<compile_context>
chip_gen: v5e
topology: v5e:2x2
jax: 0.10.0
libtpu: 0.0.40
codegen_flags: <defaults>
</compile_context>

<pallas_src>
import functools

import jax
import jax.numpy as jnp
import numpy as np
from jax import lax
from jax.experimental import pallas as pl
from jax.experimental.pallas import tpu as pltpu

# ----------------------------- config ("args") --------------------------------
VGG_LAYER = 5          # layers 0..4 of torchvision VGG16 features
IMAGE_SIZE = 16        # args.image_size  (nearest-resize target)
L1_LAMBDA = 1.0
L2_LAMBDA = 10.0
VGG_LAMBDA = 0.5
# vgg_loss_type == 'L2'  -> F.mse_loss on the feature maps

CF = 128               # feature lane width (64 real conv channels zero-padded to 128)

_PP_MEAN = np.array([0.485, 0.456, 0.406], np.float32)
_PP_STD = np.array([0.229, 0.224, 0.225], np.float32)


# ------------------------------ fused Pallas kernel ----------------------------
def _build_fused_kernel(g, mp, wp, offsets):
    """g: guard rows; mp: padded-row positions per pair (2*(H+2)*(W+2)); wp: W+2;
    offsets: the 9 static row offsets of conv2's 3x3 taps."""
    half = mp // 2

    def kernel(xr_ref, gr_ref, col_ref, w1_ref, b1_ref, w2_ref, b2_ref,
               int_ref, pool_ref, out_ref, buf1_ref, buf2_ref):
        # ---- raw-pixel L1 / L2 partial sums for this (x_i, gt_i) pair ----
        dr = xr_ref[...] - gr_ref[...]
        l1s = jnp.sum(jnp.abs(dr), keepdims=True)            # (1, 1)
        l2s = jnp.sum(dr * dr, keepdims=True)                 # (1, 1)

        # ---- zero ONLY the guard bands (interior is overwritten before it is read;
        #      guards must be 0 so border-row taps never see stale-VMEM garbage) ----
        zg1 = jnp.zeros((g, CF), buf1_ref.dtype)
        zg2 = jnp.zeros((g, CF), buf2_ref.dtype)
        buf1_ref[0:g, :] = zg1
        buf1_ref[g + mp:g + mp + g, :] = zg1
        buf2_ref[0:g, :] = zg2
        buf2_ref[g + mp:g + mp + g, :] = zg2

        interior = int_ref[...]                                # (mp, 1): 1 on real pixels

        # ---- conv1 (3->64): single K=128 im2col matmul + bias + ReLU ----
        y1 = jnp.dot(col_ref[...], w1_ref[...], preferred_element_type=jnp.float32)
        y1 = jnp.maximum(y1 + b1_ref[...], 0.0) * interior
        buf1_ref[g:g + mp, :] = y1.astype(buf1_ref.dtype)      # one bf16 store

        # ---- conv2 (64->64): 9 shifted-window taps on bf16 buf1, f32 MXU accumulation ----
        # TODO(synk): on v7x the per-tap f32 adds could be folded into the MXU result
        #             buffer (MRB) via pltpu.matmul_push_rhs/matmul_acc_lhs/matmul_pop.
        acc = None
        for t, off in enumerate(offsets):
            a = buf1_ref[g + off:g + off + mp, :]              # bf16, no per-tap cast
            p = jnp.dot(a, w2_ref[t], preferred_element_type=jnp.float32)
            acc = p if acc is None else acc + p
        y2 = jnp.maximum(acc + b2_ref[...], 0.0) * interior
        buf2_ref[g:g + mp, :] = y2

        # ---- 2x2 / stride-2 maxpool on VMEM-resident y2 (shifted windows, per image) ----
        def pooled_half(base):
            q00 = buf2_ref[base:base + half, :]
            q01 = buf2_ref[base + 1:base + 1 + half, :]
            q10 = buf2_ref[base + wp:base + wp + half, :]
            q11 = buf2_ref[base + wp + 1:base + wp + 1 + half, :]
            return jnp.maximum(jnp.maximum(q00, q01), jnp.maximum(q10, q11))

        # ---- feature MSE partial sum: first half = x image, second half = gt image ----
        fd = pooled_half(g) - pooled_half(g + half)
        vggs = jnp.sum(fd * fd * pool_ref[...], keepdims=True)

        # ---- single lane-dense (8,128) output block; sums at row 0, lanes 0..2 ----
        row = lax.broadcasted_iota(jnp.int32, out_ref.shape, 0)
        lane = lax.broadcasted_iota(jnp.int32, out_ref.shape, 1)
        out_ref[...] = (jnp.where((row == 0) & (lane == 0), l1s, 0.0)
                        + jnp.where((row == 0) & (lane == 1), l2s, 0.0)
                        + jnp.where((row == 0) & (lane == 2), vggs, 0.0))

    return kernel


# --------------------------------- JAX glue ------------------------------------
def preprocess_nchw(x):
    # x in [-1, 1] -> [0, 1] -> ImageNet-normalize (per channel, NCHW)
    mean = jnp.asarray(_PP_MEAN).reshape(1, 3, 1, 1)
    std = jnp.asarray(_PP_STD).reshape(1, 3, 1, 1)
    return ((x * 0.5 + 0.5) - mean) / std


def nearest_resize_nchw(x, size):
    # F.interpolate(mode='nearest'): src = floor(dst * in / out)
    _, _, H, W = x.shape
    hi = (jnp.arange(size) * H // size).astype(jnp.int32)
    wi = (jnp.arange(size) * W // size).astype(jnp.int32)
    return x[:, :, hi, :][:, :, :, wi]


def _conv_taps_matrix(w_oihw):
    # (Cout, Cin, 3, 3) -> (9, CF, CF) bf16, tap order (dy, dx)
    cout, cin, kh, kw = w_oihw.shape
    taps = []
    for dy in range(kh):
        for dx in range(kw):
            t = w_oihw[:, :, dy, dx].T                          # (Cin, Cout)
            t = jnp.pad(t, ((0, CF - cin), (0, CF - cout)))
            taps.append(t)
    return jnp.stack(taps, axis=0).astype(jnp.bfloat16)


def _build_masks(h, w):
    hp, wp = h + 2, w + 2
    r = np.arange(hp)[:, None]
    c = np.arange(wp)[None, :]
    inter = (r >= 1) & (r <= h) & (c >= 1) & (c <= w)
    pool = (r % 2 == 1) & (r < h) & (c % 2 == 1) & (c < w)
    interior = np.tile(inter.reshape(-1), 2).astype(np.float32).reshape(-1, 1)   # per pair
    poolm = pool.reshape(-1).astype(np.float32).reshape(-1, 1)                   # per image
    return jnp.asarray(interior), jnp.asarray(poolm)


def combination_loss(x, gt, w1, b1, w2, b2, *,
                     image_size=IMAGE_SIZE,
                     l1_lambda=L1_LAMBDA, l2_lambda=L2_LAMBDA, vgg_lambda=VGG_LAMBDA):
    n = x.shape[0]
    assert gt.shape == x.shape and image_size % 2 == 0
    h = w = image_size
    hp, wp = h + 2, w + 2
    rows_img = hp * wp
    mp = 2 * rows_img                               # rows per (x_i, gt_i) pair
    # guard rows must cover the max tap / pool reach (wp+1); round up to bf16 sublane pack
    g = -(-(wp + 1) // 16) * 16
    assert g >= wp + 1
    offsets = tuple((dy - 1) * wp + (dx - 1) for dy in range(3) for dx in range(3))

    # ---- preprocess + nearest resize (torch semantics), x & gt batched together ----
    pre = nearest_resize_nchw(preprocess_nchw(jnp.concatenate([x, gt], axis=0)), image_size)
    pre = jnp.transpose(pre, (0, 2, 3, 1))                                  # (2N, H, W, 3)

    # ---- conv1 im2col built with cheap XLA shifts (27 neighborhood channels on lanes) ----
    p2 = jnp.pad(pre, ((0, 0), (2, 2), (2, 2), (0, 0)))
    cols = [p2[:, dy:dy + hp, dx:dx + wp, :] for dy in range(3) for dx in range(3)]
    col = jnp.concatenate(cols, axis=-1)                                    # (2N, hp, wp, 27)
    col = jnp.pad(col, ((0, 0), (0, 0), (0, 0), (0, CF - col.shape[-1])))
    col = (col.reshape(2, n, hp, wp, CF).transpose(1, 0, 2, 3, 4)
              .reshape(n, mp, CF).astype(jnp.bfloat16))                     # per pair, bf16 once

    # ---- weights -> matmul operands (bf16), biases padded to 128 lanes ----
    w1m = jnp.transpose(w1, (2, 3, 1, 0)).reshape(9 * w1.shape[1], w1.shape[0])
    w1m = jnp.pad(w1m, ((0, CF - w1m.shape[0]), (0, CF - w1m.shape[1]))).astype(jnp.bfloat16)
    w2t = _conv_taps_matrix(w2)                                             # (9, 128, 128)
    b1p = jnp.pad(b1, (0, CF - b1.shape[0])).reshape(1, CF).astype(jnp.float32)
    b2p = jnp.pad(b2, (0, CF - b2.shape[0])).reshape(1, CF).astype(jnp.float32)

    # ---- static masks (compile-time constants) ----
    interior, poolm = _build_masks(h, w)

    # ---- raw pixels for L1/L2, lane-dense per pair ----
    def lanes(a):
        f = a.reshape(n, -1).astype(jnp.float32)
        padw = (-f.shape[1]) % 128
        if padw:
            f = jnp.pad(f, ((0, 0), (0, padw)))
        return f.reshape(n, -1, 128)
    xr, gr = lanes(x), lanes(gt)
    rows_raw = xr.shape[1]

    kernel = _build_fused_kernel(g, mp, wp, offsets)
    buf_rows = 2 * g + mp
    # VMEM budget derived from the actual buffers (x2 for double buffering, + slack)
    est = (2 * mp * CF * 2 + 4 * rows_raw * 128 * 4
           + 10 * CF * CF * 2 + 2 * CF * 4
           + (mp + rows_img) * 128 * 4 + 8 * CF * 4
           + buf_rows * CF * (2 + 4))
    vmem_limit = int(min(64 * 1024 * 1024, 2 * est + (4 << 20)))

    grid_spec = pltpu.PrefetchScalarGridSpec(
        num_scalar_prefetch=0,
        grid=(n,),
        in_specs=[
            pl.BlockSpec((None, rows_raw, 128), lambda i: (i, 0, 0)),   # x raw pixels
            pl.BlockSpec((None, rows_raw, 128), lambda i: (i, 0, 0)),   # gt raw pixels
            pl.BlockSpec((None, mp, CF), lambda i: (i, 0, 0)),          # conv1 im2col (bf16)
            pl.BlockSpec((CF, CF), lambda i: (0, 0)),                   # w1 (im2col packed)
            pl.BlockSpec((1, CF), lambda i: (0, 0)),                    # b1
            pl.BlockSpec((9, CF, CF), lambda i: (0, 0, 0)),             # w2 taps
            pl.BlockSpec((1, CF), lambda i: (0, 0)),                    # b2
            pl.BlockSpec((mp, 1), lambda i: (0, 0)),                    # interior mask
            pl.BlockSpec((rows_img, 1), lambda i: (0, 0)),              # pool mask
        ],
        out_specs=pl.BlockSpec((None, 8, CF), lambda i: (i, 0, 0)),
        scratch_shapes=[pltpu.VMEM((buf_rows, CF), jnp.bfloat16),       # conv1 activations
                        pltpu.VMEM((buf_rows, CF), jnp.float32)],       # conv2 activations
    )
    out = pl.pallas_call(
        kernel,
        out_shape=jax.ShapeDtypeStruct((n, 8, CF), jnp.float32),
        grid_spec=grid_spec,
        compiler_params=pltpu.CompilerParams(
            dimension_semantics=("parallel",),      # v7x: pairs split across TensorCores
            vmem_limit_bytes=vmem_limit),
    )(xr, gr, col, w1m, b1p, w2t, b2p, interior, poolm)

    totals = jnp.sum(out, axis=(0, 1))              # rows 1..7 and lanes 3..127 are zero
    n_pix = x.size
    n_feat = n * w2.shape[0] * (h // 2) * (w // 2)  # real feature count after pooling
    l1 = totals[0] / n_pix                          # nn.L1Loss()  (mean)
    l2 = totals[1] / n_pix                          # nn.MSELoss() (mean)
    vgg = (totals[2] / n_feat) * 0.001              # VGGLoss: mse * 0.001
    return l1_lambda * l1 + l2_lambda * l2 + vgg_lambda * vgg


# ------------------------- pure-JAX (XLA) reference ----------------------------
def _reference_loss(x, gt, w1, b1, w2, b2, *, image_size,
                    l1_lambda, l2_lambda, vgg_lambda):
    l1 = jnp.mean(jnp.abs(x - gt))
    l2 = jnp.mean((x - gt) ** 2)

    def feats(img):
        p = nearest_resize_nchw(preprocess_nchw(img), image_size)
        y = lax.conv_general_dilated(p, w1, (1, 1), ((1, 1), (1, 1)),
                                     dimension_numbers=('NCHW', 'OIHW', 'NCHW'))
        y = jnp.maximum(y + b1[None, :, None, None], 0.0)
        y = lax.conv_general_dilated(y, w2, (1, 1), ((1, 1), (1, 1)),
                                     dimension_numbers=('NCHW', 'OIHW', 'NCHW'))
        y = jnp.maximum(y + b2[None, :, None, None], 0.0)
        return lax.reduce_window(y, -jnp.inf, lax.max, (1, 1, 2, 2), (1, 1, 2, 2), 'VALID')

    fx, fg = feats(x), feats(gt)
    vgg = jnp.mean((fx - fg) ** 2) * 0.001
    return l1_lambda * l1 + l2_lambda * l2 + vgg_lambda * vgg


# ----------------------------------- main ---------------------------------------
if __name__ == "__main__":
    key = jax.random.PRNGKey(0)
    k_x, k_gt, k_w1, k_b1, k_w2, k_b2 = jax.random.split(key, 6)

    # inputs in [-1, 1], NCHW
    x = jax.random.uniform(k_x, (2, 3, IMAGE_SIZE, IMAGE_SIZE), jnp.float32, -1.0, 1.0)
    gt = jax.random.uniform(k_gt, (2, 3, IMAGE_SIZE, IMAGE_SIZE), jnp.float32, -1.0, 1.0)

    # deterministic "VGG" parameters (shapes of vgg16.features[0] and [2])
    w1 = jax.random.normal(k_w1, (64, 3, 3, 3), jnp.float32) * 0.1
    b1 = jax.random.normal(k_b1, (64,), jnp.float32) * 0.01
    w2 = jax.random.normal(k_w2, (64, 64, 3, 3), jnp.float32) * 0.05
    b2 = jax.random.normal(k_b2, (64,), jnp.float32) * 0.01

    loss_fn = jax.jit(functools.partial(combination_loss, image_size=IMAGE_SIZE))
    ref_fn = jax.jit(functools.partial(_reference_loss, image_size=IMAGE_SIZE,
                                       l1_lambda=L1_LAMBDA, l2_lambda=L2_LAMBDA,
                                       vgg_lambda=VGG_LAMBDA))

    loss = jax.block_until_ready(loss_fn(x, gt, w1, b1, w2, b2))
    ref = jax.block_until_ready(ref_fn(x, gt, w1, b1, w2, b2))

    assert jnp.isfinite(loss)
    assert abs(float(loss) - float(ref)) <= 2e-3 * max(1.0, abs(float(ref))), (loss, ref)
    print("KERNEL_OK")
</pallas_src>

<mosaic_0001>
module attributes {stable_mosaic.version = 11 : i64} {
  func.func @kernel(%arg0: i32, %arg1: memref<1x6x128xf32, #tpu.memory_space<vmem>>, %arg2: memref<1x6x128xf32, #tpu.memory_space<vmem>>, %arg3: memref<1x648x128xbf16, #tpu.memory_space<vmem>>, %arg4: memref<128x128xbf16, #tpu.memory_space<vmem>>, %arg5: memref<1x128xf32, #tpu.memory_space<vmem>>, %arg6: memref<9x128x128xbf16, #tpu.memory_space<vmem>>, %arg7: memref<1x128xf32, #tpu.memory_space<vmem>>, %arg8: memref<648x1xf32, #tpu.memory_space<vmem>>, %arg9: memref<324x1xf32, #tpu.memory_space<vmem>>, %arg10: memref<1x8x128xf32, #tpu.memory_space<vmem>>, %arg11: memref<712x128xbf16, #tpu.memory_space<vmem>>, %arg12: memref<712x128xf32, #tpu.memory_space<vmem>>) attributes {dimension_semantics = [#tpu.dimension_semantics<parallel>], iteration_bounds = array<i64: 2>, scalar_prefetch = 0 : i64, scratch_operands = 2 : i64, tpu.core_type = #tpu.core_type<tc>, window_params = [{transform_indices = @transform_0, window_bounds = array<i64: 1, 6, 128>}, {transform_indices = @transform_1, window_bounds = array<i64: 1, 6, 128>}, {transform_indices = @transform_2, window_bounds = array<i64: 1, 648, 128>}, {pipeline_mode = #tpu.pipeline_mode<synchronous>, transform_indices = @transform_3, window_bounds = array<i64: 128, 128>}, {pipeline_mode = #tpu.pipeline_mode<synchronous>, transform_indices = @transform_4, window_bounds = array<i64: 1, 128>}, {pipeline_mode = #tpu.pipeline_mode<synchronous>, transform_indices = @transform_5, window_bounds = array<i64: 9, 128, 128>}, {pipeline_mode = #tpu.pipeline_mode<synchronous>, transform_indices = @transform_6, window_bounds = array<i64: 1, 128>}, {pipeline_mode = #tpu.pipeline_mode<synchronous>, transform_indices = @transform_7, window_bounds = array<i64: 648, 1>}, {pipeline_mode = #tpu.pipeline_mode<synchronous>, transform_indices = @transform_8, window_bounds = array<i64: 324, 1>}, {transform_indices = @transform_9, window_bounds = array<i64: 1, 8, 128>}]} {
    %c0 = arith.constant 0 : index
    %c0_0 = arith.constant 0 : index
    %c0_1 = arith.constant 0 : index
    %0 = vector.load %arg1[%c0, %c0_0, %c0_1] : memref<1x6x128xf32, #tpu.memory_space<vmem>>, vector<1x6x128xf32>
    %1 = vector.shape_cast %0 : vector<1x6x128xf32> to vector<6x128xf32>
    %c0_2 = arith.constant 0 : index
    %c0_3 = arith.constant 0 : index
    %c0_4 = arith.constant 0 : index
    %2 = vector.load %arg2[%c0_2, %c0_3, %c0_4] : memref<1x6x128xf32, #tpu.memory_space<vmem>>, vector<1x6x128xf32>
    %3 = vector.shape_cast %2 : vector<1x6x128xf32> to vector<6x128xf32>
    %4 = arith.subf %1, %3 : vector<6x128xf32>
    %5 = math.absf %4 : vector<6x128xf32>
    %6 = vector.shape_cast %5 : vector<6x128xf32> to vector<1x6x128xf32>
    %cst = arith.constant dense<0.000000e+00> : vector<1xf32>
    %7 = vector.multi_reduction <add>, %6, %cst [1, 2] : vector<1x6x128xf32> to vector<1xf32>
    %8 = vector.shape_cast %7 : vector<1xf32> to vector<1x1x1xf32>
    %9 = vector.extract %8[0, 0, 0] : f32 from vector<1x1x1xf32>
    %10 = vector.broadcast %9 : f32 to vector<1x1xf32>
    %11 = arith.mulf %4, %4 : vector<6x128xf32>
    %12 = vector.shape_cast %11 : vector<6x128xf32> to vector<1x6x128xf32>
    %cst_5 = arith.constant dense<0.000000e+00> : vector<1xf32>
    %13 = vector.multi_reduction <add>, %12, %cst_5 [1, 2] : vector<1x6x128xf32> to vector<1xf32>
    %14 = vector.shape_cast %13 : vector<1xf32> to vector<1x1x1xf32>
    %15 = vector.extract %14[0, 0, 0] : f32 from vector<1x1x1xf32>
    %16 = vector.broadcast %15 : f32 to vector<1x1xf32>
    %cst_6 = arith.constant 0.000000e+00 : bf16
    %17 = vector.broadcast %cst_6 : bf16 to vector<32x128xbf16>
    %cst_7 = arith.constant 0.000000e+00 : f32
    %18 = vector.broadcast %cst_7 : f32 to vector<32x128xf32>
    %c0_8 = arith.constant 0 : index
    %c0_9 = arith.constant 0 : index
    %19 = vector.load %arg11[%c0_8, %c0_9] : memref<712x128xbf16, #tpu.memory_space<vmem>>, vector<32x128xbf16>
    tpu.vector_store %arg11[%c0_8, %c0_9], %17 {strides = array<i32>} : memref<712x128xbf16, #tpu.memory_space<vmem>>, vector<32x128xbf16>,
    %c680 = arith.constant 680 : index
    %c0_10 = arith.constant 0 : index
    %20 = vector.load %arg11[%c680, %c0_10] : memref<712x128xbf16, #tpu.memory_space<vmem>>, vector<32x128xbf16>
    tpu.vector_store %arg11[%c680, %c0_10], %17 {strides = array<i32>} : memref<712x128xbf16, #tpu.memory_space<vmem>>, vector<32x128xbf16>,
    %c0_11 = arith.constant 0 : index
    %c0_12 = arith.constant 0 : index
    %21 = vector.load %arg12[%c0_11, %c0_12] : memref<712x128xf32, #tpu.memory_space<vmem>>, vector<32x128xf32>
    tpu.vector_store %arg12[%c0_11, %c0_12], %18 {strides = array<i32>} : memref<712x128xf32, #tpu.memory_space<vmem>>, vector<32x128xf32>,
    %c680_13 = arith.constant 680 : index
    %c0_14 = arith.constant 0 : index
    %22 = vector.load %arg12[%c680_13, %c0_14] : memref<712x128xf32, #tpu.memory_space<vmem>>, vector<32x128xf32>
    tpu.vector_store %arg12[%c680_13, %c0_14], %18 {strides = array<i32>} : memref<712x128xf32, #tpu.memory_space<vmem>>, vector<32x128xf32>,
    %c0_15 = arith.constant 0 : index
    %c0_16 = arith.constant 0 : index
    %23 = vector.load %arg8[%c0_15, %c0_16] : memref<648x1xf32, #tpu.memory_space<vmem>>, vector<648x1xf32>
    %c0_17 = arith.constant 0 : index
    %c0_18 = arith.constant 0 : index
    %c0_19 = arith.constant 0 : index
    %24 = vector.load %arg3[%c0_17, %c0_18, %c0_19] : memref<1x648x128xbf16, #tpu.memory_space<vmem>>, vector<1x648x128xbf16>
    %25 = vector.shape_cast %24 : vector<1x648x128xbf16> to vector<648x128xbf16>
    %c0_20 = arith.constant 0 : index
    %c0_21 = arith.constant 0 : index
    %26 = vector.load %arg4[%c0_20, %c0_21] : memref<128x128xbf16, #tpu.memory_space<vmem>>, vector<128x128xbf16>
    %cst_22 = arith.constant dense<0.000000e+00> : vector<648x128xf32>
    %27 = tpu.matmul %25, %26, %cst_22 {dimension_numbers = #tpu.dot_dimension_numbers<[1], [0], [0], [1], [0, 0, 1, 1], [], []>} : vector<648x128xbf16>, vector<128x128xbf16>, vector<648x128xf32> -> vector<648x128xf32>
    %c0_23 = arith.constant 0 : index
    %c0_24 = arith.constant 0 : index
    %28 = vector.load %arg5[%c0_23, %c0_24] : memref<1x128xf32, #tpu.memory_space<vmem>>, vector<1x128xf32>
    %29 = vector.broadcast %28 : vector<1x128xf32> to vector<648x128xf32>
    %30 = arith.addf %27, %29 : vector<648x128xf32>
    %cst_25 = arith.constant 0.000000e+00 : f32
    %31 = vector.broadcast %cst_25 : f32 to vector<648x128xf32>
    %32 = arith.maximumf %30, %31 : vector<648x128xf32>
    %33 = vector.broadcast %23 : vector<648x1xf32> to vector<648x128xf32>
    %34 = arith.mulf %32, %33 : vector<648x128xf32>
    %35 = arith.truncf %34 : vector<648x128xf32> to vector<648x128xbf16>
    %c32 = arith.constant 32 : index
    %c0_26 = arith.constant 0 : index
    %36 = vector.load %arg11[%c32, %c0_26] : memref<712x128xbf16, #tpu.memory_space<vmem>>, vector<648x128xbf16>
    tpu.vector_store %arg11[%c32, %c0_26], %35 {strides = array<i32>} : memref<712x128xbf16, #tpu.memory_space<vmem>>, vector<648x128xbf16>,
    %c13 = arith.constant 13 : index
    %c0_27 = arith.constant 0 : index
    %37 = vector.load %arg11[%c13, %c0_27] : memref<712x128xbf16, #tpu.memory_space<vmem>>, vector<648x128xbf16>
    %c0_28 = arith.constant 0 : index
    %c0_29 = arith.constant 0 : index
    %c0_30 = arith.constant 0 : index
    %38 = vector.load %arg6[%c0_28, %c0_29, %c0_30] : memref<9x128x128xbf16, #tpu.memory_space<vmem>>, vector<1x128x128xbf16>
    %39 = vector.shape_cast %38 : vector<1x128x128xbf16> to vector<128x128xbf16>
    %cst_31 = arith.constant dense<0.000000e+00> : vector<648x128xf32>
    %40 = tpu.matmul %37, %39, %cst_31 {dimension_numbers = #tpu.dot_dimension_numbers<[1], [0], [0], [1], [0, 0, 1, 1], [], []>} : vector<648x128xbf16>, vector<128x128xbf16>, vector<648x128xf32> -> vector<648x128xf32>
    %c14 = arith.constant 14 : index
    %c0_32 = arith.constant 0 : index
    %41 = vector.load %arg11[%c14, %c0_32] : memref<712x128xbf16, #tpu.memory_space<vmem>>, vector<648x128xbf16>
    %c1 = arith.constant 1 : index
    %c0_33 = arith.constant 0 : index
    %c0_34 = arith.constant 0 : index
    %42 = vector.load %arg6[%c1, %c0_33, %c0_34] : memref<9x128x128xbf16, #tpu.memory_space<vmem>>, vector<1x128x128xbf16>
    %43 = vector.shape_cast %42 : vector<1x128x128xbf16> to vector<128x128xbf16>
    %cst_35 = arith.constant dense<0.000000e+00> : vector<648x128xf32>
    %44 = tpu.matmul %41, %43, %cst_35 {dimension_numbers = #tpu.dot_dimension_numbers<[1], [0], [0], [1], [0, 0, 1, 1], [], []>} : vector<648x128xbf16>, vector<128x128xbf16>, vector<648x128xf32> -> vector<648x128xf32>
    %45 = arith.addf %40, %44 : vector<648x128xf32>
    %c15 = arith.constant 15 : index
    %c0_36 = arith.constant 0 : index
    %46 = vector.load %arg11[%c15, %c0_36] : memref<712x128xbf16, #tpu.memory_space<vmem>>, vector<648x128xbf16>
    %c2 = arith.constant 2 : index
    %c0_37 = arith.constant 0 : index
    %c0_38 = arith.constant 0 : index
    %47 = vector.load %arg6[%c2, %c0_37, %c0_38] : memref<9x128x128xbf16, #tpu.memory_space<vmem>>, vector<1x128x128xbf16>
    %48 = vector.shape_cast %47 : vector<1x128x128xbf16> to vector<128x128xbf16>
    %cst_39 = arith.constant dense<0.000000e+00> : vector<648x128xf32>
    %49 = tpu.matmul %46, %48, %cst_39 {dimension_numbers = #tpu.dot_dimension_numbers<[1], [0], [0], [1], [0, 0, 1, 1], [], []>} : vector<648x128xbf16>, vector<128x128xbf16>, vector<648x128xf32> -> vector<648x128xf32>
    %50 = arith.addf %45, %49 : vector<648x128xf32>
    %c31 = arith.constant 31 : index
    %c0_40 = arith.constant 0 : index
    %51 = vector.load %arg11[%c31, %c0_40] : memref<712x128xbf16, #tpu.memory_space<vmem>>, vector<648x128xbf16>
    %c3 = arith.constant 3 : index
    %c0_41 = arith.constant 0 : index
    %c0_42 = arith.constant 0 : index
    %52 = vector.load %arg6[%c3, %c0_41, %c0_42] : memref<9x128x128xbf16, #tpu.memory_space<vmem>>, vector<1x128x128xbf16>
    %53 = vector.shape_cast %52 : vector<1x128x128xbf16> to vector<128x128xbf16>
    %cst_43 = arith.constant dense<0.000000e+00> : vector<648x128xf32>
    %54 = tpu.matmul %51, %53, %cst_43 {dimension_numbers = #tpu.dot_dimension_numbers<[1], [0], [0], [1], [0, 0, 1, 1], [], []>} : vector<648x128xbf16>, vector<128x128xbf16>, vector<648x128xf32> -> vector<648x128xf32>
    %55 = arith.addf %50, %54 : vector<648x128xf32>
    %c32_44 = arith.constant 32 : index
    %c0_45 = arith.constant 0 : index
    %56 = vector.load %arg11[%c32_44, %c0_45] : memref<712x128xbf16, #tpu.memory_space<vmem>>, vector<648x128xbf16>
    %c4 = arith.constant 4 : index
    %c0_46 = arith.constant 0 : index
    %c0_47 = arith.constant 0 : index
    %57 = vector.load %arg6[%c4, %c0_46, %c0_47] : memref<9x128x128xbf16, #tpu.memory_space<vmem>>, vector<1x128x128xbf16>
    %58 = vector.shape_cast %57 : vector<1x128x128xbf16> to vector<128x128xbf16>
    %cst_48 = arith.constant dense<0.000000e+00> : vector<648x128xf32>
    %59 = tpu.matmul %56, %58, %cst_48 {dimension_numbers = #tpu.dot_dimension_numbers<[1], [0], [0], [1], [0, 0, 1, 1], [], []>} : vector<648x128xbf16>, vector<128x128xbf16>, vector<648x128xf32> -> vector<648x128xf32>
    %60 = arith.addf %55, %59 : vector<648x128xf32>
    %c33 = arith.constant 33 : index
    %c0_49 = arith.constant 0 : index
    %61 = vector.load %arg11[%c33, %c0_49] : memref<712x128xbf16, #tpu.memory_space<vmem>>, vector<648x128xbf16>
    %c5 = arith.constant 5 : index
    %c0_50 = arith.constant 0 : index
    %c0_51 = arith.constant 0 : index
    %62 = vector.load %arg6[%c5, %c0_50, %c0_51] : memref<9x128x128xbf16, #tpu.memory_space<vmem>>, vector<1x128x128xbf16>
    %63 = vector.shape_cast %62 : vector<1x128x128xbf16> to vector<128x128xbf16>
    %cst_52 = arith.constant dense<0.000000e+00> : vector<648x128xf32>
    %64 = tpu.matmul %61, %63, %cst_52 {dimension_numbers = #tpu.dot_dimension_numbers<[1], [0], [0], [1], [0, 0, 1, 1], [], []>} : vector<648x128xbf16>, vector<128x128xbf16>, vector<648x128xf32> -> vector<648x128xf32>
    %65 = arith.addf %60, %64 : vector<648x128xf32>
    %c49 = arith.constant 49 : index
    %c0_53 = arith.constant 0 : index
    %66 = vector.load %arg11[%c49, %c0_53] : memref<712x128xbf16, #tpu.memory_space<vmem>>, vector<648x128xbf16>
    %c6 = arith.constant 6 : index
    %c0_54 = arith.constant 0 : index
    %c0_55 = arith.constant 0 : index
    %67 = vector.load %arg6[%c6, %c0_54, %c0_55] : memref<9x128x128xbf16, #tpu.memory_space<vmem>>, vector<1x128x128xbf16>
    %68 = vector.shape_cast %67 : vector<1x128x128xbf16> to vector<128x128xbf16>
    %cst_56 = arith.constant dense<0.000000e+00> : vector<648x128xf32>
    %69 = tpu.matmul %66, %68, %cst_56 {dimension_numbers = #tpu.dot_dimension_numbers<[1], [0], [0], [1], [0, 0, 1, 1], [], []>} : vector<648x128xbf16>, vector<128x128xbf16>, vector<648x128xf32> -> vector<648x128xf32>
    %70 = arith.addf %65, %69 : vector<648x128xf32>
    %c50 = arith.constant 50 : index
    %c0_57 = arith.constant 0 : index
    %71 = vector.load %arg11[%c50, %c0_57] : memref<712x128xbf16, #tpu.memory_space<vmem>>, vector<648x128xbf16>
    %c7 = arith.constant 7 : index
    %c0_58 = arith.constant 0 : index
    %c0_59 = arith.constant 0 : index
    %72 = vector.load %arg6[%c7, %c0_58, %c0_59] : memref<9x128x128xbf16, #tpu.memory_space<vmem>>, vector<1x128x128xbf16>
    %73 = vector.shape_cast %72 : vector<1x128x128xbf16> to vector<128x128xbf16>
    %cst_60 = arith.constant dense<0.000000e+00> : vector<648x128xf32>
    %74 = tpu.matmul %71, %73, %cst_60 {dimension_numbers = #tpu.dot_dimension_numbers<[1], [0], [0], [1], [0, 0, 1, 1], [], []>} : vector<648x128xbf16>, vector<128x128xbf16>, vector<648x128xf32> -> vector<648x128xf32>
    %75 = arith.addf %70, %74 : vector<648x128xf32>
    %c51 = arith.constant 51 : index
    %c0_61 = arith.constant 0 : index
    %76 = vector.load %arg11[%c51, %c0_61] : memref<712x128xbf16, #tpu.memory_space<vmem>>, vector<648x128xbf16>
    %c8 = arith.constant 8 : index
    %c0_62 = arith.constant 0 : index
    %c0_63 = arith.constant 0 : index
    %77 = vector.load %arg6[%c8, %c0_62, %c0_63] : memref<9x128x128xbf16, #tpu.memory_space<vmem>>, vector<1x128x128xbf16>
    %78 = vector.shape_cast %77 : vector<1x128x128xbf16> to vector<128x128xbf16>
    %cst_64 = arith.constant dense<0.000000e+00> : vector<648x128xf32>
    %79 = tpu.matmul %76, %78, %cst_64 {dimension_numbers = #tpu.dot_dimension_numbers<[1], [0], [0], [1], [0, 0, 1, 1], [], []>} : vector<648x128xbf16>, vector<128x128xbf16>, vector<648x128xf32> -> vector<648x128xf32>
    %80 = arith.addf %75, %79 : vector<648x128xf32>
    %c0_65 = arith.constant 0 : index
    %c0_66 = arith.constant 0 : index
    %81 = vector.load %arg7[%c0_65, %c0_66] : memref<1x128xf32, #tpu.memory_space<vmem>>, vector<1x128xf32>
    %82 = vector.broadcast %81 : vector<1x128xf32> to vector<648x128xf32>
    %83 = arith.addf %80, %82 : vector<648x128xf32>
    %cst_67 = arith.constant 0.000000e+00 : f32
    %84 = vector.broadcast %cst_67 : f32 to vector<648x128xf32>
    %85 = arith.maximumf %83, %84 : vector<648x128xf32>
    %86 = vector.broadcast %23 : vector<648x1xf32> to vector<648x128xf32>
    %87 = arith.mulf %85, %86 : vector<648x128xf32>
    %c32_68 = arith.constant 32 : index
    %c0_69 = arith.constant 0 : index
    %88 = vector.load %arg12[%c32_68, %c0_69] : memref<712x128xf32, #tpu.memory_space<vmem>>, vector<648x128xf32>
    tpu.vector_store %arg12[%c32_68, %c0_69], %87 {strides = array<i32>} : memref<712x128xf32, #tpu.memory_space<vmem>>, vector<648x128xf32>,
    %c32_70 = arith.constant 32 : index
    %c0_71 = arith.constant 0 : index
    %89 = vector.load %arg12[%c32_70, %c0_71] : memref<712x128xf32, #tpu.memory_space<vmem>>, vector<324x128xf32>
    %c33_72 = arith.constant 33 : index
    %c0_73 = arith.constant 0 : index
    %90 = vector.load %arg12[%c33_72, %c0_73] : memref<712x128xf32, #tpu.memory_space<vmem>>, vector<324x128xf32>
    %c50_74 = arith.constant 50 : index
    %c0_75 = arith.constant 0 : index
    %91 = vector.load %arg12[%c50_74, %c0_75] : memref<712x128xf32, #tpu.memory_space<vmem>>, vector<324x128xf32>
    %c51_76 = arith.constant 51 : index
    %c0_77 = arith.constant 0 : index
    %92 = vector.load %arg12[%c51_76, %c0_77] : memref<712x128xf32, #tpu.memory_space<vmem>>, vector<324x128xf32>
    %93 = arith.maximumf %89, %90 : vector<324x128xf32>
    %94 = arith.maximumf %91, %92 : vector<324x128xf32>
    %95 = arith.maximumf %93, %94 : vector<324x128xf32>
    %c356 = arith.constant 356 : index
    %c0_78 = arith.constant 0 : index
    %96 = vector.load %arg12[%c356, %c0_78] : memref<712x128xf32, #tpu.memory_space<vmem>>, vector<324x128xf32>
    %c357 = arith.constant 357 : index
    %c0_79 = arith.constant 0 : index
    %97 = vector.load %arg12[%c357, %c0_79] : memref<712x128xf32, #tpu.memory_space<vmem>>, vector<324x128xf32>
    %c374 = arith.constant 374 : index
    %c0_80 = arith.constant 0 : index
    %98 = vector.load %arg12[%c374, %c0_80] : memref<712x128xf32, #tpu.memory_space<vmem>>, vector<324x128xf32>
    %c375 = arith.constant 375 : index
    %c0_81 = arith.constant 0 : index
    %99 = vector.load %arg12[%c375, %c0_81] : memref<712x128xf32, #tpu.memory_space<vmem>>, vector<324x128xf32>
    %100 = arith.maximumf %96, %97 : vector<324x128xf32>
    %101 = arith.maximumf %98, %99 : vector<324x128xf32>
    %102 = arith.maximumf %100, %101 : vector<324x128xf32>
    %103 = arith.subf %95, %102 : vector<324x128xf32>
    %104 = arith.mulf %103, %103 : vector<324x128xf32>
    %c0_82 = arith.constant 0 : index
    %c0_83 = arith.constant 0 : index
    %105 = vector.load %arg9[%c0_82, %c0_83] : memref<324x1xf32, #tpu.memory_space<vmem>>, vector<324x1xf32>
    %106 = vector.broadcast %105 : vector<324x1xf32> to vector<324x128xf32>
    %107 = arith.mulf %104, %106 : vector<324x128xf32>
    %108 = vector.shape_cast %107 : vector<324x128xf32> to vector<1x324x128xf32>
    %cst_84 = arith.constant dense<0.000000e+00> : vector<1xf32>
    %109 = vector.multi_reduction <add>, %108, %cst_84 [1, 2] : vector<1x324x128xf32> to vector<1xf32>
    %110 = vector.shape_cast %109 : vector<1xf32> to vector<1x1x1xf32>
    %111 = vector.extract %110[0, 0, 0] : f32 from vector<1x1x1xf32>
    %112 = vector.broadcast %111 : f32 to vector<1x1xf32>
    %113 = tpu.iota {dimensions = array<i32: 0>} : vector<8x128xi32>
    %114 = tpu.iota {dimensions = array<i32: 1>} : vector<8x128xi32>
    %c0_i32 = arith.constant 0 : i32
    %115 = vector.broadcast %c0_i32 : i32 to vector<8x128xi32>
    %116 = arith.cmpi eq, %113, %115 : vector<8x128xi32>
    %c0_i32_85 = arith.constant 0 : i32
    %117 = vector.broadcast %c0_i32_85 : i32 to vector<8x128xi32>
    %118 = arith.cmpi eq, %114, %117 : vector<8x128xi32>
    %119 = arith.andi %116, %118 : vector<8x128xi1>
    %cst_86 = arith.constant 0.000000e+00 : f32
    %120 = vector.shape_cast %10 : vector<1x1xf32> to vector<1x1xf32>
    %121 = vector.broadcast %120 : vector<1x1xf32> to vector<8x128xf32>
    %122 = vector.broadcast %cst_86 : f32 to vector<8x128xf32>
    %123 = arith.select %119, %121, %122 : vector<8x128xi1>, vector<8x128xf32>
    %c0_i32_87 = arith.constant 0 : i32
    %124 = vector.broadcast %c0_i32_87 : i32 to vector<8x128xi32>
    %125 = arith.cmpi eq, %113, %124 : vector<8x128xi32>
    %c1_i32 = arith.constant 1 : i32
    %126 = vector.broadcast %c1_i32 : i32 to vector<8x128xi32>
    %127 = arith.cmpi eq, %114, %126 : vector<8x128xi32>
    %128 = arith.andi %125, %127 : vector<8x128xi1>
    %cst_88 = arith.constant 0.000000e+00 : f32
    %129 = vector.shape_cast %16 : vector<1x1xf32> to vector<1x1xf32>
    %130 = vector.broadcast %129 : vector<1x1xf32> to vector<8x128xf32>
    %131 = vector.broadcast %cst_88 : f32 to vector<8x128xf32>
    %132 = arith.select %128, %130, %131 : vector<8x128xi1>, vector<8x128xf32>
    %133 = arith.addf %123, %132 : vector<8x128xf32>
    %c0_i32_89 = arith.constant 0 : i32
    %134 = vector.broadcast %c0_i32_89 : i32 to vector<8x128xi32>
    %135 = arith.cmpi eq, %113, %134 : vector<8x128xi32>
    %c2_i32 = arith.constant 2 : i32
    %136 = vector.broadcast %c2_i32 : i32 to vector<8x128xi32>
    %137 = arith.cmpi eq, %114, %136 : vector<8x128xi32>
    %138 = arith.andi %135, %137 : vector<8x128xi1>
    %cst_90 = arith.constant 0.000000e+00 : f32
    %139 = vector.shape_cast %112 : vector<1x1xf32> to vector<1x1xf32>
    %140 = vector.broadcast %139 : vector<1x1xf32> to vector<8x128xf32>
    %141 = vector.broadcast %cst_90 : f32 to vector<8x128xf32>
    %142 = arith.select %138, %140, %141 : vector<8x128xi1>, vector<8x128xf32>
    %143 = arith.addf %133, %142 : vector<8x128xf32>
    %c0_91 = arith.constant 0 : index
    %c0_92 = arith.constant 0 : index
    %c0_93 = arith.constant 0 : index
    %144 = vector.load %arg10[%c0_91, %c0_92, %c0_93] : memref<1x8x128xf32, #tpu.memory_space<vmem>>, vector<1x8x128xf32>
    %145 = vector.shape_cast %144 : vector<1x8x128xf32> to vector<8x128xf32>
    %146 = vector.shape_cast %143 : vector<8x128xf32> to vector<1x8x128xf32>
    tpu.vector_store %arg10[%c0_91, %c0_92, %c0_93], %146 {strides = array<i32>} : memref<1x8x128xf32, #tpu.memory_space<vmem>>, vector<1x8x128xf32>,
    return
  }
  func.func @transform_0(%arg0: i32) -> (i32, i32, i32) {
    %c0_i32 = arith.constant 0 : i32
    %c0_i32_0 = arith.constant 0 : i32
    %c0_i32_1 = arith.constant 0 : i32
    return %arg0, %c0_i32, %c0_i32_0 : i32, i32, i32
  }
  func.func @transform_1(%arg0: i32) -> (i32, i32, i32) {
    %c0_i32 = arith.constant 0 : i32
    %c0_i32_0 = arith.constant 0 : i32
    %c0_i32_1 = arith.constant 0 : i32
    return %arg0, %c0_i32, %c0_i32_0 : i32, i32, i32
  }
  func.func @transform_2(%arg0: i32) -> (i32, i32, i32) {
    %c0_i32 = arith.constant 0 : i32
    %c0_i32_0 = arith.constant 0 : i32
    %c0_i32_1 = arith.constant 0 : i32
    return %arg0, %c0_i32, %c0_i32_0 : i32, i32, i32
  }
  func.func @transform_3(%arg0: i32) -> (i32, i32) {
    %c0_i32 = arith.constant 0 : i32
    %c0_i32_0 = arith.constant 0 : i32
    %c0_i32_1 = arith.constant 0 : i32
    return %c0_i32, %c0_i32_0 : i32, i32
  }
  func.func @transform_4(%arg0: i32) -> (i32, i32) {
    %c0_i32 = arith.constant 0 : i32
    %c0_i32_0 = arith.constant 0 : i32
    %c0_i32_1 = arith.constant 0 : i32
    return %c0_i32, %c0_i32_0 : i32, i32
  }
  func.func @transform_5(%arg0: i32) -> (i32, i32, i32) {
    %c0_i32 = arith.constant 0 : i32
    %c0_i32_0 = arith.constant 0 : i32
    %c0_i32_1 = arith.constant 0 : i32
    %c0_i32_2 = arith.constant 0 : i32
    return %c0_i32, %c0_i32_0, %c0_i32_1 : i32, i32, i32
  }
  func.func @transform_6(%arg0: i32) -> (i32, i32) {
    %c0_i32 = arith.constant 0 : i32
    %c0_i32_0 = arith.constant 0 : i32
    %c0_i32_1 = arith.constant 0 : i32
    return %c0_i32, %c0_i32_0 : i32, i32
  }
  func.func @transform_7(%arg0: i32) -> (i32, i32) {
    %c0_i32 = arith.constant 0 : i32
    %c0_i32_0 = arith.constant 0 : i32
    %c0_i32_1 = arith.constant 0 : i32
    return %c0_i32, %c0_i32_0 : i32, i32
  }
  func.func @transform_8(%arg0: i32) -> (i32, i32) {
    %c0_i32 = arith.constant 0 : i32
    %c0_i32_0 = arith.constant 0 : i32
    %c0_i32_1 = arith.constant 0 : i32
    return %c0_i32, %c0_i32_0 : i32, i32
  }
  func.func @transform_9(%arg0: i32) -> (i32, i32, i32) {
    %c0_i32 = arith.constant 0 : i32
    %c0_i32_0 = arith.constant 0 : i32
    %c0_i32_1 = arith.constant 0 : i32
    return %arg0, %c0_i32, %c0_i32_0 : i32, i32, i32
  }
}

</mosaic_0001>

<llo_original>
// kernel: combination_loss.1
$region0: #{combination_loss.1}
  #allocation0 [shape = 'u32[]', space=smem, size = 0x4, offset = 0x4, fixed_abs, tag = 'smem constant byte address 0x4 - core index']
  #allocation1 [shape = 'u32[72,128]{1,0:T(1,128)}', space=vmem, size = 0x9000, scoped, tag = 'internal scratch']
  #allocation2 [shape = 'bf16[712,128]{1,0:T(8,128)(2,1)}', space=vmem, size = 0x2c800, scoped, tag = 'scratch operand']
  #allocation3 [shape = 'f32[712,128]{1,0:T(8,128)}', space=vmem, size = 0x59000, scoped, tag = 'scratch operand']
  %s0 = inlined_call_operand.vmem [shape: f32[2,6,128], index: 0, kind: input, shape index: {}]
  %s1 = inlined_call_operand.vmem [shape: f32[2,6,128], index: 1, kind: input, shape index: {}]
  %s2 = inlined_call_operand.vmem [shape: bf16[2,648,128], index: 2, kind: input, shape index: {}]
  %s3 = inlined_call_operand.vmem [shape: bf16[128,128], index: 3, kind: input, shape index: {}]
  %s4 = inlined_call_operand.vmem [shape: f32[1,128], index: 4, kind: input, shape index: {}]
  %s5 = inlined_call_operand.vmem [shape: bf16[9,128,128], index: 5, kind: input, shape index: {}]
  %s6 = inlined_call_operand.vmem [shape: f32[1,128], index: 6, kind: input, shape index: {}]
  %s7 = inlined_call_operand.vmem [shape: f32[648,1], index: 7, kind: input, shape index: {}]
  %s8 = inlined_call_operand.vmem [shape: f32[324,1], index: 8, kind: input, shape index: {}]
  %s9 = inlined_call_operand.vmem [shape: f32[2,8,128], index: 9, kind: output, shape index: {}]
  %s10 = sld [smem:[#allocation0]]
  $region69: #{combination_loss.1} parent=0
    _
  %s12 = ssub.s32 1, %s10
  %s13 = scalar_select 0, %s12, %s10
  loop: start=0, step=1, limit=4
  $region2: #{combination_loss.1} parent=0 // loop_pre_header
    _
  $region3: #{combination_loss.1} parent=0 // loop_header
    %s15 = sphi 0, %s19
    %p16 = scmp.ge.s32.totalorder %s15, 4
    %s25 = sphi 0, %s27
    %s28 = sphi 0, %s25
    %s29 = sphi 0, %s28
    %s45 = sphi 0, %s29
    %s51 = sphi 0, %s53
    %s54 = sphi 0, %s51
    %s55 = sphi 0, %s54
    %s71 = sphi 0, %s55
    %s77 = sphi 0, %s79
    %s80 = sphi 0, %s77
    %s81 = sphi 0, %s80
    %s97 = sphi 0, %s81
    %s101 = sphi 0, %s101
    %s103 = sphi 0, %s101
    %s104 = sphi 0, %s103
    %s118 = sphi 0, %s104
    %s122 = sphi 0, %s122
    %s124 = sphi 0, %s122
    %s125 = sphi 0, %s124
    %s139 = sphi 0, %s125
    %s143 = sphi 0, %s143
    %s145 = sphi 0, %s143
    %s146 = sphi 0, %s145
    %s160 = sphi 0, %s146
    %s164 = sphi 0, %s164
    %s166 = sphi 0, %s164
    %s167 = sphi 0, %s166
    %s181 = sphi 0, %s167
    %s185 = sphi 0, %s185
    %s187 = sphi 0, %s185
    %s188 = sphi 0, %s187
    %s202 = sphi 0, %s188
    %s206 = sphi 0, %s206
    %s208 = sphi 0, %s206
    %s209 = sphi 0, %s208
    %s223 = sphi 0, %s209
    %s229 = sphi 0, %s231
    %s232 = sphi 0, %s229
    %s233 = sphi 0, %s232
    %s249 = sphi 0, %s233
  $region4: #{combination_loss.1} parent=0 // loop_header_branch
    %18 = sbr.rel (%p16) target = $region8
  $region5: #{combination_loss.1} parent=0 // loop_body
    %s20 = ssub.s32 %s15, 1
    %s21 = ssub.s32 %s15, 2
    %s22 = sadd.s32 %s15, 1
    %s23 = ssub.s32 %s15, %s22
    %p24 = scmp.eq.s32.totalorder %s23, 0
    %s26 = sadd.s32 %s25, 1
    %s27 = scalar_select %p24, %s25, %s26
    %p30 = pneg %p24
    %p31 = scmp.eq.s32.totalorder %s15, 1
    %p32 = por %p30, %p31
    %p33 = scmp.ne.s32.totalorder %s25, %s28
    %p34 = scmp.eq.s32.totalorder %s15, 0
    %p35 = por %p33, %p34
    %p36 = scmp.ne.s32.totalorder %s25, %s28
    %p37 = scmp.eq.s32.totalorder %s20, 1
    %p38 = por %p36, %p37
    %p39 = scmp.ne.s32.totalorder %s28, %s29
    %p40 = scmp.eq.s32.totalorder %s20, 0
    %p41 = por %p39, %p40
    %p42 = scmp.ne.s32.totalorder %s28, %s29
    %p43 = scmp.eq.s32.totalorder %s21, 1
    %p44 = por %p42, %p43
    %p46 = scmp.ne.s32.totalorder %s29, %s45
    %p47 = scmp.eq.s32.totalorder %s21, 0
    %p48 = por %p46, %p47
    %s49 = ssub.s32 %s15, %s22
    %p50 = scmp.eq.s32.totalorder %s49, 0
    %s52 = sadd.s32 %s51, 1
    %s53 = scalar_select %p50, %s51, %s52
    %p56 = pneg %p50
    %p57 = scmp.eq.s32.totalorder %s15, 1
    %p58 = por %p56, %p57
    %p59 = scmp.ne.s32.totalorder %s51, %s54
    %p60 = scmp.eq.s32.totalorder %s15, 0
    %p61 = por %p59, %p60
    %p62 = scmp.ne.s32.totalorder %s51, %s54
    %p63 = scmp.eq.s32.totalorder %s20, 1
    %p64 = por %p62, %p63
    %p65 = scmp.ne.s32.totalorder %s54, %s55
    %p66 = scmp.eq.s32.totalorder %s20, 0
    %p67 = por %p65, %p66
    %p68 = scmp.ne.s32.totalorder %s54, %s55
    %p69 = scmp.eq.s32.totalorder %s21, 1
    %p70 = por %p68, %p69
    %p72 = scmp.ne.s32.totalorder %s55, %s71
    %p73 = scmp.eq.s32.totalorder %s21, 0
    %p74 = por %p72, %p73
    %s75 = ssub.s32 %s15, %s22
    %p76 = scmp.eq.s32.totalorder %s75, 0
    %s78 = sadd.s32 %s77, 1
    %s79 = scalar_select %p76, %s77, %s78
    %p82 = pneg %p76
    %p83 = scmp.eq.s32.totalorder %s15, 1
    %p84 = por %p82, %p83
    %p85 = scmp.ne.s32.totalorder %s77, %s80
    %p86 = scmp.eq.s32.totalorder %s15, 0
    %p87 = por %p85, %p86
    %p88 = scmp.ne.s32.totalorder %s77, %s80
    %p89 = scmp.eq.s32.totalorder %s20, 1
    %p90 = por %p88, %p89
    %p91 = scmp.ne.s32.totalorder %s80, %s81
    %p92 = scmp.eq.s32.totalorder %s20, 0
    %p93 = por %p91, %p92
    %p94 = scmp.ne.s32.totalorder %s80, %s81
    %p95 = scmp.eq.s32.totalorder %s21, 1
    %p96 = por %p94, %p95
    %p98 = scmp.ne.s32.totalorder %s81, %s97
    %p99 = scmp.eq.s32.totalorder %s21, 0
    %p100 = por %p98, %p99
    %s102 = sadd.s32 %s101, 1
    %p105 = scmp.eq.s32.totalorder %s15, 1
    %p106 = scmp.ne.s32.totalorder %s101, %s103
    %p107 = scmp.eq.s32.totalorder %s15, 0
    %p108 = por %p106, %p107
    %p109 = scmp.ne.s32.totalorder %s101, %s103
    %p110 = scmp.eq.s32.totalorder %s20, 1
    %p111 = por %p109, %p110
    %p112 = scmp.ne.s32.totalorder %s103, %s104
    %p113 = scmp.eq.s32.totalorder %s20, 0
    %p114 = por %p112, %p113
    %p115 = scmp.ne.s32.totalorder %s103, %s104
    %p116 = scmp.eq.s32.totalorder %s21, 1
    %p117 = por %p115, %p116
    %p119 = scmp.ne.s32.totalorder %s104, %s118
    %p120 = scmp.eq.s32.totalorder %s21, 0
    %p121 = por %p119, %p120
    %s123 = sadd.s32 %s122, 1
    %p126 = scmp.eq.s32.totalorder %s15, 1
    %p127 = scmp.ne.s32.totalorder %s122, %s124
    %p128 = scmp.eq.s32.totalorder %s15, 0
    %p129 = por %p127, %p128
    %p130 = scmp.ne.s32.totalorder %s122, %s124
    %p131 = scmp.eq.s32.totalorder %s20, 1
    %p132 = por %p130, %p131
    %p133 = scmp.ne.s32.totalorder %s124, %s125
    %p134 = scmp.eq.s32.totalorder %s20, 0
    %p135 = por %p133, %p134
    %p136 = scmp.ne.s32.totalorder %s124, %s125
    %p137 = scmp.eq.s32.totalorder %s21, 1
    %p138 = por %p136, %p137
    %p140 = scmp.ne.s32.totalorder %s125, %s139
    %p141 = scmp.eq.s32.totalorder %s21, 0
    %p142 = por %p140, %p141
    %s144 = sadd.s32 %s143, 1
    %p147 = scmp.eq.s32.totalorder %s15, 1
    %p148 = scmp.ne.s32.totalorder %s143, %s145
    %p149 = scmp.eq.s32.totalorder %s15, 0
    %p150 = por %p148, %p149
    %p151 = scmp.ne.s32.totalorder %s143, %s145
    %p152 = scmp.eq.s32.totalorder %s20, 1
    %p153 = por %p151, %p152
    %p154 = scmp.ne.s32.totalorder %s145, %s146
    %p155 = scmp.eq.s32.totalorder %s20, 0
    %p156 = por %p154, %p155
    %p157 = scmp.ne.s32.totalorder %s145, %s146
    %p158 = scmp.eq.s32.totalorder %s21, 1
    %p159 = por %p157, %p158
    %p161 = scmp.ne.s32.totalorder %s146, %s160
    %p162 = scmp.eq.s32.totalorder %s21, 0
    %p163 = por %p161, %p162
    %s165 = sadd.s32 %s164, 1
    %p168 = scmp.eq.s32.totalorder %s15, 1
    %p169 = scmp.ne.s32.totalorder %s164, %s166
    %p170 = scmp.eq.s32.totalorder %s15, 0
    %p171 = por %p169, %p170
    %p172 = scmp.ne.s32.totalorder %s164, %s166
    %p173 = scmp.eq.s32.totalorder %s20, 1
    %p174 = por %p172, %p173
    %p175 = scmp.ne.s32.totalorder %s166, %s167
    %p176 = scmp.eq.s32.totalorder %s20, 0
    %p177 = por %p175, %p176
    %p178 = scmp.ne.s32.totalorder %s166, %s167
    %p179 = scmp.eq.s32.totalorder %s21, 1
    %p180 = por %p178, %p179
    %p182 = scmp.ne.s32.totalorder %s167, %s181
    %p183 = scmp.eq.s32.totalorder %s21, 0
    %p184 = por %p182, %p183
    %s186 = sadd.s32 %s185, 1
    %p189 = scmp.eq.s32.totalorder %s15, 1
    %p190 = scmp.ne.s32.totalorder %s185, %s187
    %p191 = scmp.eq.s32.totalorder %s15, 0
    %p192 = por %p190, %p191
    %p193 = scmp.ne.s32.totalorder %s185, %s187
    %p194 = scmp.eq.s32.totalorder %s20, 1
    %p195 = por %p193, %p194
    %p196 = scmp.ne.s32.totalorder %s187, %s188
    %p197 = scmp.eq.s32.totalorder %s20, 0
    %p198 = por %p196, %p197
    %p199 = scmp.ne.s32.totalorder %s187, %s188
    %p200 = scmp.eq.s32.totalorder %s21, 1
    %p201 = por %p199, %p200
    %p203 = scmp.ne.s32.totalorder %s188, %s202
    %p204 = scmp.eq.s32.totalorder %s21, 0
    %p205 = por %p203, %p204
    %s207 = sadd.s32 %s206, 1
    %p210 = scmp.eq.s32.totalorder %s15, 1
    %p211 = scmp.ne.s32.totalorder %s206, %s208
    %p212 = scmp.eq.s32.totalorder %s15, 0
    %p213 = por %p211, %p212
    %p214 = scmp.ne.s32.totalorder %s206, %s208
    %p215 = scmp.eq.s32.totalorder %s20, 1
    %p216 = por %p214, %p215
    %p217 = scmp.ne.s32.totalorder %s208, %s209
    %p218 = scmp.eq.s32.totalorder %s20, 0
    %p219 = por %p217, %p218
    %p220 = scmp.ne.s32.totalorder %s208, %s209
    %p221 = scmp.eq.s32.totalorder %s21, 1
    %p222 = por %p220, %p221
    %p224 = scmp.ne.s32.totalorder %s209, %s223
    %p225 = scmp.eq.s32.totalorder %s21, 0
    %p226 = por %p224, %p225
    %s227 = ssub.s32 %s15, %s22
    %p228 = scmp.eq.s32.totalorder %s227, 0
    %s230 = sadd.s32 %s229, 1
    %s231 = scalar_select %p228, %s229, %s230
    %p234 = pneg %p228
    %p235 = scmp.eq.s32.totalorder %s15, 1
    %p236 = por %p234, %p235
    %p237 = scmp.ne.s32.totalorder %s229, %s232
    %p238 = scmp.eq.s32.totalorder %s15, 0
    %p239 = por %p237, %p238
    %p240 = scmp.ne.s32.totalorder %s229, %s232
    %p241 = scmp.eq.s32.totalorder %s20, 1
    %p242 = por %p240, %p241
    %p243 = scmp.ne.s32.totalorder %s232, %s233
    %p244 = scmp.eq.s32.totalorder %s20, 0
    %p245 = por %p243, %p244
    %p246 = scmp.ne.s32.totalorder %s232, %s233
    %p247 = scmp.eq.s32.totalorder %s21, 1
    %p248 = por %p246, %p247
    %p250 = scmp.ne.s32.totalorder %s233, %s249
    %p251 = scmp.eq.s32.totalorder %s21, 0
    %p252 = por %p250, %p251
    %p253 = scmp.le.s32.totalorder 1, %s15
    %p254 = scmp.lt.s32.totalorder %s15, 3
    %p255 = pnand %p253, %p254
    %p256 = pneg %p255
    // Predicated region
    $region9: #{combination_loss.1} parent=5 // pred_check
      _
    $region10: #{combination_loss.1} parent=5 // pred_check_branch
      %258 = sbr.rel (%p255) target = $region12
    $region11: #{combination_loss.1} parent=5 // pred_region
      %s259 = ssub.s32 %s15, 1
      // Predicated region
      $region13: #{combination_loss.1} parent=11 // pred_check
        %p260 = pneg %p114
      $region14: #{combination_loss.1} parent=11 // pred_check_branch
        %262 = sbr.rel (%p260) target = $region16
      $region15: #{combination_loss.1} parent=11 // pred_region
        _
      $region16: #{combination_loss.1} parent=11 // pred_fallthru
        _
      // Predicated region
      $region17: #{combination_loss.1} parent=11 // pred_check
        %p263 = pneg %p135
      $region18: #{combination_loss.1} parent=11 // pred_check_branch
        %265 = sbr.rel (%p263) target = $region20
      $region19: #{combination_loss.1} parent=11 // pred_region
        _
      $region20: #{combination_loss.1} parent=11 // pred_fallthru
        _
      // Predicated region
      $region21: #{combination_loss.1} parent=11 // pred_check
        %p266 = pneg %p156
      $region22: #{combination_loss.1} parent=11 // pred_check_branch
        %268 = sbr.rel (%p266) target = $region24
      $region23: #{combination_loss.1} parent=11 // pred_region
        _
      $region24: #{combination_loss.1} parent=11 // pred_fallthru
        _
      // Predicated region
      $region25: #{combination_loss.1} parent=11 // pred_check
        %p269 = pneg %p177
      $region26: #{combination_loss.1} parent=11 // pred_check_branch
        %271 = sbr.rel (%p269) target = $region28
      $region27: #{combination_loss.1} parent=11 // pred_region
        _
      $region28: #{combination_loss.1} parent=11 // pred_fallthru
        _
      // Predicated region
      $region29: #{combination_loss.1} parent=11 // pred_check
        %p272 = pneg %p198
      $region30: #{combination_loss.1} parent=11 // pred_check_branch
        %274 = sbr.rel (%p272) target = $region32
      $region31: #{combination_loss.1} parent=11 // pred_region
        _
      $region32: #{combination_loss.1} parent=11 // pred_fallthru
        _
      // Predicated region
      $region33: #{combination_loss.1} parent=11 // pred_check
        %p275 = pneg %p219
      $region34: #{combination_loss.1} parent=11 // pred_check_branch
        %277 = sbr.rel (%p275) target = $region36
      $region35: #{combination_loss.1} parent=11 // pred_region
        _
      $region36: #{combination_loss.1} parent=11 // pred_fallthru
        _
    $region12: #{combination_loss.1} parent=5 // pred_fallthru
      _
    %p278 = scmp.lt.s32.totalorder %s15, 2
    // Predicated region
    $region37: #{combination_loss.1} parent=5 // pred_check
      %p279 = pneg %p278
    $region38: #{combination_loss.1} parent=5 // pred_check_branch
      %281 = sbr.rel (%p279) target = $region40
    $region39: #{combination_loss.1} parent=5 // pred_region
      // Predicated region
      $region41: #{combination_loss.1} parent=39 // pred_check
        %p282 = pneg %p35
      $region42: #{combination_loss.1} parent=39 // pred_check_branch
        %284 = sbr.rel (%p282) target = $region44
      $region43: #{combination_loss.1} parent=39 // pred_region
        %p285 = scmp.lt.s32.totalorder %s15, 1
        %s286 = scalar_select %p285, %s15, 1
        %s287 = smul.addr %s286, 8
        %s288 = scalar_lea.vmem %s0, %s287
      $region44: #{combination_loss.1} parent=39 // pred_fallthru
        _
      // Predicated region
      $region45: #{combination_loss.1} parent=39 // pred_check
        %p289 = pneg %p61
      $region46: #{combination_loss.1} parent=39 // pred_check_branch
        %291 = sbr.rel (%p289) target = $region48
      $region47: #{combination_loss.1} parent=39 // pred_region
        %p292 = scmp.lt.s32.totalorder %s15, 1
        %s293 = scalar_select %p292, %s15, 1
        %s294 = smul.addr %s293, 8
        %s295 = scalar_lea.vmem %s1, %s294
      $region48: #{combination_loss.1} parent=39 // pred_fallthru
        _
      // Predicated region
      $region49: #{combination_loss.1} parent=39 // pred_check
        %p296 = pneg %p87
      $region50: #{combination_loss.1} parent=39 // pred_check_branch
        %298 = sbr.rel (%p296) target = $region52
      $region51: #{combination_loss.1} parent=39 // pred_region
        %p299 = scmp.lt.s32.totalorder %s15, 1
        %s300 = scalar_select %p299, %s15, 1
        %s301 = smul.addr %s300, 81
        %s302 = smul.addr %s301, 4
        %s303 = scalar_lea.vmem %s2, %s302
      $region52: #{combination_loss.1} parent=39 // pred_fallthru
        _
    $region40: #{combination_loss.1} parent=5 // pred_fallthru
      _
    %p304 = scmp.le.s32.totalorder 1, %s15
    %p305 = scmp.lt.s32.totalorder %s15, 3
    %p306 = pnand %p304, %p305
    %p307 = pneg %p306
    // Predicated region
    $region53: #{combination_loss.1} parent=5 // pred_check
      _
    $region54: #{combination_loss.1} parent=5 // pred_check_branch
      %309 = sbr.rel (%p306) target = $region56
    $region55: #{combination_loss.1} parent=5 // pred_region
      %s310 = ssub.s32 %s15, 1
      %p311 = scmp.lt.s32.totalorder %s20, 1
      %s312 = scalar_select %p311, %s20, 1
      %s313 = smul.addr %s312, 8
      %s314 = scalar_lea.vmem %s0, %s313
      %p315 = pneg %p41
      %p316 = pneg %p38
      %p317 = scmp.lt.s32.totalorder %s20, 1
      %s318 = scalar_select %p317, %s20, 1
      %s319 = smul.addr %s318, 8
      %s320 = scalar_lea.vmem %s1, %s319
      %p321 = pneg %p67
      %p322 = pneg %p64
      %p323 = scmp.lt.s32.totalorder %s20, 1
      %s324 = scalar_select %p323, %s20, 1
      %s325 = smul.addr %s324, 81
      %s326 = smul.addr %s325, 4
      %s327 = scalar_lea.vmem %s2, %s326
      %p328 = pneg %p93
      %p329 = pneg %p90
      %p330 = pneg %p114
      %p331 = pneg %p111
      %p332 = pneg %p135
      %p333 = pneg %p132
      %p334 = pneg %p156
      %p335 = pneg %p153
      %p336 = pneg %p177
      %p337 = pneg %p174
      %p338 = pneg %p198
      %p339 = pneg %p195
      %p340 = pneg %p219
      %p341 = pneg %p216
      %p342 = pneg %p245
      %p343 = pneg %p242
      %p344 = scmp.lt.s32.totalorder %s20, 1
      %s345 = scalar_select %p344, %s20, 1
      %s346 = smul.addr %s345, 8
      %s347 = scalar_lea.vmem %s9, %s346
      %p348 = scmp.lt.s32.totalorder %s20, 1
      %s349 = scalar_select %p348, %s20, 1
      %s350 = smul.addr %s349, 8
      %s351 = scalar_lea.vmem %s0, %s350
      %p352 = scmp.lt.s32.totalorder %s20, 1
      %s353 = scalar_select %p352, %s20, 1
      %s354 = smul.addr %s353, 8
      %s355 = scalar_lea.vmem %s1, %s354
      %p356 = scmp.lt.s32.totalorder %s20, 1
      %s357 = scalar_select %p356, %s20, 1
      %s358 = smul.addr %s357, 81
      %s359 = smul.addr %s358, 4
      %s360 = scalar_lea.vmem %s2, %s359
      %p361 = scmp.lt.s32.totalorder %s20, 1
      %s362 = scalar_select %p361, %s20, 1
      %s363 = smul.addr %s362, 8
      %s364 = scalar_lea.vmem %s9, %s363
      %v366 = vld [vmem:[%s351] sm:$0x3f]
      %v367 = vld [vmem:[%s355] sm:$0x3f]
      %v368 = vsub.f32 %v366, %v367
      %v369 = vand.u32 2147483647, %v368
      %vm370 = vcmask 1045504
      %v371 = vsel %vm370, %v369, 0.0
      %372 = vadd.xlane.f32.xlu0 %v371
      %v373 = vpop.xlane.xlu0 %372
      %v374 = vrot.slane %v373, 4
      %v375 = vadd.f32 %v373, %v374
      %v376 = vrot.slane %v375, 2
      %v377 = vadd.f32 %v375, %v376
      %v378 = vrot.slane %v377, 1
      %v379 = vadd.f32 %v377, %v378
      %s380 = vtos %v379
      %v381 = vmul.f32 %v368, %v368
      %v382 = vsel %vm370, %v381, 0.0
      %383 = vadd.xlane.f32.xlu0 %v382
      %v384 = vpop.xlane.xlu0 %383
      %v385 = vrot.slane %v384, 4
      %v386 = vadd.f32 %v384, %v385
      %v387 = vrot.slane %v386, 2
      %v388 = vadd.f32 %v386, %v387
      %v389 = vrot.slane %v388, 1
      %v390 = vadd.f32 %v388, %v389
      %s391 = vtos %v390
      %392 = vst [vmem:[#allocation2] sm:$0xf] 0
      %393 = vst [vmem:[#allocation2 + $0x4] sm:$0xf] 0
      %394 = vst [vmem:[#allocation2 + $0x8] sm:$0xf] 0
      %395 = vst [vmem:[#allocation2 + $0xc] sm:$0xf] 0
      %396 = vst [vmem:[#allocation2 + $0x154] sm:$0xf] 0
      %397 = vst [vmem:[#allocation2 + $0x158] sm:$0xf] 0
      %398 = vst [vmem:[#allocation2 + $0x15c] sm:$0xf] 0
      %399 = vst [vmem:[#allocation2 + $0x160] sm:$0xf] 0
      %400 = vst [vmem:[#allocation3] sm:$0xff] 0.0
      %401 = vst [vmem:[#allocation3 + $0x8] sm:$0xff] 0.0
      %402 = vst [vmem:[#allocation3 + $0x10] sm:$0xff] 0.0
      %403 = vst [vmem:[#allocation3 + $0x18] sm:$0xff] 0.0
      %404 = vst [vmem:[#allocation3 + $0x2a8] sm:$0xff] 0.0
      %405 = vst [vmem:[#allocation3 + $0x2b0] sm:$0xff] 0.0
      %406 = vst [vmem:[#allocation3 + $0x2b8] sm:$0xff] 0.0
      %407 = vst [vmem:[#allocation3 + $0x2c0] sm:$0xff] 0.0
      %v408 = vld [vmem:[%s7] sm:$0xff]
      %v409 = vld [vmem:[%s7 + $0x8] sm:$0xff]
      %v410 = vld [vmem:[%s7 + $0x10] sm:$0xff]
      %v411 = vld [vmem:[%s7 + $0x18] sm:$0xff]
      %v412 = vld [vmem:[%s7 + $0x20] sm:$0xff]
      %v413 = vld [vmem:[%s7 + $0x28] sm:$0xff]
      %v414 = vld [vmem:[%s7 + $0x30] sm:$0xff]
      %v415 = vld [vmem:[%s7 + $0x38] sm:$0xff]
      %v416 = vld [vmem:[%s7 + $0x40] sm:$0xff]
      %v417 = vld [vmem:[%s7 + $0x48] sm:$0xff]
      %v418 = vld [vmem:[%s7 + $0x50] sm:$0xff]
      %v419 = vld [vmem:[%s7 + $0x58] sm:$0xff]
      %v420 = vld [vmem:[%s7 + $0x60] sm:$0xff]
      %v421 = vld [vmem:[%s7 + $0x68] sm:$0xff]
      %v422 = vld [vmem:[%s7 + $0x70] sm:$0xff]
      %v423 = vld [vmem:[%s7 + $0x78] sm:$0xff]
      %v424 = vld [vmem:[%s7 + $0x80] sm:$0xff]
      %v425 = vld [vmem:[%s7 + $0x88] sm:$0xff]
      %v426 = vld [vmem:[%s7 + $0x90] sm:$0xff]
      %v427 = vld [vmem:[%s7 + $0x98] sm:$0xff]
      %v428 = vld [vmem:[%s7 + $0xa0] sm:$0xff]
      %v429 = vld [vmem:[%s7 + $0xa8] sm:$0xff]
      %v430 = vld [vmem:[%s7 + $0xb0] sm:$0xff]
      %v431 = vld [vmem:[%s7 + $0xb8] sm:$0xff]
      %v432 = vld [vmem:[%s7 + $0xc0] sm:$0xff]
      %v433 = vld [vmem:[%s7 + $0xc8] sm:$0xff]
      %v434 = vld [vmem:[%s7 + $0xd0] sm:$0xff]
      %v435 = vld [vmem:[%s7 + $0xd8] sm:$0xff]
      %v436 = vld [vmem:[%s7 + $0xe0] sm:$0xff]
      %v437 = vld [vmem:[%s7 + $0xe8] sm:$0xff]
      %v438 = vld [vmem:[%s7 + $0xf0] sm:$0xff]
      %v439 = vld [vmem:[%s7 + $0xf8] sm:$0xff]
      %v440 = vld [vmem:[%s7 + $0x100] sm:$0xff]
      %v441 = vld [vmem:[%s7 + $0x108] sm:$0xff]
      %v442 = vld [vmem:[%s7 + $0x110] sm:$0xff]
      %v443 = vld [vmem:[%s7 + $0x118] sm:$0xff]
      %v444 = vld [vmem:[%s7 + $0x120] sm:$0xff]
      %v445 = vld [vmem:[%s7 + $0x128] sm:$0xff]
      %v446 = vld [vmem:[%s7 + $0x130] sm:$0xff]
      %v447 = vld [vmem:[%s7 + $0x138] sm:$0xff]
      %v448 = vld [vmem:[%s7 + $0x140] sm:$0xff]
      %v449 = vld [vmem:[%s7 + $0x148] sm:$0xff]
      %v450 = vld [vmem:[%s7 + $0x150] sm:$0xff]
      %v451 = vld [vmem:[%s7 + $0x158] sm:$0xff]
      %v452 = vld [vmem:[%s7 + $0x160] sm:$0xff]
      %v453 = vld [vmem:[%s7 + $0x168] sm:$0xff]
      %v454 = vld [vmem:[%s7 + $0x170] sm:$0xff]
      %v455 = vld [vmem:[%s7 + $0x178] sm:$0xff]
      %v456 = vld [vmem:[%s7 + $0x180] sm:$0xff]
      %v457 = vld [vmem:[%s7 + $0x188] sm:$0xff]
      %v458 = vld [vmem:[%s7 + $0x190] sm:$0xff]
      %v459 = vld [vmem:[%s7 + $0x198] sm:$0xff]
      %v460 = vld [vmem:[%s7 + $0x1a0] sm:$0xff]
      %v461 = vld [vmem:[%s7 + $0x1a8] sm:$0xff]
      %v462 = vld [vmem:[%s7 + $0x1b0] sm:$0xff]
      %v463 = vld [vmem:[%s7 + $0x1b8] sm:$0xff]
      %v464 = vld [vmem:[%s7 + $0x1c0] sm:$0xff]
      %v465 = vld [vmem:[%s7 + $0x1c8] sm:$0xff]
      %v466 = vld [vmem:[%s7 + $0x1d0] sm:$0xff]
      %v467 = vld [vmem:[%s7 + $0x1d8] sm:$0xff]
      %v468 = vld [vmem:[%s7 + $0x1e0] sm:$0xff]
      %v469 = vld [vmem:[%s7 + $0x1e8] sm:$0xff]
      %v470 = vld [vmem:[%s7 + $0x1f0] sm:$0xff]
      %v471 = vld [vmem:[%s7 + $0x1f8] sm:$0xff]
      %v472 = vld [vmem:[%s7 + $0x200] sm:$0xff]
      %v473 = vld [vmem:[%s7 + $0x208] sm:$0xff]
      %v474 = vld [vmem:[%s7 + $0x210] sm:$0xff]
      %v475 = vld [vmem:[%s7 + $0x218] sm:$0xff]
      %v476 = vld [vmem:[%s7 + $0x220] sm:$0xff]
      %v477 = vld [vmem:[%s7 + $0x228] sm:$0xff]
      %v478 = vld [vmem:[%s7 + $0x230] sm:$0xff]
      %v479 = vld [vmem:[%s7 + $0x238] sm:$0xff]
      %v480 = vld [vmem:[%s7 + $0x240] sm:$0xff]
      %v481 = vld [vmem:[%s7 + $0x248] sm:$0xff]
      %v482 = vld [vmem:[%s7 + $0x250] sm:$0xff]
      %v483 = vld [vmem:[%s7 + $0x258] sm:$0xff]
      %v484 = vld [vmem:[%s7 + $0x260] sm:$0xff]
      %v485 = vld [vmem:[%s7 + $0x268] sm:$0xff]
      %v486 = vld [vmem:[%s7 + $0x270] sm:$0xff]
      %v487 = vld [vmem:[%s7 + $0x278] sm:$0xff]
      %v488 = vld [vmem:[%s7 + $0x280] sm:$0xff]
      %v489 = vld [vmem:[%s360] sm:$0xf]
      %v490 = vld [vmem:[%s360 + $0x4] sm:$0xf]
      %v491 = vld [vmem:[%s360 + $0x8] sm:$0xf]
      %v492 = vld [vmem:[%s360 + $0xc] sm:$0xf]
      %v493 = vld [vmem:[%s360 + $0x10] sm:$0xf]
      %v494 = vld [vmem:[%s360 + $0x14] sm:$0xf]
      %v495 = vld [vmem:[%s360 + $0x18] sm:$0xf]
      %v496 = vld [vmem:[%s360 + $0x1c] sm:$0xf]
      %v497 = vld [vmem:[%s360 + $0x20] sm:$0xf]
      %v498 = vld [vmem:[%s360 + $0x24] sm:$0xf]
      %v499 = vld [vmem:[%s360 + $0x28] sm:$0xf]
      %v500 = vld [vmem:[%s360 + $0x2c] sm:$0xf]
      %v501 = vld [vmem:[%s360 + $0x30] sm:$0xf]
      %v502 = vld [vmem:[%s360 + $0x34] sm:$0xf]
      %v503 = vld [vmem:[%s360 + $0x38] sm:$0xf]
      %v504 = vld [vmem:[%s360 + $0x3c] sm:$0xf]
      %v505 = vld [vmem:[%s360 + $0x40] sm:$0xf]
      %v506 = vld [vmem:[%s360 + $0x44] sm:$0xf]
      %v507 = vld [vmem:[%s360 + $0x48] sm:$0xf]
      %v508 = vld [vmem:[%s360 + $0x4c] sm:$0xf]
      %v509 = vld [vmem:[%s360 + $0x50] sm:$0xf]
      %v510 = vld [vmem:[%s360 + $0x54] sm:$0xf]
      %v511 = vld [vmem:[%s360 + $0x58] sm:$0xf]
      %v512 = vld [vmem:[%s360 + $0x5c] sm:$0xf]
      %v513 = vld [vmem:[%s360 + $0x60] sm:$0xf]
      %v514 = vld [vmem:[%s360 + $0x64] sm:$0xf]
      %v515 = vld [vmem:[%s360 + $0x68] sm:$0xf]
      %v516 = vld [vmem:[%s360 + $0x6c] sm:$0xf]
      %v517 = vld [vmem:[%s360 + $0x70] sm:$0xf]
      %v518 = vld [vmem:[%s360 + $0x74] sm:$0xf]
      %v519 = vld [vmem:[%s360 + $0x78] sm:$0xf]
      %v520 = vld [vmem:[%s360 + $0x7c] sm:$0xf]
      %v521 = vld [vmem:[%s360 + $0x80] sm:$0xf]
      %v522 = vld [vmem:[%s360 + $0x84] sm:$0xf]
      %v523 = vld [vmem:[%s360 + $0x88] sm:$0xf]
      %v524 = vld [vmem:[%s360 + $0x8c] sm:$0xf]
      %v525 = vld [vmem:[%s360 + $0x90] sm:$0xf]
      %v526 = vld [vmem:[%s360 + $0x94] sm:$0xf]
      %v527 = vld [vmem:[%s360 + $0x98] sm:$0xf]
      %v528 = vld [vmem:[%s360 + $0x9c] sm:$0xf]
      %v529 = vld [vmem:[%s360 + $0xa0] sm:$0xf]
      %v530 = vld [vmem:[%s360 + $0xa4] sm:$0xf]
      %v531 = vld [vmem:[%s360 + $0xa8] sm:$0xf]
      %v532 = vld [vmem:[%s360 + $0xac] sm:$0xf]
      %v533 = vld [vmem:[%s360 + $0xb0] sm:$0xf]
      %v534 = vld [vmem:[%s360 + $0xb4] sm:$0xf]
      %v535 = vld [vmem:[%s360 + $0xb8] sm:$0xf]
      %v536 = vld [vmem:[%s360 + $0xbc] sm:$0xf]
      %v537 = vld [vmem:[%s360 + $0xc0] sm:$0xf]
      %v538 = vld [vmem:[%s360 + $0xc4] sm:$0xf]
      %v539 = vld [vmem:[%s360 + $0xc8] sm:$0xf]
      %v540 = vld [vmem:[%s360 + $0xcc] sm:$0xf]
      %v541 = vld [vmem:[%s360 + $0xd0] sm:$0xf]
      %v542 = vld [vmem:[%s360 + $0xd4] sm:$0xf]
      %v543 = vld [vmem:[%s360 + $0xd8] sm:$0xf]
      %v544 = vld [vmem:[%s360 + $0xdc] sm:$0xf]
      %v545 = vld [vmem:[%s360 + $0xe0] sm:$0xf]
      %v546 = vld [vmem:[%s360 + $0xe4] sm:$0xf]
      %v547 = vld [vmem:[%s360 + $0xe8] sm:$0xf]
      %v548 = vld [vmem:[%s360 + $0xec] sm:$0xf]
      %v549 = vld [vmem:[%s360 + $0xf0] sm:$0xf]
      %v550 = vld [vmem:[%s360 + $0xf4] sm:$0xf]
      %v551 = vld [vmem:[%s360 + $0xf8] sm:$0xf]
      %v552 = vld [vmem:[%s360 + $0xfc] sm:$0xf]
      %v553 = vld [vmem:[%s360 + $0x100] sm:$0xf]
      %v554 = vld [vmem:[%s360 + $0x104] sm:$0xf]
      %v555 = vld [vmem:[%s360 + $0x108] sm:$0xf]
      %v556 = vld [vmem:[%s360 + $0x10c] sm:$0xf]
      %v557 = vld [vmem:[%s360 + $0x110] sm:$0xf]
      %v558 = vld [vmem:[%s360 + $0x114] sm:$0xf]
      %v559 = vld [vmem:[%s360 + $0x118] sm:$0xf]
      %v560 = vld [vmem:[%s360 + $0x11c] sm:$0xf]
      %v561 = vld [vmem:[%s360 + $0x120] sm:$0xf]
      %v562 = vld [vmem:[%s360 + $0x124] sm:$0xf]
      %v563 = vld [vmem:[%s360 + $0x128] sm:$0xf]
      %v564 = vld [vmem:[%s360 + $0x12c] sm:$0xf]
      %v565 = vld [vmem:[%s360 + $0x130] sm:$0xf]
      %v566 = vld [vmem:[%s360 + $0x134] sm:$0xf]
      %v567 = vld [vmem:[%s360 + $0x138] sm:$0xf]
      %v568 = vld [vmem:[%s360 + $0x13c] sm:$0xf]
      %v569 = vld [vmem:[%s360 + $0x140] sm:$0xf]
      %v570 = vld [vmem:[%s3] sm:$0xf]
      %v571 = vld [vmem:[%s3 + $0x4] sm:$0xf]
      %v572 = vld [vmem:[%s3 + $0x8] sm:$0xf]
      %v573 = vld [vmem:[%s3 + $0xc] sm:$0xf]
      %v574 = vld [vmem:[%s3 + $0x10] sm:$0xf]
      %v575 = vld [vmem:[%s3 + $0x14] sm:$0xf]
      %v576 = vld [vmem:[%s3 + $0x18] sm:$0xf]
      %v577 = vld [vmem:[%s3 + $0x1c] sm:$0xf]
      %v578 = vld [vmem:[%s3 + $0x20] sm:$0xf]
      %v579 = vld [vmem:[%s3 + $0x24] sm:$0xf]
      %v580 = vld [vmem:[%s3 + $0x28] sm:$0xf]
      %v581 = vld [vmem:[%s3 + $0x2c] sm:$0xf]
      %v582 = vld [vmem:[%s3 + $0x30] sm:$0xf]
      %v583 = vld [vmem:[%s3 + $0x34] sm:$0xf]
      %v584 = vld [vmem:[%s3 + $0x38] sm:$0xf]
      %v585 = vld [vmem:[%s3 + $0x3c] sm:$0xf]
      %v586 = vld [vmem:[%s4] sm:$0x1]
      %v588 = vperm.slane %v586, 0
      %v671 = vunpack.c.l.b16 %v489
      %v672 = vunpack.c.l.b16 %v490
      %v673 = vunpack.c.l.b16 %v491
      %v674 = vunpack.c.l.b16 %v492
      %v675 = vunpack.c.l.b16 %v493
      %v676 = vunpack.c.l.b16 %v494
      %v677 = vunpack.c.l.b16 %v495
      %v678 = vunpack.c.l.b16 %v496
      %v679 = vunpack.c.l.b16 %v497
      %v680 = vunpack.c.l.b16 %v498
      %v681 = vunpack.c.l.b16 %v499
      %v682 = vunpack.c.l.b16 %v500
      %v683 = vunpack.c.l.b16 %v501
      %v684 = vunpack.c.l.b16 %v502
      %v685 = vunpack.c.l.b16 %v503
      %v686 = vunpack.c.l.b16 %v504
      %v687 = vunpack.c.l.b16 %v505
      %v688 = vunpack.c.l.b16 %v506
      %v689 = vunpack.c.l.b16 %v507
      %v690 = vunpack.c.l.b16 %v508
      %v691 = vunpack.c.l.b16 %v509
      %v692 = vunpack.c.l.b16 %v510
      %v693 = vunpack.c.l.b16 %v511
      %v694 = vunpack.c.l.b16 %v512
      %v695 = vunpack.c.l.b16 %v513
      %v696 = vunpack.c.l.b16 %v514
      %v697 = vunpack.c.l.b16 %v515
      %v698 = vunpack.c.l.b16 %v516
      %v699 = vunpack.c.l.b16 %v517
      %v700 = vunpack.c.l.b16 %v518
      %v701 = vunpack.c.l.b16 %v519
      %v702 = vunpack.c.l.b16 %v520
      %v703 = vunpack.c.l.b16 %v521
      %v704 = vunpack.c.l.b16 %v522
      %v705 = vunpack.c.l.b16 %v523
      %v706 = vunpack.c.l.b16 %v524
      %v707 = vunpack.c.l.b16 %v525
      %v708 = vunpack.c.l.b16 %v526
      %v709 = vunpack.c.l.b16 %v527
      %v710 = vunpack.c.l.b16 %v528
      %v711 = vunpack.c.l.b16 %v529
      %v712 = vunpack.c.l.b16 %v530
      %v713 = vunpack.c.l.b16 %v531
      %v714 = vunpack.c.l.b16 %v532
      %v715 = vunpack.c.l.b16 %v533
      %v716 = vunpack.c.l.b16 %v534
      %v717 = vunpack.c.l.b16 %v535
      %v718 = vunpack.c.l.b16 %v536
      %v719 = vunpack.c.l.b16 %v537
      %v720 = vunpack.c.l.b16 %v538
      %v721 = vunpack.c.l.b16 %v539
      %v722 = vunpack.c.l.b16 %v540
      %v723 = vunpack.c.l.b16 %v541
      %v724 = vunpack.c.l.b16 %v542
      %v725 = vunpack.c.l.b16 %v543
      %v726 = vunpack.c.l.b16 %v544
      %v727 = vunpack.c.l.b16 %v545
      %v728 = vunpack.c.l.b16 %v546
      %v729 = vunpack.c.l.b16 %v547
      %v730 = vunpack.c.l.b16 %v548
      %v731 = vunpack.c.l.b16 %v549
      %v732 = vunpack.c.l.b16 %v550
      %v733 = vunpack.c.l.b16 %v551
      %v734 = vunpack.c.l.b16 %v552
      %v735 = vunpack.c.l.b16 %v553
      %v736 = vunpack.c.l.b16 %v554
      %v737 = vunpack.c.l.b16 %v555
      %v738 = vunpack.c.l.b16 %v556
      %v739 = vunpack.c.l.b16 %v557
      %v740 = vunpack.c.l.b16 %v558
      %v741 = vunpack.c.l.b16 %v559
      %v742 = vunpack.c.l.b16 %v560
      %v743 = vunpack.c.l.b16 %v561
      %v744 = vunpack.c.l.b16 %v562
      %v745 = vunpack.c.l.b16 %v563
      %v746 = vunpack.c.l.b16 %v564
      %v747 = vunpack.c.l.b16 %v565
      %v748 = vunpack.c.l.b16 %v566
      %v749 = vunpack.c.l.b16 %v567
      %v750 = vunpack.c.l.b16 %v568
      %v751 = vunpack.c.l.b16 %v569
      %v752 = vpack.c.b16 %v672, %v671
      %v753 = vpack.c.b16 %v674, %v673
      %v754 = vpack.c.b16 %v676, %v675
      %v755 = vpack.c.b16 %v678, %v677
      %v756 = vpack.c.b16 %v680, %v679
      %v757 = vpack.c.b16 %v682, %v681
      %v758 = vpack.c.b16 %v684, %v683
      %v759 = vpack.c.b16 %v686, %v685
      %v760 = vpack.c.b16 %v688, %v687
      %v761 = vpack.c.b16 %v690, %v689
      %v762 = vpack.c.b16 %v692, %v691
      %v763 = vpack.c.b16 %v694, %v693
      %v764 = vpack.c.b16 %v696, %v695
      %v765 = vpack.c.b16 %v698, %v697
      %v766 = vpack.c.b16 %v700, %v699
      %v767 = vpack.c.b16 %v702, %v701
      %v768 = vpack.c.b16 %v704, %v703
      %v769 = vpack.c.b16 %v706, %v705
      %v770 = vpack.c.b16 %v708, %v707
      %v771 = vpack.c.b16 %v710, %v709
      %v772 = vpack.c.b16 %v712, %v711
      %v773 = vpack.c.b16 %v714, %v713
      %v774 = vpack.c.b16 %v716, %v715
      %v775 = vpack.c.b16 %v718, %v717
      %v776 = vpack.c.b16 %v720, %v719
      %v777 = vpack.c.b16 %v722, %v721
      %v778 = vpack.c.b16 %v724, %v723
      %v779 = vpack.c.b16 %v726, %v725
      %v780 = vpack.c.b16 %v728, %v727
      %v781 = vpack.c.b16 %v730, %v729
      %v782 = vpack.c.b16 %v732, %v731
      %v783 = vpack.c.b16 %v734, %v733
      %v784 = vpack.c.b16 %v736, %v735
      %v785 = vpack.c.b16 %v738, %v737
      %v786 = vpack.c.b16 %v740, %v739
      %v787 = vpack.c.b16 %v742, %v741
      %v788 = vpack.c.b16 %v744, %v743
      %v789 = vpack.c.b16 %v746, %v745
      %v790 = vpack.c.b16 %v748, %v747
      %v791 = vpack.c.b16 %v750, %v749
      %v792 = vpack.c.b16 %v751, %v751
      %v850 = vunpack.c.l.b16 %v570
      %v851 = vunpack.c.l.b16 %v571
      %v852 = vunpack.c.l.b16 %v572
      %v853 = vunpack.c.l.b16 %v573
      %v854 = vunpack.c.l.b16 %v574
      %v855 = vunpack.c.l.b16 %v575
      %v856 = vunpack.c.l.b16 %v576
      %v857 = vunpack.c.l.b16 %v577
      %v858 = vunpack.c.l.b16 %v578
      %v859 = vunpack.c.l.b16 %v579
      %v860 = vunpack.c.l.b16 %v580
      %v861 = vunpack.c.l.b16 %v581
      %v862 = vunpack.c.l.b16 %v582
      %v863 = vunpack.c.l.b16 %v583
      %v864 = vunpack.c.l.b16 %v584
      %v865 = vunpack.c.l.b16 %v585
      %v866 = vpack.c.b16 %v851, %v850
      %v867 = vpack.c.b16 %v853, %v852
      %v868 = vpack.c.b16 %v855, %v854
      %v869 = vpack.c.b16 %v857, %v856
      %v870 = vpack.c.b16 %v859, %v858
      %v871 = vpack.c.b16 %v861, %v860
      %v872 = vpack.c.b16 %v863, %v862
      %v873 = vpack.c.b16 %v865, %v864
      %882 = vmatpush.bf16.msra.mxu0 %v873
      %883 = vmatpush.bf16.msra.mxu0 %v872
      %884 = vmatpush.bf16.msra.mxu0 %v871
      %885 = vmatpush.bf16.msra.mxu0 %v870
      %886 = vmatpush.bf16.msra.mxu0 %v869
      %887 = vmatpush.bf16.msra.mxu0 %v868
      %888 = vmatpush.bf16.msra.mxu0 %v867
      %889 = vmatpush.bf16.msra.mxu0 %v866
      %890 = vmatmul.bf16.gmra.mxu0 %v752
      %v891 = vpop.f32.mrf.mxu0
      %v892 = vadd.f32 %v588, %v891
      %v893 = vpop.f32.mrf.mxu0
      %v894 = vadd.f32 %v588, %v893
      %895 = vmatmul.bf16.gmra.mxu0 %v753
      %v896 = vpop.f32.mrf.mxu0
      %v897 = vadd.f32 %v588, %v896
      %v898 = vpop.f32.mrf.mxu0
      %v899 = vadd.f32 %v588, %v898
      %900 = vmatmul.bf16.gmra.mxu0 %v754
      %v901 = vpop.f32.mrf.mxu0
      %v902 = vadd.f32 %v588, %v901
      %v903 = vpop.f32.mrf.mxu0
      %v904 = vadd.f32 %v588, %v903
      %905 = vmatmul.bf16.gmra.mxu0 %v755
      %v906 = vpop.f32.mrf.mxu0
      %v907 = vadd.f32 %v588, %v906
      %v908 = vpop.f32.mrf.mxu0
      %v909 = vadd.f32 %v588, %v908
      %910 = vmatmul.bf16.gmra.mxu0 %v756
      %v911 = vpop.f32.mrf.mxu0
      %v912 = vadd.f32 %v588, %v911
      %v913 = vpop.f32.mrf.mxu0
      %v914 = vadd.f32 %v588, %v913
      %915 = vmatmul.bf16.gmra.mxu0 %v757
      %v916 = vpop.f32.mrf.mxu0
      %v917 = vadd.f32 %v588, %v916
      %v918 = vpop.f32.mrf.mxu0
      %v919 = vadd.f32 %v588, %v918
      %920 = vmatmul.bf16.gmra.mxu0 %v758
      %v921 = vpop.f32.mrf.mxu0
      %v922 = vadd.f32 %v588, %v921
      %v923 = vpop.f32.mrf.mxu0
      %v924 = vadd.f32 %v588, %v923
      %925 = vmatmul.bf16.gmra.mxu0 %v759
      %v926 = vpop.f32.mrf.mxu0
      %v927 = vadd.f32 %v588, %v926
      %v928 = vpop.f32.mrf.mxu0
      %v929 = vadd.f32 %v588, %v928
      %930 = vmatmul.bf16.gmra.mxu0 %v760
      %v931 = vpop.f32.mrf.mxu0
      %v932 = vadd.f32 %v588, %v931
      %v933 = vpop.f32.mrf.mxu0
      %v934 = vadd.f32 %v588, %v933
      %935 = vmatmul.bf16.gmra.mxu0 %v761
      %v936 = vpop.f32.mrf.mxu0
      %v937 = vadd.f32 %v588, %v936
      %v938 = vpop.f32.mrf.mxu0
      %v939 = vadd.f32 %v588, %v938
      %940 = vmatmul.bf16.gmra.mxu0 %v762
      %v941 = vpop.f32.mrf.mxu0
      %v942 = vadd.f32 %v588, %v941
      %v943 = vpop.f32.mrf.mxu0
      %v944 = vadd.f32 %v588, %v943
      %945 = vmatmul.bf16.gmra.mxu0 %v763
      %v946 = vpop.f32.mrf.mxu0
      %v947 = vadd.f32 %v588, %v946
      %v948 = vpop.f32.mrf.mxu0
      %v949 = vadd.f32 %v588, %v948
      %950 = vmatmul.bf16.gmra.mxu0 %v764
      %v951 = vpop.f32.mrf.mxu0
      %v952 = vadd.f32 %v588, %v951
      %v953 = vpop.f32.mrf.mxu0
      %v954 = vadd.f32 %v588, %v953
      %955 = vmatmul.bf16.gmra.mxu0 %v765
      %v956 = vpop.f32.mrf.mxu0
      %v957 = vadd.f32 %v588, %v956
      %v958 = vpop.f32.mrf.mxu0
      %v959 = vadd.f32 %v588, %v958
      %960 = vmatmul.bf16.gmra.mxu0 %v766
      %v961 = vpop.f32.mrf.mxu0
      %v962 = vadd.f32 %v588, %v961
      %v963 = vpop.f32.mrf.mxu0
      %v964 = vadd.f32 %v588, %v963
      %965 = vmatmul.bf16.gmra.mxu0 %v767
      %v966 = vpop.f32.mrf.mxu0
      %v967 = vadd.f32 %v588, %v966
      %v968 = vpop.f32.mrf.mxu0
      %v969 = vadd.f32 %v588, %v968
      %970 = vmatmul.bf16.gmra.mxu0 %v768
      %v971 = vpop.f32.mrf.mxu0
      %v972 = vadd.f32 %v588, %v971
      %v973 = vpop.f32.mrf.mxu0
      %v974 = vadd.f32 %v588, %v973
      %975 = vmatmul.bf16.gmra.mxu0 %v769
      %v976 = vpop.f32.mrf.mxu0
      %v977 = vadd.f32 %v588, %v976
      %v978 = vpop.f32.mrf.mxu0
      %v979 = vadd.f32 %v588, %v978
      %980 = vmatmul.bf16.gmra.mxu0 %v770
      %v981 = vpop.f32.mrf.mxu0
      %v982 = vadd.f32 %v588, %v981
      %v983 = vpop.f32.mrf.mxu0
      %v984 = vadd.f32 %v588, %v983
      %985 = vmatmul.bf16.gmra.mxu0 %v771
      %v986 = vpop.f32.mrf.mxu0
      %v987 = vadd.f32 %v588, %v986
      %v988 = vpop.f32.mrf.mxu0
      %v989 = vadd.f32 %v588, %v988
      %990 = vmatmul.bf16.gmra.mxu0 %v772
      %v991 = vpop.f32.mrf.mxu0
      %v992 = vadd.f32 %v588, %v991
      %v993 = vpop.f32.mrf.mxu0
      %v994 = vadd.f32 %v588, %v993
      %995 = vmatmul.bf16.gmra.mxu0 %v773
      %v996 = vpop.f32.mrf.mxu0
      %v997 = vadd.f32 %v588, %v996
      %v998 = vpop.f32.mrf.mxu0
      %v999 = vadd.f32 %v588, %v998
      %1000 = vmatmul.bf16.gmra.mxu0 %v774
      %v1001 = vpop.f32.mrf.mxu0
      %v1002 = vadd.f32 %v588, %v1001
      %v1003 = vpop.f32.mrf.mxu0
      %v1004 = vadd.f32 %v588, %v1003
      %1005 = vmatmul.bf16.gmra.mxu0 %v775
      %v1006 = vpop.f32.mrf.mxu0
      %v1007 = vadd.f32 %v588, %v1006
      %v1008 = vpop.f32.mrf.mxu0
      %v1009 = vadd.f32 %v588, %v1008
      %1010 = vmatmul.bf16.gmra.mxu0 %v776
      %v1011 = vpop.f32.mrf.mxu0
      %v1012 = vadd.f32 %v588, %v1011
      %v1013 = vpop.f32.mrf.mxu0
      %v1014 = vadd.f32 %v588, %v1013
      %1015 = vmatmul.bf16.gmra.mxu0 %v777
      %v1016 = vpop.f32.mrf.mxu0
      %v1017 = vadd.f32 %v588, %v1016
      %v1018 = vpop.f32.mrf.mxu0
      %v1019 = vadd.f32 %v588, %v1018
      %1020 = vmatmul.bf16.gmra.mxu0 %v778
      %v1021 = vpop.f32.mrf.mxu0
      %v1022 = vadd.f32 %v588, %v1021
      %v1023 = vpop.f32.mrf.mxu0
      %v1024 = vadd.f32 %v588, %v1023
      %1025 = vmatmul.bf16.gmra.mxu0 %v779
      %v1026 = vpop.f32.mrf.mxu0
      %v1027 = vadd.f32 %v588, %v1026
      %v1028 = vpop.f32.mrf.mxu0
      %v1029 = vadd.f32 %v588, %v1028
      %1030 = vmatmul.bf16.gmra.mxu0 %v780
      %v1031 = vpop.f32.mrf.mxu0
      %v1032 = vadd.f32 %v588, %v1031
      %v1033 = vpop.f32.mrf.mxu0
      %v1034 = vadd.f32 %v588, %v1033
      %1035 = vmatmul.bf16.gmra.mxu0 %v781
      %v1036 = vpop.f32.mrf.mxu0
      %v1037 = vadd.f32 %v588, %v1036
      %v1038 = vpop.f32.mrf.mxu0
      %v1039 = vadd.f32 %v588, %v1038
      %1040 = vmatmul.bf16.gmra.mxu0 %v782
      %v1041 = vpop.f32.mrf.mxu0
      %v1042 = vadd.f32 %v588, %v1041
      %v1043 = vpop.f32.mrf.mxu0
      %v1044 = vadd.f32 %v588, %v1043
      %1045 = vmatmul.bf16.gmra.mxu0 %v783
      %v1046 = vpop.f32.mrf.mxu0
      %v1047 = vadd.f32 %v588, %v1046
      %v1048 = vpop.f32.mrf.mxu0
      %v1049 = vadd.f32 %v588, %v1048
      %1050 = vmatmul.bf16.gmra.mxu0 %v784
      %v1051 = vpop.f32.mrf.mxu0
      %v1052 = vadd.f32 %v588, %v1051
      %v1053 = vpop.f32.mrf.mxu0
      %v1054 = vadd.f32 %v588, %v1053
      %1055 = vmatmul.bf16.gmra.mxu0 %v785
      %v1056 = vpop.f32.mrf.mxu0
      %v1057 = vadd.f32 %v588, %v1056
      %v1058 = vpop.f32.mrf.mxu0
      %v1059 = vadd.f32 %v588, %v1058
      %1060 = vmatmul.bf16.gmra.mxu0 %v786
      %v1061 = vpop.f32.mrf.mxu0
      %v1062 = vadd.f32 %v588, %v1061
      %v1063 = vpop.f32.mrf.mxu0
      %v1064 = vadd.f32 %v588, %v1063
      %1065 = vmatmul.bf16.gmra.mxu0 %v787
      %v1066 = vpop.f32.mrf.mxu0
      %v1067 = vadd.f32 %v588, %v1066
      %v1068 = vpop.f32.mrf.mxu0
      %v1069 = vadd.f32 %v588, %v1068
      %1070 = vmatmul.bf16.gmra.mxu0 %v788
      %v1071 = vpop.f32.mrf.mxu0
      %v1072 = vadd.f32 %v588, %v1071
      %v1073 = vpop.f32.mrf.mxu0
      %v1074 = vadd.f32 %v588, %v1073
      %1075 = vmatmul.bf16.gmra.mxu0 %v789
      %v1076 = vpop.f32.mrf.mxu0
      %v1077 = vadd.f32 %v588, %v1076
      %v1078 = vpop.f32.mrf.mxu0
      %v1079 = vadd.f32 %v588, %v1078
      %1080 = vmatmul.bf16.gmra.mxu0 %v790
      %v1081 = vpop.f32.mrf.mxu0
      %v1082 = vadd.f32 %v588, %v1081
      %v1083 = vpop.f32.mrf.mxu0
      %v1084 = vadd.f32 %v588, %v1083
      %1085 = vmatmul.bf16.gmra.mxu0 %v791
      %v1086 = vpop.f32.mrf.mxu0
      %v1087 = vadd.f32 %v588, %v1086
      %v1088 = vpop.f32.mrf.mxu0
      %v1089 = vadd.f32 %v588, %v1088
      %1090 = vmatmul.bf16.gmra.mxu0 %v792
      %v1091 = vpop.f32.mrf.mxu0
      %v1092 = vadd.f32 %v588, %v1091
      %v1093 = vpop.f32.mrf.mxu0
      %1094 = vdwg.mxu0
      %v1095 = vmax.f32 %v892, 0.0
      %v1096 = vmax.f32 %v894, 0.0
      %v1097 = vmax.f32 %v897, 0.0
      %v1098 = vmax.f32 %v899, 0.0
      %v1099 = vmax.f32 %v902, 0.0
      %v1100 = vmax.f32 %v904, 0.0
      %v1101 = vmax.f32 %v907, 0.0
      %v1102 = vmax.f32 %v909, 0.0
      %v1103 = vmax.f32 %v912, 0.0
      %v1104 = vmax.f32 %v914, 0.0
      %v1105 = vmax.f32 %v917, 0.0
      %v1106 = vmax.f32 %v919, 0.0
      %v1107 = vmax.f32 %v922, 0.0
      %v1108 = vmax.f32 %v924, 0.0
      %v1109 = vmax.f32 %v927, 0.0
      %v1110 = vmax.f32 %v929, 0.0
      %v1111 = vmax.f32 %v932, 0.0
      %v1112 = vmax.f32 %v934, 0.0
      %v1113 = vmax.f32 %v937, 0.0
      %v1114 = vmax.f32 %v939, 0.0
      %v1115 = vmax.f32 %v942, 0.0
      %v1116 = vmax.f32 %v944, 0.0
      %v1117 = vmax.f32 %v947, 0.0
      %v1118 = vmax.f32 %v949, 0.0
      %v1119 = vmax.f32 %v952, 0.0
      %v1120 = vmax.f32 %v954, 0.0
      %v1121 = vmax.f32 %v957, 0.0
      %v1122 = vmax.f32 %v959, 0.0
      %v1123 = vmax.f32 %v962, 0.0
      %v1124 = vmax.f32 %v964, 0.0
      %v1125 = vmax.f32 %v967, 0.0
      %v1126 = vmax.f32 %v969, 0.0
      %v1127 = vmax.f32 %v972, 0.0
      %v1128 = vmax.f32 %v974, 0.0
      %v1129 = vmax.f32 %v977, 0.0
      %v1130 = vmax.f32 %v979, 0.0
      %v1131 = vmax.f32 %v982, 0.0
      %v1132 = vmax.f32 %v984, 0.0
      %v1133 = vmax.f32 %v987, 0.0
      %v1134 = vmax.f32 %v989, 0.0
      %v1135 = vmax.f32 %v992, 0.0
      %v1136 = vmax.f32 %v994, 0.0
      %v1137 = vmax.f32 %v997, 0.0
      %v1138 = vmax.f32 %v999, 0.0
      %v1139 = vmax.f32 %v1002, 0.0
      %v1140 = vmax.f32 %v1004, 0.0
      %v1141 = vmax.f32 %v1007, 0.0
      %v1142 = vmax.f32 %v1009, 0.0
      %v1143 = vmax.f32 %v1012, 0.0
      %v1144 = vmax.f32 %v1014, 0.0
      %v1145 = vmax.f32 %v1017, 0.0
      %v1146 = vmax.f32 %v1019, 0.0
      %v1147 = vmax.f32 %v1022, 0.0
      %v1148 = vmax.f32 %v1024, 0.0
      %v1149 = vmax.f32 %v1027, 0.0
      %v1150 = vmax.f32 %v1029, 0.0
      %v1151 = vmax.f32 %v1032, 0.0
      %v1152 = vmax.f32 %v1034, 0.0
      %v1153 = vmax.f32 %v1037, 0.0
      %v1154 = vmax.f32 %v1039, 0.0
      %v1155 = vmax.f32 %v1042, 0.0
      %v1156 = vmax.f32 %v1044, 0.0
      %v1157 = vmax.f32 %v1047, 0.0
      %v1158 = vmax.f32 %v1049, 0.0
      %v1159 = vmax.f32 %v1052, 0.0
      %v1160 = vmax.f32 %v1054, 0.0
      %v1161 = vmax.f32 %v1057, 0.0
      %v1162 = vmax.f32 %v1059, 0.0
      %v1163 = vmax.f32 %v1062, 0.0
      %v1164 = vmax.f32 %v1064, 0.0
      %v1165 = vmax.f32 %v1067, 0.0
      %v1166 = vmax.f32 %v1069, 0.0
      %v1167 = vmax.f32 %v1072, 0.0
      %v1168 = vmax.f32 %v1074, 0.0
      %v1169 = vmax.f32 %v1077, 0.0
      %v1170 = vmax.f32 %v1079, 0.0
      %v1171 = vmax.f32 %v1082, 0.0
      %v1172 = vmax.f32 %v1084, 0.0
      %v1173 = vmax.f32 %v1087, 0.0
      %v1174 = vmax.f32 %v1089, 0.0
      %v1175 = vmax.f32 %v1092, 0.0
      %1177 = vset.pattern.permute.xlu0 0
      %1178 = vperm.xlu0 %1177, %v408
      %v1179 = vpop.permute.xlu0 %1178
      %1182 = vset.pattern.permute.xlu0 0
      %1183 = vperm.xlu0 %1182, %v409
      %v1184 = vpop.permute.xlu0 %1183
      %1187 = vset.pattern.permute.xlu0 0
      %1188 = vperm.xlu0 %1187, %v410
      %v1189 = vpop.permute.xlu0 %1188
      %1192 = vset.pattern.permute.xlu0 0
      %1193 = vperm.xlu0 %1192, %v411
      %v1194 = vpop.permute.xlu0 %1193
      %1197 = vset.pattern.permute.xlu0 0
      %1198 = vperm.xlu0 %1197, %v412
      %v1199 = vpop.permute.xlu0 %1198
      %1202 = vset.pattern.permute.xlu0 0
      %1203 = vperm.xlu0 %1202, %v413
      %v1204 = vpop.permute.xlu0 %1203
      %1207 = vset.pattern.permute.xlu0 0
      %1208 = vperm.xlu0 %1207, %v414
      %v1209 = vpop.permute.xlu0 %1208
      %1212 = vset.pattern.permute.xlu0 0
      %1213 = vperm.xlu0 %1212, %v415
      %v1214 = vpop.permute.xlu0 %1213
      %1217 = vset.pattern.permute.xlu0 0
      %1218 = vperm.xlu0 %1217, %v416
      %v1219 = vpop.permute.xlu0 %1218
      %1222 = vset.pattern.permute.xlu0 0
      %1223 = vperm.xlu0 %1222, %v417
      %v1224 = vpop.permute.xlu0 %1223
      %1227 = vset.pattern.permute.xlu0 0
      %1228 = vperm.xlu0 %1227, %v418
      %v1229 = vpop.permute.xlu0 %1228
      %1232 = vset.pattern.permute.xlu0 0
      %1233 = vperm.xlu0 %1232, %v419
      %v1234 = vpop.permute.xlu0 %1233
      %1237 = vset.pattern.permute.xlu0 0
      %1238 = vperm.xlu0 %1237, %v420
      %v1239 = vpop.permute.xlu0 %1238
      %1242 = vset.pattern.permute.xlu0 0
      %1243 = vperm.xlu0 %1242, %v421
      %v1244 = vpop.permute.xlu0 %1243
      %1247 = vset.pattern.permute.xlu0 0
      %1248 = vperm.xlu0 %1247, %v422
      %v1249 = vpop.permute.xlu0 %1248
      %1252 = vset.pattern.permute.xlu0 0
      %1253 = vperm.xlu0 %1252, %v423
      %v1254 = vpop.permute.xlu0 %1253
      %1257 = vset.pattern.permute.xlu0 0
      %1258 = vperm.xlu0 %1257, %v424
      %v1259 = vpop.permute.xlu0 %1258
      %1262 = vset.pattern.permute.xlu0 0
      %1263 = vperm.xlu0 %1262, %v425
      %v1264 = vpop.permute.xlu0 %1263
      %1267 = vset.pattern.permute.xlu0 0
      %1268 = vperm.xlu0 %1267, %v426
      %v1269 = vpop.permute.xlu0 %1268
      %1272 = vset.pattern.permute.xlu0 0
      %1273 = vperm.xlu0 %1272, %v427
      %v1274 = vpop.permute.xlu0 %1273
      %1277 = vset.pattern.permute.xlu0 0
      %1278 = vperm.xlu0 %1277, %v428
      %v1279 = vpop.permute.xlu0 %1278
      %1282 = vset.pattern.permute.xlu0 0
      %1283 = vperm.xlu0 %1282, %v429
      %v1284 = vpop.permute.xlu0 %1283
      %1287 = vset.pattern.permute.xlu0 0
      %1288 = vperm.xlu0 %1287, %v430
      %v1289 = vpop.permute.xlu0 %1288
      %1292 = vset.pattern.permute.xlu0 0
      %1293 = vperm.xlu0 %1292, %v431
      %v1294 = vpop.permute.xlu0 %1293
      %1297 = vset.pattern.permute.xlu0 0
      %1298 = vperm.xlu0 %1297, %v432
      %v1299 = vpop.permute.xlu0 %1298
      %1302 = vset.pattern.permute.xlu0 0
      %1303 = vperm.xlu0 %1302, %v433
      %v1304 = vpop.permute.xlu0 %1303
      %1307 = vset.pattern.permute.xlu0 0
      %1308 = vperm.xlu0 %1307, %v434
      %v1309 = vpop.permute.xlu0 %1308
      %1312 = vset.pattern.permute.xlu0 0
      %1313 = vperm.xlu0 %1312, %v435
      %v1314 = vpop.permute.xlu0 %1313
      %1317 = vset.pattern.permute.xlu0 0
      %1318 = vperm.xlu0 %1317, %v436
      %v1319 = vpop.permute.xlu0 %1318
      %1322 = vset.pattern.permute.xlu0 0
      %1323 = vperm.xlu0 %1322, %v437
      %v1324 = vpop.permute.xlu0 %1323
      %1327 = vset.pattern.permute.xlu0 0
      %1328 = vperm.xlu0 %1327, %v438
      %v1329 = vpop.permute.xlu0 %1328
      %1332 = vset.pattern.permute.xlu0 0
      %1333 = vperm.xlu0 %1332, %v439
      %v1334 = vpop.permute.xlu0 %1333
      %1337 = vset.pattern.permute.xlu0 0
      %1338 = vperm.xlu0 %1337, %v440
      %v1339 = vpop.permute.xlu0 %1338
      %1342 = vset.pattern.permute.xlu0 0
      %1343 = vperm.xlu0 %1342, %v441
      %v1344 = vpop.permute.xlu0 %1343
      %1347 = vset.pattern.permute.xlu0 0
      %1348 = vperm.xlu0 %1347, %v442
      %v1349 = vpop.permute.xlu0 %1348
      %1352 = vset.pattern.permute.xlu0 0
      %1353 = vperm.xlu0 %1352, %v443
      %v1354 = vpop.permute.xlu0 %1353
      %1357 = vset.pattern.permute.xlu0 0
      %1358 = vperm.xlu0 %1357, %v444
      %v1359 = vpop.permute.xlu0 %1358
      %1362 = vset.pattern.permute.xlu0 0
      %1363 = vperm.xlu0 %1362, %v445
      %v1364 = vpop.permute.xlu0 %1363
      %1367 = vset.pattern.permute.xlu0 0
      %1368 = vperm.xlu0 %1367, %v446
      %v1369 = vpop.permute.xlu0 %1368
      %1372 = vset.pattern.permute.xlu0 0
      %1373 = vperm.xlu0 %1372, %v447
      %v1374 = vpop.permute.xlu0 %1373
      %1377 = vset.pattern.permute.xlu0 0
      %1378 = vperm.xlu0 %1377, %v448
      %v1379 = vpop.permute.xlu0 %1378
      %1382 = vset.pattern.permute.xlu0 0
      %1383 = vperm.xlu0 %1382, %v449
      %v1384 = vpop.permute.xlu0 %1383
      %1387 = vset.pattern.permute.xlu0 0
      %1388 = vperm.xlu0 %1387, %v450
      %v1389 = vpop.permute.xlu0 %1388
      %1392 = vset.pattern.permute.xlu0 0
      %1393 = vperm.xlu0 %1392, %v451
      %v1394 = vpop.permute.xlu0 %1393
      %1397 = vset.pattern.permute.xlu0 0
      %1398 = vperm.xlu0 %1397, %v452
      %v1399 = vpop.permute.xlu0 %1398
      %1402 = vset.pattern.permute.xlu0 0
      %1403 = vperm.xlu0 %1402, %v453
      %v1404 = vpop.permute.xlu0 %1403
      %1407 = vset.pattern.permute.xlu0 0
      %1408 = vperm.xlu0 %1407, %v454
      %v1409 = vpop.permute.xlu0 %1408
      %1412 = vset.pattern.permute.xlu0 0
      %1413 = vperm.xlu0 %1412, %v455
      %v1414 = vpop.permute.xlu0 %1413
      %1417 = vset.pattern.permute.xlu0 0
      %1418 = vperm.xlu0 %1417, %v456
      %v1419 = vpop.permute.xlu0 %1418
      %1422 = vset.pattern.permute.xlu0 0
      %1423 = vperm.xlu0 %1422, %v457
      %v1424 = vpop.permute.xlu0 %1423
      %1427 = vset.pattern.permute.xlu0 0
      %1428 = vperm.xlu0 %1427, %v458
      %v1429 = vpop.permute.xlu0 %1428
      %1432 = vset.pattern.permute.xlu0 0
      %1433 = vperm.xlu0 %1432, %v459
      %v1434 = vpop.permute.xlu0 %1433
      %1437 = vset.pattern.permute.xlu0 0
      %1438 = vperm.xlu0 %1437, %v460
      %v1439 = vpop.permute.xlu0 %1438
      %1442 = vset.pattern.permute.xlu0 0
      %1443 = vperm.xlu0 %1442, %v461
      %v1444 = vpop.permute.xlu0 %1443
      %1447 = vset.pattern.permute.xlu0 0
      %1448 = vperm.xlu0 %1447, %v462
      %v1449 = vpop.permute.xlu0 %1448
      %1452 = vset.pattern.permute.xlu0 0
      %1453 = vperm.xlu0 %1452, %v463
      %v1454 = vpop.permute.xlu0 %1453
      %1457 = vset.pattern.permute.xlu0 0
      %1458 = vperm.xlu0 %1457, %v464
      %v1459 = vpop.permute.xlu0 %1458
      %1462 = vset.pattern.permute.xlu0 0
      %1463 = vperm.xlu0 %1462, %v465
      %v1464 = vpop.permute.xlu0 %1463
      %1467 = vset.pattern.permute.xlu0 0
      %1468 = vperm.xlu0 %1467, %v466
      %v1469 = vpop.permute.xlu0 %1468
      %1472 = vset.pattern.permute.xlu0 0
      %1473 = vperm.xlu0 %1472, %v467
      %v1474 = vpop.permute.xlu0 %1473
      %1477 = vset.pattern.permute.xlu0 0
      %1478 = vperm.xlu0 %1477, %v468
      %v1479 = vpop.permute.xlu0 %1478
      %1482 = vset.pattern.permute.xlu0 0
      %1483 = vperm.xlu0 %1482, %v469
      %v1484 = vpop.permute.xlu0 %1483
      %1487 = vset.pattern.permute.xlu0 0
      %1488 = vperm.xlu0 %1487, %v470
      %v1489 = vpop.permute.xlu0 %1488
      %1492 = vset.pattern.permute.xlu0 0
      %1493 = vperm.xlu0 %1492, %v471
      %v1494 = vpop.permute.xlu0 %1493
      %1497 = vset.pattern.permute.xlu0 0
      %1498 = vperm.xlu0 %1497, %v472
      %v1499 = vpop.permute.xlu0 %1498
      %1502 = vset.pattern.permute.xlu0 0
      %1503 = vperm.xlu0 %1502, %v473
      %v1504 = vpop.permute.xlu0 %1503
      %1507 = vset.pattern.permute.xlu0 0
      %1508 = vperm.xlu0 %1507, %v474
      %v1509 = vpop.permute.xlu0 %1508
      %1512 = vset.pattern.permute.xlu0 0
      %1513 = vperm.xlu0 %1512, %v475
      %v1514 = vpop.permute.xlu0 %1513
      %1517 = vset.pattern.permute.xlu0 0
      %1518 = vperm.xlu0 %1517, %v476
      %v1519 = vpop.permute.xlu0 %1518
      %1522 = vset.pattern.permute.xlu0 0
      %1523 = vperm.xlu0 %1522, %v477
      %v1524 = vpop.permute.xlu0 %1523
      %1527 = vset.pattern.permute.xlu0 0
      %1528 = vperm.xlu0 %1527, %v478
      %v1529 = vpop.permute.xlu0 %1528
      %1532 = vset.pattern.permute.xlu0 0
      %1533 = vperm.xlu0 %1532, %v479
      %v1534 = vpop.permute.xlu0 %1533
      %1537 = vset.pattern.permute.xlu0 0
      %1538 = vperm.xlu0 %1537, %v480
      %v1539 = vpop.permute.xlu0 %1538
      %1542 = vset.pattern.permute.xlu0 0
      %1543 = vperm.xlu0 %1542, %v481
      %v1544 = vpop.permute.xlu0 %1543
      %1547 = vset.pattern.permute.xlu0 0
      %1548 = vperm.xlu0 %1547, %v482
      %v1549 = vpop.permute.xlu0 %1548
      %1552 = vset.pattern.permute.xlu0 0
      %1553 = vperm.xlu0 %1552, %v483
      %v1554 = vpop.permute.xlu0 %1553
      %1557 = vset.pattern.permute.xlu0 0
      %1558 = vperm.xlu0 %1557, %v484
      %v1559 = vpop.permute.xlu0 %1558
      %1562 = vset.pattern.permute.xlu0 0
      %1563 = vperm.xlu0 %1562, %v485
      %v1564 = vpop.permute.xlu0 %1563
      %1567 = vset.pattern.permute.xlu0 0
      %1568 = vperm.xlu0 %1567, %v486
      %v1569 = vpop.permute.xlu0 %1568
      %1572 = vset.pattern.permute.xlu0 0
      %1573 = vperm.xlu0 %1572, %v487
      %v1574 = vpop.permute.xlu0 %1573
      %1577 = vset.pattern.permute.xlu0 0
      %1578 = vperm.xlu0 %1577, %v488
      %v1579 = vpop.permute.xlu0 %1578
      %v1581 = vmul.f32 %v1095, %v1179
      %v1582 = vmul.f32 %v1096, %v1184
      %v1583 = vmul.f32 %v1097, %v1189
      %v1584 = vmul.f32 %v1098, %v1194
      %v1585 = vmul.f32 %v1099, %v1199
      %v1586 = vmul.f32 %v1100, %v1204
      %v1587 = vmul.f32 %v1101, %v1209
      %v1588 = vmul.f32 %v1102, %v1214
      %v1589 = vmul.f32 %v1103, %v1219
      %v1590 = vmul.f32 %v1104, %v1224
      %v1591 = vmul.f32 %v1105, %v1229
      %v1592 = vmul.f32 %v1106, %v1234
      %v1593 = vmul.f32 %v1107, %v1239
      %v1594 = vmul.f32 %v1108, %v1244
      %v1595 = vmul.f32 %v1109, %v1249
      %v1596 = vmul.f32 %v1110, %v1254
      %v1597 = vmul.f32 %v1111, %v1259
      %v1598 = vmul.f32 %v1112, %v1264
      %v1599 = vmul.f32 %v1113, %v1269
      %v1600 = vmul.f32 %v1114, %v1274
      %v1601 = vmul.f32 %v1115, %v1279
      %v1602 = vmul.f32 %v1116, %v1284
      %v1603 = vmul.f32 %v1117, %v1289
      %v1604 = vmul.f32 %v1118, %v1294
      %v1605 = vmul.f32 %v1119, %v1299
      %v1606 = vmul.f32 %v1120, %v1304
      %v1607 = vmul.f32 %v1121, %v1309
      %v1608 = vmul.f32 %v1122, %v1314
      %v1609 = vmul.f32 %v1123, %v1319
      %v1610 = vmul.f32 %v1124, %v1324
      %v1611 = vmul.f32 %v1125, %v1329
      %v1612 = vmul.f32 %v1126, %v1334
      %v1613 = vmul.f32 %v1127, %v1339
      %v1614 = vmul.f32 %v1128, %v1344
      %v1615 = vmul.f32 %v1129, %v1349
      %v1616 = vmul.f32 %v1130, %v1354
      %v1617 = vmul.f32 %v1131, %v1359
      %v1618 = vmul.f32 %v1132, %v1364
      %v1619 = vmul.f32 %v1133, %v1369
      %v1620 = vmul.f32 %v1134, %v1374
      %v1621 = vmul.f32 %v1135, %v1379
      %v1622 = vmul.f32 %v1136, %v1384
      %v1623 = vmul.f32 %v1137, %v1389
      %v1624 = vmul.f32 %v1138, %v1394
      %v1625 = vmul.f32 %v1139, %v1399
      %v1626 = vmul.f32 %v1140, %v1404
      %v1627 = vmul.f32 %v1141, %v1409
      %v1628 = vmul.f32 %v1142, %v1414
      %v1629 = vmul.f32 %v1143, %v1419
      %v1630 = vmul.f32 %v1144, %v1424
      %v1631 = vmul.f32 %v1145, %v1429
      %v1632 = vmul.f32 %v1146, %v1434
      %v1633 = vmul.f32 %v1147, %v1439
      %v1634 = vmul.f32 %v1148, %v1444
      %v1635 = vmul.f32 %v1149, %v1449
      %v1636 = vmul.f32 %v1150, %v1454
      %v1637 = vmul.f32 %v1151, %v1459
      %v1638 = vmul.f32 %v1152, %v1464
      %v1639 = vmul.f32 %v1153, %v1469
      %v1640 = vmul.f32 %v1154, %v1474
      %v1641 = vmul.f32 %v1155, %v1479
      %v1642 = vmul.f32 %v1156, %v1484
      %v1643 = vmul.f32 %v1157, %v1489
      %v1644 = vmul.f32 %v1158, %v1494
      %v1645 = vmul.f32 %v1159, %v1499
      %v1646 = vmul.f32 %v1160, %v1504
      %v1647 = vmul.f32 %v1161, %v1509
      %v1648 = vmul.f32 %v1162, %v1514
      %v1649 = vmul.f32 %v1163, %v1519
      %v1650 = vmul.f32 %v1164, %v1524
      %v1651 = vmul.f32 %v1165, %v1529
      %v1652 = vmul.f32 %v1166, %v1534
      %v1653 = vmul.f32 %v1167, %v1539
      %v1654 = vmul.f32 %v1168, %v1544
      %v1655 = vmul.f32 %v1169, %v1549
      %v1656 = vmul.f32 %v1170, %v1554
      %v1657 = vmul.f32 %v1171, %v1559
      %v1658 = vmul.f32 %v1172, %v1564
      %v1659 = vmul.f32 %v1173, %v1569
      %v1660 = vmul.f32 %v1174, %v1574
      %v1661 = vmul.f32 %v1175, %v1579
      %v1662 = vpack.c.bf16 %v1581, %v1581
      %v1663 = vpack.c.bf16 %v1582, %v1582
      %v1664 = vpack.c.bf16 %v1583, %v1583
      %v1665 = vpack.c.bf16 %v1584, %v1584
      %v1666 = vpack.c.bf16 %v1585, %v1585
      %v1667 = vpack.c.bf16 %v1586, %v1586
      %v1668 = vpack.c.bf16 %v1587, %v1587
      %v1669 = vpack.c.bf16 %v1588, %v1588
      %v1670 = vpack.c.bf16 %v1589, %v1589
      %v1671 = vpack.c.bf16 %v1590, %v1590
      %v1672 = vpack.c.bf16 %v1591, %v1591
      %v1673 = vpack.c.bf16 %v1592, %v1592
      %v1674 = vpack.c.bf16 %v1593, %v1593
      %v1675 = vpack.c.bf16 %v1594, %v1594
      %v1676 = vpack.c.bf16 %v1595, %v1595
      %v1677 = vpack.c.bf16 %v1596, %v1596
      %v1678 = vpack.c.bf16 %v1597, %v1597
      %v1679 = vpack.c.bf16 %v1598, %v1598
      %v1680 = vpack.c.bf16 %v1599, %v1599
      %v1681 = vpack.c.bf16 %v1600, %v1600
      %v1682 = vpack.c.bf16 %v1601, %v1601
      %v1683 = vpack.c.bf16 %v1602, %v1602
      %v1684 = vpack.c.bf16 %v1603, %v1603
      %v1685 = vpack.c.bf16 %v1604, %v1604
      %v1686 = vpack.c.bf16 %v1605, %v1605
      %v1687 = vpack.c.bf16 %v1606, %v1606
      %v1688 = vpack.c.bf16 %v1607, %v1607
      %v1689 = vpack.c.bf16 %v1608, %v1608
      %v1690 = vpack.c.bf16 %v1609, %v1609
      %v1691 = vpack.c.bf16 %v1610, %v1610
      %v1692 = vpack.c.bf16 %v1611, %v1611
      %v1693 = vpack.c.bf16 %v1612, %v1612
      %v1694 = vpack.c.bf16 %v1613, %v1613
      %v1695 = vpack.c.bf16 %v1614, %v1614
      %v1696 = vpack.c.bf16 %v1615, %v1615
      %v1697 = vpack.c.bf16 %v1616, %v1616
      %v1698 = vpack.c.bf16 %v1617, %v1617
      %v1699 = vpack.c.bf16 %v1618, %v1618
      %v1700 = vpack.c.bf16 %v1619, %v1619
      %v1701 = vpack.c.bf16 %v1620, %v1620
      %v1702 = vpack.c.bf16 %v1621, %v1621
      %v1703 = vpack.c.bf16 %v1622, %v1622
      %v1704 = vpack.c.bf16 %v1623, %v1623
      %v1705 = vpack.c.bf16 %v1624, %v1624
      %v1706 = vpack.c.bf16 %v1625, %v1625
      %v1707 = vpack.c.bf16 %v1626, %v1626
      %v1708 = vpack.c.bf16 %v1627, %v1627
      %v1709 = vpack.c.bf16 %v1628, %v1628
      %v1710 = vpack.c.bf16 %v1629, %v1629
      %v1711 = vpack.c.bf16 %v1630, %v1630
      %v1712 = vpack.c.bf16 %v1631, %v1631
      %v1713 = vpack.c.bf16 %v1632, %v1632
      %v1714 = vpack.c.bf16 %v1633, %v1633
      %v1715 = vpack.c.bf16 %v1634, %v1634
      %v1716 = vpack.c.bf16 %v1635, %v1635
      %v1717 = vpack.c.bf16 %v1636, %v1636
      %v1718 = vpack.c.bf16 %v1637, %v1637
      %v1719 = vpack.c.bf16 %v1638, %v1638
      %v1720 = vpack.c.bf16 %v1639, %v1639
      %v1721 = vpack.c.bf16 %v1640, %v1640
      %v1722 = vpack.c.bf16 %v1641, %v1641
      %v1723 = vpack.c.bf16 %v1642, %v1642
      %v1724 = vpack.c.bf16 %v1643, %v1643
      %v1725 = vpack.c.bf16 %v1644, %v1644
      %v1726 = vpack.c.bf16 %v1645, %v1645
      %v1727 = vpack.c.bf16 %v1646, %v1646
      %v1728 = vpack.c.bf16 %v1647, %v1647
      %v1729 = vpack.c.bf16 %v1648, %v1648
      %v1730 = vpack.c.bf16 %v1649, %v1649
      %v1731 = vpack.c.bf16 %v1650, %v1650
      %v1732 = vpack.c.bf16 %v1651, %v1651
      %v1733 = vpack.c.bf16 %v1652, %v1652
      %v1734 = vpack.c.bf16 %v1653, %v1653
      %v1735 = vpack.c.bf16 %v1654, %v1654
      %v1736 = vpack.c.bf16 %v1655, %v1655
      %v1737 = vpack.c.bf16 %v1656, %v1656
      %v1738 = vpack.c.bf16 %v1657, %v1657
      %v1739 = vpack.c.bf16 %v1658, %v1658
      %v1740 = vpack.c.bf16 %v1659, %v1659
      %v1741 = vpack.c.bf16 %v1660, %v1660
      %v1742 = vpack.c.bf16 %v1661, %v1661
      %1743 = vst [vmem:[#allocation2 + $0x10] sm:$0xf] %v1662
      %1744 = vst [vmem:[#allocation2 + $0x14] sm:$0xf] %v1663
      %1745 = vst [vmem:[#allocation2 + $0x18] sm:$0xf] %v1664
      %1746 = vst [vmem:[#allocation2 + $0x1c] sm:$0xf] %v1665
      %1747 = vst [vmem:[#allocation2 + $0x20] sm:$0xf] %v1666
      %1748 = vst [vmem:[#allocation2 + $0x24] sm:$0xf] %v1667
      %1749 = vst [vmem:[#allocation2 + $0x28] sm:$0xf] %v1668
      %1750 = vst [vmem:[#allocation2 + $0x2c] sm:$0xf] %v1669
      %1751 = vst [vmem:[#allocation2 + $0x30] sm:$0xf] %v1670
      %1752 = vst [vmem:[#allocation2 + $0x34] sm:$0xf] %v1671
      %1753 = vst [vmem:[#allocation2 + $0x38] sm:$0xf] %v1672
      %1754 = vst [vmem:[#allocation2 + $0x3c] sm:$0xf] %v1673
      %1755 = vst [vmem:[#allocation2 + $0x40] sm:$0xf] %v1674
      %1756 = vst [vmem:[#allocation2 + $0x44] sm:$0xf] %v1675
      %1757 = vst [vmem:[#allocation2 + $0x48] sm:$0xf] %v1676
      %1758 = vst [vmem:[#allocation2 + $0x4c] sm:$0xf] %v1677
      %1759 = vst [vmem:[#allocation2 + $0x50] sm:$0xf] %v1678
      %1760 = vst [vmem:[#allocation2 + $0x54] sm:$0xf] %v1679
      %1761 = vst [vmem:[#allocation2 + $0x58] sm:$0xf] %v1680
      %1762 = vst [vmem:[#allocation2 + $0x5c] sm:$0xf] %v1681
      %1763 = vst [vmem:[#allocation2 + $0x60] sm:$0xf] %v1682
      %1764 = vst [vmem:[#allocation2 + $0x64] sm:$0xf] %v1683
      %1765 = vst [vmem:[#allocation2 + $0x68] sm:$0xf] %v1684
      %1766 = vst [vmem:[#allocation2 + $0x6c] sm:$0xf] %v1685
      %1767 = vst [vmem:[#allocation2 + $0x70] sm:$0xf] %v1686
      %1768 = vst [vmem:[#allocation2 + $0x74] sm:$0xf] %v1687
      %1769 = vst [vmem:[#allocation2 + $0x78] sm:$0xf] %v1688
      %1770 = vst [vmem:[#allocation2 + $0x7c] sm:$0xf] %v1689
      %1771 = vst [vmem:[#allocation2 + $0x80] sm:$0xf] %v1690
      %1772 = vst [vmem:[#allocation2 + $0x84] sm:$0xf] %v1691
      %1773 = vst [vmem:[#allocation2 + $0x88] sm:$0xf] %v1692
      %1774 = vst [vmem:[#allocation2 + $0x8c] sm:$0xf] %v1693
      %1775 = vst [vmem:[#allocation2 + $0x90] sm:$0xf] %v1694
      %1776 = vst [vmem:[#allocation2 + $0x94] sm:$0xf] %v1695
      %1777 = vst [vmem:[#allocation2 + $0x98] sm:$0xf] %v1696
      %1778 = vst [vmem:[#allocation2 + $0x9c] sm:$0xf] %v1697
      %1779 = vst [vmem:[#allocation2 + $0xa0] sm:$0xf] %v1698
      %1780 = vst [vmem:[#allocation2 + $0xa4] sm:$0xf] %v1699
      %1781 = vst [vmem:[#allocation2 + $0xa8] sm:$0xf] %v1700
      %1782 = vst [vmem:[#allocation2 + $0xac] sm:$0xf] %v1701
      %1783 = vst [vmem:[#allocation2 + $0xb0] sm:$0xf] %v1702
      %1784 = vst [vmem:[#allocation2 + $0xb4] sm:$0xf] %v1703
      %1785 = vst [vmem:[#allocation2 + $0xb8] sm:$0xf] %v1704
      %1786 = vst [vmem:[#allocation2 + $0xbc] sm:$0xf] %v1705
      %1787 = vst [vmem:[#allocation2 + $0xc0] sm:$0xf] %v1706
      %1788 = vst [vmem:[#allocation2 + $0xc4] sm:$0xf] %v1707
      %1789 = vst [vmem:[#allocation2 + $0xc8] sm:$0xf] %v1708
      %1790 = vst [vmem:[#allocation2 + $0xcc] sm:$0xf] %v1709
      %1791 = vst [vmem:[#allocation2 + $0xd0] sm:$0xf] %v1710
      %1792 = vst [vmem:[#allocation2 + $0xd4] sm:$0xf] %v1711
      %1793 = vst [vmem:[#allocation2 + $0xd8] sm:$0xf] %v1712
      %1794 = vst [vmem:[#allocation2 + $0xdc] sm:$0xf] %v1713
      %1795 = vst [vmem:[#allocation2 + $0xe0] sm:$0xf] %v1714
      %1796 = vst [vmem:[#allocation2 + $0xe4] sm:$0xf] %v1715
      %1797 = vst [vmem:[#allocation2 + $0xe8] sm:$0xf] %v1716
      %1798 = vst [vmem:[#allocation2 + $0xec] sm:$0xf] %v1717
      %1799 = vst [vmem:[#allocation2 + $0xf0] sm:$0xf] %v1718
      %1800 = vst [vmem:[#allocation2 + $0xf4] sm:$0xf] %v1719
      %1801 = vst [vmem:[#allocation2 + $0xf8] sm:$0xf] %v1720
      %1802 = vst [vmem:[#allocation2 + $0xfc] sm:$0xf] %v1721
      %1803 = vst [vmem:[#allocation2 + $0x100] sm:$0xf] %v1722
      %1804 = vst [vmem:[#allocation2 + $0x104] sm:$0xf] %v1723
      %1805 = vst [vmem:[#allocation2 + $0x108] sm:$0xf] %v1724
      %1806 = vst [vmem:[#allocation2 + $0x10c] sm:$0xf] %v1725
      %1807 = vst [vmem:[#allocation2 + $0x110] sm:$0xf] %v1726
      %1808 = vst [vmem:[#allocation2 + $0x114] sm:$0xf] %v1727
      %1809 = vst [vmem:[#allocation2 + $0x118] sm:$0xf] %v1728
      %1810 = vst [vmem:[#allocation2 + $0x11c] sm:$0xf] %v1729
      %1811 = vst [vmem:[#allocation2 + $0x120] sm:$0xf] %v1730
      %1812 = vst [vmem:[#allocation2 + $0x124] sm:$0xf] %v1731
      %1813 = vst [vmem:[#allocation2 + $0x128] sm:$0xf] %v1732
      %1814 = vst [vmem:[#allocation2 + $0x12c] sm:$0xf] %v1733
      %1815 = vst [vmem:[#allocation2 + $0x130] sm:$0xf] %v1734
      %1816 = vst [vmem:[#allocation2 + $0x134] sm:$0xf] %v1735
      %1817 = vst [vmem:[#allocation2 + $0x138] sm:$0xf] %v1736
      %1818 = vst [vmem:[#allocation2 + $0x13c] sm:$0xf] %v1737
      %1819 = vst [vmem:[#allocation2 + $0x140] sm:$0xf] %v1738
      %1820 = vst [vmem:[#allocation2 + $0x144] sm:$0xf] %v1739
      %1821 = vst [vmem:[#allocation2 + $0x148] sm:$0xf] %v1740
      %1822 = vst [vmem:[#allocation2 + $0x14c] sm:$0xf] %v1741
      %1823 = vst [vmem:[#allocation2 + $0x150] sm:$0xf] %v1742
      %v1824 = vld [vmem:[#allocation2 + $0x4] sm:$0xc]
      %v1825 = vld [vmem:[#allocation2 + $0x8] sm:$0xf]
      %v1826 = vld [vmem:[#allocation2 + $0xc] sm:$0xf]
      %v1827 = vld [vmem:[#allocation2 + $0x10] sm:$0xf]
      %v1828 = vld [vmem:[#allocation2 + $0x14] sm:$0xf]
      %v1829 = vld [vmem:[#allocation2 + $0x18] sm:$0xf]
      %v1830 = vld [vmem:[#allocation2 + $0x1c] sm:$0xf]
      %v1831 = vld [vmem:[#allocation2 + $0x20] sm:$0xf]
      %v1832 = vld [vmem:[#allocation2 + $0x24] sm:$0xf]
      %v1833 = vld [vmem:[#allocation2 + $0x28] sm:$0xf]
      %v1834 = vld [vmem:[#allocation2 + $0x2c] sm:$0xf]
      %v1835 = vld [vmem:[#allocation2 + $0x30] sm:$0xf]
      %v1836 = vld [vmem:[#allocation2 + $0x34] sm:$0xf]
      %v1837 = vld [vmem:[#allocation2 + $0x38] sm:$0xf]
      %v1838 = vld [vmem:[#allocation2 + $0x3c] sm:$0xf]
      %v1839 = vld [vmem:[#allocation2 + $0x40] sm:$0xf]
      %v1840 = vld [vmem:[#allocation2 + $0x44] sm:$0xf]
      %v1841 = vld [vmem:[#allocation2 + $0x48] sm:$0xf]
      %v1842 = vld [vmem:[#allocation2 + $0x4c] sm:$0xf]
      %v1843 = vld [vmem:[#allocation2 + $0x50] sm:$0xf]
      %v1844 = vld [vmem:[#allocation2 + $0x54] sm:$0xf]
      %v1845 = vld [vmem:[#allocation2 + $0x58] sm:$0xf]
      %v1846 = vld [vmem:[#allocation2 + $0x5c] sm:$0xf]
      %v1847 = vld [vmem:[#allocation2 + $0x60] sm:$0xf]
      %v1848 = vld [vmem:[#allocation2 + $0x64] sm:$0xf]
      %v1849 = vld [vmem:[#allocation2 + $0x68] sm:$0xf]
      %v1850 = vld [vmem:[#allocation2 + $0x6c] sm:$0xf]
      %v1851 = vld [vmem:[#allocation2 + $0x70] sm:$0xf]
      %v1852 = vld [vmem:[#allocation2 + $0x74] sm:$0xf]
      %v1853 = vld [vmem:[#allocation2 + $0x78] sm:$0xf]
      %v1854 = vld [vmem:[#allocation2 + $0x7c] sm:$0xf]
      %v1855 = vld [vmem:[#allocation2 + $0x80] sm:$0xf]
      %v1856 = vld [vmem:[#allocation2 + $0x84] sm:$0xf]
      %v1857 = vld [vmem:[#allocation2 + $0x88] sm:$0xf]
      %v1858 = vld [vmem:[#allocation2 + $0x8c] sm:$0xf]
      %v1859 = vld [vmem:[#allocation2 + $0x90] sm:$0xf]
      %v1860 = vld [vmem:[#allocation2 + $0x94] sm:$0xf]
      %v1861 = vld [vmem:[#allocation2 + $0x98] sm:$0xf]
      %v1862 = vld [vmem:[#allocation2 + $0x9c] sm:$0xf]
      %v1863 = vld [vmem:[#allocation2 + $0xa0] sm:$0xf]
      %v1864 = vld [vmem:[#allocation2 + $0xa4] sm:$0xf]
      %v1865 = vld [vmem:[#allocation2 + $0xa8] sm:$0xf]
      %v1866 = vld [vmem:[#allocation2 + $0xac] sm:$0xf]
      %v1867 = vld [vmem:[#allocation2 + $0xb0] sm:$0xf]
      %v1868 = vld [vmem:[#allocation2 + $0xb4] sm:$0xf]
      %v1869 = vld [vmem:[#allocation2 + $0xb8] sm:$0xf]
      %v1870 = vld [vmem:[#allocation2 + $0xbc] sm:$0xf]
      %v1871 = vld [vmem:[#allocation2 + $0xc0] sm:$0xf]
      %v1872 = vld [vmem:[#allocation2 + $0xc4] sm:$0xf]
      %v1873 = vld [vmem:[#allocation2 + $0xc8] sm:$0xf]
      %v1874 = vld [vmem:[#allocation2 + $0xcc] sm:$0xf]
      %v1875 = vld [vmem:[#allocation2 + $0xd0] sm:$0xf]
      %v1876 = vld [vmem:[#allocation2 + $0xd4] sm:$0xf]
      %v1877 = vld [vmem:[#allocation2 + $0xd8] sm:$0xf]
      %v1878 = vld [vmem:[#allocation2 + $0xdc] sm:$0xf]
      %v1879 = vld [vmem:[#allocation2 + $0xe0] sm:$0xf]
      %v1880 = vld [vmem:[#allocation2 + $0xe4] sm:$0xf]
      %v1881 = vld [vmem:[#allocation2 + $0xe8] sm:$0xf]
      %v1882 = vld [vmem:[#allocation2 + $0xec] sm:$0xf]
      %v1883 = vld [vmem:[#allocation2 + $0xf0] sm:$0xf]
      %v1884 = vld [vmem:[#allocation2 + $0xf4] sm:$0xf]
      %v1885 = vld [vmem:[#allocation2 + $0xf8] sm:$0xf]
      %v1886 = vld [vmem:[#allocation2 + $0xfc] sm:$0xf]
      %v1887 = vld [vmem:[#allocation2 + $0x100] sm:$0xf]
      %v1888 = vld [vmem:[#allocation2 + $0x104] sm:$0xf]
      %v1889 = vld [vmem:[#allocation2 + $0x108] sm:$0xf]
      %v1890 = vld [vmem:[#allocation2 + $0x10c] sm:$0xf]
      %v1891 = vld [vmem:[#allocation2 + $0x110] sm:$0xf]
      %v1892 = vld [vmem:[#allocation2 + $0x114] sm:$0xf]
      %v1893 = vld [vmem:[#allocation2 + $0x118] sm:$0xf]
      %v1894 = vld [vmem:[#allocation2 + $0x11c] sm:$0xf]
      %v1895 = vld [vmem:[#allocation2 + $0x120] sm:$0xf]
      %v1896 = vld [vmem:[#allocation2 + $0x124] sm:$0xf]
      %v1897 = vld [vmem:[#allocation2 + $0x128] sm:$0xf]
      %v1898 = vld [vmem:[#allocation2 + $0x12c] sm:$0xf]
      %v1899 = vld [vmem:[#allocation2 + $0x130] sm:$0xf]
      %v1900 = vld [vmem:[#allocation2 + $0x134] sm:$0xf]
      %v1901 = vld [vmem:[#allocation2 + $0x138] sm:$0xf]
      %v1902 = vld [vmem:[#allocation2 + $0x13c] sm:$0xf]
      %v1903 = vld [vmem:[#allocation2 + $0x140] sm:$0xf]
      %v1904 = vld [vmem:[#allocation2 + $0x144] sm:$0xf]
      %v1905 = vld [vmem:[#allocation2 + $0x148] sm:$0x7]
      %v1906 = vld [vmem:[%s5] sm:$0xf]
      %v1907 = vld [vmem:[%s5 + $0x4] sm:$0xf]
      %v1908 = vld [vmem:[%s5 + $0x8] sm:$0xf]
      %v1909 = vld [vmem:[%s5 + $0xc] sm:$0xf]
      %v1910 = vld [vmem:[%s5 + $0x10] sm:$0xf]
      %v1911 = vld [vmem:[%s5 + $0x14] sm:$0xf]
      %v1912 = vld [vmem:[%s5 + $0x18] sm:$0xf]
      %v1913 = vld [vmem:[%s5 + $0x1c] sm:$0xf]
      %v1914 = vld [vmem:[%s5 + $0x20] sm:$0xf]
      %v1915 = vld [vmem:[%s5 + $0x24] sm:$0xf]
      %v1916 = vld [vmem:[%s5 + $0x28] sm:$0xf]
      %v1917 = vld [vmem:[%s5 + $0x2c] sm:$0xf]
      %v1918 = vld [vmem:[%s5 + $0x30] sm:$0xf]
      %v1919 = vld [vmem:[%s5 + $0x34] sm:$0xf]
      %v1920 = vld [vmem:[%s5 + $0x38] sm:$0xf]
      %v1921 = vld [vmem:[%s5 + $0x3c] sm:$0xf]
      %v1922 = vld [vmem:[#allocation2 + $0x4] sm:$0x8]
      %s1923 = scalar_lea.vmem %s5, 64
      %v1924 = vld [vmem:[%s1923] sm:$0xf]
      %v1925 = vld [vmem:[%s1923 + $0x4] sm:$0xf]
      %v1926 = vld [vmem:[%s1923 + $0x8] sm:$0xf]
      %v1927 = vld [vmem:[%s1923 + $0xc] sm:$0xf]
      %v1928 = vld [vmem:[%s1923 + $0x10] sm:$0xf]
      %v1929 = vld [vmem:[%s1923 + $0x14] sm:$0xf]
      %v1930 = vld [vmem:[%s1923 + $0x18] sm:$0xf]
      %v1931 = vld [vmem:[%s1923 + $0x1c] sm:$0xf]
      %v1932 = vld [vmem:[%s1923 + $0x20] sm:$0xf]
      %v1933 = vld [vmem:[%s1923 + $0x24] sm:$0xf]
      %v1934 = vld [vmem:[%s1923 + $0x28] sm:$0xf]
      %v1935 = vld [vmem:[%s1923 + $0x2c] sm:$0xf]
      %v1936 = vld [vmem:[%s1923 + $0x30] sm:$0xf]
      %v1937 = vld [vmem:[%s1923 + $0x34] sm:$0xf]
      %v1938 = vld [vmem:[%s1923 + $0x38] sm:$0xf]
      %v1939 = vld [vmem:[%s1923 + $0x3c] sm:$0xf]
      %v2022 = vunpack.c.l.b16 %v1922
      %v2023 = vunpack.c.l.b16 %v1825
      %v2024 = vunpack.c.l.b16 %v1826
      %v2025 = vunpack.c.l.b16 %v1827
      %v2026 = vunpack.c.l.b16 %v1828
      %v2027 = vunpack.c.l.b16 %v1829
      %v2028 = vunpack.c.l.b16 %v1830
      %v2029 = vunpack.c.l.b16 %v1831
      %v2030 = vunpack.c.l.b16 %v1832
      %v2031 = vunpack.c.l.b16 %v1833
      %v2032 = vunpack.c.l.b16 %v1834
      %v2033 = vunpack.c.l.b16 %v1835
      %v2034 = vunpack.c.l.b16 %v1836
      %v2035 = vunpack.c.l.b16 %v1837
      %v2036 = vunpack.c.l.b16 %v1838
      %v2037 = vunpack.c.l.b16 %v1839
      %v2038 = vunpack.c.l.b16 %v1840
      %v2039 = vunpack.c.l.b16 %v1841
      %v2040 = vunpack.c.l.b16 %v1842
      %v2041 = vunpack.c.l.b16 %v1843
      %v2042 = vunpack.c.l.b16 %v1844
      %v2043 = vunpack.c.l.b16 %v1845
      %v2044 = vunpack.c.l.b16 %v1846
      %v2045 = vunpack.c.l.b16 %v1847
      %v2046 = vunpack.c.l.b16 %v1848
      %v2047 = vunpack.c.l.b16 %v1849
      %v2048 = vunpack.c.l.b16 %v1850
      %v2049 = vunpack.c.l.b16 %v1851
      %v2050 = vunpack.c.l.b16 %v1852
      %v2051 = vunpack.c.l.b16 %v1853
      %v2052 = vunpack.c.l.b16 %v1854
      %v2053 = vunpack.c.l.b16 %v1855
      %v2054 = vunpack.c.l.b16 %v1856
      %v2055 = vunpack.c.l.b16 %v1857
      %v2056 = vunpack.c.l.b16 %v1858
      %v2057 = vunpack.c.l.b16 %v1859
      %v2058 = vunpack.c.l.b16 %v1860
      %v2059 = vunpack.c.l.b16 %v1861
      %v2060 = vunpack.c.l.b16 %v1862
      %v2061 = vunpack.c.l.b16 %v1863
      %v2062 = vunpack.c.l.b16 %v1864
      %v2063 = vunpack.c.l.b16 %v1865
      %v2064 = vunpack.c.l.b16 %v1866
      %v2065 = vunpack.c.l.b16 %v1867
      %v2066 = vunpack.c.l.b16 %v1868
      %v2067 = vunpack.c.l.b16 %v1869
      %v2068 = vunpack.c.l.b16 %v1870
      %v2069 = vunpack.c.l.b16 %v1871
      %v2070 = vunpack.c.l.b16 %v1872
      %v2071 = vunpack.c.l.b16 %v1873
      %v2072 = vunpack.c.l.b16 %v1874
      %v2073 = vunpack.c.l.b16 %v1875
      %v2074 = vunpack.c.l.b16 %v1876
      %v2075 = vunpack.c.l.b16 %v1877
      %v2076 = vunpack.c.l.b16 %v1878
      %v2077 = vunpack.c.l.b16 %v1879
      %v2078 = vunpack.c.l.b16 %v1880
      %v2079 = vunpack.c.l.b16 %v1881
      %v2080 = vunpack.c.l.b16 %v1882
      %v2081 = vunpack.c.l.b16 %v1883
      %v2082 = vunpack.c.l.b16 %v1884
      %v2083 = vunpack.c.l.b16 %v1885
      %v2084 = vunpack.c.l.b16 %v1886
      %v2085 = vunpack.c.l.b16 %v1887
      %v2086 = vunpack.c.l.b16 %v1888
      %v2087 = vunpack.c.l.b16 %v1889
      %v2088 = vunpack.c.l.b16 %v1890
      %v2089 = vunpack.c.l.b16 %v1891
      %v2090 = vunpack.c.l.b16 %v1892
      %v2091 = vunpack.c.l.b16 %v1893
      %v2092 = vunpack.c.l.b16 %v1894
      %v2093 = vunpack.c.l.b16 %v1895
      %v2094 = vunpack.c.l.b16 %v1896
      %v2095 = vunpack.c.l.b16 %v1897
      %v2096 = vunpack.c.l.b16 %v1898
      %v2097 = vunpack.c.l.b16 %v1899
      %v2098 = vunpack.c.l.b16 %v1900
      %v2099 = vunpack.c.l.b16 %v1901
      %v2100 = vunpack.c.l.b16 %v1902
      %v2101 = vunpack.c.l.b16 %v1903
      %v2102 = vunpack.c.l.b16 %v1904
      %v2103 = vunpack.c.l.b16 %v1905
      %v2104 = vpack.c.b16 %v2023, %v2022
      %v2105 = vpack.c.b16 %v2025, %v2024
      %v2106 = vpack.c.b16 %v2027, %v2026
      %v2107 = vpack.c.b16 %v2029, %v2028
      %v2108 = vpack.c.b16 %v2031, %v2030
      %v2109 = vpack.c.b16 %v2033, %v2032
      %v2110 = vpack.c.b16 %v2035, %v2034
      %v2111 = vpack.c.b16 %v2037, %v2036
      %v2112 = vpack.c.b16 %v2039, %v2038
      %v2113 = vpack.c.b16 %v2041, %v2040
      %v2114 = vpack.c.b16 %v2043, %v2042
      %v2115 = vpack.c.b16 %v2045, %v2044
      %v2116 = vpack.c.b16 %v2047, %v2046
      %v2117 = vpack.c.b16 %v2049, %v2048
      %v2118 = vpack.c.b16 %v2051, %v2050
      %v2119 = vpack.c.b16 %v2053, %v2052
      %v2120 = vpack.c.b16 %v2055, %v2054
      %v2121 = vpack.c.b16 %v2057, %v2056
      %v2122 = vpack.c.b16 %v2059, %v2058
      %v2123 = vpack.c.b16 %v2061, %v2060
      %v2124 = vpack.c.b16 %v2063, %v2062
      %v2125 = vpack.c.b16 %v2065, %v2064
      %v2126 = vpack.c.b16 %v2067, %v2066
      %v2127 = vpack.c.b16 %v2069, %v2068
      %v2128 = vpack.c.b16 %v2071, %v2070
      %v2129 = vpack.c.b16 %v2073, %v2072
      %v2130 = vpack.c.b16 %v2075, %v2074
      %v2131 = vpack.c.b16 %v2077, %v2076
      %v2132 = vpack.c.b16 %v2079, %v2078
      %v2133 = vpack.c.b16 %v2081, %v2080
      %v2134 = vpack.c.b16 %v2083, %v2082
      %v2135 = vpack.c.b16 %v2085, %v2084
      %v2136 = vpack.c.b16 %v2087, %v2086
      %v2137 = vpack.c.b16 %v2089, %v2088
      %v2138 = vpack.c.b16 %v2091, %v2090
      %v2139 = vpack.c.b16 %v2093, %v2092
      %v2140 = vpack.c.b16 %v2095, %v2094
      %v2141 = vpack.c.b16 %v2097, %v2096
      %v2142 = vpack.c.b16 %v2099, %v2098
      %v2143 = vpack.c.b16 %v2101, %v2100
      %v2144 = vpack.c.b16 %v2103, %v2102
      %vm2145 = vcmask 1044480
      %v2146 = vrot.slane %v2104, 3
      %v2147 = vrot.slane %v2105, 3
      %v2148 = vsel %vm2145, %v2146, %v2147
      %v2149 = vrot.slane %v2106, 3
      %v2150 = vsel %vm2145, %v2147, %v2149
      %v2151 = vrot.slane %v2107, 3
      %v2152 = vsel %vm2145, %v2149, %v2151
      %v2153 = vrot.slane %v2108, 3
      %v2154 = vsel %vm2145, %v2151, %v2153
      %v2155 = vrot.slane %v2109, 3
      %v2156 = vsel %vm2145, %v2153, %v2155
      %v2157 = vrot.slane %v2110, 3
      %v2158 = vsel %vm2145, %v2155, %v2157
      %v2159 = vrot.slane %v2111, 3
      %v2160 = vsel %vm2145, %v2157, %v2159
      %v2161 = vrot.slane %v2112, 3
      %v2162 = vsel %vm2145, %v2159, %v2161
      %v2163 = vrot.slane %v2113, 3
      %v2164 = vsel %vm2145, %v2161, %v2163
      %v2165 = vrot.slane %v2114, 3
      %v2166 = vsel %vm2145, %v2163, %v2165
      %v2167 = vrot.slane %v2115, 3
      %v2168 = vsel %vm2145, %v2165, %v2167
      %v2169 = vrot.slane %v2116, 3
      %v2170 = vsel %vm2145, %v2167, %v2169
      %v2171 = vrot.slane %v2117, 3
      %v2172 = vsel %vm2145, %v2169, %v2171
      %v2173 = vrot.slane %v2118, 3
      %v2174 = vsel %vm2145, %v2171, %v2173
      %v2175 = vrot.slane %v2119, 3
      %v2176 = vsel %vm2145, %v2173, %v2175
      %v2177 = vrot.slane %v2120, 3
      %v2178 = vsel %vm2145, %v2175, %v2177
      %v2179 = vrot.slane %v2121, 3
      %v2180 = vsel %vm2145, %v2177, %v2179
      %v2181 = vrot.slane %v2122, 3
      %v2182 = vsel %vm2145, %v2179, %v2181
      %v2183 = vrot.slane %v2123, 3
      %v2184 = vsel %vm2145, %v2181, %v2183
      %v2185 = vrot.slane %v2124, 3
      %v2186 = vsel %vm2145, %v2183, %v2185
      %v2187 = vrot.slane %v2125, 3
      %v2188 = vsel %vm2145, %v2185, %v2187
      %v2189 = vrot.slane %v2126, 3
      %v2190 = vsel %vm2145, %v2187, %v2189
      %v2191 = vrot.slane %v2127, 3
      %v2192 = vsel %vm2145, %v2189, %v2191
      %v2193 = vrot.slane %v2128, 3
      %v2194 = vsel %vm2145, %v2191, %v2193
      %v2195 = vrot.slane %v2129, 3
      %v2196 = vsel %vm2145, %v2193, %v2195
      %v2197 = vrot.slane %v2130, 3
      %v2198 = vsel %vm2145, %v2195, %v2197
      %v2199 = vrot.slane %v2131, 3
      %v2200 = vsel %vm2145, %v2197, %v2199
      %v2201 = vrot.slane %v2132, 3
      %v2202 = vsel %vm2145, %v2199, %v2201
      %v2203 = vrot.slane %v2133, 3
      %v2204 = vsel %vm2145, %v2201, %v2203
      %v2205 = vrot.slane %v2134, 3
      %v2206 = vsel %vm2145, %v2203, %v2205
      %v2207 = vrot.slane %v2135, 3
      %v2208 = vsel %vm2145, %v2205, %v2207
      %v2209 = vrot.slane %v2136, 3
      %v2210 = vsel %vm2145, %v2207, %v2209
      %v2211 = vrot.slane %v2137, 3
      %v2212 = vsel %vm2145, %v2209, %v2211
      %v2213 = vrot.slane %v2138, 3
      %v2214 = vsel %vm2145, %v2211, %v2213
      %v2215 = vrot.slane %v2139, 3
      %v2216 = vsel %vm2145, %v2213, %v2215
      %v2217 = vrot.slane %v2140, 3
      %v2218 = vsel %vm2145, %v2215, %v2217
      %v2219 = vrot.slane %v2141, 3
      %v2220 = vsel %vm2145, %v2217, %v2219
      %v2221 = vrot.slane %v2142, 3
      %v2222 = vsel %vm2145, %v2219, %v2221
      %v2223 = vrot.slane %v2143, 3
      %v2224 = vsel %vm2145, %v2221, %v2223
      %v2225 = vrot.slane %v2144, 3
      %v2226 = vsel %vm2145, %v2223, %v2225
      %v2284 = vunpack.c.l.b16 %v1924
      %v2285 = vunpack.c.l.b16 %v1925
      %v2286 = vunpack.c.l.b16 %v1926
      %v2287 = vunpack.c.l.b16 %v1927
      %v2288 = vunpack.c.l.b16 %v1928
      %v2289 = vunpack.c.l.b16 %v1929
      %v2290 = vunpack.c.l.b16 %v1930
      %v2291 = vunpack.c.l.b16 %v1931
      %v2292 = vunpack.c.l.b16 %v1932
      %v2293 = vunpack.c.l.b16 %v1933
      %v2294 = vunpack.c.l.b16 %v1934
      %v2295 = vunpack.c.l.b16 %v1935
      %v2296 = vunpack.c.l.b16 %v1936
      %v2297 = vunpack.c.l.b16 %v1937
      %v2298 = vunpack.c.l.b16 %v1938
      %v2299 = vunpack.c.l.b16 %v1939
      %v2300 = vpack.c.b16 %v2285, %v2284
      %v2301 = vpack.c.b16 %v2287, %v2286
      %v2302 = vpack.c.b16 %v2289, %v2288
      %v2303 = vpack.c.b16 %v2291, %v2290
      %v2304 = vpack.c.b16 %v2293, %v2292
      %v2305 = vpack.c.b16 %v2295, %v2294
      %v2306 = vpack.c.b16 %v2297, %v2296
      %v2307 = vpack.c.b16 %v2299, %v2298
      %2316 = vmatpush.bf16.msra.mxu0 %v2307
      %2317 = vmatpush.bf16.msra.mxu0 %v2306
      %2318 = vmatpush.bf16.msra.mxu0 %v2305
      %2319 = vmatpush.bf16.msra.mxu0 %v2304
      %2320 = vmatpush.bf16.msra.mxu0 %v2303
      %2321 = vmatpush.bf16.msra.mxu0 %v2302
      %2322 = vmatpush.bf16.msra.mxu0 %v2301
      %2323 = vmatpush.bf16.msra.mxu0 %v2300
      %2324 = vmatmul.bf16.gmra.mxu0 %v2148
      %v2325 = vpop.f32.mrf.mxu0
      %v2326 = vadd.f32 0.0, %v2325
      %v2327 = vpop.f32.mrf.mxu0
      %v2328 = vadd.f32 0.0, %v2327
      %2329 = vmatmul.bf16.gmra.mxu0 %v2150
      %v2330 = vpop.f32.mrf.mxu0
      %v2331 = vadd.f32 0.0, %v2330
      %v2332 = vpop.f32.mrf.mxu0
      %v2333 = vadd.f32 0.0, %v2332
      %2334 = vmatmul.bf16.gmra.mxu0 %v2152
      %v2335 = vpop.f32.mrf.mxu0
      %v2336 = vadd.f32 0.0, %v2335
      %v2337 = vpop.f32.mrf.mxu0
      %v2338 = vadd.f32 0.0, %v2337
      %2339 = vmatmul.bf16.gmra.mxu0 %v2154
      %v2340 = vpop.f32.mrf.mxu0
      %v2341 = vadd.f32 0.0, %v2340
      %v2342 = vpop.f32.mrf.mxu0
      %v2343 = vadd.f32 0.0, %v2342
      %2344 = vmatmul.bf16.gmra.mxu0 %v2156
      %v2345 = vpop.f32.mrf.mxu0
      %v2346 = vadd.f32 0.0, %v2345
      %v2347 = vpop.f32.mrf.mxu0
      %v2348 = vadd.f32 0.0, %v2347
      %2349 = vmatmul.bf16.gmra.mxu0 %v2158
      %v2350 = vpop.f32.mrf.mxu0
      %v2351 = vadd.f32 0.0, %v2350
      %v2352 = vpop.f32.mrf.mxu0
      %v2353 = vadd.f32 0.0, %v2352
      %2354 = vmatmul.bf16.gmra.mxu0 %v2160
      %v2355 = vpop.f32.mrf.mxu0
      %v2356 = vadd.f32 0.0, %v2355
      %v2357 = vpop.f32.mrf.mxu0
      %v2358 = vadd.f32 0.0, %v2357
      %2359 = vmatmul.bf16.gmra.mxu0 %v2162
      %v2360 = vpop.f32.mrf.mxu0
      %v2361 = vadd.f32 0.0, %v2360
      %v2362 = vpop.f32.mrf.mxu0
      %v2363 = vadd.f32 0.0, %v2362
      %2364 = vmatmul.bf16.gmra.mxu0 %v2164
      %v2365 = vpop.f32.mrf.mxu0
      %v2366 = vadd.f32 0.0, %v2365
      %v2367 = vpop.f32.mrf.mxu0
      %v2368 = vadd.f32 0.0, %v2367
      %2369 = vmatmul.bf16.gmra.mxu0 %v2166
      %v2370 = vpop.f32.mrf.mxu0
      %v2371 = vadd.f32 0.0, %v2370
      %v2372 = vpop.f32.mrf.mxu0
      %v2373 = vadd.f32 0.0, %v2372
      %2374 = vmatmul.bf16.gmra.mxu0 %v2168
      %v2375 = vpop.f32.mrf.mxu0
      %v2376 = vadd.f32 0.0, %v2375
      %v2377 = vpop.f32.mrf.mxu0
      %v2378 = vadd.f32 0.0, %v2377
      %2379 = vmatmul.bf16.gmra.mxu0 %v2170
      %v2380 = vpop.f32.mrf.mxu0
      %v2381 = vadd.f32 0.0, %v2380
      %v2382 = vpop.f32.mrf.mxu0
      %v2383 = vadd.f32 0.0, %v2382
      %2384 = vmatmul.bf16.gmra.mxu0 %v2172
      %v2385 = vpop.f32.mrf.mxu0
      %v2386 = vadd.f32 0.0, %v2385
      %v2387 = vpop.f32.mrf.mxu0
      %v2388 = vadd.f32 0.0, %v2387
      %2389 = vmatmul.bf16.gmra.mxu0 %v2174
      %v2390 = vpop.f32.mrf.mxu0
      %v2391 = vadd.f32 0.0, %v2390
      %v2392 = vpop.f32.mrf.mxu0
      %v2393 = vadd.f32 0.0, %v2392
      %2394 = vmatmul.bf16.gmra.mxu0 %v2176
      %v2395 = vpop.f32.mrf.mxu0
      %v2396 = vadd.f32 0.0, %v2395
      %v2397 = vpop.f32.mrf.mxu0
      %v2398 = vadd.f32 0.0, %v2397
      %2399 = vmatmul.bf16.gmra.mxu0 %v2178
      %v2400 = vpop.f32.mrf.mxu0
      %v2401 = vadd.f32 0.0, %v2400
      %v2402 = vpop.f32.mrf.mxu0
      %v2403 = vadd.f32 0.0, %v2402
      %2404 = vmatmul.bf16.gmra.mxu0 %v2180
      %v2405 = vpop.f32.mrf.mxu0
      %v2406 = vadd.f32 0.0, %v2405
      %v2407 = vpop.f32.mrf.mxu0
      %v2408 = vadd.f32 0.0, %v2407
      %2409 = vmatmul.bf16.gmra.mxu0 %v2182
      %v2410 = vpop.f32.mrf.mxu0
      %v2411 = vadd.f32 0.0, %v2410
      %v2412 = vpop.f32.mrf.mxu0
      %v2413 = vadd.f32 0.0, %v2412
      %2414 = vmatmul.bf16.gmra.mxu0 %v2184
      %v2415 = vpop.f32.mrf.mxu0
      %v2416 = vadd.f32 0.0, %v2415
      %v2417 = vpop.f32.mrf.mxu0
      %v2418 = vadd.f32 0.0, %v2417
      %2419 = vmatmul.bf16.gmra.mxu0 %v2186
      %v2420 = vpop.f32.mrf.mxu0
      %v2421 = vadd.f32 0.0, %v2420
      %v2422 = vpop.f32.mrf.mxu0
      %v2423 = vadd.f32 0.0, %v2422
      %2424 = vmatmul.bf16.gmra.mxu0 %v2188
      %v2425 = vpop.f32.mrf.mxu0
      %v2426 = vadd.f32 0.0, %v2425
      %v2427 = vpop.f32.mrf.mxu0
      %v2428 = vadd.f32 0.0, %v2427
      %2429 = vmatmul.bf16.gmra.mxu0 %v2190
      %v2430 = vpop.f32.mrf.mxu0
      %v2431 = vadd.f32 0.0, %v2430
      %v2432 = vpop.f32.mrf.mxu0
      %v2433 = vadd.f32 0.0, %v2432
      %2434 = vmatmul.bf16.gmra.mxu0 %v2192
      %v2435 = vpop.f32.mrf.mxu0
      %v2436 = vadd.f32 0.0, %v2435
      %v2437 = vpop.f32.mrf.mxu0
      %v2438 = vadd.f32 0.0, %v2437
      %2439 = vmatmul.bf16.gmra.mxu0 %v2194
      %v2440 = vpop.f32.mrf.mxu0
      %v2441 = vadd.f32 0.0, %v2440
      %v2442 = vpop.f32.mrf.mxu0
      %v2443 = vadd.f32 0.0, %v2442
      %2444 = vmatmul.bf16.gmra.mxu0 %v2196
      %v2445 = vpop.f32.mrf.mxu0
      %v2446 = vadd.f32 0.0, %v2445
      %v2447 = vpop.f32.mrf.mxu0
      %v2448 = vadd.f32 0.0, %v2447
      %2449 = vmatmul.bf16.gmra.mxu0 %v2198
      %v2450 = vpop.f32.mrf.mxu0
      %v2451 = vadd.f32 0.0, %v2450
      %v2452 = vpop.f32.mrf.mxu0
      %v2453 = vadd.f32 0.0, %v2452
      %2454 = vmatmul.bf16.gmra.mxu0 %v2200
      %v2455 = vpop.f32.mrf.mxu0
      %v2456 = vadd.f32 0.0, %v2455
      %v2457 = vpop.f32.mrf.mxu0
      %v2458 = vadd.f32 0.0, %v2457
      %2459 = vmatmul.bf16.gmra.mxu0 %v2202
      %v2460 = vpop.f32.mrf.mxu0
      %v2461 = vadd.f32 0.0, %v2460
      %v2462 = vpop.f32.mrf.mxu0
      %v2463 = vadd.f32 0.0, %v2462
      %2464 = vmatmul.bf16.gmra.mxu0 %v2204
      %v2465 = vpop.f32.mrf.mxu0
      %v2466 = vadd.f32 0.0, %v2465
      %v2467 = vpop.f32.mrf.mxu0
      %v2468 = vadd.f32 0.0, %v2467
      %2469 = vmatmul.bf16.gmra.mxu0 %v2206
      %v2470 = vpop.f32.mrf.mxu0
      %v2471 = vadd.f32 0.0, %v2470
      %v2472 = vpop.f32.mrf.mxu0
      %v2473 = vadd.f32 0.0, %v2472
      %2474 = vmatmul.bf16.gmra.mxu0 %v2208
      %v2475 = vpop.f32.mrf.mxu0
      %v2476 = vadd.f32 0.0, %v2475
      %v2477 = vpop.f32.mrf.mxu0
      %v2478 = vadd.f32 0.0, %v2477
      %2479 = vmatmul.bf16.gmra.mxu0 %v2210
      %v2480 = vpop.f32.mrf.mxu0
      %v2481 = vadd.f32 0.0, %v2480
      %v2482 = vpop.f32.mrf.mxu0
      %v2483 = vadd.f32 0.0, %v2482
      %2484 = vmatmul.bf16.gmra.mxu0 %v2212
      %v2485 = vpop.f32.mrf.mxu0
      %v2486 = vadd.f32 0.0, %v2485
      %v2487 = vpop.f32.mrf.mxu0
      %v2488 = vadd.f32 0.0, %v2487
      %2489 = vmatmul.bf16.gmra.mxu0 %v2214
      %v2490 = vpop.f32.mrf.mxu0
      %v2491 = vadd.f32 0.0, %v2490
      %v2492 = vpop.f32.mrf.mxu0
      %v2493 = vadd.f32 0.0, %v2492
      %2494 = vmatmul.bf16.gmra.mxu0 %v2216
      %v2495 = vpop.f32.mrf.mxu0
      %v2496 = vadd.f32 0.0, %v2495
      %v2497 = vpop.f32.mrf.mxu0
      %v2498 = vadd.f32 0.0, %v2497
      %2499 = vmatmul.bf16.gmra.mxu0 %v2218
      %v2500 = vpop.f32.mrf.mxu0
      %v2501 = vadd.f32 0.0, %v2500
      %v2502 = vpop.f32.mrf.mxu0
      %v2503 = vadd.f32 0.0, %v2502
      %2504 = vmatmul.bf16.gmra.mxu0 %v2220
      %v2505 = vpop.f32.mrf.mxu0
      %v2506 = vadd.f32 0.0, %v2505
      %v2507 = vpop.f32.mrf.mxu0
      %v2508 = vadd.f32 0.0, %v2507
      %2509 = vmatmul.bf16.gmra.mxu0 %v2222
      %v2510 = vpop.f32.mrf.mxu0
      %v2511 = vadd.f32 0.0, %v2510
      %v2512 = vpop.f32.mrf.mxu0
      %v2513 = vadd.f32 0.0, %v2512
      %2514 = vmatmul.bf16.gmra.mxu0 %v2224
      %v2515 = vpop.f32.mrf.mxu0
      %v2516 = vadd.f32 0.0, %v2515
      %v2517 = vpop.f32.mrf.mxu0
      %v2518 = vadd.f32 0.0, %v2517
      %2519 = vmatmul.bf16.gmra.mxu0 %v2226
      %v2520 = vpop.f32.mrf.mxu0
      %v2521 = vadd.f32 0.0, %v2520
      %v2522 = vpop.f32.mrf.mxu0
      %v2523 = vadd.f32 0.0, %v2522
      %2524 = vmatmul.bf16.gmra.mxu0 %v2225
      %v2525 = vpop.f32.mrf.mxu0
      %v2526 = vadd.f32 0.0, %v2525
      %v2527 = vpop.f32.mrf.mxu0
      %2528 = vdwg.mxu0
      %v2530 = vunpack.c.l.b16 %v1824
      %v2531 = vpack.c.b16 %v2023, %v2530
      %vm2532 = vsmask.f32 5376
      %v2534 = vshrl.u32 %v2531, 16
      %v2536 = vrot.slane %v2534, 2
      %v2537 = vshll.u32 %v2531, 16
      %v2539 = vrot.slane %v2537, 3
      %v2540 = vor.u32 %v2536, %v2539
      %v2542 = vshrl.u32 %v2105, 16
      %v2544 = vrot.slane %v2542, 2
      %v2545 = vshll.u32 %v2105, 16
      %v2547 = vrot.slane %v2545, 3
      %v2548 = vor.u32 %v2544, %v2547
      %v2549 = vsel %vm2532, %v2540, %v2548
      %v2551 = vshrl.u32 %v2106, 16
      %v2553 = vrot.slane %v2551, 2
      %v2554 = vshll.u32 %v2106, 16
      %v2556 = vrot.slane %v2554, 3
      %v2557 = vor.u32 %v2553, %v2556
      %v2558 = vsel %vm2532, %v2548, %v2557
      %v2560 = vshrl.u32 %v2107, 16
      %v2562 = vrot.slane %v2560, 2
      %v2563 = vshll.u32 %v2107, 16
      %v2565 = vrot.slane %v2563, 3
      %v2566 = vor.u32 %v2562, %v2565
      %v2567 = vsel %vm2532, %v2557, %v2566
      %v2569 = vshrl.u32 %v2108, 16
      %v2571 = vrot.slane %v2569, 2
      %v2572 = vshll.u32 %v2108, 16
      %v2574 = vrot.slane %v2572, 3
      %v2575 = vor.u32 %v2571, %v2574
      %v2576 = vsel %vm2532, %v2566, %v2575
      %v2578 = vshrl.u32 %v2109, 16
      %v2580 = vrot.slane %v2578, 2
      %v2581 = vshll.u32 %v2109, 16
      %v2583 = vrot.slane %v2581, 3
      %v2584 = vor.u32 %v2580, %v2583
      %v2585 = vsel %vm2532, %v2575, %v2584
      %v2587 = vshrl.u32 %v2110, 16
      %v2589 = vrot.slane %v2587, 2
      %v2590 = vshll.u32 %v2110, 16
      %v2592 = vrot.slane %v2590, 3
      %v2593 = vor.u32 %v2589, %v2592
      %v2594 = vsel %vm2532, %v2584, %v2593
      %v2596 = vshrl.u32 %v2111, 16
      %v2598 = vrot.slane %v2596, 2
      %v2599 = vshll.u32 %v2111, 16
      %v2601 = vrot.slane %v2599, 3
      %v2602 = vor.u32 %v2598, %v2601
      %v2603 = vsel %vm2532, %v2593, %v2602
      %v2605 = vshrl.u32 %v2112, 16
      %v2607 = vrot.slane %v2605, 2
      %v2608 = vshll.u32 %v2112, 16
      %v2610 = vrot.slane %v2608, 3
      %v2611 = vor.u32 %v2607, %v2610
      %v2612 = vsel %vm2532, %v2602, %v2611
      %v2614 = vshrl.u32 %v2113, 16
      %v2616 = vrot.slane %v2614, 2
      %v2617 = vshll.u32 %v2113, 16
      %v2619 = vrot.slane %v2617, 3
      %v2620 = vor.u32 %v2616, %v2619
      %v2621 = vsel %vm2532, %v2611, %v2620
      %v2623 = vshrl.u32 %v2114, 16
      %v2625 = vrot.slane %v2623, 2
      %v2626 = vshll.u32 %v2114, 16
      %v2628 = vrot.slane %v2626, 3
      %v2629 = vor.u32 %v2625, %v2628
      %v2630 = vsel %vm2532, %v2620, %v2629
      %v2632 = vshrl.u32 %v2115, 16
      %v2634 = vrot.slane %v2632, 2
      %v2635 = vshll.u32 %v2115, 16
      %v2637 = vrot.slane %v2635, 3
      %v2638 = vor.u32 %v2634, %v2637
      %v2639 = vsel %vm2532, %v2629, %v2638
      %v2641 = vshrl.u32 %v2116, 16
      %v2643 = vrot.slane %v2641, 2
      %v2644 = vshll.u32 %v2116, 16
      %v2646 = vrot.slane %v2644, 3
      %v2647 = vor.u32 %v2643, %v2646
      %v2648 = vsel %vm2532, %v2638, %v2647
      %v2650 = vshrl.u32 %v2117, 16
      %v2652 = vrot.slane %v2650, 2
      %v2653 = vshll.u32 %v2117, 16
      %v2655 = vrot.slane %v2653, 3
      %v2656 = vor.u32 %v2652, %v2655
      %v2657 = vsel %vm2532, %v2647, %v2656
      %v2659 = vshrl.u32 %v2118, 16
      %v2661 = vrot.slane %v2659, 2
      %v2662 = vshll.u32 %v2118, 16
      %v2664 = vrot.slane %v2662, 3
      %v2665 = vor.u32 %v2661, %v2664
      %v2666 = vsel %vm2532, %v2656, %v2665
      %v2668 = vshrl.u32 %v2119, 16
      %v2670 = vrot.slane %v2668, 2
      %v2671 = vshll.u32 %v2119, 16
      %v2673 = vrot.slane %v2671, 3
      %v2674 = vor.u32 %v2670, %v2673
      %v2675 = vsel %vm2532, %v2665, %v2674
      %v2677 = vshrl.u32 %v2120, 16
      %v2679 = vrot.slane %v2677, 2
      %v2680 = vshll.u32 %v2120, 16
      %v2682 = vrot.slane %v2680, 3
      %v2683 = vor.u32 %v2679, %v2682
      %v2684 = vsel %vm2532, %v2674, %v2683
      %v2686 = vshrl.u32 %v2121, 16
      %v2688 = vrot.slane %v2686, 2
      %v2689 = vshll.u32 %v2121, 16
      %v2691 = vrot.slane %v2689, 3
      %v2692 = vor.u32 %v2688, %v2691
      %v2693 = vsel %vm2532, %v2683, %v2692
      %v2695 = vshrl.u32 %v2122, 16
      %v2697 = vrot.slane %v2695, 2
      %v2698 = vshll.u32 %v2122, 16
      %v2700 = vrot.slane %v2698, 3
      %v2701 = vor.u32 %v2697, %v2700
      %v2702 = vsel %vm2532, %v2692, %v2701
      %v2704 = vshrl.u32 %v2123, 16
      %v2706 = vrot.slane %v2704, 2
      %v2707 = vshll.u32 %v2123, 16
      %v2709 = vrot.slane %v2707, 3
      %v2710 = vor.u32 %v2706, %v2709
      %v2711 = vsel %vm2532, %v2701, %v2710
      %v2713 = vshrl.u32 %v2124, 16
      %v2715 = vrot.slane %v2713, 2
      %v2716 = vshll.u32 %v2124, 16
      %v2718 = vrot.slane %v2716, 3
      %v2719 = vor.u32 %v2715, %v2718
      %v2720 = vsel %vm2532, %v2710, %v2719
      %v2722 = vshrl.u32 %v2125, 16
      %v2724 = vrot.slane %v2722, 2
      %v2725 = vshll.u32 %v2125, 16
      %v2727 = vrot.slane %v2725, 3
      %v2728 = vor.u32 %v2724, %v2727
      %v2729 = vsel %vm2532, %v2719, %v2728
      %v2731 = vshrl.u32 %v2126, 16
      %v2733 = vrot.slane %v2731, 2
      %v2734 = vshll.u32 %v2126, 16
      %v2736 = vrot.slane %v2734, 3
      %v2737 = vor.u32 %v2733, %v2736
      %v2738 = vsel %vm2532, %v2728, %v2737
      %v2740 = vshrl.u32 %v2127, 16
      %v2742 = vrot.slane %v2740, 2
      %v2743 = vshll.u32 %v2127, 16
      %v2745 = vrot.slane %v2743, 3
      %v2746 = vor.u32 %v2742, %v2745
      %v2747 = vsel %vm2532, %v2737, %v2746
      %v2749 = vshrl.u32 %v2128, 16
      %v2751 = vrot.slane %v2749, 2
      %v2752 = vshll.u32 %v2128, 16
      %v2754 = vrot.slane %v2752, 3
      %v2755 = vor.u32 %v2751, %v2754
      %v2756 = vsel %vm2532, %v2746, %v2755
      %v2758 = vshrl.u32 %v2129, 16
      %v2760 = vrot.slane %v2758, 2
      %v2761 = vshll.u32 %v2129, 16
      %v2763 = vrot.slane %v2761, 3
      %v2764 = vor.u32 %v2760, %v2763
      %v2765 = vsel %vm2532, %v2755, %v2764
      %v2767 = vshrl.u32 %v2130, 16
      %v2769 = vrot.slane %v2767, 2
      %v2770 = vshll.u32 %v2130, 16
      %v2772 = vrot.slane %v2770, 3
      %v2773 = vor.u32 %v2769, %v2772
      %v2774 = vsel %vm2532, %v2764, %v2773
      %v2776 = vshrl.u32 %v2131, 16
      %v2778 = vrot.slane %v2776, 2
      %v2779 = vshll.u32 %v2131, 16
      %v2781 = vrot.slane %v2779, 3
      %v2782 = vor.u32 %v2778, %v2781
      %v2783 = vsel %vm2532, %v2773, %v2782
      %v2785 = vshrl.u32 %v2132, 16
      %v2787 = vrot.slane %v2785, 2
      %v2788 = vshll.u32 %v2132, 16
      %v2790 = vrot.slane %v2788, 3
      %v2791 = vor.u32 %v2787, %v2790
      %v2792 = vsel %vm2532, %v2782, %v2791
      %v2794 = vshrl.u32 %v2133, 16
      %v2796 = vrot.slane %v2794, 2
      %v2797 = vshll.u32 %v2133, 16
      %v2799 = vrot.slane %v2797, 3
      %v2800 = vor.u32 %v2796, %v2799
      %v2801 = vsel %vm2532, %v2791, %v2800
      %v2803 = vshrl.u32 %v2134, 16
      %v2805 = vrot.slane %v2803, 2
      %v2806 = vshll.u32 %v2134, 16
      %v2808 = vrot.slane %v2806, 3
      %v2809 = vor.u32 %v2805, %v2808
      %v2810 = vsel %vm2532, %v2800, %v2809
      %v2812 = vshrl.u32 %v2135, 16
      %v2814 = vrot.slane %v2812, 2
      %v2815 = vshll.u32 %v2135, 16
      %v2817 = vrot.slane %v2815, 3
      %v2818 = vor.u32 %v2814, %v2817
      %v2819 = vsel %vm2532, %v2809, %v2818
      %v2821 = vshrl.u32 %v2136, 16
      %v2823 = vrot.slane %v2821, 2
      %v2824 = vshll.u32 %v2136, 16
      %v2826 = vrot.slane %v2824, 3
      %v2827 = vor.u32 %v2823, %v2826
      %v2828 = vsel %vm2532, %v2818, %v2827
      %v2830 = vshrl.u32 %v2137, 16
      %v2832 = vrot.slane %v2830, 2
      %v2833 = vshll.u32 %v2137, 16
      %v2835 = vrot.slane %v2833, 3
      %v2836 = vor.u32 %v2832, %v2835
      %v2837 = vsel %vm2532, %v2827, %v2836
      %v2839 = vshrl.u32 %v2138, 16
      %v2841 = vrot.slane %v2839, 2
      %v2842 = vshll.u32 %v2138, 16
      %v2844 = vrot.slane %v2842, 3
      %v2845 = vor.u32 %v2841, %v2844
      %v2846 = vsel %vm2532, %v2836, %v2845
      %v2848 = vshrl.u32 %v2139, 16
      %v2850 = vrot.slane %v2848, 2
      %v2851 = vshll.u32 %v2139, 16
      %v2853 = vrot.slane %v2851, 3
      %v2854 = vor.u32 %v2850, %v2853
      %v2855 = vsel %vm2532, %v2845, %v2854
      %v2857 = vshrl.u32 %v2140, 16
      %v2859 = vrot.slane %v2857, 2
      %v2860 = vshll.u32 %v2140, 16
      %v2862 = vrot.slane %v2860, 3
      %v2863 = vor.u32 %v2859, %v2862
      %v2864 = vsel %vm2532, %v2854, %v2863
      %v2866 = vshrl.u32 %v2141, 16
      %v2868 = vrot.slane %v2866, 2
      %v2869 = vshll.u32 %v2141, 16
      %v2871 = vrot.slane %v2869, 3
      %v2872 = vor.u32 %v2868, %v2871
      %v2873 = vsel %vm2532, %v2863, %v2872
      %v2875 = vshrl.u32 %v2142, 16
      %v2877 = vrot.slane %v2875, 2
      %v2878 = vshll.u32 %v2142, 16
      %v2880 = vrot.slane %v2878, 3
      %v2881 = vor.u32 %v2877, %v2880
      %v2882 = vsel %vm2532, %v2872, %v2881
      %v2884 = vshrl.u32 %v2143, 16
      %v2886 = vrot.slane %v2884, 2
      %v2887 = vshll.u32 %v2143, 16
      %v2889 = vrot.slane %v2887, 3
      %v2890 = vor.u32 %v2886, %v2889
      %v2891 = vsel %vm2532, %v2881, %v2890
      %v2893 = vshrl.u32 %v2144, 16
      %v2895 = vrot.slane %v2893, 2
      %v2896 = vshll.u32 %v2144, 16
      %v2898 = vrot.slane %v2896, 3
      %v2899 = vor.u32 %v2895, %v2898
      %v2900 = vsel %vm2532, %v2890, %v2899
      %v2958 = vunpack.c.l.b16 %v1906
      %v2959 = vunpack.c.l.b16 %v1907
      %v2960 = vunpack.c.l.b16 %v1908
      %v2961 = vunpack.c.l.b16 %v1909
      %v2962 = vunpack.c.l.b16 %v1910
      %v2963 = vunpack.c.l.b16 %v1911
      %v2964 = vunpack.c.l.b16 %v1912
      %v2965 = vunpack.c.l.b16 %v1913
      %v2966 = vunpack.c.l.b16 %v1914
      %v2967 = vunpack.c.l.b16 %v1915
      %v2968 = vunpack.c.l.b16 %v1916
      %v2969 = vunpack.c.l.b16 %v1917
      %v2970 = vunpack.c.l.b16 %v1918
      %v2971 = vunpack.c.l.b16 %v1919
      %v2972 = vunpack.c.l.b16 %v1920
      %v2973 = vunpack.c.l.b16 %v1921
      %v2974 = vpack.c.b16 %v2959, %v2958
      %v2975 = vpack.c.b16 %v2961, %v2960
      %v2976 = vpack.c.b16 %v2963, %v2962
      %v2977 = vpack.c.b16 %v2965, %v2964
      %v2978 = vpack.c.b16 %v2967, %v2966
      %v2979 = vpack.c.b16 %v2969, %v2968
      %v2980 = vpack.c.b16 %v2971, %v2970
      %v2981 = vpack.c.b16 %v2973, %v2972
      %2990 = vmatpush.bf16.msra.mxu0 %v2981
      %2991 = vmatpush.bf16.msra.mxu0 %v2980
      %2992 = vmatpush.bf16.msra.mxu0 %v2979
      %2993 = vmatpush.bf16.msra.mxu0 %v2978
      %2994 = vmatpush.bf16.msra.mxu0 %v2977
      %2995 = vmatpush.bf16.msra.mxu0 %v2976
      %2996 = vmatpush.bf16.msra.mxu0 %v2975
      %2997 = vmatpush.bf16.msra.mxu0 %v2974
      %2998 = vmatmul.bf16.gmra.mxu0 %v2549
      %v2999 = vpop.f32.mrf.mxu0
      %v3000 = vadd.f32 %v2326, %v2999
      %v3001 = vpop.f32.mrf.mxu0
      %v3002 = vadd.f32 %v2328, %v3001
      %3003 = vmatmul.bf16.gmra.mxu0 %v2558
      %v3004 = vpop.f32.mrf.mxu0
      %v3005 = vadd.f32 %v2331, %v3004
      %v3006 = vpop.f32.mrf.mxu0
      %v3007 = vadd.f32 %v2333, %v3006
      %3008 = vmatmul.bf16.gmra.mxu0 %v2567
      %v3009 = vpop.f32.mrf.mxu0
      %v3010 = vadd.f32 %v2336, %v3009
      %v3011 = vpop.f32.mrf.mxu0
      %v3012 = vadd.f32 %v2338, %v3011
      %3013 = vmatmul.bf16.gmra.mxu0 %v2576
      %v3014 = vpop.f32.mrf.mxu0
      %v3015 = vadd.f32 %v2341, %v3014
      %v3016 = vpop.f32.mrf.mxu0
      %v3017 = vadd.f32 %v2343, %v3016
      %3018 = vmatmul.bf16.gmra.mxu0 %v2585
      %v3019 = vpop.f32.mrf.mxu0
      %v3020 = vadd.f32 %v2346, %v3019
      %v3021 = vpop.f32.mrf.mxu0
      %v3022 = vadd.f32 %v2348, %v3021
      %3023 = vmatmul.bf16.gmra.mxu0 %v2594
      %v3024 = vpop.f32.mrf.mxu0
      %v3025 = vadd.f32 %v2351, %v3024
      %v3026 = vpop.f32.mrf.mxu0
      %v3027 = vadd.f32 %v2353, %v3026
      %3028 = vmatmul.bf16.gmra.mxu0 %v2603
      %v3029 = vpop.f32.mrf.mxu0
      %v3030 = vadd.f32 %v2356, %v3029
      %v3031 = vpop.f32.mrf.mxu0
      %v3032 = vadd.f32 %v2358, %v3031
      %3033 = vmatmul.bf16.gmra.mxu0 %v2612
      %v3034 = vpop.f32.mrf.mxu0
      %v3035 = vadd.f32 %v2361, %v3034
      %v3036 = vpop.f32.mrf.mxu0
      %v3037 = vadd.f32 %v2363, %v3036
      %3038 = vmatmul.bf16.gmra.mxu0 %v2621
      %v3039 = vpop.f32.mrf.mxu0
      %v3040 = vadd.f32 %v2366, %v3039
      %v3041 = vpop.f32.mrf.mxu0
      %v3042 = vadd.f32 %v2368, %v3041
      %3043 = vmatmul.bf16.gmra.mxu0 %v2630
      %v3044 = vpop.f32.mrf.mxu0
      %v3045 = vadd.f32 %v2371, %v3044
      %v3046 = vpop.f32.mrf.mxu0
      %v3047 = vadd.f32 %v2373, %v3046
      %3048 = vmatmul.bf16.gmra.mxu0 %v2639
      %v3049 = vpop.f32.mrf.mxu0
      %v3050 = vadd.f32 %v2376, %v3049
      %v3051 = vpop.f32.mrf.mxu0
      %v3052 = vadd.f32 %v2378, %v3051
      %3053 = vmatmul.bf16.gmra.mxu0 %v2648
      %v3054 = vpop.f32.mrf.mxu0
      %v3055 = vadd.f32 %v2381, %v3054
      %v3056 = vpop.f32.mrf.mxu0
      %v3057 = vadd.f32 %v2383, %v3056
      %3058 = vmatmul.bf16.gmra.mxu0 %v2657
      %v3059 = vpop.f32.mrf.mxu0
      %v3060 = vadd.f32 %v2386, %v3059
      %v3061 = vpop.f32.mrf.mxu0
      %v3062 = vadd.f32 %v2388, %v3061
      %3063 = vmatmul.bf16.gmra.mxu0 %v2666
      %v3064 = vpop.f32.mrf.mxu0
      %v3065 = vadd.f32 %v2391, %v3064
      %v3066 = vpop.f32.mrf.mxu0
      %v3067 = vadd.f32 %v2393, %v3066
      %3068 = vmatmul.bf16.gmra.mxu0 %v2675
      %v3069 = vpop.f32.mrf.mxu0
      %v3070 = vadd.f32 %v2396, %v3069
      %v3071 = vpop.f32.mrf.mxu0
      %v3072 = vadd.f32 %v2398, %v3071
      %3073 = vmatmul.bf16.gmra.mxu0 %v2684
      %v3074 = vpop.f32.mrf.mxu0
      %v3075 = vadd.f32 %v2401, %v3074
      %v3076 = vpop.f32.mrf.mxu0
      %v3077 = vadd.f32 %v2403, %v3076
      %3078 = vmatmul.bf16.gmra.mxu0 %v2693
      %v3079 = vpop.f32.mrf.mxu0
      %v3080 = vadd.f32 %v2406, %v3079
      %v3081 = vpop.f32.mrf.mxu0
      %v3082 = vadd.f32 %v2408, %v3081
      %3083 = vmatmul.bf16.gmra.mxu0 %v2702
      %v3084 = vpop.f32.mrf.mxu0
      %v3085 = vadd.f32 %v2411, %v3084
      %v3086 = vpop.f32.mrf.mxu0
      %v3087 = vadd.f32 %v2413, %v3086
      %3088 = vmatmul.bf16.gmra.mxu0 %v2711
      %v3089 = vpop.f32.mrf.mxu0
      %v3090 = vadd.f32 %v2416, %v3089
      %v3091 = vpop.f32.mrf.mxu0
      %v3092 = vadd.f32 %v2418, %v3091
      %3093 = vmatmul.bf16.gmra.mxu0 %v2720
      %v3094 = vpop.f32.mrf.mxu0
      %v3095 = vadd.f32 %v2421, %v3094
      %v3096 = vpop.f32.mrf.mxu0
      %v3097 = vadd.f32 %v2423, %v3096
      %3098 = vmatmul.bf16.gmra.mxu0 %v2729
      %v3099 = vpop.f32.mrf.mxu0
      %v3100 = vadd.f32 %v2426, %v3099
      %v3101 = vpop.f32.mrf.mxu0
      %v3102 = vadd.f32 %v2428, %v3101
      %3103 = vmatmul.bf16.gmra.mxu0 %v2738
      %v3104 = vpop.f32.mrf.mxu0
      %v3105 = vadd.f32 %v2431, %v3104
      %v3106 = vpop.f32.mrf.mxu0
      %v3107 = vadd.f32 %v2433, %v3106
      %3108 = vmatmul.bf16.gmra.mxu0 %v2747
      %v3109 = vpop.f32.mrf.mxu0
      %v3110 = vadd.f32 %v2436, %v3109
      %v3111 = vpop.f32.mrf.mxu0
      %v3112 = vadd.f32 %v2438, %v3111
      %3113 = vmatmul.bf16.gmra.mxu0 %v2756
      %v3114 = vpop.f32.mrf.mxu0
      %v3115 = vadd.f32 %v2441, %v3114
      %v3116 = vpop.f32.mrf.mxu0
      %v3117 = vadd.f32 %v2443, %v3116
      %3118 = vmatmul.bf16.gmra.mxu0 %v2765
      %v3119 = vpop.f32.mrf.mxu0
      %v3120 = vadd.f32 %v2446, %v3119
      %v3121 = vpop.f32.mrf.mxu0
      %v3122 = vadd.f32 %v2448, %v3121
      %3123 = vmatmul.bf16.gmra.mxu0 %v2774
      %v3124 = vpop.f32.mrf.mxu0
      %v3125 = vadd.f32 %v2451, %v3124
      %v3126 = vpop.f32.mrf.mxu0
      %v3127 = vadd.f32 %v2453, %v3126
      %3128 = vmatmul.bf16.gmra.mxu0 %v2783
      %v3129 = vpop.f32.mrf.mxu0
      %v3130 = vadd.f32 %v2456, %v3129
      %v3131 = vpop.f32.mrf.mxu0
      %v3132 = vadd.f32 %v2458, %v3131
      %3133 = vmatmul.bf16.gmra.mxu0 %v2792
      %v3134 = vpop.f32.mrf.mxu0
      %v3135 = vadd.f32 %v2461, %v3134
      %v3136 = vpop.f32.mrf.mxu0
      %v3137 = vadd.f32 %v2463, %v3136
      %3138 = vmatmul.bf16.gmra.mxu0 %v2801
      %v3139 = vpop.f32.mrf.mxu0
      %v3140 = vadd.f32 %v2466, %v3139
      %v3141 = vpop.f32.mrf.mxu0
      %v3142 = vadd.f32 %v2468, %v3141
      %3143 = vmatmul.bf16.gmra.mxu0 %v2810
      %v3144 = vpop.f32.mrf.mxu0
      %v3145 = vadd.f32 %v2471, %v3144
      %v3146 = vpop.f32.mrf.mxu0
      %v3147 = vadd.f32 %v2473, %v3146
      %3148 = vmatmul.bf16.gmra.mxu0 %v2819
      %v3149 = vpop.f32.mrf.mxu0
      %v3150 = vadd.f32 %v2476, %v3149
      %v3151 = vpop.f32.mrf.mxu0
      %v3152 = vadd.f32 %v2478, %v3151
      %3153 = vmatmul.bf16.gmra.mxu0 %v2828
      %v3154 = vpop.f32.mrf.mxu0
      %v3155 = vadd.f32 %v2481, %v3154
      %v3156 = vpop.f32.mrf.mxu0
      %v3157 = vadd.f32 %v2483, %v3156
      %3158 = vmatmul.bf16.gmra.mxu0 %v2837
      %v3159 = vpop.f32.mrf.mxu0
      %v3160 = vadd.f32 %v2486, %v3159
      %v3161 = vpop.f32.mrf.mxu0
      %v3162 = vadd.f32 %v2488, %v3161
      %3163 = vmatmul.bf16.gmra.mxu0 %v2846
      %v3164 = vpop.f32.mrf.mxu0
      %v3165 = vadd.f32 %v2491, %v3164
      %v3166 = vpop.f32.mrf.mxu0
      %v3167 = vadd.f32 %v2493, %v3166
      %3168 = vmatmul.bf16.gmra.mxu0 %v2855
      %v3169 = vpop.f32.mrf.mxu0
      %v3170 = vadd.f32 %v2496, %v3169
      %v3171 = vpop.f32.mrf.mxu0
      %v3172 = vadd.f32 %v2498, %v3171
      %3173 = vmatmul.bf16.gmra.mxu0 %v2864
      %v3174 = vpop.f32.mrf.mxu0
      %v3175 = vadd.f32 %v2501, %v3174
      %v3176 = vpop.f32.mrf.mxu0
      %v3177 = vadd.f32 %v2503, %v3176
      %3178 = vmatmul.bf16.gmra.mxu0 %v2873
      %v3179 = vpop.f32.mrf.mxu0
      %v3180 = vadd.f32 %v2506, %v3179
      %v3181 = vpop.f32.mrf.mxu0
      %v3182 = vadd.f32 %v2508, %v3181
      %3183 = vmatmul.bf16.gmra.mxu0 %v2882
      %v3184 = vpop.f32.mrf.mxu0
      %v3185 = vadd.f32 %v2511, %v3184
      %v3186 = vpop.f32.mrf.mxu0
      %v3187 = vadd.f32 %v2513, %v3186
      %3188 = vmatmul.bf16.gmra.mxu0 %v2891
      %v3189 = vpop.f32.mrf.mxu0
      %v3190 = vadd.f32 %v2516, %v3189
      %v3191 = vpop.f32.mrf.mxu0
      %v3192 = vadd.f32 %v2518, %v3191
      %3193 = vmatmul.bf16.gmra.mxu0 %v2900
      %v3194 = vpop.f32.mrf.mxu0
      %v3195 = vadd.f32 %v2521, %v3194
      %v3196 = vpop.f32.mrf.mxu0
      %v3197 = vadd.f32 %v2523, %v3196
      %3198 = vmatmul.bf16.gmra.mxu0 %v2899
      %v3199 = vpop.f32.mrf.mxu0
      %v3200 = vadd.f32 %v2526, %v3199
      %v3201 = vpop.f32.mrf.mxu0
      %3202 = vdwg.mxu0
      %v3203 = vld [vmem:[#allocation2 + $0x148] sm:$0xf]
      %s3204 = scalar_lea.vmem %s5, 128
      %v3205 = vld [vmem:[%s3204] sm:$0xf]
      %v3206 = vld [vmem:[%s3204 + $0x4] sm:$0xf]
      %v3207 = vld [vmem:[%s3204 + $0x8] sm:$0xf]
      %v3208 = vld [vmem:[%s3204 + $0xc] sm:$0xf]
      %v3209 = vld [vmem:[%s3204 + $0x10] sm:$0xf]
      %v3210 = vld [vmem:[%s3204 + $0x14] sm:$0xf]
      %v3211 = vld [vmem:[%s3204 + $0x18] sm:$0xf]
      %v3212 = vld [vmem:[%s3204 + $0x1c] sm:$0xf]
      %v3213 = vld [vmem:[%s3204 + $0x20] sm:$0xf]
      %v3214 = vld [vmem:[%s3204 + $0x24] sm:$0xf]
      %v3215 = vld [vmem:[%s3204 + $0x28] sm:$0xf]
      %v3216 = vld [vmem:[%s3204 + $0x2c] sm:$0xf]
      %v3217 = vld [vmem:[%s3204 + $0x30] sm:$0xf]
      %v3218 = vld [vmem:[%s3204 + $0x34] sm:$0xf]
      %v3219 = vld [vmem:[%s3204 + $0x38] sm:$0xf]
      %v3220 = vld [vmem:[%s3204 + $0x3c] sm:$0xf]
      %v3222 = vunpack.c.l.b16 %v3203
      %v3223 = vpack.c.b16 %v3222, %v2102
      %vm3224 = vsmask.f32 4352
      %v3226 = vshrl.u32 %v2104, 16
      %v3228 = vrot.slane %v3226, 3
      %v3229 = vshll.u32 %v2104, 16
      %v3231 = vrot.slane %v3229, 4
      %v3232 = vor.u32 %v3228, %v3231
      %v3233 = vrot.slane %v2542, 3
      %v3234 = vrot.slane %v2545, 4
      %v3235 = vor.u32 %v3233, %v3234
      %v3236 = vsel %vm3224, %v3232, %v3235
      %v3237 = vrot.slane %v2551, 3
      %v3238 = vrot.slane %v2554, 4
      %v3239 = vor.u32 %v3237, %v3238
      %v3240 = vsel %vm3224, %v3235, %v3239
      %v3241 = vrot.slane %v2560, 3
      %v3242 = vrot.slane %v2563, 4
      %v3243 = vor.u32 %v3241, %v3242
      %v3244 = vsel %vm3224, %v3239, %v3243
      %v3245 = vrot.slane %v2569, 3
      %v3246 = vrot.slane %v2572, 4
      %v3247 = vor.u32 %v3245, %v3246
      %v3248 = vsel %vm3224, %v3243, %v3247
      %v3249 = vrot.slane %v2578, 3
      %v3250 = vrot.slane %v2581, 4
      %v3251 = vor.u32 %v3249, %v3250
      %v3252 = vsel %vm3224, %v3247, %v3251
      %v3253 = vrot.slane %v2587, 3
      %v3254 = vrot.slane %v2590, 4
      %v3255 = vor.u32 %v3253, %v3254
      %v3256 = vsel %vm3224, %v3251, %v3255
      %v3257 = vrot.slane %v2596, 3
      %v3258 = vrot.slane %v2599, 4
      %v3259 = vor.u32 %v3257, %v3258
      %v3260 = vsel %vm3224, %v3255, %v3259
      %v3261 = vrot.slane %v2605, 3
      %v3262 = vrot.slane %v2608, 4
      %v3263 = vor.u32 %v3261, %v3262
      %v3264 = vsel %vm3224, %v3259, %v3263
      %v3265 = vrot.slane %v2614, 3
      %v3266 = vrot.slane %v2617, 4
      %v3267 = vor.u32 %v3265, %v3266
      %v3268 = vsel %vm3224, %v3263, %v3267
      %v3269 = vrot.slane %v2623, 3
      %v3270 = vrot.slane %v2626, 4
      %v3271 = vor.u32 %v3269, %v3270
      %v3272 = vsel %vm3224, %v3267, %v3271
      %v3273 = vrot.slane %v2632, 3
      %v3274 = vrot.slane %v2635, 4
      %v3275 = vor.u32 %v3273, %v3274
      %v3276 = vsel %vm3224, %v3271, %v3275
      %v3277 = vrot.slane %v2641, 3
      %v3278 = vrot.slane %v2644, 4
      %v3279 = vor.u32 %v3277, %v3278
      %v3280 = vsel %vm3224, %v3275, %v3279
      %v3281 = vrot.slane %v2650, 3
      %v3282 = vrot.slane %v2653, 4
      %v3283 = vor.u32 %v3281, %v3282
      %v3284 = vsel %vm3224, %v3279, %v3283
      %v3285 = vrot.slane %v2659, 3
      %v3286 = vrot.slane %v2662, 4
      %v3287 = vor.u32 %v3285, %v3286
      %v3288 = vsel %vm3224, %v3283, %v3287
      %v3289 = vrot.slane %v2668, 3
      %v3290 = vrot.slane %v2671, 4
      %v3291 = vor.u32 %v3289, %v3290
      %v3292 = vsel %vm3224, %v3287, %v3291
      %v3293 = vrot.slane %v2677, 3
      %v3294 = vrot.slane %v2680, 4
      %v3295 = vor.u32 %v3293, %v3294
      %v3296 = vsel %vm3224, %v3291, %v3295
      %v3297 = vrot.slane %v2686, 3
      %v3298 = vrot.slane %v2689, 4
      %v3299 = vor.u32 %v3297, %v3298
      %v3300 = vsel %vm3224, %v3295, %v3299
      %v3301 = vrot.slane %v2695, 3
      %v3302 = vrot.slane %v2698, 4
      %v3303 = vor.u32 %v3301, %v3302
      %v3304 = vsel %vm3224, %v3299, %v3303
      %v3305 = vrot.slane %v2704, 3
      %v3306 = vrot.slane %v2707, 4
      %v3307 = vor.u32 %v3305, %v3306
      %v3308 = vsel %vm3224, %v3303, %v3307
      %v3309 = vrot.slane %v2713, 3
      %v3310 = vrot.slane %v2716, 4
      %v3311 = vor.u32 %v3309, %v3310
      %v3312 = vsel %vm3224, %v3307, %v3311
      %v3313 = vrot.slane %v2722, 3
      %v3314 = vrot.slane %v2725, 4
      %v3315 = vor.u32 %v3313, %v3314
      %v3316 = vsel %vm3224, %v3311, %v3315
      %v3317 = vrot.slane %v2731, 3
      %v3318 = vrot.slane %v2734, 4
      %v3319 = vor.u32 %v3317, %v3318
      %v3320 = vsel %vm3224, %v3315, %v3319
      %v3321 = vrot.slane %v2740, 3
      %v3322 = vrot.slane %v2743, 4
      %v3323 = vor.u32 %v3321, %v3322
      %v3324 = vsel %vm3224, %v3319, %v3323
      %v3325 = vrot.slane %v2749, 3
      %v3326 = vrot.slane %v2752, 4
      %v3327 = vor.u32 %v3325, %v3326
      %v3328 = vsel %vm3224, %v3323, %v3327
      %v3329 = vrot.slane %v2758, 3
      %v3330 = vrot.slane %v2761, 4
      %v3331 = vor.u32 %v3329, %v3330
      %v3332 = vsel %vm3224, %v3327, %v3331
      %v3333 = vrot.slane %v2767, 3
      %v3334 = vrot.slane %v2770, 4
      %v3335 = vor.u32 %v3333, %v3334
      %v3336 = vsel %vm3224, %v3331, %v3335
      %v3337 = vrot.slane %v2776, 3
      %v3338 = vrot.slane %v2779, 4
      %v3339 = vor.u32 %v3337, %v3338
      %v3340 = vsel %vm3224, %v3335, %v3339
      %v3341 = vrot.slane %v2785, 3
      %v3342 = vrot.slane %v2788, 4
      %v3343 = vor.u32 %v3341, %v3342
      %v3344 = vsel %vm3224, %v3339, %v3343
      %v3345 = vrot.slane %v2794, 3
      %v3346 = vrot.slane %v2797, 4
      %v3347 = vor.u32 %v3345, %v3346
      %v3348 = vsel %vm3224, %v3343, %v3347
      %v3349 = vrot.slane %v2803, 3
      %v3350 = vrot.slane %v2806, 4
      %v3351 = vor.u32 %v3349, %v3350
      %v3352 = vsel %vm3224, %v3347, %v3351
      %v3353 = vrot.slane %v2812, 3
      %v3354 = vrot.slane %v2815, 4
      %v3355 = vor.u32 %v3353, %v3354
      %v3356 = vsel %vm3224, %v3351, %v3355
      %v3357 = vrot.slane %v2821, 3
      %v3358 = vrot.slane %v2824, 4
      %v3359 = vor.u32 %v3357, %v3358
      %v3360 = vsel %vm3224, %v3355, %v3359
      %v3361 = vrot.slane %v2830, 3
      %v3362 = vrot.slane %v2833, 4
      %v3363 = vor.u32 %v3361, %v3362
      %v3364 = vsel %vm3224, %v3359, %v3363
      %v3365 = vrot.slane %v2839, 3
      %v3366 = vrot.slane %v2842, 4
      %v3367 = vor.u32 %v3365, %v3366
      %v3368 = vsel %vm3224, %v3363, %v3367
      %v3369 = vrot.slane %v2848, 3
      %v3370 = vrot.slane %v2851, 4
      %v3371 = vor.u32 %v3369, %v3370
      %v3372 = vsel %vm3224, %v3367, %v3371
      %v3373 = vrot.slane %v2857, 3
      %v3374 = vrot.slane %v2860, 4
      %v3375 = vor.u32 %v3373, %v3374
      %v3376 = vsel %vm3224, %v3371, %v3375
      %v3377 = vrot.slane %v2866, 3
      %v3378 = vrot.slane %v2869, 4
      %v3379 = vor.u32 %v3377, %v3378
      %v3380 = vsel %vm3224, %v3375, %v3379
      %v3381 = vrot.slane %v2875, 3
      %v3382 = vrot.slane %v2878, 4
      %v3383 = vor.u32 %v3381, %v3382
      %v3384 = vsel %vm3224, %v3379, %v3383
      %v3385 = vrot.slane %v2884, 3
      %v3386 = vrot.slane %v2887, 4
      %v3387 = vor.u32 %v3385, %v3386
      %v3388 = vsel %vm3224, %v3383, %v3387
      %v3390 = vshrl.u32 %v3223, 16
      %v3392 = vrot.slane %v3390, 3
      %v3393 = vshll.u32 %v3223, 16
      %v3395 = vrot.slane %v3393, 4
      %v3396 = vor.u32 %v3392, %v3395
      %v3397 = vsel %vm3224, %v3387, %v3396
      %v3455 = vunpack.c.l.b16 %v3205
      %v3456 = vunpack.c.l.b16 %v3206
      %v3457 = vunpack.c.l.b16 %v3207
      %v3458 = vunpack.c.l.b16 %v3208
      %v3459 = vunpack.c.l.b16 %v3209
      %v3460 = vunpack.c.l.b16 %v3210
      %v3461 = vunpack.c.l.b16 %v3211
      %v3462 = vunpack.c.l.b16 %v3212
      %v3463 = vunpack.c.l.b16 %v3213
      %v3464 = vunpack.c.l.b16 %v3214
      %v3465 = vunpack.c.l.b16 %v3215
      %v3466 = vunpack.c.l.b16 %v3216
      %v3467 = vunpack.c.l.b16 %v3217
      %v3468 = vunpack.c.l.b16 %v3218
      %v3469 = vunpack.c.l.b16 %v3219
      %v3470 = vunpack.c.l.b16 %v3220
      %v3471 = vpack.c.b16 %v3456, %v3455
      %v3472 = vpack.c.b16 %v3458, %v3457
      %v3473 = vpack.c.b16 %v3460, %v3459
      %v3474 = vpack.c.b16 %v3462, %v3461
      %v3475 = vpack.c.b16 %v3464, %v3463
      %v3476 = vpack.c.b16 %v3466, %v3465
      %v3477 = vpack.c.b16 %v3468, %v3467
      %v3478 = vpack.c.b16 %v3470, %v3469
      %3487 = vmatpush.bf16.msra.mxu0 %v3478
      %3488 = vmatpush.bf16.msra.mxu0 %v3477
      %3489 = vmatpush.bf16.msra.mxu0 %v3476
      %3490 = vmatpush.bf16.msra.mxu0 %v3475
      %3491 = vmatpush.bf16.msra.mxu0 %v3474
      %3492 = vmatpush.bf16.msra.mxu0 %v3473
      %3493 = vmatpush.bf16.msra.mxu0 %v3472
      %3494 = vmatpush.bf16.msra.mxu0 %v3471
      %3495 = vmatmul.bf16.gmra.mxu0 %v3236
      %v3496 = vpop.f32.mrf.mxu0
      %v3497 = vadd.f32 0.0, %v3496
      %v3498 = vpop.f32.mrf.mxu0
      %v3499 = vadd.f32 0.0, %v3498
      %3500 = vmatmul.bf16.gmra.mxu0 %v3240
      %v3501 = vpop.f32.mrf.mxu0
      %v3502 = vadd.f32 0.0, %v3501
      %v3503 = vpop.f32.mrf.mxu0
      %v3504 = vadd.f32 0.0, %v3503
      %3505 = vmatmul.bf16.gmra.mxu0 %v3244
      %v3506 = vpop.f32.mrf.mxu0
      %v3507 = vadd.f32 0.0, %v3506
      %v3508 = vpop.f32.mrf.mxu0
      %v3509 = vadd.f32 0.0, %v3508
      %3510 = vmatmul.bf16.gmra.mxu0 %v3248
      %v3511 = vpop.f32.mrf.mxu0
      %v3512 = vadd.f32 0.0, %v3511
      %v3513 = vpop.f32.mrf.mxu0
      %v3514 = vadd.f32 0.0, %v3513
      %3515 = vmatmul.bf16.gmra.mxu0 %v3252
      %v3516 = vpop.f32.mrf.mxu0
      %v3517 = vadd.f32 0.0, %v3516
      %v3518 = vpop.f32.mrf.mxu0
      %v3519 = vadd.f32 0.0, %v3518
      %3520 = vmatmul.bf16.gmra.mxu0 %v3256
      %v3521 = vpop.f32.mrf.mxu0
      %v3522 = vadd.f32 0.0, %v3521
      %v3523 = vpop.f32.mrf.mxu0
      %v3524 = vadd.f32 0.0, %v3523
      %3525 = vmatmul.bf16.gmra.mxu0 %v3260
      %v3526 = vpop.f32.mrf.mxu0
      %v3527 = vadd.f32 0.0, %v3526
      %v3528 = vpop.f32.mrf.mxu0
      %v3529 = vadd.f32 0.0, %v3528
      %3530 = vmatmul.bf16.gmra.mxu0 %v3264
      %v3531 = vpop.f32.mrf.mxu0
      %v3532 = vadd.f32 0.0, %v3531
      %v3533 = vpop.f32.mrf.mxu0
      %v3534 = vadd.f32 0.0, %v3533
      %3535 = vmatmul.bf16.gmra.mxu0 %v3268
      %v3536 = vpop.f32.mrf.mxu0
      %v3537 = vadd.f32 0.0, %v3536
      %v3538 = vpop.f32.mrf.mxu0
      %v3539 = vadd.f32 0.0, %v3538
      %3540 = vmatmul.bf16.gmra.mxu0 %v3272
      %v3541 = vpop.f32.mrf.mxu0
      %v3542 = vadd.f32 0.0, %v3541
      %v3543 = vpop.f32.mrf.mxu0
      %v3544 = vadd.f32 0.0, %v3543
      %3545 = vmatmul.bf16.gmra.mxu0 %v3276
      %v3546 = vpop.f32.mrf.mxu0
      %v3547 = vadd.f32 0.0, %v3546
      %v3548 = vpop.f32.mrf.mxu0
      %v3549 = vadd.f32 0.0, %v3548
      %3550 = vmatmul.bf16.gmra.mxu0 %v3280
      %v3551 = vpop.f32.mrf.mxu0
      %v3552 = vadd.f32 0.0, %v3551
      %v3553 = vpop.f32.mrf.mxu0
      %v3554 = vadd.f32 0.0, %v3553
      %3555 = vmatmul.bf16.gmra.mxu0 %v3284
      %v3556 = vpop.f32.mrf.mxu0
      %v3557 = vadd.f32 0.0, %v3556
      %v3558 = vpop.f32.mrf.mxu0
      %v3559 = vadd.f32 0.0, %v3558
      %3560 = vmatmul.bf16.gmra.mxu0 %v3288
      %v3561 = vpop.f32.mrf.mxu0
      %v3562 = vadd.f32 0.0, %v3561
      %v3563 = vpop.f32.mrf.mxu0
      %v3564 = vadd.f32 0.0, %v3563
      %3565 = vmatmul.bf16.gmra.mxu0 %v3292
      %v3566 = vpop.f32.mrf.mxu0
      %v3567 = vadd.f32 0.0, %v3566
      %v3568 = vpop.f32.mrf.mxu0
      %v3569 = vadd.f32 0.0, %v3568
      %3570 = vmatmul.bf16.gmra.mxu0 %v3296
      %v3571 = vpop.f32.mrf.mxu0
      %v3572 = vadd.f32 0.0, %v3571
      %v3573 = vpop.f32.mrf.mxu0
      %v3574 = vadd.f32 0.0, %v3573
      %3575 = vmatmul.bf16.gmra.mxu0 %v3300
      %v3576 = vpop.f32.mrf.mxu0
      %v3577 = vadd.f32 0.0, %v3576
      %v3578 = vpop.f32.mrf.mxu0
      %v3579 = vadd.f32 0.0, %v3578
      %3580 = vmatmul.bf16.gmra.mxu0 %v3304
      %v3581 = vpop.f32.mrf.mxu0
      %v3582 = vadd.f32 0.0, %v3581
      %v3583 = vpop.f32.mrf.mxu0
      %v3584 = vadd.f32 0.0, %v3583
      %3585 = vmatmul.bf16.gmra.mxu0 %v3308
      %v3586 = vpop.f32.mrf.mxu0
      %v3587 = vadd.f32 0.0, %v3586
      %v3588 = vpop.f32.mrf.mxu0
      %v3589 = vadd.f32 0.0, %v3588
      %3590 = vmatmul.bf16.gmra.mxu0 %v3312
      %v3591 = vpop.f32.mrf.mxu0
      %v3592 = vadd.f32 0.0, %v3591
      %v3593 = vpop.f32.mrf.mxu0
      %v3594 = vadd.f32 0.0, %v3593
      %3595 = vmatmul.bf16.gmra.mxu0 %v3316
      %v3596 = vpop.f32.mrf.mxu0
      %v3597 = vadd.f32 0.0, %v3596
      %v3598 = vpop.f32.mrf.mxu0
      %v3599 = vadd.f32 0.0, %v3598
      %3600 = vmatmul.bf16.gmra.mxu0 %v3320
      %v3601 = vpop.f32.mrf.mxu0
      %v3602 = vadd.f32 0.0, %v3601
      %v3603 = vpop.f32.mrf.mxu0
      %v3604 = vadd.f32 0.0, %v3603
      %3605 = vmatmul.bf16.gmra.mxu0 %v3324
      %v3606 = vpop.f32.mrf.mxu0
      %v3607 = vadd.f32 0.0, %v3606
      %v3608 = vpop.f32.mrf.mxu0
      %v3609 = vadd.f32 0.0, %v3608
      %3610 = vmatmul.bf16.gmra.mxu0 %v3328
      %v3611 = vpop.f32.mrf.mxu0
      %v3612 = vadd.f32 0.0, %v3611
      %v3613 = vpop.f32.mrf.mxu0
      %v3614 = vadd.f32 0.0, %v3613
      %3615 = vmatmul.bf16.gmra.mxu0 %v3332
      %v3616 = vpop.f32.mrf.mxu0
      %v3617 = vadd.f32 0.0, %v3616
      %v3618 = vpop.f32.mrf.mxu0
      %v3619 = vadd.f32 0.0, %v3618
      %3620 = vmatmul.bf16.gmra.mxu0 %v3336
      %v3621 = vpop.f32.mrf.mxu0
      %v3622 = vadd.f32 0.0, %v3621
      %v3623 = vpop.f32.mrf.mxu0
      %v3624 = vadd.f32 0.0, %v3623
      %3625 = vmatmul.bf16.gmra.mxu0 %v3340
      %v3626 = vpop.f32.mrf.mxu0
      %v3627 = vadd.f32 0.0, %v3626
      %v3628 = vpop.f32.mrf.mxu0
      %v3629 = vadd.f32 0.0, %v3628
      %3630 = vmatmul.bf16.gmra.mxu0 %v3344
      %v3631 = vpop.f32.mrf.mxu0
      %v3632 = vadd.f32 0.0, %v3631
      %v3633 = vpop.f32.mrf.mxu0
      %v3634 = vadd.f32 0.0, %v3633
      %3635 = vmatmul.bf16.gmra.mxu0 %v3348
      %v3636 = vpop.f32.mrf.mxu0
      %v3637 = vadd.f32 0.0, %v3636
      %v3638 = vpop.f32.mrf.mxu0
      %v3639 = vadd.f32 0.0, %v3638
      %3640 = vmatmul.bf16.gmra.mxu0 %v3352
      %v3641 = vpop.f32.mrf.mxu0
      %v3642 = vadd.f32 0.0, %v3641
      %v3643 = vpop.f32.mrf.mxu0
      %v3644 = vadd.f32 0.0, %v3643
      %3645 = vmatmul.bf16.gmra.mxu0 %v3356
      %v3646 = vpop.f32.mrf.mxu0
      %v3647 = vadd.f32 0.0, %v3646
      %v3648 = vpop.f32.mrf.mxu0
      %v3649 = vadd.f32 0.0, %v3648
      %3650 = vmatmul.bf16.gmra.mxu0 %v3360
      %v3651 = vpop.f32.mrf.mxu0
      %v3652 = vadd.f32 0.0, %v3651
      %v3653 = vpop.f32.mrf.mxu0
      %v3654 = vadd.f32 0.0, %v3653
      %3655 = vmatmul.bf16.gmra.mxu0 %v3364
      %v3656 = vpop.f32.mrf.mxu0
      %v3657 = vadd.f32 0.0, %v3656
      %v3658 = vpop.f32.mrf.mxu0
      %v3659 = vadd.f32 0.0, %v3658
      %3660 = vmatmul.bf16.gmra.mxu0 %v3368
      %v3661 = vpop.f32.mrf.mxu0
      %v3662 = vadd.f32 0.0, %v3661
      %v3663 = vpop.f32.mrf.mxu0
      %v3664 = vadd.f32 0.0, %v3663
      %3665 = vmatmul.bf16.gmra.mxu0 %v3372
      %v3666 = vpop.f32.mrf.mxu0
      %v3667 = vadd.f32 0.0, %v3666
      %v3668 = vpop.f32.mrf.mxu0
      %v3669 = vadd.f32 0.0, %v3668
      %3670 = vmatmul.bf16.gmra.mxu0 %v3376
      %v3671 = vpop.f32.mrf.mxu0
      %v3672 = vadd.f32 0.0, %v3671
      %v3673 = vpop.f32.mrf.mxu0
      %v3674 = vadd.f32 0.0, %v3673
      %3675 = vmatmul.bf16.gmra.mxu0 %v3380
      %v3676 = vpop.f32.mrf.mxu0
      %v3677 = vadd.f32 0.0, %v3676
      %v3678 = vpop.f32.mrf.mxu0
      %v3679 = vadd.f32 0.0, %v3678
      %3680 = vmatmul.bf16.gmra.mxu0 %v3384
      %v3681 = vpop.f32.mrf.mxu0
      %v3682 = vadd.f32 0.0, %v3681
      %v3683 = vpop.f32.mrf.mxu0
      %v3684 = vadd.f32 0.0, %v3683
      %3685 = vmatmul.bf16.gmra.mxu0 %v3388
      %v3686 = vpop.f32.mrf.mxu0
      %v3687 = vadd.f32 0.0, %v3686
      %v3688 = vpop.f32.mrf.mxu0
      %v3689 = vadd.f32 0.0, %v3688
      %3690 = vmatmul.bf16.gmra.mxu0 %v3397
      %v3691 = vpop.f32.mrf.mxu0
      %v3692 = vadd.f32 0.0, %v3691
      %v3693 = vpop.f32.mrf.mxu0
      %v3694 = vadd.f32 0.0, %v3693
      %3695 = vmatmul.bf16.gmra.mxu0 %v3396
      %v3696 = vpop.f32.mrf.mxu0
      %v3697 = vadd.f32 0.0, %v3696
      %v3698 = vpop.f32.mrf.mxu0
      %3699 = vdwg.mxu0
      %v3700 = vadd.f32 %v3000, %v3497
      %v3701 = vadd.f32 %v3002, %v3499
      %v3702 = vadd.f32 %v3005, %v3502
      %v3703 = vadd.f32 %v3007, %v3504
      %v3704 = vadd.f32 %v3010, %v3507
      %v3705 = vadd.f32 %v3012, %v3509
      %v3706 = vadd.f32 %v3015, %v3512
      %v3707 = vadd.f32 %v3017, %v3514
      %v3708 = vadd.f32 %v3020, %v3517
      %v3709 = vadd.f32 %v3022, %v3519
      %v3710 = vadd.f32 %v3025, %v3522
      %v3711 = vadd.f32 %v3027, %v3524
      %v3712 = vadd.f32 %v3030, %v3527
      %v3713 = vadd.f32 %v3032, %v3529
      %v3714 = vadd.f32 %v3035, %v3532
      %v3715 = vadd.f32 %v3037, %v3534
      %v3716 = vadd.f32 %v3040, %v3537
      %v3717 = vadd.f32 %v3042, %v3539
      %v3718 = vadd.f32 %v3045, %v3542
      %v3719 = vadd.f32 %v3047, %v3544
      %v3720 = vadd.f32 %v3050, %v3547
      %v3721 = vadd.f32 %v3052, %v3549
      %v3722 = vadd.f32 %v3055, %v3552
      %v3723 = vadd.f32 %v3057, %v3554
      %v3724 = vadd.f32 %v3060, %v3557
      %v3725 = vadd.f32 %v3062, %v3559
      %v3726 = vadd.f32 %v3065, %v3562
      %v3727 = vadd.f32 %v3067, %v3564
      %v3728 = vadd.f32 %v3070, %v3567
      %v3729 = vadd.f32 %v3072, %v3569
      %v3730 = vadd.f32 %v3075, %v3572
      %v3731 = vadd.f32 %v3077, %v3574
      %v3732 = vadd.f32 %v3080, %v3577
      %v3733 = vadd.f32 %v3082, %v3579
      %v3734 = vadd.f32 %v3085, %v3582
      %v3735 = vadd.f32 %v3087, %v3584
      %v3736 = vadd.f32 %v3090, %v3587
      %v3737 = vadd.f32 %v3092, %v3589
      %v3738 = vadd.f32 %v3095, %v3592
      %v3739 = vadd.f32 %v3097, %v3594
      %v3740 = vadd.f32 %v3100, %v3597
      %v3741 = vadd.f32 %v3102, %v3599
      %v3742 = vadd.f32 %v3105, %v3602
      %v3743 = vadd.f32 %v3107, %v3604
      %v3744 = vadd.f32 %v3110, %v3607
      %v3745 = vadd.f32 %v3112, %v3609
      %v3746 = vadd.f32 %v3115, %v3612
      %v3747 = vadd.f32 %v3117, %v3614
      %v3748 = vadd.f32 %v3120, %v3617
      %v3749 = vadd.f32 %v3122, %v3619
      %v3750 = vadd.f32 %v3125, %v3622
      %v3751 = vadd.f32 %v3127, %v3624
      %v3752 = vadd.f32 %v3130, %v3627
      %v3753 = vadd.f32 %v3132, %v3629
      %v3754 = vadd.f32 %v3135, %v3632
      %v3755 = vadd.f32 %v3137, %v3634
      %v3756 = vadd.f32 %v3140, %v3637
      %v3757 = vadd.f32 %v3142, %v3639
      %v3758 = vadd.f32 %v3145, %v3642
      %v3759 = vadd.f32 %v3147, %v3644
      %v3760 = vadd.f32 %v3150, %v3647
      %v3761 = vadd.f32 %v3152, %v3649
      %v3762 = vadd.f32 %v3155, %v3652
      %v3763 = vadd.f32 %v3157, %v3654
      %v3764 = vadd.f32 %v3160, %v3657
      %v3765 = vadd.f32 %v3162, %v3659
      %v3766 = vadd.f32 %v3165, %v3662
      %v3767 = vadd.f32 %v3167, %v3664
      %v3768 = vadd.f32 %v3170, %v3667
      %v3769 = vadd.f32 %v3172, %v3669
      %v3770 = vadd.f32 %v3175, %v3672
      %v3771 = vadd.f32 %v3177, %v3674
      %v3772 = vadd.f32 %v3180, %v3677
      %v3773 = vadd.f32 %v3182, %v3679
      %v3774 = vadd.f32 %v3185, %v3682
      %v3775 = vadd.f32 %v3187, %v3684
      %v3776 = vadd.f32 %v3190, %v3687
      %v3777 = vadd.f32 %v3192, %v3689
      %v3778 = vadd.f32 %v3195, %v3692
      %v3779 = vadd.f32 %v3197, %v3694
      %v3780 = vadd.f32 %v3200, %v3697
      %v3781 = vld [vmem:[#allocation2 + $0xc] sm:$0x8]
      %v3782 = vld [vmem:[#allocation2 + $0x10] sm:$0xf]
      %v3783 = vld [vmem:[#allocation2 + $0x14] sm:$0xf]
      %v3784 = vld [vmem:[#allocation2 + $0x18] sm:$0xf]
      %v3785 = vld [vmem:[#allocation2 + $0x1c] sm:$0xf]
      %v3786 = vld [vmem:[#allocation2 + $0x20] sm:$0xf]
      %v3787 = vld [vmem:[#allocation2 + $0x24] sm:$0xf]
      %v3788 = vld [vmem:[#allocation2 + $0x28] sm:$0xf]
      %v3789 = vld [vmem:[#allocation2 + $0x2c] sm:$0xf]
      %v3790 = vld [vmem:[#allocation2 + $0x30] sm:$0xf]
      %v3791 = vld [vmem:[#allocation2 + $0x34] sm:$0xf]
      %v3792 = vld [vmem:[#allocation2 + $0x38] sm:$0xf]
      %v3793 = vld [vmem:[#allocation2 + $0x3c] sm:$0xf]
      %v3794 = vld [vmem:[#allocation2 + $0x40] sm:$0xf]
      %v3795 = vld [vmem:[#allocation2 + $0x44] sm:$0xf]
      %v3796 = vld [vmem:[#allocation2 + $0x48] sm:$0xf]
      %v3797 = vld [vmem:[#allocation2 + $0x4c] sm:$0xf]
      %v3798 = vld [vmem:[#allocation2 + $0x50] sm:$0xf]
      %v3799 = vld [vmem:[#allocation2 + $0x54] sm:$0xf]
      %v3800 = vld [vmem:[#allocation2 + $0x58] sm:$0xf]
      %v3801 = vld [vmem:[#allocation2 + $0x5c] sm:$0xf]
      %v3802 = vld [vmem:[#allocation2 + $0x60] sm:$0xf]
      %v3803 = vld [vmem:[#allocation2 + $0x64] sm:$0xf]
      %v3804 = vld [vmem:[#allocation2 + $0x68] sm:$0xf]
      %v3805 = vld [vmem:[#allocation2 + $0x6c] sm:$0xf]
      %v3806 = vld [vmem:[#allocation2 + $0x70] sm:$0xf]
      %v3807 = vld [vmem:[#allocation2 + $0x74] sm:$0xf]
      %v3808 = vld [vmem:[#allocation2 + $0x78] sm:$0xf]
      %v3809 = vld [vmem:[#allocation2 + $0x7c] sm:$0xf]
      %v3810 = vld [vmem:[#allocation2 + $0x80] sm:$0xf]
      %v3811 = vld [vmem:[#allocation2 + $0x84] sm:$0xf]
      %v3812 = vld [vmem:[#allocation2 + $0x88] sm:$0xf]
      %v3813 = vld [vmem:[#allocation2 + $0x8c] sm:$0xf]
      %v3814 = vld [vmem:[#allocation2 + $0x90] sm:$0xf]
      %v3815 = vld [vmem:[#allocation2 + $0x94] sm:$0xf]
      %v3816 = vld [vmem:[#allocation2 + $0x98] sm:$0xf]
      %v3817 = vld [vmem:[#allocation2 + $0x9c] sm:$0xf]
      %v3818 = vld [vmem:[#allocation2 + $0xa0] sm:$0xf]
      %v3819 = vld [vmem:[#allocation2 + $0xa4] sm:$0xf]
      %v3820 = vld [vmem:[#allocation2 + $0xa8] sm:$0xf]
      %v3821 = vld [vmem:[#allocation2 + $0xac] sm:$0xf]
      %v3822 = vld [vmem:[#allocation2 + $0xb0] sm:$0xf]
      %v3823 = vld [vmem:[#allocation2 + $0xb4] sm:$0xf]
      %v3824 = vld [vmem:[#allocation2 + $0xb8] sm:$0xf]
      %v3825 = vld [vmem:[#allocation2 + $0xbc] sm:$0xf]
      %v3826 = vld [vmem:[#allocation2 + $0xc0] sm:$0xf]
      %v3827 = vld [vmem:[#allocation2 + $0xc4] sm:$0xf]
      %v3828 = vld [vmem:[#allocation2 + $0xc8] sm:$0xf]
      %v3829 = vld [vmem:[#allocation2 + $0xcc] sm:$0xf]
      %v3830 = vld [vmem:[#allocation2 + $0xd0] sm:$0xf]
      %v3831 = vld [vmem:[#allocation2 + $0xd4] sm:$0xf]
      %v3832 = vld [vmem:[#allocation2 + $0xd8] sm:$0xf]
      %v3833 = vld [vmem:[#allocation2 + $0xdc] sm:$0xf]
      %v3834 = vld [vmem:[#allocation2 + $0xe0] sm:$0xf]
      %v3835 = vld [vmem:[#allocation2 + $0xe4] sm:$0xf]
      %v3836 = vld [vmem:[#allocation2 + $0xe8] sm:$0xf]
      %v3837 = vld [vmem:[#allocation2 + $0xec] sm:$0xf]
      %v3838 = vld [vmem:[#allocation2 + $0xf0] sm:$0xf]
      %v3839 = vld [vmem:[#allocation2 + $0xf4] sm:$0xf]
      %v3840 = vld [vmem:[#allocation2 + $0xf8] sm:$0xf]
      %v3841 = vld [vmem:[#allocation2 + $0xfc] sm:$0xf]
      %v3842 = vld [vmem:[#allocation2 + $0x100] sm:$0xf]
      %v3843 = vld [vmem:[#allocation2 + $0x104] sm:$0xf]
      %v3844 = vld [vmem:[#allocation2 + $0x108] sm:$0xf]
      %v3845 = vld [vmem:[#allocation2 + $0x10c] sm:$0xf]
      %v3846 = vld [vmem:[#allocation2 + $0x110] sm:$0xf]
      %v3847 = vld [vmem:[#allocation2 + $0x114] sm:$0xf]
      %v3848 = vld [vmem:[#allocation2 + $0x118] sm:$0xf]
      %v3849 = vld [vmem:[#allocation2 + $0x11c] sm:$0xf]
      %v3850 = vld [vmem:[#allocation2 + $0x120] sm:$0xf]
      %v3851 = vld [vmem:[#allocation2 + $0x124] sm:$0xf]
      %v3852 = vld [vmem:[#allocation2 + $0x128] sm:$0xf]
      %v3853 = vld [vmem:[#allocation2 + $0x12c] sm:$0xf]
      %v3854 = vld [vmem:[#allocation2 + $0x130] sm:$0xf]
      %v3855 = vld [vmem:[#allocation2 + $0x134] sm:$0xf]
      %v3856 = vld [vmem:[#allocation2 + $0x138] sm:$0xf]
      %v3857 = vld [vmem:[#allocation2 + $0x13c] sm:$0xf]
      %v3858 = vld [vmem:[#allocation2 + $0x140] sm:$0xf]
      %v3859 = vld [vmem:[#allocation2 + $0x144] sm:$0xf]
      %v3860 = vld [vmem:[#allocation2 + $0x148] sm:$0xf]
      %v3861 = vld [vmem:[#allocation2 + $0x14c] sm:$0xf]
      %v3862 = vld [vmem:[#allocation2 + $0x150] sm:$0xf]
      %s3863 = scalar_lea.vmem %s5, 192
      %v3864 = vld [vmem:[%s3863] sm:$0xf]
      %v3865 = vld [vmem:[%s3863 + $0x4] sm:$0xf]
      %v3866 = vld [vmem:[%s3863 + $0x8] sm:$0xf]
      %v3867 = vld [vmem:[%s3863 + $0xc] sm:$0xf]
      %v3868 = vld [vmem:[%s3863 + $0x10] sm:$0xf]
      %v3869 = vld [vmem:[%s3863 + $0x14] sm:$0xf]
      %v3870 = vld [vmem:[%s3863 + $0x18] sm:$0xf]
      %v3871 = vld [vmem:[%s3863 + $0x1c] sm:$0xf]
      %v3872 = vld [vmem:[%s3863 + $0x20] sm:$0xf]
      %v3873 = vld [vmem:[%s3863 + $0x24] sm:$0xf]
      %v3874 = vld [vmem:[%s3863 + $0x28] sm:$0xf]
      %v3875 = vld [vmem:[%s3863 + $0x2c] sm:$0xf]
      %v3876 = vld [vmem:[%s3863 + $0x30] sm:$0xf]
      %v3877 = vld [vmem:[%s3863 + $0x34] sm:$0xf]
      %v3878 = vld [vmem:[%s3863 + $0x38] sm:$0xf]
      %v3879 = vld [vmem:[%s3863 + $0x3c] sm:$0xf]
      %v3962 = vunpack.c.l.b16 %v3781
      %v3963 = vunpack.c.l.b16 %v3782
      %v3964 = vunpack.c.l.b16 %v3783
      %v3965 = vunpack.c.l.b16 %v3784
      %v3966 = vunpack.c.l.b16 %v3785
      %v3967 = vunpack.c.l.b16 %v3786
      %v3968 = vunpack.c.l.b16 %v3787
      %v3969 = vunpack.c.l.b16 %v3788
      %v3970 = vunpack.c.l.b16 %v3789
      %v3971 = vunpack.c.l.b16 %v3790
      %v3972 = vunpack.c.l.b16 %v3791
      %v3973 = vunpack.c.l.b16 %v3792
      %v3974 = vunpack.c.l.b16 %v3793
      %v3975 = vunpack.c.l.b16 %v3794
      %v3976 = vunpack.c.l.b16 %v3795
      %v3977 = vunpack.c.l.b16 %v3796
      %v3978 = vunpack.c.l.b16 %v3797
      %v3979 = vunpack.c.l.b16 %v3798
      %v3980 = vunpack.c.l.b16 %v3799
      %v3981 = vunpack.c.l.b16 %v3800
      %v3982 = vunpack.c.l.b16 %v3801
      %v3983 = vunpack.c.l.b16 %v3802
      %v3984 = vunpack.c.l.b16 %v3803
      %v3985 = vunpack.c.l.b16 %v3804
      %v3986 = vunpack.c.l.b16 %v3805
      %v3987 = vunpack.c.l.b16 %v3806
      %v3988 = vunpack.c.l.b16 %v3807
      %v3989 = vunpack.c.l.b16 %v3808
      %v3990 = vunpack.c.l.b16 %v3809
      %v3991 = vunpack.c.l.b16 %v3810
      %v3992 = vunpack.c.l.b16 %v3811
      %v3993 = vunpack.c.l.b16 %v3812
      %v3994 = vunpack.c.l.b16 %v3813
      %v3995 = vunpack.c.l.b16 %v3814
      %v3996 = vunpack.c.l.b16 %v3815
      %v3997 = vunpack.c.l.b16 %v3816
      %v3998 = vunpack.c.l.b16 %v3817
      %v3999 = vunpack.c.l.b16 %v3818
      %v4000 = vunpack.c.l.b16 %v3819
      %v4001 = vunpack.c.l.b16 %v3820
      %v4002 = vunpack.c.l.b16 %v3821
      %v4003 = vunpack.c.l.b16 %v3822
      %v4004 = vunpack.c.l.b16 %v3823
      %v4005 = vunpack.c.l.b16 %v3824
      %v4006 = vunpack.c.l.b16 %v3825
      %v4007 = vunpack.c.l.b16 %v3826
      %v4008 = vunpack.c.l.b16 %v3827
      %v4009 = vunpack.c.l.b16 %v3828
      %v4010 = vunpack.c.l.b16 %v3829
      %v4011 = vunpack.c.l.b16 %v3830
      %v4012 = vunpack.c.l.b16 %v3831
      %v4013 = vunpack.c.l.b16 %v3832
      %v4014 = vunpack.c.l.b16 %v3833
      %v4015 = vunpack.c.l.b16 %v3834
      %v4016 = vunpack.c.l.b16 %v3835
      %v4017 = vunpack.c.l.b16 %v3836
      %v4018 = vunpack.c.l.b16 %v3837
      %v4019 = vunpack.c.l.b16 %v3838
      %v4020 = vunpack.c.l.b16 %v3839
      %v4021 = vunpack.c.l.b16 %v3840
      %v4022 = vunpack.c.l.b16 %v3841
      %v4023 = vunpack.c.l.b16 %v3842
      %v4024 = vunpack.c.l.b16 %v3843
      %v4025 = vunpack.c.l.b16 %v3844
      %v4026 = vunpack.c.l.b16 %v3845
      %v4027 = vunpack.c.l.b16 %v3846
      %v4028 = vunpack.c.l.b16 %v3847
      %v4029 = vunpack.c.l.b16 %v3848
      %v4030 = vunpack.c.l.b16 %v3849
      %v4031 = vunpack.c.l.b16 %v3850
      %v4032 = vunpack.c.l.b16 %v3851
      %v4033 = vunpack.c.l.b16 %v3852
      %v4034 = vunpack.c.l.b16 %v3853
      %v4035 = vunpack.c.l.b16 %v3854
      %v4036 = vunpack.c.l.b16 %v3855
      %v4037 = vunpack.c.l.b16 %v3856
      %v4038 = vunpack.c.l.b16 %v3857
      %v4039 = vunpack.c.l.b16 %v3858
      %v4040 = vunpack.c.l.b16 %v3859
      %v4041 = vunpack.c.l.b16 %v3860
      %v4042 = vunpack.c.l.b16 %v3861
      %v4043 = vunpack.c.l.b16 %v3862
      %v4044 = vpack.c.b16 %v3963, %v3962
      %v4045 = vpack.c.b16 %v3965, %v3964
      %v4046 = vpack.c.b16 %v3967, %v3966
      %v4047 = vpack.c.b16 %v3969, %v3968
      %v4048 = vpack.c.b16 %v3971, %v3970
      %v4049 = vpack.c.b16 %v3973, %v3972
      %v4050 = vpack.c.b16 %v3975, %v3974
      %v4051 = vpack.c.b16 %v3977, %v3976
      %v4052 = vpack.c.b16 %v3979, %v3978
      %v4053 = vpack.c.b16 %v3981, %v3980
      %v4054 = vpack.c.b16 %v3983, %v3982
      %v4055 = vpack.c.b16 %v3985, %v3984
      %v4056 = vpack.c.b16 %v3987, %v3986
      %v4057 = vpack.c.b16 %v3989, %v3988
      %v4058 = vpack.c.b16 %v3991, %v3990
      %v4059 = vpack.c.b16 %v3993, %v3992
      %v4060 = vpack.c.b16 %v3995, %v3994
      %v4061 = vpack.c.b16 %v3997, %v3996
      %v4062 = vpack.c.b16 %v3999, %v3998
      %v4063 = vpack.c.b16 %v4001, %v4000
      %v4064 = vpack.c.b16 %v4003, %v4002
      %v4065 = vpack.c.b16 %v4005, %v4004
      %v4066 = vpack.c.b16 %v4007, %v4006
      %v4067 = vpack.c.b16 %v4009, %v4008
      %v4068 = vpack.c.b16 %v4011, %v4010
      %v4069 = vpack.c.b16 %v4013, %v4012
      %v4070 = vpack.c.b16 %v4015, %v4014
      %v4071 = vpack.c.b16 %v4017, %v4016
      %v4072 = vpack.c.b16 %v4019, %v4018
      %v4073 = vpack.c.b16 %v4021, %v4020
      %v4074 = vpack.c.b16 %v4023, %v4022
      %v4075 = vpack.c.b16 %v4025, %v4024
      %v4076 = vpack.c.b16 %v4027, %v4026
      %v4077 = vpack.c.b16 %v4029, %v4028
      %v4078 = vpack.c.b16 %v4031, %v4030
      %v4079 = vpack.c.b16 %v4033, %v4032
      %v4080 = vpack.c.b16 %v4035, %v4034
      %v4081 = vpack.c.b16 %v4037, %v4036
      %v4082 = vpack.c.b16 %v4039, %v4038
      %v4083 = vpack.c.b16 %v4041, %v4040
      %v4084 = vpack.c.b16 %v4043, %v4042
      %v4086 = vshrl.u32 %v4044, 16
      %v4088 = vrot.slane %v4086, 3
      %v4089 = vshll.u32 %v4044, 16
      %v4091 = vrot.slane %v4089, 4
      %v4092 = vor.u32 %v4088, %v4091
      %v4094 = vshrl.u32 %v4045, 16
      %v4096 = vrot.slane %v4094, 3
      %v4097 = vshll.u32 %v4045, 16
      %v4099 = vrot.slane %v4097, 4
      %v4100 = vor.u32 %v4096, %v4099
      %v4101 = vsel %vm3224, %v4092, %v4100
      %v4103 = vshrl.u32 %v4046, 16
      %v4105 = vrot.slane %v4103, 3
      %v4106 = vshll.u32 %v4046, 16
      %v4108 = vrot.slane %v4106, 4
      %v4109 = vor.u32 %v4105, %v4108
      %v4110 = vsel %vm3224, %v4100, %v4109
      %v4112 = vshrl.u32 %v4047, 16
      %v4114 = vrot.slane %v4112, 3
      %v4115 = vshll.u32 %v4047, 16
      %v4117 = vrot.slane %v4115, 4
      %v4118 = vor.u32 %v4114, %v4117
      %v4119 = vsel %vm3224, %v4109, %v4118
      %v4121 = vshrl.u32 %v4048, 16
      %v4123 = vrot.slane %v4121, 3
      %v4124 = vshll.u32 %v4048, 16
      %v4126 = vrot.slane %v4124, 4
      %v4127 = vor.u32 %v4123, %v4126
      %v4128 = vsel %vm3224, %v4118, %v4127
      %v4130 = vshrl.u32 %v4049, 16
      %v4132 = vrot.slane %v4130, 3
      %v4133 = vshll.u32 %v4049, 16
      %v4135 = vrot.slane %v4133, 4
      %v4136 = vor.u32 %v4132, %v4135
      %v4137 = vsel %vm3224, %v4127, %v4136
      %v4139 = vshrl.u32 %v4050, 16
      %v4141 = vrot.slane %v4139, 3
      %v4142 = vshll.u32 %v4050, 16
      %v4144 = vrot.slane %v4142, 4
      %v4145 = vor.u32 %v4141, %v4144
      %v4146 = vsel %vm3224, %v4136, %v4145
      %v4148 = vshrl.u32 %v4051, 16
      %v4150 = vrot.slane %v4148, 3
      %v4151 = vshll.u32 %v4051, 16
      %v4153 = vrot.slane %v4151, 4
      %v4154 = vor.u32 %v4150, %v4153
      %v4155 = vsel %vm3224, %v4145, %v4154
      %v4157 = vshrl.u32 %v4052, 16
      %v4159 = vrot.slane %v4157, 3
      %v4160 = vshll.u32 %v4052, 16
      %v4162 = vrot.slane %v4160, 4
      %v4163 = vor.u32 %v4159, %v4162
      %v4164 = vsel %vm3224, %v4154, %v4163
      %v4166 = vshrl.u32 %v4053, 16
      %v4168 = vrot.slane %v4166, 3
      %v4169 = vshll.u32 %v4053, 16
      %v4171 = vrot.slane %v4169, 4
      %v4172 = vor.u32 %v4168, %v4171
      %v4173 = vsel %vm3224, %v4163, %v4172
      %v4175 = vshrl.u32 %v4054, 16
      %v4177 = vrot.slane %v4175, 3
      %v4178 = vshll.u32 %v4054, 16
      %v4180 = vrot.slane %v4178, 4
      %v4181 = vor.u32 %v4177, %v4180
      %v4182 = vsel %vm3224, %v4172, %v4181
      %v4184 = vshrl.u32 %v4055, 16
      %v4186 = vrot.slane %v4184, 3
      %v4187 = vshll.u32 %v4055, 16
      %v4189 = vrot.slane %v4187, 4
      %v4190 = vor.u32 %v4186, %v4189
      %v4191 = vsel %vm3224, %v4181, %v4190
      %v4193 = vshrl.u32 %v4056, 16
      %v4195 = vrot.slane %v4193, 3
      %v4196 = vshll.u32 %v4056, 16
      %v4198 = vrot.slane %v4196, 4
      %v4199 = vor.u32 %v4195, %v4198
      %v4200 = vsel %vm3224, %v4190, %v4199
      %v4202 = vshrl.u32 %v4057, 16
      %v4204 = vrot.slane %v4202, 3
      %v4205 = vshll.u32 %v4057, 16
      %v4207 = vrot.slane %v4205, 4
      %v4208 = vor.u32 %v4204, %v4207
      %v4209 = vsel %vm3224, %v4199, %v4208
      %v4211 = vshrl.u32 %v4058, 16
      %v4213 = vrot.slane %v4211, 3
      %v4214 = vshll.u32 %v4058, 16
      %v4216 = vrot.slane %v4214, 4
      %v4217 = vor.u32 %v4213, %v4216
      %v4218 = vsel %vm3224, %v4208, %v4217
      %v4220 = vshrl.u32 %v4059, 16
      %v4222 = vrot.slane %v4220, 3
      %v4223 = vshll.u32 %v4059, 16
      %v4225 = vrot.slane %v4223, 4
      %v4226 = vor.u32 %v4222, %v4225
      %v4227 = vsel %vm3224, %v4217, %v4226
      %v4229 = vshrl.u32 %v4060, 16
      %v4231 = vrot.slane %v4229, 3
      %v4232 = vshll.u32 %v4060, 16
      %v4234 = vrot.slane %v4232, 4
      %v4235 = vor.u32 %v4231, %v4234
      %v4236 = vsel %vm3224, %v4226, %v4235
      %v4238 = vshrl.u32 %v4061, 16
      %v4240 = vrot.slane %v4238, 3
      %v4241 = vshll.u32 %v4061, 16
      %v4243 = vrot.slane %v4241, 4
      %v4244 = vor.u32 %v4240, %v4243
      %v4245 = vsel %vm3224, %v4235, %v4244
      %v4247 = vshrl.u32 %v4062, 16
      %v4249 = vrot.slane %v4247, 3
      %v4250 = vshll.u32 %v4062, 16
      %v4252 = vrot.slane %v4250, 4
      %v4253 = vor.u32 %v4249, %v4252
      %v4254 = vsel %vm3224, %v4244, %v4253
      %v4256 = vshrl.u32 %v4063, 16
      %v4258 = vrot.slane %v4256, 3
      %v4259 = vshll.u32 %v4063, 16
      %v4261 = vrot.slane %v4259, 4
      %v4262 = vor.u32 %v4258, %v4261
      %v4263 = vsel %vm3224, %v4253, %v4262
      %v4265 = vshrl.u32 %v4064, 16
      %v4267 = vrot.slane %v4265, 3
      %v4268 = vshll.u32 %v4064, 16
      %v4270 = vrot.slane %v4268, 4
      %v4271 = vor.u32 %v4267, %v4270
      %v4272 = vsel %vm3224, %v4262, %v4271
      %v4274 = vshrl.u32 %v4065, 16
      %v4276 = vrot.slane %v4274, 3
      %v4277 = vshll.u32 %v4065, 16
      %v4279 = vrot.slane %v4277, 4
      %v4280 = vor.u32 %v4276, %v4279
      %v4281 = vsel %vm3224, %v4271, %v4280
      %v4283 = vshrl.u32 %v4066, 16
      %v4285 = vrot.slane %v4283, 3
      %v4286 = vshll.u32 %v4066, 16
      %v4288 = vrot.slane %v4286, 4
      %v4289 = vor.u32 %v4285, %v4288
      %v4290 = vsel %vm3224, %v4280, %v4289
      %v4292 = vshrl.u32 %v4067, 16
      %v4294 = vrot.slane %v4292, 3
      %v4295 = vshll.u32 %v4067, 16
      %v4297 = vrot.slane %v4295, 4
      %v4298 = vor.u32 %v4294, %v4297
      %v4299 = vsel %vm3224, %v4289, %v4298
      %v4301 = vshrl.u32 %v4068, 16
      %v4303 = vrot.slane %v4301, 3
      %v4304 = vshll.u32 %v4068, 16
      %v4306 = vrot.slane %v4304, 4
      %v4307 = vor.u32 %v4303, %v4306
      %v4308 = vsel %vm3224, %v4298, %v4307
      %v4310 = vshrl.u32 %v4069, 16
      %v4312 = vrot.slane %v4310, 3
      %v4313 = vshll.u32 %v4069, 16
      %v4315 = vrot.slane %v4313, 4
      %v4316 = vor.u32 %v4312, %v4315
      %v4317 = vsel %vm3224, %v4307, %v4316
      %v4319 = vshrl.u32 %v4070, 16
      %v4321 = vrot.slane %v4319, 3
      %v4322 = vshll.u32 %v4070, 16
      %v4324 = vrot.slane %v4322, 4
      %v4325 = vor.u32 %v4321, %v4324
      %v4326 = vsel %vm3224, %v4316, %v4325
      %v4328 = vshrl.u32 %v4071, 16
      %v4330 = vrot.slane %v4328, 3
      %v4331 = vshll.u32 %v4071, 16
      %v4333 = vrot.slane %v4331, 4
      %v4334 = vor.u32 %v4330, %v4333
      %v4335 = vsel %vm3224, %v4325, %v4334
      %v4337 = vshrl.u32 %v4072, 16
      %v4339 = vrot.slane %v4337, 3
      %v4340 = vshll.u32 %v4072, 16
      %v4342 = vrot.slane %v4340, 4
      %v4343 = vor.u32 %v4339, %v4342
      %v4344 = vsel %vm3224, %v4334, %v4343
      %v4346 = vshrl.u32 %v4073, 16
      %v4348 = vrot.slane %v4346, 3
      %v4349 = vshll.u32 %v4073, 16
      %v4351 = vrot.slane %v4349, 4
      %v4352 = vor.u32 %v4348, %v4351
      %v4353 = vsel %vm3224, %v4343, %v4352
      %v4355 = vshrl.u32 %v4074, 16
      %v4357 = vrot.slane %v4355, 3
      %v4358 = vshll.u32 %v4074, 16
      %v4360 = vrot.slane %v4358, 4
      %v4361 = vor.u32 %v4357, %v4360
      %v4362 = vsel %vm3224, %v4352, %v4361
      %v4364 = vshrl.u32 %v4075, 16
      %v4366 = vrot.slane %v4364, 3
      %v4367 = vshll.u32 %v4075, 16
      %v4369 = vrot.slane %v4367, 4
      %v4370 = vor.u32 %v4366, %v4369
      %v4371 = vsel %vm3224, %v4361, %v4370
      %v4373 = vshrl.u32 %v4076, 16
      %v4375 = vrot.slane %v4373, 3
      %v4376 = vshll.u32 %v4076, 16
      %v4378 = vrot.slane %v4376, 4
      %v4379 = vor.u32 %v4375, %v4378
      %v4380 = vsel %vm3224, %v4370, %v4379
      %v4382 = vshrl.u32 %v4077, 16
      %v4384 = vrot.slane %v4382, 3
      %v4385 = vshll.u32 %v4077, 16
      %v4387 = vrot.slane %v4385, 4
      %v4388 = vor.u32 %v4384, %v4387
      %v4389 = vsel %vm3224, %v4379, %v4388
      %v4391 = vshrl.u32 %v4078, 16
      %v4393 = vrot.slane %v4391, 3
      %v4394 = vshll.u32 %v4078, 16
      %v4396 = vrot.slane %v4394, 4
      %v4397 = vor.u32 %v4393, %v4396
      %v4398 = vsel %vm3224, %v4388, %v4397
      %v4400 = vshrl.u32 %v4079, 16
      %v4402 = vrot.slane %v4400, 3
      %v4403 = vshll.u32 %v4079, 16
      %v4405 = vrot.slane %v4403, 4
      %v4406 = vor.u32 %v4402, %v4405
      %v4407 = vsel %vm3224, %v4397, %v4406
      %v4409 = vshrl.u32 %v4080, 16
      %v4411 = vrot.slane %v4409, 3
      %v4412 = vshll.u32 %v4080, 16
      %v4414 = vrot.slane %v4412, 4
      %v4415 = vor.u32 %v4411, %v4414
      %v4416 = vsel %vm3224, %v4406, %v4415
      %v4418 = vshrl.u32 %v4081, 16
      %v4420 = vrot.slane %v4418, 3
      %v4421 = vshll.u32 %v4081, 16
      %v4423 = vrot.slane %v4421, 4
      %v4424 = vor.u32 %v4420, %v4423
      %v4425 = vsel %vm3224, %v4415, %v4424
      %v4427 = vshrl.u32 %v4082, 16
      %v4429 = vrot.slane %v4427, 3
      %v4430 = vshll.u32 %v4082, 16
      %v4432 = vrot.slane %v4430, 4
      %v4433 = vor.u32 %v4429, %v4432
      %v4434 = vsel %vm3224, %v4424, %v4433
      %v4436 = vshrl.u32 %v4083, 16
      %v4438 = vrot.slane %v4436, 3
      %v4439 = vshll.u32 %v4083, 16
      %v4441 = vrot.slane %v4439, 4
      %v4442 = vor.u32 %v4438, %v4441
      %v4443 = vsel %vm3224, %v4433, %v4442
      %v4445 = vshrl.u32 %v4084, 16
      %v4447 = vrot.slane %v4445, 3
      %v4448 = vshll.u32 %v4084, 16
      %v4450 = vrot.slane %v4448, 4
      %v4451 = vor.u32 %v4447, %v4450
      %v4452 = vsel %vm3224, %v4442, %v4451
      %v4510 = vunpack.c.l.b16 %v3864
      %v4511 = vunpack.c.l.b16 %v3865
      %v4512 = vunpack.c.l.b16 %v3866
      %v4513 = vunpack.c.l.b16 %v3867
      %v4514 = vunpack.c.l.b16 %v3868
      %v4515 = vunpack.c.l.b16 %v3869
      %v4516 = vunpack.c.l.b16 %v3870
      %v4517 = vunpack.c.l.b16 %v3871
      %v4518 = vunpack.c.l.b16 %v3872
      %v4519 = vunpack.c.l.b16 %v3873
      %v4520 = vunpack.c.l.b16 %v3874
      %v4521 = vunpack.c.l.b16 %v3875
      %v4522 = vunpack.c.l.b16 %v3876
      %v4523 = vunpack.c.l.b16 %v3877
      %v4524 = vunpack.c.l.b16 %v3878
      %v4525 = vunpack.c.l.b16 %v3879
      %v4526 = vpack.c.b16 %v4511, %v4510
      %v4527 = vpack.c.b16 %v4513, %v4512
      %v4528 = vpack.c.b16 %v4515, %v4514
      %v4529 = vpack.c.b16 %v4517, %v4516
      %v4530 = vpack.c.b16 %v4519, %v4518
      %v4531 = vpack.c.b16 %v4521, %v4520
      %v4532 = vpack.c.b16 %v4523, %v4522
      %v4533 = vpack.c.b16 %v4525, %v4524
      %4542 = vmatpush.bf16.msra.mxu0 %v4533
      %4543 = vmatpush.bf16.msra.mxu0 %v4532
      %4544 = vmatpush.bf16.msra.mxu0 %v4531
      %4545 = vmatpush.bf16.msra.mxu0 %v4530
      %4546 = vmatpush.bf16.msra.mxu0 %v4529
      %4547 = vmatpush.bf16.msra.mxu0 %v4528
      %4548 = vmatpush.bf16.msra.mxu0 %v4527
      %4549 = vmatpush.bf16.msra.mxu0 %v4526
      %4550 = vmatmul.bf16.gmra.mxu0 %v4101
      %v4551 = vpop.f32.mrf.mxu0
      %v4552 = vadd.f32 0.0, %v4551
      %v4553 = vpop.f32.mrf.mxu0
      %v4554 = vadd.f32 0.0, %v4553
      %4555 = vmatmul.bf16.gmra.mxu0 %v4110
      %v4556 = vpop.f32.mrf.mxu0
      %v4557 = vadd.f32 0.0, %v4556
      %v4558 = vpop.f32.mrf.mxu0
      %v4559 = vadd.f32 0.0, %v4558
      %4560 = vmatmul.bf16.gmra.mxu0 %v4119
      %v4561 = vpop.f32.mrf.mxu0
      %v4562 = vadd.f32 0.0, %v4561
      %v4563 = vpop.f32.mrf.mxu0
      %v4564 = vadd.f32 0.0, %v4563
      %4565 = vmatmul.bf16.gmra.mxu0 %v4128
      %v4566 = vpop.f32.mrf.mxu0
      %v4567 = vadd.f32 0.0, %v4566
      %v4568 = vpop.f32.mrf.mxu0
      %v4569 = vadd.f32 0.0, %v4568
      %4570 = vmatmul.bf16.gmra.mxu0 %v4137
      %v4571 = vpop.f32.mrf.mxu0
      %v4572 = vadd.f32 0.0, %v4571
      %v4573 = vpop.f32.mrf.mxu0
      %v4574 = vadd.f32 0.0, %v4573
      %4575 = vmatmul.bf16.gmra.mxu0 %v4146
      %v4576 = vpop.f32.mrf.mxu0
      %v4577 = vadd.f32 0.0, %v4576
      %v4578 = vpop.f32.mrf.mxu0
      %v4579 = vadd.f32 0.0, %v4578
      %4580 = vmatmul.bf16.gmra.mxu0 %v4155
      %v4581 = vpop.f32.mrf.mxu0
      %v4582 = vadd.f32 0.0, %v4581
      %v4583 = vpop.f32.mrf.mxu0
      %v4584 = vadd.f32 0.0, %v4583
      %4585 = vmatmul.bf16.gmra.mxu0 %v4164
      %v4586 = vpop.f32.mrf.mxu0
      %v4587 = vadd.f32 0.0, %v4586
      %v4588 = vpop.f32.mrf.mxu0
      %v4589 = vadd.f32 0.0, %v4588
      %4590 = vmatmul.bf16.gmra.mxu0 %v4173
      %v4591 = vpop.f32.mrf.mxu0
      %v4592 = vadd.f32 0.0, %v4591
      %v4593 = vpop.f32.mrf.mxu0
      %v4594 = vadd.f32 0.0, %v4593
      %4595 = vmatmul.bf16.gmra.mxu0 %v4182
      %v4596 = vpop.f32.mrf.mxu0
      %v4597 = vadd.f32 0.0, %v4596
      %v4598 = vpop.f32.mrf.mxu0
      %v4599 = vadd.f32 0.0, %v4598
      %4600 = vmatmul.bf16.gmra.mxu0 %v4191
      %v4601 = vpop.f32.mrf.mxu0
      %v4602 = vadd.f32 0.0, %v4601
      %v4603 = vpop.f32.mrf.mxu0
      %v4604 = vadd.f32 0.0, %v4603
      %4605 = vmatmul.bf16.gmra.mxu0 %v4200
      %v4606 = vpop.f32.mrf.mxu0
      %v4607 = vadd.f32 0.0, %v4606
      %v4608 = vpop.f32.mrf.mxu0
      %v4609 = vadd.f32 0.0, %v4608
      %4610 = vmatmul.bf16.gmra.mxu0 %v4209
      %v4611 = vpop.f32.mrf.mxu0
      %v4612 = vadd.f32 0.0, %v4611
      %v4613 = vpop.f32.mrf.mxu0
      %v4614 = vadd.f32 0.0, %v4613
      %4615 = vmatmul.bf16.gmra.mxu0 %v4218
      %v4616 = vpop.f32.mrf.mxu0
      %v4617 = vadd.f32 0.0, %v4616
      %v4618 = vpop.f32.mrf.mxu0
      %v4619 = vadd.f32 0.0, %v4618
      %4620 = vmatmul.bf16.gmra.mxu0 %v4227
      %v4621 = vpop.f32.mrf.mxu0
      %v4622 = vadd.f32 0.0, %v4621
      %v4623 = vpop.f32.mrf.mxu0
      %v4624 = vadd.f32 0.0, %v4623
      %4625 = vmatmul.bf16.gmra.mxu0 %v4236
      %v4626 = vpop.f32.mrf.mxu0
      %v4627 = vadd.f32 0.0, %v4626
      %v4628 = vpop.f32.mrf.mxu0
      %v4629 = vadd.f32 0.0, %v4628
      %4630 = vmatmul.bf16.gmra.mxu0 %v4245
      %v4631 = vpop.f32.mrf.mxu0
      %v4632 = vadd.f32 0.0, %v4631
      %v4633 = vpop.f32.mrf.mxu0
      %v4634 = vadd.f32 0.0, %v4633
      %4635 = vmatmul.bf16.gmra.mxu0 %v4254
      %v4636 = vpop.f32.mrf.mxu0
      %v4637 = vadd.f32 0.0, %v4636
      %v4638 = vpop.f32.mrf.mxu0
      %v4639 = vadd.f32 0.0, %v4638
      %4640 = vmatmul.bf16.gmra.mxu0 %v4263
      %v4641 = vpop.f32.mrf.mxu0
      %v4642 = vadd.f32 0.0, %v4641
      %v4643 = vpop.f32.mrf.mxu0
      %v4644 = vadd.f32 0.0, %v4643
      %4645 = vmatmul.bf16.gmra.mxu0 %v4272
      %v4646 = vpop.f32.mrf.mxu0
      %v4647 = vadd.f32 0.0, %v4646
      %v4648 = vpop.f32.mrf.mxu0
      %v4649 = vadd.f32 0.0, %v4648
      %4650 = vmatmul.bf16.gmra.mxu0 %v4281
      %v4651 = vpop.f32.mrf.mxu0
      %v4652 = vadd.f32 0.0, %v4651
      %v4653 = vpop.f32.mrf.mxu0
      %v4654 = vadd.f32 0.0, %v4653
      %4655 = vmatmul.bf16.gmra.mxu0 %v4290
      %v4656 = vpop.f32.mrf.mxu0
      %v4657 = vadd.f32 0.0, %v4656
      %v4658 = vpop.f32.mrf.mxu0
      %v4659 = vadd.f32 0.0, %v4658
      %4660 = vmatmul.bf16.gmra.mxu0 %v4299
      %v4661 = vpop.f32.mrf.mxu0
      %v4662 = vadd.f32 0.0, %v4661
      %v4663 = vpop.f32.mrf.mxu0
      %v4664 = vadd.f32 0.0, %v4663
      %4665 = vmatmul.bf16.gmra.mxu0 %v4308
      %v4666 = vpop.f32.mrf.mxu0
      %v4667 = vadd.f32 0.0, %v4666
      %v4668 = vpop.f32.mrf.mxu0
      %v4669 = vadd.f32 0.0, %v4668
      %4670 = vmatmul.bf16.gmra.mxu0 %v4317
      %v4671 = vpop.f32.mrf.mxu0
      %v4672 = vadd.f32 0.0, %v4671
      %v4673 = vpop.f32.mrf.mxu0
      %v4674 = vadd.f32 0.0, %v4673
      %4675 = vmatmul.bf16.gmra.mxu0 %v4326
      %v4676 = vpop.f32.mrf.mxu0
      %v4677 = vadd.f32 0.0, %v4676
      %v4678 = vpop.f32.mrf.mxu0
      %v4679 = vadd.f32 0.0, %v4678
      %4680 = vmatmul.bf16.gmra.mxu0 %v4335
      %v4681 = vpop.f32.mrf.mxu0
      %v4682 = vadd.f32 0.0, %v4681
      %v4683 = vpop.f32.mrf.mxu0
      %v4684 = vadd.f32 0.0, %v4683
      %4685 = vmatmul.bf16.gmra.mxu0 %v4344
      %v4686 = vpop.f32.mrf.mxu0
      %v4687 = vadd.f32 0.0, %v4686
      %v4688 = vpop.f32.mrf.mxu0
      %v4689 = vadd.f32 0.0, %v4688
      %4690 = vmatmul.bf16.gmra.mxu0 %v4353
      %v4691 = vpop.f32.mrf.mxu0
      %v4692 = vadd.f32 0.0, %v4691
      %v4693 = vpop.f32.mrf.mxu0
      %v4694 = vadd.f32 0.0, %v4693
      %4695 = vmatmul.bf16.gmra.mxu0 %v4362
      %v4696 = vpop.f32.mrf.mxu0
      %v4697 = vadd.f32 0.0, %v4696
      %v4698 = vpop.f32.mrf.mxu0
      %v4699 = vadd.f32 0.0, %v4698
      %4700 = vmatmul.bf16.gmra.mxu0 %v4371
      %v4701 = vpop.f32.mrf.mxu0
      %v4702 = vadd.f32 0.0, %v4701
      %v4703 = vpop.f32.mrf.mxu0
      %v4704 = vadd.f32 0.0, %v4703
      %4705 = vmatmul.bf16.gmra.mxu0 %v4380
      %v4706 = vpop.f32.mrf.mxu0
      %v4707 = vadd.f32 0.0, %v4706
      %v4708 = vpop.f32.mrf.mxu0
      %v4709 = vadd.f32 0.0, %v4708
      %4710 = vmatmul.bf16.gmra.mxu0 %v4389
      %v4711 = vpop.f32.mrf.mxu0
      %v4712 = vadd.f32 0.0, %v4711
      %v4713 = vpop.f32.mrf.mxu0
      %v4714 = vadd.f32 0.0, %v4713
      %4715 = vmatmul.bf16.gmra.mxu0 %v4398
      %v4716 = vpop.f32.mrf.mxu0
      %v4717 = vadd.f32 0.0, %v4716
      %v4718 = vpop.f32.mrf.mxu0
      %v4719 = vadd.f32 0.0, %v4718
      %4720 = vmatmul.bf16.gmra.mxu0 %v4407
      %v4721 = vpop.f32.mrf.mxu0
      %v4722 = vadd.f32 0.0, %v4721
      %v4723 = vpop.f32.mrf.mxu0
      %v4724 = vadd.f32 0.0, %v4723
      %4725 = vmatmul.bf16.gmra.mxu0 %v4416
      %v4726 = vpop.f32.mrf.mxu0
      %v4727 = vadd.f32 0.0, %v4726
      %v4728 = vpop.f32.mrf.mxu0
      %v4729 = vadd.f32 0.0, %v4728
      %4730 = vmatmul.bf16.gmra.mxu0 %v4425
      %v4731 = vpop.f32.mrf.mxu0
      %v4732 = vadd.f32 0.0, %v4731
      %v4733 = vpop.f32.mrf.mxu0
      %v4734 = vadd.f32 0.0, %v4733
      %4735 = vmatmul.bf16.gmra.mxu0 %v4434
      %v4736 = vpop.f32.mrf.mxu0
      %v4737 = vadd.f32 0.0, %v4736
      %v4738 = vpop.f32.mrf.mxu0
      %v4739 = vadd.f32 0.0, %v4738
      %4740 = vmatmul.bf16.gmra.mxu0 %v4443
      %v4741 = vpop.f32.mrf.mxu0
      %v4742 = vadd.f32 0.0, %v4741
      %v4743 = vpop.f32.mrf.mxu0
      %v4744 = vadd.f32 0.0, %v4743
      %4745 = vmatmul.bf16.gmra.mxu0 %v4452
      %v4746 = vpop.f32.mrf.mxu0
      %v4747 = vadd.f32 0.0, %v4746
      %v4748 = vpop.f32.mrf.mxu0
      %v4749 = vadd.f32 0.0, %v4748
      %4750 = vmatmul.bf16.gmra.mxu0 %v4451
      %v4751 = vpop.f32.mrf.mxu0
      %v4752 = vadd.f32 0.0, %v4751
      %v4753 = vpop.f32.mrf.mxu0
      %4754 = vdwg.mxu0
      %v4755 = vadd.f32 %v3700, %v4552
      %v4756 = vadd.f32 %v3701, %v4554
      %v4757 = vadd.f32 %v3702, %v4557
      %v4758 = vadd.f32 %v3703, %v4559
      %v4759 = vadd.f32 %v3704, %v4562
      %v4760 = vadd.f32 %v3705, %v4564
      %v4761 = vadd.f32 %v3706, %v4567
      %v4762 = vadd.f32 %v3707, %v4569
      %v4763 = vadd.f32 %v3708, %v4572
      %v4764 = vadd.f32 %v3709, %v4574
      %v4765 = vadd.f32 %v3710, %v4577
      %v4766 = vadd.f32 %v3711, %v4579
      %v4767 = vadd.f32 %v3712, %v4582
      %v4768 = vadd.f32 %v3713, %v4584
      %v4769 = vadd.f32 %v3714, %v4587
      %v4770 = vadd.f32 %v3715, %v4589
      %v4771 = vadd.f32 %v3716, %v4592
      %v4772 = vadd.f32 %v3717, %v4594
      %v4773 = vadd.f32 %v3718, %v4597
      %v4774 = vadd.f32 %v3719, %v4599
      %v4775 = vadd.f32 %v3720, %v4602
      %v4776 = vadd.f32 %v3721, %v4604
      %v4777 = vadd.f32 %v3722, %v4607
      %v4778 = vadd.f32 %v3723, %v4609
      %v4779 = vadd.f32 %v3724, %v4612
      %v4780 = vadd.f32 %v3725, %v4614
      %v4781 = vadd.f32 %v3726, %v4617
      %v4782 = vadd.f32 %v3727, %v4619
      %v4783 = vadd.f32 %v3728, %v4622
      %v4784 = vadd.f32 %v3729, %v4624
      %v4785 = vadd.f32 %v3730, %v4627
      %v4786 = vadd.f32 %v3731, %v4629
      %v4787 = vadd.f32 %v3732, %v4632
      %v4788 = vadd.f32 %v3733, %v4634
      %v4789 = vadd.f32 %v3734, %v4637
      %v4790 = vadd.f32 %v3735, %v4639
      %v4791 = vadd.f32 %v3736, %v4642
      %v4792 = vadd.f32 %v3737, %v4644
      %v4793 = vadd.f32 %v3738, %v4647
      %v4794 = vadd.f32 %v3739, %v4649
      %v4795 = vadd.f32 %v3740, %v4652
      %v4796 = vadd.f32 %v3741, %v4654
      %v4797 = vadd.f32 %v3742, %v4657
      %v4798 = vadd.f32 %v3743, %v4659
      %v4799 = vadd.f32 %v3744, %v4662
      %v4800 = vadd.f32 %v3745, %v4664
      %v4801 = vadd.f32 %v3746, %v4667
      %v4802 = vadd.f32 %v3747, %v4669
      %v4803 = vadd.f32 %v3748, %v4672
      %v4804 = vadd.f32 %v3749, %v4674
      %v4805 = vadd.f32 %v3750, %v4677
      %v4806 = vadd.f32 %v3751, %v4679
      %v4807 = vadd.f32 %v3752, %v4682
      %v4808 = vadd.f32 %v3753, %v4684
      %v4809 = vadd.f32 %v3754, %v4687
      %v4810 = vadd.f32 %v3755, %v4689
      %v4811 = vadd.f32 %v3756, %v4692
      %v4812 = vadd.f32 %v3757, %v4694
      %v4813 = vadd.f32 %v3758, %v4697
      %v4814 = vadd.f32 %v3759, %v4699
      %v4815 = vadd.f32 %v3760, %v4702
      %v4816 = vadd.f32 %v3761, %v4704
      %v4817 = vadd.f32 %v3762, %v4707
      %v4818 = vadd.f32 %v3763, %v4709
      %v4819 = vadd.f32 %v3764, %v4712
      %v4820 = vadd.f32 %v3765, %v4714
      %v4821 = vadd.f32 %v3766, %v4717
      %v4822 = vadd.f32 %v3767, %v4719
      %v4823 = vadd.f32 %v3768, %v4722
      %v4824 = vadd.f32 %v3769, %v4724
      %v4825 = vadd.f32 %v3770, %v4727
      %v4826 = vadd.f32 %v3771, %v4729
      %v4827 = vadd.f32 %v3772, %v4732
      %v4828 = vadd.f32 %v3773, %v4734
      %v4829 = vadd.f32 %v3774, %v4737
      %v4830 = vadd.f32 %v3775, %v4739
      %v4831 = vadd.f32 %v3776, %v4742
      %v4832 = vadd.f32 %v3777, %v4744
      %v4833 = vadd.f32 %v3778, %v4747
      %v4834 = vadd.f32 %v3779, %v4749
      %v4835 = vadd.f32 %v3780, %v4752
      %s4836 = scalar_lea.vmem %s5, 256
      %v4837 = vld [vmem:[%s4836] sm:$0xf]
      %v4838 = vld [vmem:[%s4836 + $0x4] sm:$0xf]
      %v4839 = vld [vmem:[%s4836 + $0x8] sm:$0xf]
      %v4840 = vld [vmem:[%s4836 + $0xc] sm:$0xf]
      %v4841 = vld [vmem:[%s4836 + $0x10] sm:$0xf]
      %v4842 = vld [vmem:[%s4836 + $0x14] sm:$0xf]
      %v4843 = vld [vmem:[%s4836 + $0x18] sm:$0xf]
      %v4844 = vld [vmem:[%s4836 + $0x1c] sm:$0xf]
      %v4845 = vld [vmem:[%s4836 + $0x20] sm:$0xf]
      %v4846 = vld [vmem:[%s4836 + $0x24] sm:$0xf]
      %v4847 = vld [vmem:[%s4836 + $0x28] sm:$0xf]
      %v4848 = vld [vmem:[%s4836 + $0x2c] sm:$0xf]
      %v4849 = vld [vmem:[%s4836 + $0x30] sm:$0xf]
      %v4850 = vld [vmem:[%s4836 + $0x34] sm:$0xf]
      %v4851 = vld [vmem:[%s4836 + $0x38] sm:$0xf]
      %v4852 = vld [vmem:[%s4836 + $0x3c] sm:$0xf]
      %v4853 = vpack.c.b16 %v3964, %v3963
      %v4854 = vpack.c.b16 %v3966, %v3965
      %v4855 = vpack.c.b16 %v3968, %v3967
      %v4856 = vpack.c.b16 %v3970, %v3969
      %v4857 = vpack.c.b16 %v3972, %v3971
      %v4858 = vpack.c.b16 %v3974, %v3973
      %v4859 = vpack.c.b16 %v3976, %v3975
      %v4860 = vpack.c.b16 %v3978, %v3977
      %v4861 = vpack.c.b16 %v3980, %v3979
      %v4862 = vpack.c.b16 %v3982, %v3981
      %v4863 = vpack.c.b16 %v3984, %v3983
      %v4864 = vpack.c.b16 %v3986, %v3985
      %v4865 = vpack.c.b16 %v3988, %v3987
      %v4866 = vpack.c.b16 %v3990, %v3989
      %v4867 = vpack.c.b16 %v3992, %v3991
      %v4868 = vpack.c.b16 %v3994, %v3993
      %v4869 = vpack.c.b16 %v3996, %v3995
      %v4870 = vpack.c.b16 %v3998, %v3997
      %v4871 = vpack.c.b16 %v4000, %v3999
      %v4872 = vpack.c.b16 %v4002, %v4001
      %v4873 = vpack.c.b16 %v4004, %v4003
      %v4874 = vpack.c.b16 %v4006, %v4005
      %v4875 = vpack.c.b16 %v4008, %v4007
      %v4876 = vpack.c.b16 %v4010, %v4009
      %v4877 = vpack.c.b16 %v4012, %v4011
      %v4878 = vpack.c.b16 %v4014, %v4013
      %v4879 = vpack.c.b16 %v4016, %v4015
      %v4880 = vpack.c.b16 %v4018, %v4017
      %v4881 = vpack.c.b16 %v4020, %v4019
      %v4882 = vpack.c.b16 %v4022, %v4021
      %v4883 = vpack.c.b16 %v4024, %v4023
      %v4884 = vpack.c.b16 %v4026, %v4025
      %v4885 = vpack.c.b16 %v4028, %v4027
      %v4886 = vpack.c.b16 %v4030, %v4029
      %v4887 = vpack.c.b16 %v4032, %v4031
      %v4888 = vpack.c.b16 %v4034, %v4033
      %v4889 = vpack.c.b16 %v4036, %v4035
      %v4890 = vpack.c.b16 %v4038, %v4037
      %v4891 = vpack.c.b16 %v4040, %v4039
      %v4892 = vpack.c.b16 %v4042, %v4041
      %v4893 = vpack.c.b16 %v4043, %v4043
      %v4951 = vunpack.c.l.b16 %v4837
      %v4952 = vunpack.c.l.b16 %v4838
      %v4953 = vunpack.c.l.b16 %v4839
      %v4954 = vunpack.c.l.b16 %v4840
      %v4955 = vunpack.c.l.b16 %v4841
      %v4956 = vunpack.c.l.b16 %v4842
      %v4957 = vunpack.c.l.b16 %v4843
      %v4958 = vunpack.c.l.b16 %v4844
      %v4959 = vunpack.c.l.b16 %v4845
      %v4960 = vunpack.c.l.b16 %v4846
      %v4961 = vunpack.c.l.b16 %v4847
      %v4962 = vunpack.c.l.b16 %v4848
      %v4963 = vunpack.c.l.b16 %v4849
      %v4964 = vunpack.c.l.b16 %v4850
      %v4965 = vunpack.c.l.b16 %v4851
      %v4966 = vunpack.c.l.b16 %v4852
      %v4967 = vpack.c.b16 %v4952, %v4951
      %v4968 = vpack.c.b16 %v4954, %v4953
      %v4969 = vpack.c.b16 %v4956, %v4955
      %v4970 = vpack.c.b16 %v4958, %v4957
      %v4971 = vpack.c.b16 %v4960, %v4959
      %v4972 = vpack.c.b16 %v4962, %v4961
      %v4973 = vpack.c.b16 %v4964, %v4963
      %v4974 = vpack.c.b16 %v4966, %v4965
      %4983 = vmatpush.bf16.msra.mxu0 %v4974
      %4984 = vmatpush.bf16.msra.mxu0 %v4973
      %4985 = vmatpush.bf16.msra.mxu0 %v4972
      %4986 = vmatpush.bf16.msra.mxu0 %v4971
      %4987 = vmatpush.bf16.msra.mxu0 %v4970
      %4988 = vmatpush.bf16.msra.mxu0 %v4969
      %4989 = vmatpush.bf16.msra.mxu0 %v4968
      %4990 = vmatpush.bf16.msra.mxu0 %v4967
      %4991 = vmatmul.bf16.gmra.mxu0 %v4853
      %v4992 = vpop.f32.mrf.mxu0
      %v4993 = vadd.f32 0.0, %v4992
      %v4994 = vpop.f32.mrf.mxu0
      %v4995 = vadd.f32 0.0, %v4994
      %4996 = vmatmul.bf16.gmra.mxu0 %v4854
      %v4997 = vpop.f32.mrf.mxu0
      %v4998 = vadd.f32 0.0, %v4997
      %v4999 = vpop.f32.mrf.mxu0
      %v5000 = vadd.f32 0.0, %v4999
      %5001 = vmatmul.bf16.gmra.mxu0 %v4855
      %v5002 = vpop.f32.mrf.mxu0
      %v5003 = vadd.f32 0.0, %v5002
      %v5004 = vpop.f32.mrf.mxu0
      %v5005 = vadd.f32 0.0, %v5004
      %5006 = vmatmul.bf16.gmra.mxu0 %v4856
      %v5007 = vpop.f32.mrf.mxu0
      %v5008 = vadd.f32 0.0, %v5007
      %v5009 = vpop.f32.mrf.mxu0
      %v5010 = vadd.f32 0.0, %v5009
      %5011 = vmatmul.bf16.gmra.mxu0 %v4857
      %v5012 = vpop.f32.mrf.mxu0
      %v5013 = vadd.f32 0.0, %v5012
      %v5014 = vpop.f32.mrf.mxu0
      %v5015 = vadd.f32 0.0, %v5014
      %5016 = vmatmul.bf16.gmra.mxu0 %v4858
      %v5017 = vpop.f32.mrf.mxu0
      %v5018 = vadd.f32 0.0, %v5017
      %v5019 = vpop.f32.mrf.mxu0
      %v5020 = vadd.f32 0.0, %v5019
      %5021 = vmatmul.bf16.gmra.mxu0 %v4859
      %v5022 = vpop.f32.mrf.mxu0
      %v5023 = vadd.f32 0.0, %v5022
      %v5024 = vpop.f32.mrf.mxu0
      %v5025 = vadd.f32 0.0, %v5024
      %5026 = vmatmul.bf16.gmra.mxu0 %v4860
      %v5027 = vpop.f32.mrf.mxu0
      %v5028 = vadd.f32 0.0, %v5027
      %v5029 = vpop.f32.mrf.mxu0
      %v5030 = vadd.f32 0.0, %v5029
      %5031 = vmatmul.bf16.gmra.mxu0 %v4861
      %v5032 = vpop.f32.mrf.mxu0
      %v5033 = vadd.f32 0.0, %v5032
      %v5034 = vpop.f32.mrf.mxu0
      %v5035 = vadd.f32 0.0, %v5034
      %5036 = vmatmul.bf16.gmra.mxu0 %v4862
      %v5037 = vpop.f32.mrf.mxu0
      %v5038 = vadd.f32 0.0, %v5037
      %v5039 = vpop.f32.mrf.mxu0
      %v5040 = vadd.f32 0.0, %v5039
      %5041 = vmatmul.bf16.gmra.mxu0 %v4863
      %v5042 = vpop.f32.mrf.mxu0
      %v5043 = vadd.f32 0.0, %v5042
      %v5044 = vpop.f32.mrf.mxu0
      %v5045 = vadd.f32 0.0, %v5044
      %5046 = vmatmul.bf16.gmra.mxu0 %v4864
      %v5047 = vpop.f32.mrf.mxu0
      %v5048 = vadd.f32 0.0, %v5047
      %v5049 = vpop.f32.mrf.mxu0
      %v5050 = vadd.f32 0.0, %v5049
      %5051 = vmatmul.bf16.gmra.mxu0 %v4865
      %v5052 = vpop.f32.mrf.mxu0
      %v5053 = vadd.f32 0.0, %v5052
      %v5054 = vpop.f32.mrf.mxu0
      %v5055 = vadd.f32 0.0, %v5054
      %5056 = vmatmul.bf16.gmra.mxu0 %v4866
      %v5057 = vpop.f32.mrf.mxu0
      %v5058 = vadd.f32 0.0, %v5057
      %v5059 = vpop.f32.mrf.mxu0
      %v5060 = vadd.f32 0.0, %v5059
      %5061 = vmatmul.bf16.gmra.mxu0 %v4867
      %v5062 = vpop.f32.mrf.mxu0
      %v5063 = vadd.f32 0.0, %v5062
      %v5064 = vpop.f32.mrf.mxu0
      %v5065 = vadd.f32 0.0, %v5064
      %5066 = vmatmul.bf16.gmra.mxu0 %v4868
      %v5067 = vpop.f32.mrf.mxu0
      %v5068 = vadd.f32 0.0, %v5067
      %v5069 = vpop.f32.mrf.mxu0
      %v5070 = vadd.f32 0.0, %v5069
      %5071 = vmatmul.bf16.gmra.mxu0 %v4869
      %v5072 = vpop.f32.mrf.mxu0
      %v5073 = vadd.f32 0.0, %v5072
      %v5074 = vpop.f32.mrf.mxu0
      %v5075 = vadd.f32 0.0, %v5074
      %5076 = vmatmul.bf16.gmra.mxu0 %v4870
      %v5077 = vpop.f32.mrf.mxu0
      %v5078 = vadd.f32 0.0, %v5077
      %v5079 = vpop.f32.mrf.mxu0
      %v5080 = vadd.f32 0.0, %v5079
      %5081 = vmatmul.bf16.gmra.mxu0 %v4871
      %v5082 = vpop.f32.mrf.mxu0
      %v5083 = vadd.f32 0.0, %v5082
      %v5084 = vpop.f32.mrf.mxu0
      %v5085 = vadd.f32 0.0, %v5084
      %5086 = vmatmul.bf16.gmra.mxu0 %v4872
      %v5087 = vpop.f32.mrf.mxu0
      %v5088 = vadd.f32 0.0, %v5087
      %v5089 = vpop.f32.mrf.mxu0
      %v5090 = vadd.f32 0.0, %v5089
      %5091 = vmatmul.bf16.gmra.mxu0 %v4873
      %v5092 = vpop.f32.mrf.mxu0
      %v5093 = vadd.f32 0.0, %v5092
      %v5094 = vpop.f32.mrf.mxu0
      %v5095 = vadd.f32 0.0, %v5094
      %5096 = vmatmul.bf16.gmra.mxu0 %v4874
      %v5097 = vpop.f32.mrf.mxu0
      %v5098 = vadd.f32 0.0, %v5097
      %v5099 = vpop.f32.mrf.mxu0
      %v5100 = vadd.f32 0.0, %v5099
      %5101 = vmatmul.bf16.gmra.mxu0 %v4875
      %v5102 = vpop.f32.mrf.mxu0
      %v5103 = vadd.f32 0.0, %v5102
      %v5104 = vpop.f32.mrf.mxu0
      %v5105 = vadd.f32 0.0, %v5104
      %5106 = vmatmul.bf16.gmra.mxu0 %v4876
      %v5107 = vpop.f32.mrf.mxu0
      %v5108 = vadd.f32 0.0, %v5107
      %v5109 = vpop.f32.mrf.mxu0
      %v5110 = vadd.f32 0.0, %v5109
      %5111 = vmatmul.bf16.gmra.mxu0 %v4877
      %v5112 = vpop.f32.mrf.mxu0
      %v5113 = vadd.f32 0.0, %v5112
      %v5114 = vpop.f32.mrf.mxu0
      %v5115 = vadd.f32 0.0, %v5114
      %5116 = vmatmul.bf16.gmra.mxu0 %v4878
      %v5117 = vpop.f32.mrf.mxu0
      %v5118 = vadd.f32 0.0, %v5117
      %v5119 = vpop.f32.mrf.mxu0
      %v5120 = vadd.f32 0.0, %v5119
      %5121 = vmatmul.bf16.gmra.mxu0 %v4879
      %v5122 = vpop.f32.mrf.mxu0
      %v5123 = vadd.f32 0.0, %v5122
      %v5124 = vpop.f32.mrf.mxu0
      %v5125 = vadd.f32 0.0, %v5124
      %5126 = vmatmul.bf16.gmra.mxu0 %v4880
      %v5127 = vpop.f32.mrf.mxu0
      %v5128 = vadd.f32 0.0, %v5127
      %v5129 = vpop.f32.mrf.mxu0
      %v5130 = vadd.f32 0.0, %v5129
      %5131 = vmatmul.bf16.gmra.mxu0 %v4881
      %v5132 = vpop.f32.mrf.mxu0
      %v5133 = vadd.f32 0.0, %v5132
      %v5134 = vpop.f32.mrf.mxu0
      %v5135 = vadd.f32 0.0, %v5134
      %5136 = vmatmul.bf16.gmra.mxu0 %v4882
      %v5137 = vpop.f32.mrf.mxu0
      %v5138 = vadd.f32 0.0, %v5137
      %v5139 = vpop.f32.mrf.mxu0
      %v5140 = vadd.f32 0.0, %v5139
      %5141 = vmatmul.bf16.gmra.mxu0 %v4883
      %v5142 = vpop.f32.mrf.mxu0
      %v5143 = vadd.f32 0.0, %v5142
      %v5144 = vpop.f32.mrf.mxu0
      %v5145 = vadd.f32 0.0, %v5144
      %5146 = vmatmul.bf16.gmra.mxu0 %v4884
      %v5147 = vpop.f32.mrf.mxu0
      %v5148 = vadd.f32 0.0, %v5147
      %v5149 = vpop.f32.mrf.mxu0
      %v5150 = vadd.f32 0.0, %v5149
      %5151 = vmatmul.bf16.gmra.mxu0 %v4885
      %v5152 = vpop.f32.mrf.mxu0
      %v5153 = vadd.f32 0.0, %v5152
      %v5154 = vpop.f32.mrf.mxu0
      %v5155 = vadd.f32 0.0, %v5154
      %5156 = vmatmul.bf16.gmra.mxu0 %v4886
      %v5157 = vpop.f32.mrf.mxu0
      %v5158 = vadd.f32 0.0, %v5157
      %v5159 = vpop.f32.mrf.mxu0
      %v5160 = vadd.f32 0.0, %v5159
      %5161 = vmatmul.bf16.gmra.mxu0 %v4887
      %v5162 = vpop.f32.mrf.mxu0
      %v5163 = vadd.f32 0.0, %v5162
      %v5164 = vpop.f32.mrf.mxu0
      %v5165 = vadd.f32 0.0, %v5164
      %5166 = vmatmul.bf16.gmra.mxu0 %v4888
      %v5167 = vpop.f32.mrf.mxu0
      %v5168 = vadd.f32 0.0, %v5167
      %v5169 = vpop.f32.mrf.mxu0
      %v5170 = vadd.f32 0.0, %v5169
      %5171 = vmatmul.bf16.gmra.mxu0 %v4889
      %v5172 = vpop.f32.mrf.mxu0
      %v5173 = vadd.f32 0.0, %v5172
      %v5174 = vpop.f32.mrf.mxu0
      %v5175 = vadd.f32 0.0, %v5174
      %5176 = vmatmul.bf16.gmra.mxu0 %v4890
      %v5177 = vpop.f32.mrf.mxu0
      %v5178 = vadd.f32 0.0, %v5177
      %v5179 = vpop.f32.mrf.mxu0
      %v5180 = vadd.f32 0.0, %v5179
      %5181 = vmatmul.bf16.gmra.mxu0 %v4891
      %v5182 = vpop.f32.mrf.mxu0
      %v5183 = vadd.f32 0.0, %v5182
      %v5184 = vpop.f32.mrf.mxu0
      %v5185 = vadd.f32 0.0, %v5184
      %5186 = vmatmul.bf16.gmra.mxu0 %v4892
      %v5187 = vpop.f32.mrf.mxu0
      %v5188 = vadd.f32 0.0, %v5187
      %v5189 = vpop.f32.mrf.mxu0
      %v5190 = vadd.f32 0.0, %v5189
      %5191 = vmatmul.bf16.gmra.mxu0 %v4893
      %v5192 = vpop.f32.mrf.mxu0
      %v5193 = vadd.f32 0.0, %v5192
      %v5194 = vpop.f32.mrf.mxu0
      %5195 = vdwg.mxu0
      %v5196 = vadd.f32 %v4755, %v4993
      %v5197 = vadd.f32 %v4756, %v4995
      %v5198 = vadd.f32 %v4757, %v4998
      %v5199 = vadd.f32 %v4758, %v5000
      %v5200 = vadd.f32 %v4759, %v5003
      %v5201 = vadd.f32 %v4760, %v5005
      %v5202 = vadd.f32 %v4761, %v5008
      %v5203 = vadd.f32 %v4762, %v5010
      %v5204 = vadd.f32 %v4763, %v5013
      %v5205 = vadd.f32 %v4764, %v5015
      %v5206 = vadd.f32 %v4765, %v5018
      %v5207 = vadd.f32 %v4766, %v5020
      %v5208 = vadd.f32 %v4767, %v5023
      %v5209 = vadd.f32 %v4768, %v5025
      %v5210 = vadd.f32 %v4769, %v5028
      %v5211 = vadd.f32 %v4770, %v5030
      %v5212 = vadd.f32 %v4771, %v5033
      %v5213 = vadd.f32 %v4772, %v5035
      %v5214 = vadd.f32 %v4773, %v5038
      %v5215 = vadd.f32 %v4774, %v5040
      %v5216 = vadd.f32 %v4775, %v5043
      %v5217 = vadd.f32 %v4776, %v5045
      %v5218 = vadd.f32 %v4777, %v5048
      %v5219 = vadd.f32 %v4778, %v5050
      %v5220 = vadd.f32 %v4779, %v5053
      %v5221 = vadd.f32 %v4780, %v5055
      %v5222 = vadd.f32 %v4781, %v5058
      %v5223 = vadd.f32 %v4782, %v5060
      %v5224 = vadd.f32 %v4783, %v5063
      %v5225 = vadd.f32 %v4784, %v5065
      %v5226 = vadd.f32 %v4785, %v5068
      %v5227 = vadd.f32 %v4786, %v5070
      %v5228 = vadd.f32 %v4787, %v5073
      %v5229 = vadd.f32 %v4788, %v5075
      %v5230 = vadd.f32 %v4789, %v5078
      %v5231 = vadd.f32 %v4790, %v5080
      %v5232 = vadd.f32 %v4791, %v5083
      %v5233 = vadd.f32 %v4792, %v5085
      %v5234 = vadd.f32 %v4793, %v5088
      %v5235 = vadd.f32 %v4794, %v5090
      %v5236 = vadd.f32 %v4795, %v5093
      %v5237 = vadd.f32 %v4796, %v5095
      %v5238 = vadd.f32 %v4797, %v5098
      %v5239 = vadd.f32 %v4798, %v5100
      %v5240 = vadd.f32 %v4799, %v5103
      %v5241 = vadd.f32 %v4800, %v5105
      %v5242 = vadd.f32 %v4801, %v5108
      %v5243 = vadd.f32 %v4802, %v5110
      %v5244 = vadd.f32 %v4803, %v5113
      %v5245 = vadd.f32 %v4804, %v5115
      %v5246 = vadd.f32 %v4805, %v5118
      %v5247 = vadd.f32 %v4806, %v5120
      %v5248 = vadd.f32 %v4807, %v5123
      %v5249 = vadd.f32 %v4808, %v5125
      %v5250 = vadd.f32 %v4809, %v5128
      %v5251 = vadd.f32 %v4810, %v5130
      %v5252 = vadd.f32 %v4811, %v5133
      %v5253 = vadd.f32 %v4812, %v5135
      %v5254 = vadd.f32 %v4813, %v5138
      %v5255 = vadd.f32 %v4814, %v5140
      %v5256 = vadd.f32 %v4815, %v5143
      %v5257 = vadd.f32 %v4816, %v5145
      %v5258 = vadd.f32 %v4817, %v5148
      %v5259 = vadd.f32 %v4818, %v5150
      %v5260 = vadd.f32 %v4819, %v5153
      %v5261 = vadd.f32 %v4820, %v5155
      %v5262 = vadd.f32 %v4821, %v5158
      %v5263 = vadd.f32 %v4822, %v5160
      %v5264 = vadd.f32 %v4823, %v5163
      %v5265 = vadd.f32 %v4824, %v5165
      %v5266 = vadd.f32 %v4825, %v5168
      %v5267 = vadd.f32 %v4826, %v5170
      %v5268 = vadd.f32 %v4827, %v5173
      %v5269 = vadd.f32 %v4828, %v5175
      %v5270 = vadd.f32 %v4829, %v5178
      %v5271 = vadd.f32 %v4830, %v5180
      %v5272 = vadd.f32 %v4831, %v5183
      %v5273 = vadd.f32 %v4832, %v5185
      %v5274 = vadd.f32 %v4833, %v5188
      %v5275 = vadd.f32 %v4834, %v5190
      %v5276 = vadd.f32 %v4835, %v5193
      %v5277 = vld [vmem:[#allocation2 + $0x10] sm:$0xf]
      %v5278 = vld [vmem:[#allocation2 + $0x14] sm:$0xf]
      %v5279 = vld [vmem:[#allocation2 + $0x18] sm:$0xf]
      %v5280 = vld [vmem:[#allocation2 + $0x1c] sm:$0xf]
      %v5281 = vld [vmem:[#allocation2 + $0x20] sm:$0xf]
      %v5282 = vld [vmem:[#allocation2 + $0x24] sm:$0xf]
      %v5283 = vld [vmem:[#allocation2 + $0x28] sm:$0xf]
      %v5284 = vld [vmem:[#allocation2 + $0x2c] sm:$0xf]
      %v5285 = vld [vmem:[#allocation2 + $0x30] sm:$0xf]
      %v5286 = vld [vmem:[#allocation2 + $0x34] sm:$0xf]
      %v5287 = vld [vmem:[#allocation2 + $0x38] sm:$0xf]
      %v5288 = vld [vmem:[#allocation2 + $0x3c] sm:$0xf]
      %v5289 = vld [vmem:[#allocation2 + $0x40] sm:$0xf]
      %v5290 = vld [vmem:[#allocation2 + $0x44] sm:$0xf]
      %v5291 = vld [vmem:[#allocation2 + $0x48] sm:$0xf]
      %v5292 = vld [vmem:[#allocation2 + $0x4c] sm:$0xf]
      %v5293 = vld [vmem:[#allocation2 + $0x50] sm:$0xf]
      %v5294 = vld [vmem:[#allocation2 + $0x54] sm:$0xf]
      %v5295 = vld [vmem:[#allocation2 + $0x58] sm:$0xf]
      %v5296 = vld [vmem:[#allocation2 + $0x5c] sm:$0xf]
      %v5297 = vld [vmem:[#allocation2 + $0x60] sm:$0xf]
      %v5298 = vld [vmem:[#allocation2 + $0x64] sm:$0xf]
      %v5299 = vld [vmem:[#allocation2 + $0x68] sm:$0xf]
      %v5300 = vld [vmem:[#allocation2 + $0x6c] sm:$0xf]
      %v5301 = vld [vmem:[#allocation2 + $0x70] sm:$0xf]
      %v5302 = vld [vmem:[#allocation2 + $0x74] sm:$0xf]
      %v5303 = vld [vmem:[#allocation2 + $0x78] sm:$0xf]
      %v5304 = vld [vmem:[#allocation2 + $0x7c] sm:$0xf]
      %v5305 = vld [vmem:[#allocation2 + $0x80] sm:$0xf]
      %v5306 = vld [vmem:[#allocation2 + $0x84] sm:$0xf]
      %v5307 = vld [vmem:[#allocation2 + $0x88] sm:$0xf]
      %v5308 = vld [vmem:[#allocation2 + $0x8c] sm:$0xf]
      %v5309 = vld [vmem:[#allocation2 + $0x90] sm:$0xf]
      %v5310 = vld [vmem:[#allocation2 + $0x94] sm:$0xf]
      %v5311 = vld [vmem:[#allocation2 + $0x98] sm:$0xf]
      %v5312 = vld [vmem:[#allocation2 + $0x9c] sm:$0xf]
      %v5313 = vld [vmem:[#allocation2 + $0xa0] sm:$0xf]
      %v5314 = vld [vmem:[#allocation2 + $0xa4] sm:$0xf]
      %v5315 = vld [vmem:[#allocation2 + $0xa8] sm:$0xf]
      %v5316 = vld [vmem:[#allocation2 + $0xac] sm:$0xf]
      %v5317 = vld [vmem:[#allocation2 + $0xb0] sm:$0xf]
      %v5318 = vld [vmem:[#allocation2 + $0xb4] sm:$0xf]
      %v5319 = vld [vmem:[#allocation2 + $0xb8] sm:$0xf]
      %v5320 = vld [vmem:[#allocation2 + $0xbc] sm:$0xf]
      %v5321 = vld [vmem:[#allocation2 + $0xc0] sm:$0xf]
      %v5322 = vld [vmem:[#allocation2 + $0xc4] sm:$0xf]
      %v5323 = vld [vmem:[#allocation2 + $0xc8] sm:$0xf]
      %v5324 = vld [vmem:[#allocation2 + $0xcc] sm:$0xf]
      %v5325 = vld [vmem:[#allocation2 + $0xd0] sm:$0xf]
      %v5326 = vld [vmem:[#allocation2 + $0xd4] sm:$0xf]
      %v5327 = vld [vmem:[#allocation2 + $0xd8] sm:$0xf]
      %v5328 = vld [vmem:[#allocation2 + $0xdc] sm:$0xf]
      %v5329 = vld [vmem:[#allocation2 + $0xe0] sm:$0xf]
      %v5330 = vld [vmem:[#allocation2 + $0xe4] sm:$0xf]
      %v5331 = vld [vmem:[#allocation2 + $0xe8] sm:$0xf]
      %v5332 = vld [vmem:[#allocation2 + $0xec] sm:$0xf]
      %v5333 = vld [vmem:[#allocation2 + $0xf0] sm:$0xf]
      %v5334 = vld [vmem:[#allocation2 + $0xf4] sm:$0xf]
      %v5335 = vld [vmem:[#allocation2 + $0xf8] sm:$0xf]
      %v5336 = vld [vmem:[#allocation2 + $0xfc] sm:$0xf]
      %v5337 = vld [vmem:[#allocation2 + $0x100] sm:$0xf]
      %v5338 = vld [vmem:[#allocation2 + $0x104] sm:$0xf]
      %v5339 = vld [vmem:[#allocation2 + $0x108] sm:$0xf]
      %v5340 = vld [vmem:[#allocation2 + $0x10c] sm:$0xf]
      %v5341 = vld [vmem:[#allocation2 + $0x110] sm:$0xf]
      %v5342 = vld [vmem:[#allocation2 + $0x114] sm:$0xf]
      %v5343 = vld [vmem:[#allocation2 + $0x118] sm:$0xf]
      %v5344 = vld [vmem:[#allocation2 + $0x11c] sm:$0xf]
      %v5345 = vld [vmem:[#allocation2 + $0x120] sm:$0xf]
      %v5346 = vld [vmem:[#allocation2 + $0x124] sm:$0xf]
      %v5347 = vld [vmem:[#allocation2 + $0x128] sm:$0xf]
      %v5348 = vld [vmem:[#allocation2 + $0x12c] sm:$0xf]
      %v5349 = vld [vmem:[#allocation2 + $0x130] sm:$0xf]
      %v5350 = vld [vmem:[#allocation2 + $0x134] sm:$0xf]
      %v5351 = vld [vmem:[#allocation2 + $0x138] sm:$0xf]
      %v5352 = vld [vmem:[#allocation2 + $0x13c] sm:$0xf]
      %v5353 = vld [vmem:[#allocation2 + $0x140] sm:$0xf]
      %v5354 = vld [vmem:[#allocation2 + $0x144] sm:$0xf]
      %v5355 = vld [vmem:[#allocation2 + $0x148] sm:$0xf]
      %v5356 = vld [vmem:[#allocation2 + $0x14c] sm:$0xf]
      %v5357 = vld [vmem:[#allocation2 + $0x150] sm:$0xf]
      %v5358 = vld [vmem:[#allocation2 + $0x154] sm:$0x1]
      %s5359 = scalar_lea.vmem %s5, 320
      %v5360 = vld [vmem:[%s5359] sm:$0xf]
      %v5361 = vld [vmem:[%s5359 + $0x4] sm:$0xf]
      %v5362 = vld [vmem:[%s5359 + $0x8] sm:$0xf]
      %v5363 = vld [vmem:[%s5359 + $0xc] sm:$0xf]
      %v5364 = vld [vmem:[%s5359 + $0x10] sm:$0xf]
      %v5365 = vld [vmem:[%s5359 + $0x14] sm:$0xf]
      %v5366 = vld [vmem:[%s5359 + $0x18] sm:$0xf]
      %v5367 = vld [vmem:[%s5359 + $0x1c] sm:$0xf]
      %v5368 = vld [vmem:[%s5359 + $0x20] sm:$0xf]
      %v5369 = vld [vmem:[%s5359 + $0x24] sm:$0xf]
      %v5370 = vld [vmem:[%s5359 + $0x28] sm:$0xf]
      %v5371 = vld [vmem:[%s5359 + $0x2c] sm:$0xf]
      %v5372 = vld [vmem:[%s5359 + $0x30] sm:$0xf]
      %v5373 = vld [vmem:[%s5359 + $0x34] sm:$0xf]
      %v5374 = vld [vmem:[%s5359 + $0x38] sm:$0xf]
      %v5375 = vld [vmem:[%s5359 + $0x3c] sm:$0xf]
      %v5458 = vunpack.c.l.b16 %v5277
      %v5459 = vunpack.c.l.b16 %v5278
      %v5460 = vunpack.c.l.b16 %v5279
      %v5461 = vunpack.c.l.b16 %v5280
      %v5462 = vunpack.c.l.b16 %v5281
      %v5463 = vunpack.c.l.b16 %v5282
      %v5464 = vunpack.c.l.b16 %v5283
      %v5465 = vunpack.c.l.b16 %v5284
      %v5466 = vunpack.c.l.b16 %v5285
      %v5467 = vunpack.c.l.b16 %v5286
      %v5468 = vunpack.c.l.b16 %v5287
      %v5469 = vunpack.c.l.b16 %v5288
      %v5470 = vunpack.c.l.b16 %v5289
      %v5471 = vunpack.c.l.b16 %v5290
      %v5472 = vunpack.c.l.b16 %v5291
      %v5473 = vunpack.c.l.b16 %v5292
      %v5474 = vunpack.c.l.b16 %v5293
      %v5475 = vunpack.c.l.b16 %v5294
      %v5476 = vunpack.c.l.b16 %v5295
      %v5477 = vunpack.c.l.b16 %v5296
      %v5478 = vunpack.c.l.b16 %v5297
      %v5479 = vunpack.c.l.b16 %v5298
      %v5480 = vunpack.c.l.b16 %v5299
      %v5481 = vunpack.c.l.b16 %v5300
      %v5482 = vunpack.c.l.b16 %v5301
      %v5483 = vunpack.c.l.b16 %v5302
      %v5484 = vunpack.c.l.b16 %v5303
      %v5485 = vunpack.c.l.b16 %v5304
      %v5486 = vunpack.c.l.b16 %v5305
      %v5487 = vunpack.c.l.b16 %v5306
      %v5488 = vunpack.c.l.b16 %v5307
      %v5489 = vunpack.c.l.b16 %v5308
      %v5490 = vunpack.c.l.b16 %v5309
      %v5491 = vunpack.c.l.b16 %v5310
      %v5492 = vunpack.c.l.b16 %v5311
      %v5493 = vunpack.c.l.b16 %v5312
      %v5494 = vunpack.c.l.b16 %v5313
      %v5495 = vunpack.c.l.b16 %v5314
      %v5496 = vunpack.c.l.b16 %v5315
      %v5497 = vunpack.c.l.b16 %v5316
      %v5498 = vunpack.c.l.b16 %v5317
      %v5499 = vunpack.c.l.b16 %v5318
      %v5500 = vunpack.c.l.b16 %v5319
      %v5501 = vunpack.c.l.b16 %v5320
      %v5502 = vunpack.c.l.b16 %v5321
      %v5503 = vunpack.c.l.b16 %v5322
      %v5504 = vunpack.c.l.b16 %v5323
      %v5505 = vunpack.c.l.b16 %v5324
      %v5506 = vunpack.c.l.b16 %v5325
      %v5507 = vunpack.c.l.b16 %v5326
      %v5508 = vunpack.c.l.b16 %v5327
      %v5509 = vunpack.c.l.b16 %v5328
      %v5510 = vunpack.c.l.b16 %v5329
      %v5511 = vunpack.c.l.b16 %v5330
      %v5512 = vunpack.c.l.b16 %v5331
      %v5513 = vunpack.c.l.b16 %v5332
      %v5514 = vunpack.c.l.b16 %v5333
      %v5515 = vunpack.c.l.b16 %v5334
      %v5516 = vunpack.c.l.b16 %v5335
      %v5517 = vunpack.c.l.b16 %v5336
      %v5518 = vunpack.c.l.b16 %v5337
      %v5519 = vunpack.c.l.b16 %v5338
      %v5520 = vunpack.c.l.b16 %v5339
      %v5521 = vunpack.c.l.b16 %v5340
      %v5522 = vunpack.c.l.b16 %v5341
      %v5523 = vunpack.c.l.b16 %v5342
      %v5524 = vunpack.c.l.b16 %v5343
      %v5525 = vunpack.c.l.b16 %v5344
      %v5526 = vunpack.c.l.b16 %v5345
      %v5527 = vunpack.c.l.b16 %v5346
      %v5528 = vunpack.c.l.b16 %v5347
      %v5529 = vunpack.c.l.b16 %v5348
      %v5530 = vunpack.c.l.b16 %v5349
      %v5531 = vunpack.c.l.b16 %v5350
      %v5532 = vunpack.c.l.b16 %v5351
      %v5533 = vunpack.c.l.b16 %v5352
      %v5534 = vunpack.c.l.b16 %v5353
      %v5535 = vunpack.c.l.b16 %v5354
      %v5536 = vunpack.c.l.b16 %v5355
      %v5537 = vunpack.c.l.b16 %v5356
      %v5538 = vunpack.c.l.b16 %v5357
      %v5539 = vunpack.c.l.b16 %v5358
      %v5540 = vpack.c.b16 %v5459, %v5458
      %v5541 = vpack.c.b16 %v5461, %v5460
      %v5542 = vpack.c.b16 %v5463, %v5462
      %v5543 = vpack.c.b16 %v5465, %v5464
      %v5544 = vpack.c.b16 %v5467, %v5466
      %v5545 = vpack.c.b16 %v5469, %v5468
      %v5546 = vpack.c.b16 %v5471, %v5470
      %v5547 = vpack.c.b16 %v5473, %v5472
      %v5548 = vpack.c.b16 %v5475, %v5474
      %v5549 = vpack.c.b16 %v5477, %v5476
      %v5550 = vpack.c.b16 %v5479, %v5478
      %v5551 = vpack.c.b16 %v5481, %v5480
      %v5552 = vpack.c.b16 %v5483, %v5482
      %v5553 = vpack.c.b16 %v5485, %v5484
      %v5554 = vpack.c.b16 %v5487, %v5486
      %v5555 = vpack.c.b16 %v5489, %v5488
      %v5556 = vpack.c.b16 %v5491, %v5490
      %v5557 = vpack.c.b16 %v5493, %v5492
      %v5558 = vpack.c.b16 %v5495, %v5494
      %v5559 = vpack.c.b16 %v5497, %v5496
      %v5560 = vpack.c.b16 %v5499, %v5498
      %v5561 = vpack.c.b16 %v5501, %v5500
      %v5562 = vpack.c.b16 %v5503, %v5502
      %v5563 = vpack.c.b16 %v5505, %v5504
      %v5564 = vpack.c.b16 %v5507, %v5506
      %v5565 = vpack.c.b16 %v5509, %v5508
      %v5566 = vpack.c.b16 %v5511, %v5510
      %v5567 = vpack.c.b16 %v5513, %v5512
      %v5568 = vpack.c.b16 %v5515, %v5514
      %v5569 = vpack.c.b16 %v5517, %v5516
      %v5570 = vpack.c.b16 %v5519, %v5518
      %v5571 = vpack.c.b16 %v5521, %v5520
      %v5572 = vpack.c.b16 %v5523, %v5522
      %v5573 = vpack.c.b16 %v5525, %v5524
      %v5574 = vpack.c.b16 %v5527, %v5526
      %v5575 = vpack.c.b16 %v5529, %v5528
      %v5576 = vpack.c.b16 %v5531, %v5530
      %v5577 = vpack.c.b16 %v5533, %v5532
      %v5578 = vpack.c.b16 %v5535, %v5534
      %v5579 = vpack.c.b16 %v5537, %v5536
      %v5580 = vpack.c.b16 %v5539, %v5538
      %vm5581 = vsmask.f32 7424
      %v5583 = vshrl.u32 %v5540, 16
      %v5585 = vshll.u32 %v5540, 16
      %v5587 = vrot.slane %v5585, 1
      %v5588 = vor.u32 %v5583, %v5587
      %v5590 = vshll.u32 %v5541, 16
      %v5592 = vrot.slane %v5590, 1
      %v5593 = vsel %vm5581, %v5588, %v5592
      %v5594 = vshrl.u32 %v5541, 16
      %v5596 = vor.u32 %v5594, %v5592
      %v5598 = vshll.u32 %v5542, 16
      %v5600 = vrot.slane %v5598, 1
      %v5601 = vsel %vm5581, %v5596, %v5600
      %v5602 = vshrl.u32 %v5542, 16
      %v5604 = vor.u32 %v5602, %v5600
      %v5606 = vshll.u32 %v5543, 16
      %v5608 = vrot.slane %v5606, 1
      %v5609 = vsel %vm5581, %v5604, %v5608
      %v5610 = vshrl.u32 %v5543, 16
      %v5612 = vor.u32 %v5610, %v5608
      %v5614 = vshll.u32 %v5544, 16
      %v5616 = vrot.slane %v5614, 1
      %v5617 = vsel %vm5581, %v5612, %v5616
      %v5618 = vshrl.u32 %v5544, 16
      %v5620 = vor.u32 %v5618, %v5616
      %v5622 = vshll.u32 %v5545, 16
      %v5624 = vrot.slane %v5622, 1
      %v5625 = vsel %vm5581, %v5620, %v5624
      %v5626 = vshrl.u32 %v5545, 16
      %v5628 = vor.u32 %v5626, %v5624
      %v5630 = vshll.u32 %v5546, 16
      %v5632 = vrot.slane %v5630, 1
      %v5633 = vsel %vm5581, %v5628, %v5632
      %v5634 = vshrl.u32 %v5546, 16
      %v5636 = vor.u32 %v5634, %v5632
      %v5638 = vshll.u32 %v5547, 16
      %v5640 = vrot.slane %v5638, 1
      %v5641 = vsel %vm5581, %v5636, %v5640
      %v5642 = vshrl.u32 %v5547, 16
      %v5644 = vor.u32 %v5642, %v5640
      %v5646 = vshll.u32 %v5548, 16
      %v5648 = vrot.slane %v5646, 1
      %v5649 = vsel %vm5581, %v5644, %v5648
      %v5650 = vshrl.u32 %v5548, 16
      %v5652 = vor.u32 %v5650, %v5648
      %v5654 = vshll.u32 %v5549, 16
      %v5656 = vrot.slane %v5654, 1
      %v5657 = vsel %vm5581, %v5652, %v5656
      %v5658 = vshrl.u32 %v5549, 16
      %v5660 = vor.u32 %v5658, %v5656
      %v5662 = vshll.u32 %v5550, 16
      %v5664 = vrot.slane %v5662, 1
      %v5665 = vsel %vm5581, %v5660, %v5664
      %v5666 = vshrl.u32 %v5550, 16
      %v5668 = vor.u32 %v5666, %v5664
      %v5670 = vshll.u32 %v5551, 16
      %v5672 = vrot.slane %v5670, 1
      %v5673 = vsel %vm5581, %v5668, %v5672
      %v5674 = vshrl.u32 %v5551, 16
      %v5676 = vor.u32 %v5674, %v5672
      %v5678 = vshll.u32 %v5552, 16
      %v5680 = vrot.slane %v5678, 1
      %v5681 = vsel %vm5581, %v5676, %v5680
      %v5682 = vshrl.u32 %v5552, 16
      %v5684 = vor.u32 %v5682, %v5680
      %v5686 = vshll.u32 %v5553, 16
      %v5688 = vrot.slane %v5686, 1
      %v5689 = vsel %vm5581, %v5684, %v5688
      %v5690 = vshrl.u32 %v5553, 16
      %v5692 = vor.u32 %v5690, %v5688
      %v5694 = vshll.u32 %v5554, 16
      %v5696 = vrot.slane %v5694, 1
      %v5697 = vsel %vm5581, %v5692, %v5696
      %v5698 = vshrl.u32 %v5554, 16
      %v5700 = vor.u32 %v5698, %v5696
      %v5702 = vshll.u32 %v5555, 16
      %v5704 = vrot.slane %v5702, 1
      %v5705 = vsel %vm5581, %v5700, %v5704
      %v5706 = vshrl.u32 %v5555, 16
      %v5708 = vor.u32 %v5706, %v5704
      %v5710 = vshll.u32 %v5556, 16
      %v5712 = vrot.slane %v5710, 1
      %v5713 = vsel %vm5581, %v5708, %v5712
      %v5714 = vshrl.u32 %v5556, 16
      %v5716 = vor.u32 %v5714, %v5712
      %v5718 = vshll.u32 %v5557, 16
      %v5720 = vrot.slane %v5718, 1
      %v5721 = vsel %vm5581, %v5716, %v5720
      %v5722 = vshrl.u32 %v5557, 16
      %v5724 = vor.u32 %v5722, %v5720
      %v5726 = vshll.u32 %v5558, 16
      %v5728 = vrot.slane %v5726, 1
      %v5729 = vsel %vm5581, %v5724, %v5728
      %v5730 = vshrl.u32 %v5558, 16
      %v5732 = vor.u32 %v5730, %v5728
      %v5734 = vshll.u32 %v5559, 16
      %v5736 = vrot.slane %v5734, 1
      %v5737 = vsel %vm5581, %v5732, %v5736
      %v5738 = vshrl.u32 %v5559, 16
      %v5740 = vor.u32 %v5738, %v5736
      %v5742 = vshll.u32 %v5560, 16
      %v5744 = vrot.slane %v5742, 1
      %v5745 = vsel %vm5581, %v5740, %v5744
      %v5746 = vshrl.u32 %v5560, 16
      %v5748 = vor.u32 %v5746, %v5744
      %v5750 = vshll.u32 %v5561, 16
      %v5752 = vrot.slane %v5750, 1
      %v5753 = vsel %vm5581, %v5748, %v5752
      %v5754 = vshrl.u32 %v5561, 16
      %v5756 = vor.u32 %v5754, %v5752
      %v5758 = vshll.u32 %v5562, 16
      %v5760 = vrot.slane %v5758, 1
      %v5761 = vsel %vm5581, %v5756, %v5760
      %v5762 = vshrl.u32 %v5562, 16
      %v5764 = vor.u32 %v5762, %v5760
      %v5766 = vshll.u32 %v5563, 16
      %v5768 = vrot.slane %v5766, 1
      %v5769 = vsel %vm5581, %v5764, %v5768
      %v5770 = vshrl.u32 %v5563, 16
      %v5772 = vor.u32 %v5770, %v5768
      %v5774 = vshll.u32 %v5564, 16
      %v5776 = vrot.slane %v5774, 1
      %v5777 = vsel %vm5581, %v5772, %v5776
      %v5778 = vshrl.u32 %v5564, 16
      %v5780 = vor.u32 %v5778, %v5776
      %v5782 = vshll.u32 %v5565, 16
      %v5784 = vrot.slane %v5782, 1
      %v5785 = vsel %vm5581, %v5780, %v5784
      %v5786 = vshrl.u32 %v5565, 16
      %v5788 = vor.u32 %v5786, %v5784
      %v5790 = vshll.u32 %v5566, 16
      %v5792 = vrot.slane %v5790, 1
      %v5793 = vsel %vm5581, %v5788, %v5792
      %v5794 = vshrl.u32 %v5566, 16
      %v5796 = vor.u32 %v5794, %v5792
      %v5798 = vshll.u32 %v5567, 16
      %v5800 = vrot.slane %v5798, 1
      %v5801 = vsel %vm5581, %v5796, %v5800
      %v5802 = vshrl.u32 %v5567, 16
      %v5804 = vor.u32 %v5802, %v5800
      %v5806 = vshll.u32 %v5568, 16
      %v5808 = vrot.slane %v5806, 1
      %v5809 = vsel %vm5581, %v5804, %v5808
      %v5810 = vshrl.u32 %v5568, 16
      %v5812 = vor.u32 %v5810, %v5808
      %v5814 = vshll.u32 %v5569, 16
      %v5816 = vrot.slane %v5814, 1
      %v5817 = vsel %vm5581, %v5812, %v5816
      %v5818 = vshrl.u32 %v5569, 16
      %v5820 = vor.u32 %v5818, %v5816
      %v5822 = vshll.u32 %v5570, 16
      %v5824 = vrot.slane %v5822, 1
      %v5825 = vsel %vm5581, %v5820, %v5824
      %v5826 = vshrl.u32 %v5570, 16
      %v5828 = vor.u32 %v5826, %v5824
      %v5830 = vshll.u32 %v5571, 16
      %v5832 = vrot.slane %v5830, 1
      %v5833 = vsel %vm5581, %v5828, %v5832
      %v5834 = vshrl.u32 %v5571, 16
      %v5836 = vor.u32 %v5834, %v5832
      %v5838 = vshll.u32 %v5572, 16
      %v5840 = vrot.slane %v5838, 1
      %v5841 = vsel %vm5581, %v5836, %v5840
      %v5842 = vshrl.u32 %v5572, 16
      %v5844 = vor.u32 %v5842, %v5840
      %v5846 = vshll.u32 %v5573, 16
      %v5848 = vrot.slane %v5846, 1
      %v5849 = vsel %vm5581, %v5844, %v5848
      %v5850 = vshrl.u32 %v5573, 16
      %v5852 = vor.u32 %v5850, %v5848
      %v5854 = vshll.u32 %v5574, 16
      %v5856 = vrot.slane %v5854, 1
      %v5857 = vsel %vm5581, %v5852, %v5856
      %v5858 = vshrl.u32 %v5574, 16
      %v5860 = vor.u32 %v5858, %v5856
      %v5862 = vshll.u32 %v5575, 16
      %v5864 = vrot.slane %v5862, 1
      %v5865 = vsel %vm5581, %v5860, %v5864
      %v5866 = vshrl.u32 %v5575, 16
      %v5868 = vor.u32 %v5866, %v5864
      %v5870 = vshll.u32 %v5576, 16
      %v5872 = vrot.slane %v5870, 1
      %v5873 = vsel %vm5581, %v5868, %v5872
      %v5874 = vshrl.u32 %v5576, 16
      %v5876 = vor.u32 %v5874, %v5872
      %v5878 = vshll.u32 %v5577, 16
      %v5880 = vrot.slane %v5878, 1
      %v5881 = vsel %vm5581, %v5876, %v5880
      %v5882 = vshrl.u32 %v5577, 16
      %v5884 = vor.u32 %v5882, %v5880
      %v5886 = vshll.u32 %v5578, 16
      %v5888 = vrot.slane %v5886, 1
      %v5889 = vsel %vm5581, %v5884, %v5888
      %v5890 = vshrl.u32 %v5578, 16
      %v5892 = vor.u32 %v5890, %v5888
      %v5894 = vshll.u32 %v5579, 16
      %v5896 = vrot.slane %v5894, 1
      %v5897 = vsel %vm5581, %v5892, %v5896
      %v5898 = vshrl.u32 %v5579, 16
      %v5900 = vor.u32 %v5898, %v5896
      %v5902 = vshll.u32 %v5580, 16
      %v5904 = vrot.slane %v5902, 1
      %v5905 = vsel %vm5581, %v5900, %v5904
      %v5906 = vshrl.u32 %v5580, 16
      %v5908 = vor.u32 %v5906, %v5904
      %v5966 = vunpack.c.l.b16 %v5360
      %v5967 = vunpack.c.l.b16 %v5361
      %v5968 = vunpack.c.l.b16 %v5362
      %v5969 = vunpack.c.l.b16 %v5363
      %v5970 = vunpack.c.l.b16 %v5364
      %v5971 = vunpack.c.l.b16 %v5365
      %v5972 = vunpack.c.l.b16 %v5366
      %v5973 = vunpack.c.l.b16 %v5367
      %v5974 = vunpack.c.l.b16 %v5368
      %v5975 = vunpack.c.l.b16 %v5369
      %v5976 = vunpack.c.l.b16 %v5370
      %v5977 = vunpack.c.l.b16 %v5371
      %v5978 = vunpack.c.l.b16 %v5372
      %v5979 = vunpack.c.l.b16 %v5373
      %v5980 = vunpack.c.l.b16 %v5374
      %v5981 = vunpack.c.l.b16 %v5375
      %v5982 = vpack.c.b16 %v5967, %v5966
      %v5983 = vpack.c.b16 %v5969, %v5968
      %v5984 = vpack.c.b16 %v5971, %v5970
      %v5985 = vpack.c.b16 %v5973, %v5972
      %v5986 = vpack.c.b16 %v5975, %v5974
      %v5987 = vpack.c.b16 %v5977, %v5976
      %v5988 = vpack.c.b16 %v5979, %v5978
      %v5989 = vpack.c.b16 %v5981, %v5980
      %5998 = vmatpush.bf16.msra.mxu0 %v5989
      %5999 = vmatpush.bf16.msra.mxu0 %v5988
      %6000 = vmatpush.bf16.msra.mxu0 %v5987
      %6001 = vmatpush.bf16.msra.mxu0 %v5986
      %6002 = vmatpush.bf16.msra.mxu0 %v5985
      %6003 = vmatpush.bf16.msra.mxu0 %v5984
      %6004 = vmatpush.bf16.msra.mxu0 %v5983
      %6005 = vmatpush.bf16.msra.mxu0 %v5982
      %6006 = vmatmul.bf16.gmra.mxu0 %v5593
      %v6007 = vpop.f32.mrf.mxu0
      %v6008 = vadd.f32 0.0, %v6007
      %v6009 = vpop.f32.mrf.mxu0
      %v6010 = vadd.f32 0.0, %v6009
      %6011 = vmatmul.bf16.gmra.mxu0 %v5601
      %v6012 = vpop.f32.mrf.mxu0
      %v6013 = vadd.f32 0.0, %v6012
      %v6014 = vpop.f32.mrf.mxu0
      %v6015 = vadd.f32 0.0, %v6014
      %6016 = vmatmul.bf16.gmra.mxu0 %v5609
      %v6017 = vpop.f32.mrf.mxu0
      %v6018 = vadd.f32 0.0, %v6017
      %v6019 = vpop.f32.mrf.mxu0
      %v6020 = vadd.f32 0.0, %v6019
      %6021 = vmatmul.bf16.gmra.mxu0 %v5617
      %v6022 = vpop.f32.mrf.mxu0
      %v6023 = vadd.f32 0.0, %v6022
      %v6024 = vpop.f32.mrf.mxu0
      %v6025 = vadd.f32 0.0, %v6024
      %6026 = vmatmul.bf16.gmra.mxu0 %v5625
      %v6027 = vpop.f32.mrf.mxu0
      %v6028 = vadd.f32 0.0, %v6027
      %v6029 = vpop.f32.mrf.mxu0
      %v6030 = vadd.f32 0.0, %v6029
      %6031 = vmatmul.bf16.gmra.mxu0 %v5633
      %v6032 = vpop.f32.mrf.mxu0
      %v6033 = vadd.f32 0.0, %v6032
      %v6034 = vpop.f32.mrf.mxu0
      %v6035 = vadd.f32 0.0, %v6034
      %6036 = vmatmul.bf16.gmra.mxu0 %v5641
      %v6037 = vpop.f32.mrf.mxu0
      %v6038 = vadd.f32 0.0, %v6037
      %v6039 = vpop.f32.mrf.mxu0
      %v6040 = vadd.f32 0.0, %v6039
      %6041 = vmatmul.bf16.gmra.mxu0 %v5649
      %v6042 = vpop.f32.mrf.mxu0
      %v6043 = vadd.f32 0.0, %v6042
      %v6044 = vpop.f32.mrf.mxu0
      %v6045 = vadd.f32 0.0, %v6044
      %6046 = vmatmul.bf16.gmra.mxu0 %v5657
      %v6047 = vpop.f32.mrf.mxu0
      %v6048 = vadd.f32 0.0, %v6047
      %v6049 = vpop.f32.mrf.mxu0
      %v6050 = vadd.f32 0.0, %v6049
      %6051 = vmatmul.bf16.gmra.mxu0 %v5665
      %v6052 = vpop.f32.mrf.mxu0
      %v6053 = vadd.f32 0.0, %v6052
      %v6054 = vpop.f32.mrf.mxu0
      %v6055 = vadd.f32 0.0, %v6054
      %6056 = vmatmul.bf16.gmra.mxu0 %v5673
      %v6057 = vpop.f32.mrf.mxu0
      %v6058 = vadd.f32 0.0, %v6057
      %v6059 = vpop.f32.mrf.mxu0
      %v6060 = vadd.f32 0.0, %v6059
      %6061 = vmatmul.bf16.gmra.mxu0 %v5681
      %v6062 = vpop.f32.mrf.mxu0
      %v6063 = vadd.f32 0.0, %v6062
      %v6064 = vpop.f32.mrf.mxu0
      %v6065 = vadd.f32 0.0, %v6064
      %6066 = vmatmul.bf16.gmra.mxu0 %v5689
      %v6067 = vpop.f32.mrf.mxu0
      %v6068 = vadd.f32 0.0, %v6067
      %v6069 = vpop.f32.mrf.mxu0
      %v6070 = vadd.f32 0.0, %v6069
      %6071 = vmatmul.bf16.gmra.mxu0 %v5697
      %v6072 = vpop.f32.mrf.mxu0
      %v6073 = vadd.f32 0.0, %v6072
      %v6074 = vpop.f32.mrf.mxu0
      %v6075 = vadd.f32 0.0, %v6074
      %6076 = vmatmul.bf16.gmra.mxu0 %v5705
      %v6077 = vpop.f32.mrf.mxu0
      %v6078 = vadd.f32 0.0, %v6077
      %v6079 = vpop.f32.mrf.mxu0
      %v6080 = vadd.f32 0.0, %v6079
      %6081 = vmatmul.bf16.gmra.mxu0 %v5713
      %v6082 = vpop.f32.mrf.mxu0
      %v6083 = vadd.f32 0.0, %v6082
      %v6084 = vpop.f32.mrf.mxu0
      %v6085 = vadd.f32 0.0, %v6084
      %6086 = vmatmul.bf16.gmra.mxu0 %v5721
      %v6087 = vpop.f32.mrf.mxu0
      %v6088 = vadd.f32 0.0, %v6087
      %v6089 = vpop.f32.mrf.mxu0
      %v6090 = vadd.f32 0.0, %v6089
      %6091 = vmatmul.bf16.gmra.mxu0 %v5729
      %v6092 = vpop.f32.mrf.mxu0
      %v6093 = vadd.f32 0.0, %v6092
      %v6094 = vpop.f32.mrf.mxu0
      %v6095 = vadd.f32 0.0, %v6094
      %6096 = vmatmul.bf16.gmra.mxu0 %v5737
      %v6097 = vpop.f32.mrf.mxu0
      %v6098 = vadd.f32 0.0, %v6097
      %v6099 = vpop.f32.mrf.mxu0
      %v6100 = vadd.f32 0.0, %v6099
      %6101 = vmatmul.bf16.gmra.mxu0 %v5745
      %v6102 = vpop.f32.mrf.mxu0
      %v6103 = vadd.f32 0.0, %v6102
      %v6104 = vpop.f32.mrf.mxu0
      %v6105 = vadd.f32 0.0, %v6104
      %6106 = vmatmul.bf16.gmra.mxu0 %v5753
      %v6107 = vpop.f32.mrf.mxu0
      %v6108 = vadd.f32 0.0, %v6107
      %v6109 = vpop.f32.mrf.mxu0
      %v6110 = vadd.f32 0.0, %v6109
      %6111 = vmatmul.bf16.gmra.mxu0 %v5761
      %v6112 = vpop.f32.mrf.mxu0
      %v6113 = vadd.f32 0.0, %v6112
      %v6114 = vpop.f32.mrf.mxu0
      %v6115 = vadd.f32 0.0, %v6114
      %6116 = vmatmul.bf16.gmra.mxu0 %v5769
      %v6117 = vpop.f32.mrf.mxu0
      %v6118 = vadd.f32 0.0, %v6117
      %v6119 = vpop.f32.mrf.mxu0
      %v6120 = vadd.f32 0.0, %v6119
      %6121 = vmatmul.bf16.gmra.mxu0 %v5777
      %v6122 = vpop.f32.mrf.mxu0
      %v6123 = vadd.f32 0.0, %v6122
      %v6124 = vpop.f32.mrf.mxu0
      %v6125 = vadd.f32 0.0, %v6124
      %6126 = vmatmul.bf16.gmra.mxu0 %v5785
      %v6127 = vpop.f32.mrf.mxu0
      %v6128 = vadd.f32 0.0, %v6127
      %v6129 = vpop.f32.mrf.mxu0
      %v6130 = vadd.f32 0.0, %v6129
      %6131 = vmatmul.bf16.gmra.mxu0 %v5793
      %v6132 = vpop.f32.mrf.mxu0
      %v6133 = vadd.f32 0.0, %v6132
      %v6134 = vpop.f32.mrf.mxu0
      %v6135 = vadd.f32 0.0, %v6134
      %6136 = vmatmul.bf16.gmra.mxu0 %v5801
      %v6137 = vpop.f32.mrf.mxu0
      %v6138 = vadd.f32 0.0, %v6137
      %v6139 = vpop.f32.mrf.mxu0
      %v6140 = vadd.f32 0.0, %v6139
      %6141 = vmatmul.bf16.gmra.mxu0 %v5809
      %v6142 = vpop.f32.mrf.mxu0
      %v6143 = vadd.f32 0.0, %v6142
      %v6144 = vpop.f32.mrf.mxu0
      %v6145 = vadd.f32 0.0, %v6144
      %6146 = vmatmul.bf16.gmra.mxu0 %v5817
      %v6147 = vpop.f32.mrf.mxu0
      %v6148 = vadd.f32 0.0, %v6147
      %v6149 = vpop.f32.mrf.mxu0
      %v6150 = vadd.f32 0.0, %v6149
      %6151 = vmatmul.bf16.gmra.mxu0 %v5825
      %v6152 = vpop.f32.mrf.mxu0
      %v6153 = vadd.f32 0.0, %v6152
      %v6154 = vpop.f32.mrf.mxu0
      %v6155 = vadd.f32 0.0, %v6154
      %6156 = vmatmul.bf16.gmra.mxu0 %v5833
      %v6157 = vpop.f32.mrf.mxu0
      %v6158 = vadd.f32 0.0, %v6157
      %v6159 = vpop.f32.mrf.mxu0
      %v6160 = vadd.f32 0.0, %v6159
      %6161 = vmatmul.bf16.gmra.mxu0 %v5841
      %v6162 = vpop.f32.mrf.mxu0
      %v6163 = vadd.f32 0.0, %v6162
      %v6164 = vpop.f32.mrf.mxu0
      %v6165 = vadd.f32 0.0, %v6164
      %6166 = vmatmul.bf16.gmra.mxu0 %v5849
      %v6167 = vpop.f32.mrf.mxu0
      %v6168 = vadd.f32 0.0, %v6167
      %v6169 = vpop.f32.mrf.mxu0
      %v6170 = vadd.f32 0.0, %v6169
      %6171 = vmatmul.bf16.gmra.mxu0 %v5857
      %v6172 = vpop.f32.mrf.mxu0
      %v6173 = vadd.f32 0.0, %v6172
      %v6174 = vpop.f32.mrf.mxu0
      %v6175 = vadd.f32 0.0, %v6174
      %6176 = vmatmul.bf16.gmra.mxu0 %v5865
      %v6177 = vpop.f32.mrf.mxu0
      %v6178 = vadd.f32 0.0, %v6177
      %v6179 = vpop.f32.mrf.mxu0
      %v6180 = vadd.f32 0.0, %v6179
      %6181 = vmatmul.bf16.gmra.mxu0 %v5873
      %v6182 = vpop.f32.mrf.mxu0
      %v6183 = vadd.f32 0.0, %v6182
      %v6184 = vpop.f32.mrf.mxu0
      %v6185 = vadd.f32 0.0, %v6184
      %6186 = vmatmul.bf16.gmra.mxu0 %v5881
      %v6187 = vpop.f32.mrf.mxu0
      %v6188 = vadd.f32 0.0, %v6187
      %v6189 = vpop.f32.mrf.mxu0
      %v6190 = vadd.f32 0.0, %v6189
      %6191 = vmatmul.bf16.gmra.mxu0 %v5889
      %v6192 = vpop.f32.mrf.mxu0
      %v6193 = vadd.f32 0.0, %v6192
      %v6194 = vpop.f32.mrf.mxu0
      %v6195 = vadd.f32 0.0, %v6194
      %6196 = vmatmul.bf16.gmra.mxu0 %v5897
      %v6197 = vpop.f32.mrf.mxu0
      %v6198 = vadd.f32 0.0, %v6197
      %v6199 = vpop.f32.mrf.mxu0
      %v6200 = vadd.f32 0.0, %v6199
      %6201 = vmatmul.bf16.gmra.mxu0 %v5905
      %v6202 = vpop.f32.mrf.mxu0
      %v6203 = vadd.f32 0.0, %v6202
      %v6204 = vpop.f32.mrf.mxu0
      %v6205 = vadd.f32 0.0, %v6204
      %6206 = vmatmul.bf16.gmra.mxu0 %v5908
      %v6207 = vpop.f32.mrf.mxu0
      %v6208 = vadd.f32 0.0, %v6207
      %v6209 = vpop.f32.mrf.mxu0
      %6210 = vdwg.mxu0
      %v6211 = vadd.f32 %v5196, %v6008
      %v6212 = vadd.f32 %v5197, %v6010
      %v6213 = vadd.f32 %v5198, %v6013
      %v6214 = vadd.f32 %v5199, %v6015
      %v6215 = vadd.f32 %v5200, %v6018
      %v6216 = vadd.f32 %v5201, %v6020
      %v6217 = vadd.f32 %v5202, %v6023
      %v6218 = vadd.f32 %v5203, %v6025
      %v6219 = vadd.f32 %v5204, %v6028
      %v6220 = vadd.f32 %v5205, %v6030
      %v6221 = vadd.f32 %v5206, %v6033
      %v6222 = vadd.f32 %v5207, %v6035
      %v6223 = vadd.f32 %v5208, %v6038
      %v6224 = vadd.f32 %v5209, %v6040
      %v6225 = vadd.f32 %v5210, %v6043
      %v6226 = vadd.f32 %v5211, %v6045
      %v6227 = vadd.f32 %v5212, %v6048
      %v6228 = vadd.f32 %v5213, %v6050
      %v6229 = vadd.f32 %v5214, %v6053
      %v6230 = vadd.f32 %v5215, %v6055
      %v6231 = vadd.f32 %v5216, %v6058
      %v6232 = vadd.f32 %v5217, %v6060
      %v6233 = vadd.f32 %v5218, %v6063
      %v6234 = vadd.f32 %v5219, %v6065
      %v6235 = vadd.f32 %v5220, %v6068
      %v6236 = vadd.f32 %v5221, %v6070
      %v6237 = vadd.f32 %v5222, %v6073
      %v6238 = vadd.f32 %v5223, %v6075
      %v6239 = vadd.f32 %v5224, %v6078
      %v6240 = vadd.f32 %v5225, %v6080
      %v6241 = vadd.f32 %v5226, %v6083
      %v6242 = vadd.f32 %v5227, %v6085
      %v6243 = vadd.f32 %v5228, %v6088
      %v6244 = vadd.f32 %v5229, %v6090
      %v6245 = vadd.f32 %v5230, %v6093
      %v6246 = vadd.f32 %v5231, %v6095
      %v6247 = vadd.f32 %v5232, %v6098
      %v6248 = vadd.f32 %v5233, %v6100
      %v6249 = vadd.f32 %v5234, %v6103
      %v6250 = vadd.f32 %v5235, %v6105
      %v6251 = vadd.f32 %v5236, %v6108
      %v6252 = vadd.f32 %v5237, %v6110
      %v6253 = vadd.f32 %v5238, %v6113
      %v6254 = vadd.f32 %v5239, %v6115
      %v6255 = vadd.f32 %v5240, %v6118
      %v6256 = vadd.f32 %v5241, %v6120
      %v6257 = vadd.f32 %v5242, %v6123
      %v6258 = vadd.f32 %v5243, %v6125
      %v6259 = vadd.f32 %v5244, %v6128
      %v6260 = vadd.f32 %v5245, %v6130
      %v6261 = vadd.f32 %v5246, %v6133
      %v6262 = vadd.f32 %v5247, %v6135
      %v6263 = vadd.f32 %v5248, %v6138
      %v6264 = vadd.f32 %v5249, %v6140
      %v6265 = vadd.f32 %v5250, %v6143
      %v6266 = vadd.f32 %v5251, %v6145
      %v6267 = vadd.f32 %v5252, %v6148
      %v6268 = vadd.f32 %v5253, %v6150
      %v6269 = vadd.f32 %v5254, %v6153
      %v6270 = vadd.f32 %v5255, %v6155
      %v6271 = vadd.f32 %v5256, %v6158
      %v6272 = vadd.f32 %v5257, %v6160
      %v6273 = vadd.f32 %v5258, %v6163
      %v6274 = vadd.f32 %v5259, %v6165
      %v6275 = vadd.f32 %v5260, %v6168
      %v6276 = vadd.f32 %v5261, %v6170
      %v6277 = vadd.f32 %v5262, %v6173
      %v6278 = vadd.f32 %v5263, %v6175
      %v6279 = vadd.f32 %v5264, %v6178
      %v6280 = vadd.f32 %v5265, %v6180
      %v6281 = vadd.f32 %v5266, %v6183
      %v6282 = vadd.f32 %v5267, %v6185
      %v6283 = vadd.f32 %v5268, %v6188
      %v6284 = vadd.f32 %v5269, %v6190
      %v6285 = vadd.f32 %v5270, %v6193
      %v6286 = vadd.f32 %v5271, %v6195
      %v6287 = vadd.f32 %v5272, %v6198
      %v6288 = vadd.f32 %v5273, %v6200
      %v6289 = vadd.f32 %v5274, %v6203
      %v6290 = vadd.f32 %v5275, %v6205
      %v6291 = vadd.f32 %v5276, %v6208
      %v6292 = vld [vmem:[#allocation2 + $0x18] sm:$0xf]
      %v6293 = vld [vmem:[#allocation2 + $0x1c] sm:$0xf]
      %v6294 = vld [vmem:[#allocation2 + $0x20] sm:$0xf]
      %v6295 = vld [vmem:[#allocation2 + $0x24] sm:$0xf]
      %v6296 = vld [vmem:[#allocation2 + $0x28] sm:$0xf]
      %v6297 = vld [vmem:[#allocation2 + $0x2c] sm:$0xf]
      %v6298 = vld [vmem:[#allocation2 + $0x30] sm:$0xf]
      %v6299 = vld [vmem:[#allocation2 + $0x34] sm:$0xf]
      %v6300 = vld [vmem:[#allocation2 + $0x38] sm:$0xf]
      %v6301 = vld [vmem:[#allocation2 + $0x3c] sm:$0xf]
      %v6302 = vld [vmem:[#allocation2 + $0x40] sm:$0xf]
      %v6303 = vld [vmem:[#allocation2 + $0x44] sm:$0xf]
      %v6304 = vld [vmem:[#allocation2 + $0x48] sm:$0xf]
      %v6305 = vld [vmem:[#allocation2 + $0x4c] sm:$0xf]
      %v6306 = vld [vmem:[#allocation2 + $0x50] sm:$0xf]
      %v6307 = vld [vmem:[#allocation2 + $0x54] sm:$0xf]
      %v6308 = vld [vmem:[#allocation2 + $0x58] sm:$0xf]
      %v6309 = vld [vmem:[#allocation2 + $0x5c] sm:$0xf]
      %v6310 = vld [vmem:[#allocation2 + $0x60] sm:$0xf]
      %v6311 = vld [vmem:[#allocation2 + $0x64] sm:$0xf]
      %v6312 = vld [vmem:[#allocation2 + $0x68] sm:$0xf]
      %v6313 = vld [vmem:[#allocation2 + $0x6c] sm:$0xf]
      %v6314 = vld [vmem:[#allocation2 + $0x70] sm:$0xf]
      %v6315 = vld [vmem:[#allocation2 + $0x74] sm:$0xf]
      %v6316 = vld [vmem:[#allocation2 + $0x78] sm:$0xf]
      %v6317 = vld [vmem:[#allocation2 + $0x7c] sm:$0xf]
      %v6318 = vld [vmem:[#allocation2 + $0x80] sm:$0xf]
      %v6319 = vld [vmem:[#allocation2 + $0x84] sm:$0xf]
      %v6320 = vld [vmem:[#allocation2 + $0x88] sm:$0xf]
      %v6321 = vld [vmem:[#allocation2 + $0x8c] sm:$0xf]
      %v6322 = vld [vmem:[#allocation2 + $0x90] sm:$0xf]
      %v6323 = vld [vmem:[#allocation2 + $0x94] sm:$0xf]
      %v6324 = vld [vmem:[#allocation2 + $0x98] sm:$0xf]
      %v6325 = vld [vmem:[#allocation2 + $0x9c] sm:$0xf]
      %v6326 = vld [vmem:[#allocation2 + $0xa0] sm:$0xf]
      %v6327 = vld [vmem:[#allocation2 + $0xa4] sm:$0xf]
      %v6328 = vld [vmem:[#allocation2 + $0xa8] sm:$0xf]
      %v6329 = vld [vmem:[#allocation2 + $0xac] sm:$0xf]
      %v6330 = vld [vmem:[#allocation2 + $0xb0] sm:$0xf]
      %v6331 = vld [vmem:[#allocation2 + $0xb4] sm:$0xf]
      %v6332 = vld [vmem:[#allocation2 + $0xb8] sm:$0xf]
      %v6333 = vld [vmem:[#allocation2 + $0xbc] sm:$0xf]
      %v6334 = vld [vmem:[#allocation2 + $0xc0] sm:$0xf]
      %v6335 = vld [vmem:[#allocation2 + $0xc4] sm:$0xf]
      %v6336 = vld [vmem:[#allocation2 + $0xc8] sm:$0xf]
      %v6337 = vld [vmem:[#allocation2 + $0xcc] sm:$0xf]
      %v6338 = vld [vmem:[#allocation2 + $0xd0] sm:$0xf]
      %v6339 = vld [vmem:[#allocation2 + $0xd4] sm:$0xf]
      %v6340 = vld [vmem:[#allocation2 + $0xd8] sm:$0xf]
      %v6341 = vld [vmem:[#allocation2 + $0xdc] sm:$0xf]
      %v6342 = vld [vmem:[#allocation2 + $0xe0] sm:$0xf]
      %v6343 = vld [vmem:[#allocation2 + $0xe4] sm:$0xf]
      %v6344 = vld [vmem:[#allocation2 + $0xe8] sm:$0xf]
      %v6345 = vld [vmem:[#allocation2 + $0xec] sm:$0xf]
      %v6346 = vld [vmem:[#allocation2 + $0xf0] sm:$0xf]
      %v6347 = vld [vmem:[#allocation2 + $0xf4] sm:$0xf]
      %v6348 = vld [vmem:[#allocation2 + $0xf8] sm:$0xf]
      %v6349 = vld [vmem:[#allocation2 + $0xfc] sm:$0xf]
      %v6350 = vld [vmem:[#allocation2 + $0x100] sm:$0xf]
      %v6351 = vld [vmem:[#allocation2 + $0x104] sm:$0xf]
      %v6352 = vld [vmem:[#allocation2 + $0x108] sm:$0xf]
      %v6353 = vld [vmem:[#allocation2 + $0x10c] sm:$0xf]
      %v6354 = vld [vmem:[#allocation2 + $0x110] sm:$0xf]
      %v6355 = vld [vmem:[#allocation2 + $0x114] sm:$0xf]
      %v6356 = vld [vmem:[#allocation2 + $0x118] sm:$0xf]
      %v6357 = vld [vmem:[#allocation2 + $0x11c] sm:$0xf]
      %v6358 = vld [vmem:[#allocation2 + $0x120] sm:$0xf]
      %v6359 = vld [vmem:[#allocation2 + $0x124] sm:$0xf]
      %v6360 = vld [vmem:[#allocation2 + $0x128] sm:$0xf]
      %v6361 = vld [vmem:[#allocation2 + $0x12c] sm:$0xf]
      %v6362 = vld [vmem:[#allocation2 + $0x130] sm:$0xf]
      %v6363 = vld [vmem:[#allocation2 + $0x134] sm:$0xf]
      %v6364 = vld [vmem:[#allocation2 + $0x138] sm:$0xf]
      %v6365 = vld [vmem:[#allocation2 + $0x13c] sm:$0xf]
      %v6366 = vld [vmem:[#allocation2 + $0x140] sm:$0xf]
      %v6367 = vld [vmem:[#allocation2 + $0x144] sm:$0xf]
      %v6368 = vld [vmem:[#allocation2 + $0x148] sm:$0xf]
      %v6369 = vld [vmem:[#allocation2 + $0x14c] sm:$0xf]
      %v6370 = vld [vmem:[#allocation2 + $0x150] sm:$0xf]
      %v6371 = vld [vmem:[#allocation2 + $0x154] sm:$0xf]
      %v6372 = vld [vmem:[#allocation2 + $0x158] sm:$0xf]
      %v6373 = vld [vmem:[#allocation2 + $0x15c] sm:$0x1]
      %s6374 = scalar_lea.vmem %s5, 384
      %v6375 = vld [vmem:[%s6374] sm:$0xf]
      %v6376 = vld [vmem:[%s6374 + $0x4] sm:$0xf]
      %v6377 = vld [vmem:[%s6374 + $0x8] sm:$0xf]
      %v6378 = vld [vmem:[%s6374 + $0xc] sm:$0xf]
      %v6379 = vld [vmem:[%s6374 + $0x10] sm:$0xf]
      %v6380 = vld [vmem:[%s6374 + $0x14] sm:$0xf]
      %v6381 = vld [vmem:[%s6374 + $0x18] sm:$0xf]
      %v6382 = vld [vmem:[%s6374 + $0x1c] sm:$0xf]
      %v6383 = vld [vmem:[%s6374 + $0x20] sm:$0xf]
      %v6384 = vld [vmem:[%s6374 + $0x24] sm:$0xf]
      %v6385 = vld [vmem:[%s6374 + $0x28] sm:$0xf]
      %v6386 = vld [vmem:[%s6374 + $0x2c] sm:$0xf]
      %v6387 = vld [vmem:[%s6374 + $0x30] sm:$0xf]
      %v6388 = vld [vmem:[%s6374 + $0x34] sm:$0xf]
      %v6389 = vld [vmem:[%s6374 + $0x38] sm:$0xf]
      %v6390 = vld [vmem:[%s6374 + $0x3c] sm:$0xf]
      %v6473 = vunpack.c.l.b16 %v6292
      %v6474 = vunpack.c.l.b16 %v6293
      %v6475 = vunpack.c.l.b16 %v6294
      %v6476 = vunpack.c.l.b16 %v6295
      %v6477 = vunpack.c.l.b16 %v6296
      %v6478 = vunpack.c.l.b16 %v6297
      %v6479 = vunpack.c.l.b16 %v6298
      %v6480 = vunpack.c.l.b16 %v6299
      %v6481 = vunpack.c.l.b16 %v6300
      %v6482 = vunpack.c.l.b16 %v6301
      %v6483 = vunpack.c.l.b16 %v6302
      %v6484 = vunpack.c.l.b16 %v6303
      %v6485 = vunpack.c.l.b16 %v6304
      %v6486 = vunpack.c.l.b16 %v6305
      %v6487 = vunpack.c.l.b16 %v6306
      %v6488 = vunpack.c.l.b16 %v6307
      %v6489 = vunpack.c.l.b16 %v6308
      %v6490 = vunpack.c.l.b16 %v6309
      %v6491 = vunpack.c.l.b16 %v6310
      %v6492 = vunpack.c.l.b16 %v6311
      %v6493 = vunpack.c.l.b16 %v6312
      %v6494 = vunpack.c.l.b16 %v6313
      %v6495 = vunpack.c.l.b16 %v6314
      %v6496 = vunpack.c.l.b16 %v6315
      %v6497 = vunpack.c.l.b16 %v6316
      %v6498 = vunpack.c.l.b16 %v6317
      %v6499 = vunpack.c.l.b16 %v6318
      %v6500 = vunpack.c.l.b16 %v6319
      %v6501 = vunpack.c.l.b16 %v6320
      %v6502 = vunpack.c.l.b16 %v6321
      %v6503 = vunpack.c.l.b16 %v6322
      %v6504 = vunpack.c.l.b16 %v6323
      %v6505 = vunpack.c.l.b16 %v6324
      %v6506 = vunpack.c.l.b16 %v6325
      %v6507 = vunpack.c.l.b16 %v6326
      %v6508 = vunpack.c.l.b16 %v6327
      %v6509 = vunpack.c.l.b16 %v6328
      %v6510 = vunpack.c.l.b16 %v6329
      %v6511 = vunpack.c.l.b16 %v6330
      %v6512 = vunpack.c.l.b16 %v6331
      %v6513 = vunpack.c.l.b16 %v6332
      %v6514 = vunpack.c.l.b16 %v6333
      %v6515 = vunpack.c.l.b16 %v6334
      %v6516 = vunpack.c.l.b16 %v6335
      %v6517 = vunpack.c.l.b16 %v6336
      %v6518 = vunpack.c.l.b16 %v6337
      %v6519 = vunpack.c.l.b16 %v6338
      %v6520 = vunpack.c.l.b16 %v6339
      %v6521 = vunpack.c.l.b16 %v6340
      %v6522 = vunpack.c.l.b16 %v6341
      %v6523 = vunpack.c.l.b16 %v6342
      %v6524 = vunpack.c.l.b16 %v6343
      %v6525 = vunpack.c.l.b16 %v6344
      %v6526 = vunpack.c.l.b16 %v6345
      %v6527 = vunpack.c.l.b16 %v6346
      %v6528 = vunpack.c.l.b16 %v6347
      %v6529 = vunpack.c.l.b16 %v6348
      %v6530 = vunpack.c.l.b16 %v6349
      %v6531 = vunpack.c.l.b16 %v6350
      %v6532 = vunpack.c.l.b16 %v6351
      %v6533 = vunpack.c.l.b16 %v6352
      %v6534 = vunpack.c.l.b16 %v6353
      %v6535 = vunpack.c.l.b16 %v6354
      %v6536 = vunpack.c.l.b16 %v6355
      %v6537 = vunpack.c.l.b16 %v6356
      %v6538 = vunpack.c.l.b16 %v6357
      %v6539 = vunpack.c.l.b16 %v6358
      %v6540 = vunpack.c.l.b16 %v6359
      %v6541 = vunpack.c.l.b16 %v6360
      %v6542 = vunpack.c.l.b16 %v6361
      %v6543 = vunpack.c.l.b16 %v6362
      %v6544 = vunpack.c.l.b16 %v6363
      %v6545 = vunpack.c.l.b16 %v6364
      %v6546 = vunpack.c.l.b16 %v6365
      %v6547 = vunpack.c.l.b16 %v6366
      %v6548 = vunpack.c.l.b16 %v6367
      %v6549 = vunpack.c.l.b16 %v6368
      %v6550 = vunpack.c.l.b16 %v6369
      %v6551 = vunpack.c.l.b16 %v6370
      %v6552 = vunpack.c.l.b16 %v6371
      %v6553 = vunpack.c.l.b16 %v6372
      %v6554 = vunpack.c.l.b16 %v6373
      %v6555 = vpack.c.b16 %v6474, %v6473
      %v6556 = vpack.c.b16 %v6476, %v6475
      %v6557 = vpack.c.b16 %v6478, %v6477
      %v6558 = vpack.c.b16 %v6480, %v6479
      %v6559 = vpack.c.b16 %v6482, %v6481
      %v6560 = vpack.c.b16 %v6484, %v6483
      %v6561 = vpack.c.b16 %v6486, %v6485
      %v6562 = vpack.c.b16 %v6488, %v6487
      %v6563 = vpack.c.b16 %v6490, %v6489
      %v6564 = vpack.c.b16 %v6492, %v6491
      %v6565 = vpack.c.b16 %v6494, %v6493
      %v6566 = vpack.c.b16 %v6496, %v6495
      %v6567 = vpack.c.b16 %v6498, %v6497
      %v6568 = vpack.c.b16 %v6500, %v6499
      %v6569 = vpack.c.b16 %v6502, %v6501
      %v6570 = vpack.c.b16 %v6504, %v6503
      %v6571 = vpack.c.b16 %v6506, %v6505
      %v6572 = vpack.c.b16 %v6508, %v6507
      %v6573 = vpack.c.b16 %v6510, %v6509
      %v6574 = vpack.c.b16 %v6512, %v6511
      %v6575 = vpack.c.b16 %v6514, %v6513
      %v6576 = vpack.c.b16 %v6516, %v6515
      %v6577 = vpack.c.b16 %v6518, %v6517
      %v6578 = vpack.c.b16 %v6520, %v6519
      %v6579 = vpack.c.b16 %v6522, %v6521
      %v6580 = vpack.c.b16 %v6524, %v6523
      %v6581 = vpack.c.b16 %v6526, %v6525
      %v6582 = vpack.c.b16 %v6528, %v6527
      %v6583 = vpack.c.b16 %v6530, %v6529
      %v6584 = vpack.c.b16 %v6532, %v6531
      %v6585 = vpack.c.b16 %v6534, %v6533
      %v6586 = vpack.c.b16 %v6536, %v6535
      %v6587 = vpack.c.b16 %v6538, %v6537
      %v6588 = vpack.c.b16 %v6540, %v6539
      %v6589 = vpack.c.b16 %v6542, %v6541
      %v6590 = vpack.c.b16 %v6544, %v6543
      %v6591 = vpack.c.b16 %v6546, %v6545
      %v6592 = vpack.c.b16 %v6548, %v6547
      %v6593 = vpack.c.b16 %v6550, %v6549
      %v6594 = vpack.c.b16 %v6552, %v6551
      %v6595 = vpack.c.b16 %v6554, %v6553
      %v6597 = vshrl.u32 %v6555, 16
      %v6599 = vshll.u32 %v6555, 16
      %v6601 = vrot.slane %v6599, 1
      %v6602 = vor.u32 %v6597, %v6601
      %v6604 = vshll.u32 %v6556, 16
      %v6606 = vrot.slane %v6604, 1
      %v6607 = vsel %vm5581, %v6602, %v6606
      %v6608 = vshrl.u32 %v6556, 16
      %v6610 = vor.u32 %v6608, %v6606
      %v6612 = vshll.u32 %v6557, 16
      %v6614 = vrot.slane %v6612, 1
      %v6615 = vsel %vm5581, %v6610, %v6614
      %v6616 = vshrl.u32 %v6557, 16
      %v6618 = vor.u32 %v6616, %v6614
      %v6620 = vshll.u32 %v6558, 16
      %v6622 = vrot.slane %v6620, 1
      %v6623 = vsel %vm5581, %v6618, %v6622
      %v6624 = vshrl.u32 %v6558, 16
      %v6626 = vor.u32 %v6624, %v6622
      %v6628 = vshll.u32 %v6559, 16
      %v6630 = vrot.slane %v6628, 1
      %v6631 = vsel %vm5581, %v6626, %v6630
      %v6632 = vshrl.u32 %v6559, 16
      %v6634 = vor.u32 %v6632, %v6630
      %v6636 = vshll.u32 %v6560, 16
      %v6638 = vrot.slane %v6636, 1
      %v6639 = vsel %vm5581, %v6634, %v6638
      %v6640 = vshrl.u32 %v6560, 16
      %v6642 = vor.u32 %v6640, %v6638
      %v6644 = vshll.u32 %v6561, 16
      %v6646 = vrot.slane %v6644, 1
      %v6647 = vsel %vm5581, %v6642, %v6646
      %v6648 = vshrl.u32 %v6561, 16
      %v6650 = vor.u32 %v6648, %v6646
      %v6652 = vshll.u32 %v6562, 16
      %v6654 = vrot.slane %v6652, 1
      %v6655 = vsel %vm5581, %v6650, %v6654
      %v6656 = vshrl.u32 %v6562, 16
      %v6658 = vor.u32 %v6656, %v6654
      %v6660 = vshll.u32 %v6563, 16
      %v6662 = vrot.slane %v6660, 1
      %v6663 = vsel %vm5581, %v6658, %v6662
      %v6664 = vshrl.u32 %v6563, 16
      %v6666 = vor.u32 %v6664, %v6662
      %v6668 = vshll.u32 %v6564, 16
      %v6670 = vrot.slane %v6668, 1
      %v6671 = vsel %vm5581, %v6666, %v6670
      %v6672 = vshrl.u32 %v6564, 16
      %v6674 = vor.u32 %v6672, %v6670
      %v6676 = vshll.u32 %v6565, 16
      %v6678 = vrot.slane %v6676, 1
      %v6679 = vsel %vm5581, %v6674, %v6678
      %v6680 = vshrl.u32 %v6565, 16
      %v6682 = vor.u32 %v6680, %v6678
      %v6684 = vshll.u32 %v6566, 16
      %v6686 = vrot.slane %v6684, 1
      %v6687 = vsel %vm5581, %v6682, %v6686
      %v6688 = vshrl.u32 %v6566, 16
      %v6690 = vor.u32 %v6688, %v6686
      %v6692 = vshll.u32 %v6567, 16
      %v6694 = vrot.slane %v6692, 1
      %v6695 = vsel %vm5581, %v6690, %v6694
      %v6696 = vshrl.u32 %v6567, 16
      %v6698 = vor.u32 %v6696, %v6694
      %v6700 = vshll.u32 %v6568, 16
      %v6702 = vrot.slane %v6700, 1
      %v6703 = vsel %vm5581, %v6698, %v6702
      %v6704 = vshrl.u32 %v6568, 16
      %v6706 = vor.u32 %v6704, %v6702
      %v6708 = vshll.u32 %v6569, 16
      %v6710 = vrot.slane %v6708, 1
      %v6711 = vsel %vm5581, %v6706, %v6710
      %v6712 = vshrl.u32 %v6569, 16
      %v6714 = vor.u32 %v6712, %v6710
      %v6716 = vshll.u32 %v6570, 16
      %v6718 = vrot.slane %v6716, 1
      %v6719 = vsel %vm5581, %v6714, %v6718
      %v6720 = vshrl.u32 %v6570, 16
      %v6722 = vor.u32 %v6720, %v6718
      %v6724 = vshll.u32 %v6571, 16
      %v6726 = vrot.slane %v6724, 1
      %v6727 = vsel %vm5581, %v6722, %v6726
      %v6728 = vshrl.u32 %v6571, 16
      %v6730 = vor.u32 %v6728, %v6726
      %v6732 = vshll.u32 %v6572, 16
      %v6734 = vrot.slane %v6732, 1
      %v6735 = vsel %vm5581, %v6730, %v6734
      %v6736 = vshrl.u32 %v6572, 16
      %v6738 = vor.u32 %v6736, %v6734
      %v6740 = vshll.u32 %v6573, 16
      %v6742 = vrot.slane %v6740, 1
      %v6743 = vsel %vm5581, %v6738, %v6742
      %v6744 = vshrl.u32 %v6573, 16
      %v6746 = vor.u32 %v6744, %v6742
      %v6748 = vshll.u32 %v6574, 16
      %v6750 = vrot.slane %v6748, 1
      %v6751 = vsel %vm5581, %v6746, %v6750
      %v6752 = vshrl.u32 %v6574, 16
      %v6754 = vor.u32 %v6752, %v6750
      %v6756 = vshll.u32 %v6575, 16
      %v6758 = vrot.slane %v6756, 1
      %v6759 = vsel %vm5581, %v6754, %v6758
      %v6760 = vshrl.u32 %v6575, 16
      %v6762 = vor.u32 %v6760, %v6758
      %v6764 = vshll.u32 %v6576, 16
      %v6766 = vrot.slane %v6764, 1
      %v6767 = vsel %vm5581, %v6762, %v6766
      %v6768 = vshrl.u32 %v6576, 16
      %v6770 = vor.u32 %v6768, %v6766
      %v6772 = vshll.u32 %v6577, 16
      %v6774 = vrot.slane %v6772, 1
      %v6775 = vsel %vm5581, %v6770, %v6774
      %v6776 = vshrl.u32 %v6577, 16
      %v6778 = vor.u32 %v6776, %v6774
      %v6780 = vshll.u32 %v6578, 16
      %v6782 = vrot.slane %v6780, 1
      %v6783 = vsel %vm5581, %v6778, %v6782
      %v6784 = vshrl.u32 %v6578, 16
      %v6786 = vor.u32 %v6784, %v6782
      %v6788 = vshll.u32 %v6579, 16
      %v6790 = vrot.slane %v6788, 1
      %v6791 = vsel %vm5581, %v6786, %v6790
      %v6792 = vshrl.u32 %v6579, 16
      %v6794 = vor.u32 %v6792, %v6790
      %v6796 = vshll.u32 %v6580, 16
      %v6798 = vrot.slane %v6796, 1
      %v6799 = vsel %vm5581, %v6794, %v6798
      %v6800 = vshrl.u32 %v6580, 16
      %v6802 = vor.u32 %v6800, %v6798
      %v6804 = vshll.u32 %v6581, 16
      %v6806 = vrot.slane %v6804, 1
      %v6807 = vsel %vm5581, %v6802, %v6806
      %v6808 = vshrl.u32 %v6581, 16
      %v6810 = vor.u32 %v6808, %v6806
      %v6812 = vshll.u32 %v6582, 16
      %v6814 = vrot.slane %v6812, 1
      %v6815 = vsel %vm5581, %v6810, %v6814
      %v6816 = vshrl.u32 %v6582, 16
      %v6818 = vor.u32 %v6816, %v6814
      %v6820 = vshll.u32 %v6583, 16
      %v6822 = vrot.slane %v6820, 1
      %v6823 = vsel %vm5581, %v6818, %v6822
      %v6824 = vshrl.u32 %v6583, 16
      %v6826 = vor.u32 %v6824, %v6822
      %v6828 = vshll.u32 %v6584, 16
      %v6830 = vrot.slane %v6828, 1
      %v6831 = vsel %vm5581, %v6826, %v6830
      %v6832 = vshrl.u32 %v6584, 16
      %v6834 = vor.u32 %v6832, %v6830
      %v6836 = vshll.u32 %v6585, 16
      %v6838 = vrot.slane %v6836, 1
      %v6839 = vsel %vm5581, %v6834, %v6838
      %v6840 = vshrl.u32 %v6585, 16
      %v6842 = vor.u32 %v6840, %v6838
      %v6844 = vshll.u32 %v6586, 16
      %v6846 = vrot.slane %v6844, 1
      %v6847 = vsel %vm5581, %v6842, %v6846
      %v6848 = vshrl.u32 %v6586, 16
      %v6850 = vor.u32 %v6848, %v6846
      %v6852 = vshll.u32 %v6587, 16
      %v6854 = vrot.slane %v6852, 1
      %v6855 = vsel %vm5581, %v6850, %v6854
      %v6856 = vshrl.u32 %v6587, 16
      %v6858 = vor.u32 %v6856, %v6854
      %v6860 = vshll.u32 %v6588, 16
      %v6862 = vrot.slane %v6860, 1
      %v6863 = vsel %vm5581, %v6858, %v6862
      %v6864 = vshrl.u32 %v6588, 16
      %v6866 = vor.u32 %v6864, %v6862
      %v6868 = vshll.u32 %v6589, 16
      %v6870 = vrot.slane %v6868, 1
      %v6871 = vsel %vm5581, %v6866, %v6870
      %v6872 = vshrl.u32 %v6589, 16
      %v6874 = vor.u32 %v6872, %v6870
      %v6876 = vshll.u32 %v6590, 16
      %v6878 = vrot.slane %v6876, 1
      %v6879 = vsel %vm5581, %v6874, %v6878
      %v6880 = vshrl.u32 %v6590, 16
      %v6882 = vor.u32 %v6880, %v6878
      %v6884 = vshll.u32 %v6591, 16
      %v6886 = vrot.slane %v6884, 1
      %v6887 = vsel %vm5581, %v6882, %v6886
      %v6888 = vshrl.u32 %v6591, 16
      %v6890 = vor.u32 %v6888, %v6886
      %v6892 = vshll.u32 %v6592, 16
      %v6894 = vrot.slane %v6892, 1
      %v6895 = vsel %vm5581, %v6890, %v6894
      %v6896 = vshrl.u32 %v6592, 16
      %v6898 = vor.u32 %v6896, %v6894
      %v6900 = vshll.u32 %v6593, 16
      %v6902 = vrot.slane %v6900, 1
      %v6903 = vsel %vm5581, %v6898, %v6902
      %v6904 = vshrl.u32 %v6593, 16
      %v6906 = vor.u32 %v6904, %v6902
      %v6908 = vshll.u32 %v6594, 16
      %v6910 = vrot.slane %v6908, 1
      %v6911 = vsel %vm5581, %v6906, %v6910
      %v6912 = vshrl.u32 %v6594, 16
      %v6914 = vor.u32 %v6912, %v6910
      %v6916 = vshll.u32 %v6595, 16
      %v6918 = vrot.slane %v6916, 1
      %v6919 = vsel %vm5581, %v6914, %v6918
      %v6920 = vshrl.u32 %v6595, 16
      %v6922 = vor.u32 %v6920, %v6918
      %v6980 = vunpack.c.l.b16 %v6375
      %v6981 = vunpack.c.l.b16 %v6376
      %v6982 = vunpack.c.l.b16 %v6377
      %v6983 = vunpack.c.l.b16 %v6378
      %v6984 = vunpack.c.l.b16 %v6379
      %v6985 = vunpack.c.l.b16 %v6380
      %v6986 = vunpack.c.l.b16 %v6381
      %v6987 = vunpack.c.l.b16 %v6382
      %v6988 = vunpack.c.l.b16 %v6383
      %v6989 = vunpack.c.l.b16 %v6384
      %v6990 = vunpack.c.l.b16 %v6385
      %v6991 = vunpack.c.l.b16 %v6386
      %v6992 = vunpack.c.l.b16 %v6387
      %v6993 = vunpack.c.l.b16 %v6388
      %v6994 = vunpack.c.l.b16 %v6389
      %v6995 = vunpack.c.l.b16 %v6390
      %v6996 = vpack.c.b16 %v6981, %v6980
      %v6997 = vpack.c.b16 %v6983, %v6982
      %v6998 = vpack.c.b16 %v6985, %v6984
      %v6999 = vpack.c.b16 %v6987, %v6986
      %v7000 = vpack.c.b16 %v6989, %v6988
      %v7001 = vpack.c.b16 %v6991, %v6990
      %v7002 = vpack.c.b16 %v6993, %v6992
      %v7003 = vpack.c.b16 %v6995, %v6994
      %7012 = vmatpush.bf16.msra.mxu0 %v7003
      %7013 = vmatpush.bf16.msra.mxu0 %v7002
      %7014 = vmatpush.bf16.msra.mxu0 %v7001
      %7015 = vmatpush.bf16.msra.mxu0 %v7000
      %7016 = vmatpush.bf16.msra.mxu0 %v6999
      %7017 = vmatpush.bf16.msra.mxu0 %v6998
      %7018 = vmatpush.bf16.msra.mxu0 %v6997
      %7019 = vmatpush.bf16.msra.mxu0 %v6996
      %7020 = vmatmul.bf16.gmra.mxu0 %v6607
      %v7021 = vpop.f32.mrf.mxu0
      %v7022 = vadd.f32 0.0, %v7021
      %v7023 = vpop.f32.mrf.mxu0
      %v7024 = vadd.f32 0.0, %v7023
      %7025 = vmatmul.bf16.gmra.mxu0 %v6615
      %v7026 = vpop.f32.mrf.mxu0
      %v7027 = vadd.f32 0.0, %v7026
      %v7028 = vpop.f32.mrf.mxu0
      %v7029 = vadd.f32 0.0, %v7028
      %7030 = vmatmul.bf16.gmra.mxu0 %v6623
      %v7031 = vpop.f32.mrf.mxu0
      %v7032 = vadd.f32 0.0, %v7031
      %v7033 = vpop.f32.mrf.mxu0
      %v7034 = vadd.f32 0.0, %v7033
      %7035 = vmatmul.bf16.gmra.mxu0 %v6631
      %v7036 = vpop.f32.mrf.mxu0
      %v7037 = vadd.f32 0.0, %v7036
      %v7038 = vpop.f32.mrf.mxu0
      %v7039 = vadd.f32 0.0, %v7038
      %7040 = vmatmul.bf16.gmra.mxu0 %v6639
      %v7041 = vpop.f32.mrf.mxu0
      %v7042 = vadd.f32 0.0, %v7041
      %v7043 = vpop.f32.mrf.mxu0
      %v7044 = vadd.f32 0.0, %v7043
      %7045 = vmatmul.bf16.gmra.mxu0 %v6647
      %v7046 = vpop.f32.mrf.mxu0
      %v7047 = vadd.f32 0.0, %v7046
      %v7048 = vpop.f32.mrf.mxu0
      %v7049 = vadd.f32 0.0, %v7048
      %7050 = vmatmul.bf16.gmra.mxu0 %v6655
      %v7051 = vpop.f32.mrf.mxu0
      %v7052 = vadd.f32 0.0, %v7051
      %v7053 = vpop.f32.mrf.mxu0
      %v7054 = vadd.f32 0.0, %v7053
      %7055 = vmatmul.bf16.gmra.mxu0 %v6663
      %v7056 = vpop.f32.mrf.mxu0
      %v7057 = vadd.f32 0.0, %v7056
      %v7058 = vpop.f32.mrf.mxu0
      %v7059 = vadd.f32 0.0, %v7058
      %7060 = vmatmul.bf16.gmra.mxu0 %v6671
      %v7061 = vpop.f32.mrf.mxu0
      %v7062 = vadd.f32 0.0, %v7061
      %v7063 = vpop.f32.mrf.mxu0
      %v7064 = vadd.f32 0.0, %v7063
      %7065 = vmatmul.bf16.gmra.mxu0 %v6679
      %v7066 = vpop.f32.mrf.mxu0
      %v7067 = vadd.f32 0.0, %v7066
      %v7068 = vpop.f32.mrf.mxu0
      %v7069 = vadd.f32 0.0, %v7068
      %7070 = vmatmul.bf16.gmra.mxu0 %v6687
      %v7071 = vpop.f32.mrf.mxu0
      %v7072 = vadd.f32 0.0, %v7071
      %v7073 = vpop.f32.mrf.mxu0
      %v7074 = vadd.f32 0.0, %v7073
      %7075 = vmatmul.bf16.gmra.mxu0 %v6695
      %v7076 = vpop.f32.mrf.mxu0
      %v7077 = vadd.f32 0.0, %v7076
      %v7078 = vpop.f32.mrf.mxu0
      %v7079 = vadd.f32 0.0, %v7078
      %7080 = vmatmul.bf16.gmra.mxu0 %v6703
      %v7081 = vpop.f32.mrf.mxu0
      %v7082 = vadd.f32 0.0, %v7081
      %v7083 = vpop.f32.mrf.mxu0
      %v7084 = vadd.f32 0.0, %v7083
      %7085 = vmatmul.bf16.gmra.mxu0 %v6711
      %v7086 = vpop.f32.mrf.mxu0
      %v7087 = vadd.f32 0.0, %v7086
      %v7088 = vpop.f32.mrf.mxu0
      %v7089 = vadd.f32 0.0, %v7088
      %7090 = vmatmul.bf16.gmra.mxu0 %v6719
      %v7091 = vpop.f32.mrf.mxu0
      %v7092 = vadd.f32 0.0, %v7091
      %v7093 = vpop.f32.mrf.mxu0
      %v7094 = vadd.f32 0.0, %v7093
      %7095 = vmatmul.bf16.gmra.mxu0 %v6727
      %v7096 = vpop.f32.mrf.mxu0
      %v7097 = vadd.f32 0.0, %v7096
      %v7098 = vpop.f32.mrf.mxu0
      %v7099 = vadd.f32 0.0, %v7098
      %7100 = vmatmul.bf16.gmra.mxu0 %v6735
      %v7101 = vpop.f32.mrf.mxu0
      %v7102 = vadd.f32 0.0, %v7101
      %v7103 = vpop.f32.mrf.mxu0
      %v7104 = vadd.f32 0.0, %v7103
      %7105 = vmatmul.bf16.gmra.mxu0 %v6743
      %v7106 = vpop.f32.mrf.mxu0
      %v7107 = vadd.f32 0.0, %v7106
      %v7108 = vpop.f32.mrf.mxu0
      %v7109 = vadd.f32 0.0, %v7108
      %7110 = vmatmul.bf16.gmra.mxu0 %v6751
      %v7111 = vpop.f32.mrf.mxu0
      %v7112 = vadd.f32 0.0, %v7111
      %v7113 = vpop.f32.mrf.mxu0
      %v7114 = vadd.f32 0.0, %v7113
      %7115 = vmatmul.bf16.gmra.mxu0 %v6759
      %v7116 = vpop.f32.mrf.mxu0
      %v7117 = vadd.f32 0.0, %v7116
      %v7118 = vpop.f32.mrf.mxu0
      %v7119 = vadd.f32 0.0, %v7118
      %7120 = vmatmul.bf16.gmra.mxu0 %v6767
      %v7121 = vpop.f32.mrf.mxu0
      %v7122 = vadd.f32 0.0, %v7121
      %v7123 = vpop.f32.mrf.mxu0
      %v7124 = vadd.f32 0.0, %v7123
      %7125 = vmatmul.bf16.gmra.mxu0 %v6775
      %v7126 = vpop.f32.mrf.mxu0
      %v7127 = vadd.f32 0.0, %v7126
      %v7128 = vpop.f32.mrf.mxu0
      %v7129 = vadd.f32 0.0, %v7128
      %7130 = vmatmul.bf16.gmra.mxu0 %v6783
      %v7131 = vpop.f32.mrf.mxu0
      %v7132 = vadd.f32 0.0, %v7131
      %v7133 = vpop.f32.mrf.mxu0
      %v7134 = vadd.f32 0.0, %v7133
      %7135 = vmatmul.bf16.gmra.mxu0 %v6791
      %v7136 = vpop.f32.mrf.mxu0
      %v7137 = vadd.f32 0.0, %v7136
      %v7138 = vpop.f32.mrf.mxu0
      %v7139 = vadd.f32 0.0, %v7138
      %7140 = vmatmul.bf16.gmra.mxu0 %v6799
      %v7141 = vpop.f32.mrf.mxu0
      %v7142 = vadd.f32 0.0, %v7141
      %v7143 = vpop.f32.mrf.mxu0
      %v7144 = vadd.f32 0.0, %v7143
      %7145 = vmatmul.bf16.gmra.mxu0 %v6807
      %v7146 = vpop.f32.mrf.mxu0
      %v7147 = vadd.f32 0.0, %v7146
      %v7148 = vpop.f32.mrf.mxu0
      %v7149 = vadd.f32 0.0, %v7148
      %7150 = vmatmul.bf16.gmra.mxu0 %v6815
      %v7151 = vpop.f32.mrf.mxu0
      %v7152 = vadd.f32 0.0, %v7151
      %v7153 = vpop.f32.mrf.mxu0
      %v7154 = vadd.f32 0.0, %v7153
      %7155 = vmatmul.bf16.gmra.mxu0 %v6823
      %v7156 = vpop.f32.mrf.mxu0
      %v7157 = vadd.f32 0.0, %v7156
      %v7158 = vpop.f32.mrf.mxu0
      %v7159 = vadd.f32 0.0, %v7158
      %7160 = vmatmul.bf16.gmra.mxu0 %v6831
      %v7161 = vpop.f32.mrf.mxu0
      %v7162 = vadd.f32 0.0, %v7161
      %v7163 = vpop.f32.mrf.mxu0
      %v7164 = vadd.f32 0.0, %v7163
      %7165 = vmatmul.bf16.gmra.mxu0 %v6839
      %v7166 = vpop.f32.mrf.mxu0
      %v7167 = vadd.f32 0.0, %v7166
      %v7168 = vpop.f32.mrf.mxu0
      %v7169 = vadd.f32 0.0, %v7168
      %7170 = vmatmul.bf16.gmra.mxu0 %v6847
      %v7171 = vpop.f32.mrf.mxu0
      %v7172 = vadd.f32 0.0, %v7171
      %v7173 = vpop.f32.mrf.mxu0
      %v7174 = vadd.f32 0.0, %v7173
      %7175 = vmatmul.bf16.gmra.mxu0 %v6855
      %v7176 = vpop.f32.mrf.mxu0
      %v7177 = vadd.f32 0.0, %v7176
      %v7178 = vpop.f32.mrf.mxu0
      %v7179 = vadd.f32 0.0, %v7178
      %7180 = vmatmul.bf16.gmra.mxu0 %v6863
      %v7181 = vpop.f32.mrf.mxu0
      %v7182 = vadd.f32 0.0, %v7181
      %v7183 = vpop.f32.mrf.mxu0
      %v7184 = vadd.f32 0.0, %v7183
      %7185 = vmatmul.bf16.gmra.mxu0 %v6871
      %v7186 = vpop.f32.mrf.mxu0
      %v7187 = vadd.f32 0.0, %v7186
      %v7188 = vpop.f32.mrf.mxu0
      %v7189 = vadd.f32 0.0, %v7188
      %7190 = vmatmul.bf16.gmra.mxu0 %v6879
      %v7191 = vpop.f32.mrf.mxu0
      %v7192 = vadd.f32 0.0, %v7191
      %v7193 = vpop.f32.mrf.mxu0
      %v7194 = vadd.f32 0.0, %v7193
      %7195 = vmatmul.bf16.gmra.mxu0 %v6887
      %v7196 = vpop.f32.mrf.mxu0
      %v7197 = vadd.f32 0.0, %v7196
      %v7198 = vpop.f32.mrf.mxu0
      %v7199 = vadd.f32 0.0, %v7198
      %7200 = vmatmul.bf16.gmra.mxu0 %v6895
      %v7201 = vpop.f32.mrf.mxu0
      %v7202 = vadd.f32 0.0, %v7201
      %v7203 = vpop.f32.mrf.mxu0
      %v7204 = vadd.f32 0.0, %v7203
      %7205 = vmatmul.bf16.gmra.mxu0 %v6903
      %v7206 = vpop.f32.mrf.mxu0
      %v7207 = vadd.f32 0.0, %v7206
      %v7208 = vpop.f32.mrf.mxu0
      %v7209 = vadd.f32 0.0, %v7208
      %7210 = vmatmul.bf16.gmra.mxu0 %v6911
      %v7211 = vpop.f32.mrf.mxu0
      %v7212 = vadd.f32 0.0, %v7211
      %v7213 = vpop.f32.mrf.mxu0
      %v7214 = vadd.f32 0.0, %v7213
      %7215 = vmatmul.bf16.gmra.mxu0 %v6919
      %v7216 = vpop.f32.mrf.mxu0
      %v7217 = vadd.f32 0.0, %v7216
      %v7218 = vpop.f32.mrf.mxu0
      %v7219 = vadd.f32 0.0, %v7218
      %7220 = vmatmul.bf16.gmra.mxu0 %v6922
      %v7221 = vpop.f32.mrf.mxu0
      %v7222 = vadd.f32 0.0, %v7221
      %v7223 = vpop.f32.mrf.mxu0
      %7224 = vdwg.mxu0
      %v7225 = vadd.f32 %v6211, %v7022
      %v7226 = vadd.f32 %v6212, %v7024
      %v7227 = vadd.f32 %v6213, %v7027
      %v7228 = vadd.f32 %v6214, %v7029
      %v7229 = vadd.f32 %v6215, %v7032
      %v7230 = vadd.f32 %v6216, %v7034
      %v7231 = vadd.f32 %v6217, %v7037
      %v7232 = vadd.f32 %v6218, %v7039
      %v7233 = vadd.f32 %v6219, %v7042
      %v7234 = vadd.f32 %v6220, %v7044
      %v7235 = vadd.f32 %v6221, %v7047
      %v7236 = vadd.f32 %v6222, %v7049
      %v7237 = vadd.f32 %v6223, %v7052
      %v7238 = vadd.f32 %v6224, %v7054
      %v7239 = vadd.f32 %v6225, %v7057
      %v7240 = vadd.f32 %v6226, %v7059
      %v7241 = vadd.f32 %v6227, %v7062
      %v7242 = vadd.f32 %v6228, %v7064
      %v7243 = vadd.f32 %v6229, %v7067
      %v7244 = vadd.f32 %v6230, %v7069
      %v7245 = vadd.f32 %v6231, %v7072
      %v7246 = vadd.f32 %v6232, %v7074
      %v7247 = vadd.f32 %v6233, %v7077
      %v7248 = vadd.f32 %v6234, %v7079
      %v7249 = vadd.f32 %v6235, %v7082
      %v7250 = vadd.f32 %v6236, %v7084
      %v7251 = vadd.f32 %v6237, %v7087
      %v7252 = vadd.f32 %v6238, %v7089
      %v7253 = vadd.f32 %v6239, %v7092
      %v7254 = vadd.f32 %v6240, %v7094
      %v7255 = vadd.f32 %v6241, %v7097
      %v7256 = vadd.f32 %v6242, %v7099
      %v7257 = vadd.f32 %v6243, %v7102
      %v7258 = vadd.f32 %v6244, %v7104
      %v7259 = vadd.f32 %v6245, %v7107
      %v7260 = vadd.f32 %v6246, %v7109
      %v7261 = vadd.f32 %v6247, %v7112
      %v7262 = vadd.f32 %v6248, %v7114
      %v7263 = vadd.f32 %v6249, %v7117
      %v7264 = vadd.f32 %v6250, %v7119
      %v7265 = vadd.f32 %v6251, %v7122
      %v7266 = vadd.f32 %v6252, %v7124
      %v7267 = vadd.f32 %v6253, %v7127
      %v7268 = vadd.f32 %v6254, %v7129
      %v7269 = vadd.f32 %v6255, %v7132
      %v7270 = vadd.f32 %v6256, %v7134
      %v7271 = vadd.f32 %v6257, %v7137
      %v7272 = vadd.f32 %v6258, %v7139
      %v7273 = vadd.f32 %v6259, %v7142
      %v7274 = vadd.f32 %v6260, %v7144
      %v7275 = vadd.f32 %v6261, %v7147
      %v7276 = vadd.f32 %v6262, %v7149
      %v7277 = vadd.f32 %v6263, %v7152
      %v7278 = vadd.f32 %v6264, %v7154
      %v7279 = vadd.f32 %v6265, %v7157
      %v7280 = vadd.f32 %v6266, %v7159
      %v7281 = vadd.f32 %v6267, %v7162
      %v7282 = vadd.f32 %v6268, %v7164
      %v7283 = vadd.f32 %v6269, %v7167
      %v7284 = vadd.f32 %v6270, %v7169
      %v7285 = vadd.f32 %v6271, %v7172
      %v7286 = vadd.f32 %v6272, %v7174
      %v7287 = vadd.f32 %v6273, %v7177
      %v7288 = vadd.f32 %v6274, %v7179
      %v7289 = vadd.f32 %v6275, %v7182
      %v7290 = vadd.f32 %v6276, %v7184
      %v7291 = vadd.f32 %v6277, %v7187
      %v7292 = vadd.f32 %v6278, %v7189
      %v7293 = vadd.f32 %v6279, %v7192
      %v7294 = vadd.f32 %v6280, %v7194
      %v7295 = vadd.f32 %v6281, %v7197
      %v7296 = vadd.f32 %v6282, %v7199
      %v7297 = vadd.f32 %v6283, %v7202
      %v7298 = vadd.f32 %v6284, %v7204
      %v7299 = vadd.f32 %v6285, %v7207
      %v7300 = vadd.f32 %v6286, %v7209
      %v7301 = vadd.f32 %v6287, %v7212
      %v7302 = vadd.f32 %v6288, %v7214
      %v7303 = vadd.f32 %v6289, %v7217
      %v7304 = vadd.f32 %v6290, %v7219
      %v7305 = vadd.f32 %v6291, %v7222
      %v7306 = vld [vmem:[#allocation2 + $0x18] sm:$0xe]
      %s7307 = scalar_lea.vmem %s5, 448
      %v7308 = vld [vmem:[%s7307] sm:$0xf]
      %v7309 = vld [vmem:[%s7307 + $0x4] sm:$0xf]
      %v7310 = vld [vmem:[%s7307 + $0x8] sm:$0xf]
      %v7311 = vld [vmem:[%s7307 + $0xc] sm:$0xf]
      %v7312 = vld [vmem:[%s7307 + $0x10] sm:$0xf]
      %v7313 = vld [vmem:[%s7307 + $0x14] sm:$0xf]
      %v7314 = vld [vmem:[%s7307 + $0x18] sm:$0xf]
      %v7315 = vld [vmem:[%s7307 + $0x1c] sm:$0xf]
      %v7316 = vld [vmem:[%s7307 + $0x20] sm:$0xf]
      %v7317 = vld [vmem:[%s7307 + $0x24] sm:$0xf]
      %v7318 = vld [vmem:[%s7307 + $0x28] sm:$0xf]
      %v7319 = vld [vmem:[%s7307 + $0x2c] sm:$0xf]
      %v7320 = vld [vmem:[%s7307 + $0x30] sm:$0xf]
      %v7321 = vld [vmem:[%s7307 + $0x34] sm:$0xf]
      %v7322 = vld [vmem:[%s7307 + $0x38] sm:$0xf]
      %v7323 = vld [vmem:[%s7307 + $0x3c] sm:$0xf]
      %v7325 = vunpack.c.l.b16 %v7306
      %v7326 = vpack.c.b16 %v6474, %v7325
      %vm7327 = vcmask 1046528
      %v7328 = vrot.slane %v7326, 1
      %v7329 = vrot.slane %v6556, 1
      %v7330 = vsel %vm7327, %v7328, %v7329
      %v7331 = vrot.slane %v6557, 1
      %v7332 = vsel %vm7327, %v7329, %v7331
      %v7333 = vrot.slane %v6558, 1
      %v7334 = vsel %vm7327, %v7331, %v7333
      %v7335 = vrot.slane %v6559, 1
      %v7336 = vsel %vm7327, %v7333, %v7335
      %v7337 = vrot.slane %v6560, 1
      %v7338 = vsel %vm7327, %v7335, %v7337
      %v7339 = vrot.slane %v6561, 1
      %v7340 = vsel %vm7327, %v7337, %v7339
      %v7341 = vrot.slane %v6562, 1
      %v7342 = vsel %vm7327, %v7339, %v7341
      %v7343 = vrot.slane %v6563, 1
      %v7344 = vsel %vm7327, %v7341, %v7343
      %v7345 = vrot.slane %v6564, 1
      %v7346 = vsel %vm7327, %v7343, %v7345
      %v7347 = vrot.slane %v6565, 1
      %v7348 = vsel %vm7327, %v7345, %v7347
      %v7349 = vrot.slane %v6566, 1
      %v7350 = vsel %vm7327, %v7347, %v7349
      %v7351 = vrot.slane %v6567, 1
      %v7352 = vsel %vm7327, %v7349, %v7351
      %v7353 = vrot.slane %v6568, 1
      %v7354 = vsel %vm7327, %v7351, %v7353
      %v7355 = vrot.slane %v6569, 1
      %v7356 = vsel %vm7327, %v7353, %v7355
      %v7357 = vrot.slane %v6570, 1
      %v7358 = vsel %vm7327, %v7355, %v7357
      %v7359 = vrot.slane %v6571, 1
      %v7360 = vsel %vm7327, %v7357, %v7359
      %v7361 = vrot.slane %v6572, 1
      %v7362 = vsel %vm7327, %v7359, %v7361
      %v7363 = vrot.slane %v6573, 1
      %v7364 = vsel %vm7327, %v7361, %v7363
      %v7365 = vrot.slane %v6574, 1
      %v7366 = vsel %vm7327, %v7363, %v7365
      %v7367 = vrot.slane %v6575, 1
      %v7368 = vsel %vm7327, %v7365, %v7367
      %v7369 = vrot.slane %v6576, 1
      %v7370 = vsel %vm7327, %v7367, %v7369
      %v7371 = vrot.slane %v6577, 1
      %v7372 = vsel %vm7327, %v7369, %v7371
      %v7373 = vrot.slane %v6578, 1
      %v7374 = vsel %vm7327, %v7371, %v7373
      %v7375 = vrot.slane %v6579, 1
      %v7376 = vsel %vm7327, %v7373, %v7375
      %v7377 = vrot.slane %v6580, 1
      %v7378 = vsel %vm7327, %v7375, %v7377
      %v7379 = vrot.slane %v6581, 1
      %v7380 = vsel %vm7327, %v7377, %v7379
      %v7381 = vrot.slane %v6582, 1
      %v7382 = vsel %vm7327, %v7379, %v7381
      %v7383 = vrot.slane %v6583, 1
      %v7384 = vsel %vm7327, %v7381, %v7383
      %v7385 = vrot.slane %v6584, 1
      %v7386 = vsel %vm7327, %v7383, %v7385
      %v7387 = vrot.slane %v6585, 1
      %v7388 = vsel %vm7327, %v7385, %v7387
      %v7389 = vrot.slane %v6586, 1
      %v7390 = vsel %vm7327, %v7387, %v7389
      %v7391 = vrot.slane %v6587, 1
      %v7392 = vsel %vm7327, %v7389, %v7391
      %v7393 = vrot.slane %v6588, 1
      %v7394 = vsel %vm7327, %v7391, %v7393
      %v7395 = vrot.slane %v6589, 1
      %v7396 = vsel %vm7327, %v7393, %v7395
      %v7397 = vrot.slane %v6590, 1
      %v7398 = vsel %vm7327, %v7395, %v7397
      %v7399 = vrot.slane %v6591, 1
      %v7400 = vsel %vm7327, %v7397, %v7399
      %v7401 = vrot.slane %v6592, 1
      %v7402 = vsel %vm7327, %v7399, %v7401
      %v7403 = vrot.slane %v6593, 1
      %v7404 = vsel %vm7327, %v7401, %v7403
      %v7405 = vrot.slane %v6594, 1
      %v7406 = vsel %vm7327, %v7403, %v7405
      %v7407 = vrot.slane %v6595, 1
      %v7408 = vsel %vm7327, %v7405, %v7407
      %v7466 = vunpack.c.l.b16 %v7308
      %v7467 = vunpack.c.l.b16 %v7309
      %v7468 = vunpack.c.l.b16 %v7310
      %v7469 = vunpack.c.l.b16 %v7311
      %v7470 = vunpack.c.l.b16 %v7312
      %v7471 = vunpack.c.l.b16 %v7313
      %v7472 = vunpack.c.l.b16 %v7314
      %v7473 = vunpack.c.l.b16 %v7315
      %v7474 = vunpack.c.l.b16 %v7316
      %v7475 = vunpack.c.l.b16 %v7317
      %v7476 = vunpack.c.l.b16 %v7318
      %v7477 = vunpack.c.l.b16 %v7319
      %v7478 = vunpack.c.l.b16 %v7320
      %v7479 = vunpack.c.l.b16 %v7321
      %v7480 = vunpack.c.l.b16 %v7322
      %v7481 = vunpack.c.l.b16 %v7323
      %v7482 = vpack.c.b16 %v7467, %v7466
      %v7483 = vpack.c.b16 %v7469, %v7468
      %v7484 = vpack.c.b16 %v7471, %v7470
      %v7485 = vpack.c.b16 %v7473, %v7472
      %v7486 = vpack.c.b16 %v7475, %v7474
      %v7487 = vpack.c.b16 %v7477, %v7476
      %v7488 = vpack.c.b16 %v7479, %v7478
      %v7489 = vpack.c.b16 %v7481, %v7480
      %7498 = vmatpush.bf16.msra.mxu0 %v7489
      %7499 = vmatpush.bf16.msra.mxu0 %v7488
      %7500 = vmatpush.bf16.msra.mxu0 %v7487
      %7501 = vmatpush.bf16.msra.mxu0 %v7486
      %7502 = vmatpush.bf16.msra.mxu0 %v7485
      %7503 = vmatpush.bf16.msra.mxu0 %v7484
      %7504 = vmatpush.bf16.msra.mxu0 %v7483
      %7505 = vmatpush.bf16.msra.mxu0 %v7482
      %7506 = vmatmul.bf16.gmra.mxu0 %v7330
      %v7507 = vpop.f32.mrf.mxu0
      %v7508 = vadd.f32 0.0, %v7507
      %v7509 = vpop.f32.mrf.mxu0
      %v7510 = vadd.f32 0.0, %v7509
      %7511 = vmatmul.bf16.gmra.mxu0 %v7332
      %v7512 = vpop.f32.mrf.mxu0
      %v7513 = vadd.f32 0.0, %v7512
      %v7514 = vpop.f32.mrf.mxu0
      %v7515 = vadd.f32 0.0, %v7514
      %7516 = vmatmul.bf16.gmra.mxu0 %v7334
      %v7517 = vpop.f32.mrf.mxu0
      %v7518 = vadd.f32 0.0, %v7517
      %v7519 = vpop.f32.mrf.mxu0
      %v7520 = vadd.f32 0.0, %v7519
      %7521 = vmatmul.bf16.gmra.mxu0 %v7336
      %v7522 = vpop.f32.mrf.mxu0
      %v7523 = vadd.f32 0.0, %v7522
      %v7524 = vpop.f32.mrf.mxu0
      %v7525 = vadd.f32 0.0, %v7524
      %7526 = vmatmul.bf16.gmra.mxu0 %v7338
      %v7527 = vpop.f32.mrf.mxu0
      %v7528 = vadd.f32 0.0, %v7527
      %v7529 = vpop.f32.mrf.mxu0
      %v7530 = vadd.f32 0.0, %v7529
      %7531 = vmatmul.bf16.gmra.mxu0 %v7340
      %v7532 = vpop.f32.mrf.mxu0
      %v7533 = vadd.f32 0.0, %v7532
      %v7534 = vpop.f32.mrf.mxu0
      %v7535 = vadd.f32 0.0, %v7534
      %7536 = vmatmul.bf16.gmra.mxu0 %v7342
      %v7537 = vpop.f32.mrf.mxu0
      %v7538 = vadd.f32 0.0, %v7537
      %v7539 = vpop.f32.mrf.mxu0
      %v7540 = vadd.f32 0.0, %v7539
      %7541 = vmatmul.bf16.gmra.mxu0 %v7344
      %v7542 = vpop.f32.mrf.mxu0
      %v7543 = vadd.f32 0.0, %v7542
      %v7544 = vpop.f32.mrf.mxu0
      %v7545 = vadd.f32 0.0, %v7544
      %7546 = vmatmul.bf16.gmra.mxu0 %v7346
      %v7547 = vpop.f32.mrf.mxu0
      %v7548 = vadd.f32 0.0, %v7547
      %v7549 = vpop.f32.mrf.mxu0
      %v7550 = vadd.f32 0.0, %v7549
      %7551 = vmatmul.bf16.gmra.mxu0 %v7348
      %v7552 = vpop.f32.mrf.mxu0
      %v7553 = vadd.f32 0.0, %v7552
      %v7554 = vpop.f32.mrf.mxu0
      %v7555 = vadd.f32 0.0, %v7554
      %7556 = vmatmul.bf16.gmra.mxu0 %v7350
      %v7557 = vpop.f32.mrf.mxu0
      %v7558 = vadd.f32 0.0, %v7557
      %v7559 = vpop.f32.mrf.mxu0
      %v7560 = vadd.f32 0.0, %v7559
      %7561 = vmatmul.bf16.gmra.mxu0 %v7352
      %v7562 = vpop.f32.mrf.mxu0
      %v7563 = vadd.f32 0.0, %v7562
      %v7564 = vpop.f32.mrf.mxu0
      %v7565 = vadd.f32 0.0, %v7564
      %7566 = vmatmul.bf16.gmra.mxu0 %v7354
      %v7567 = vpop.f32.mrf.mxu0
      %v7568 = vadd.f32 0.0, %v7567
      %v7569 = vpop.f32.mrf.mxu0
      %v7570 = vadd.f32 0.0, %v7569
      %7571 = vmatmul.bf16.gmra.mxu0 %v7356
      %v7572 = vpop.f32.mrf.mxu0
      %v7573 = vadd.f32 0.0, %v7572
      %v7574 = vpop.f32.mrf.mxu0
      %v7575 = vadd.f32 0.0, %v7574
      %7576 = vmatmul.bf16.gmra.mxu0 %v7358
      %v7577 = vpop.f32.mrf.mxu0
      %v7578 = vadd.f32 0.0, %v7577
      %v7579 = vpop.f32.mrf.mxu0
      %v7580 = vadd.f32 0.0, %v7579
      %7581 = vmatmul.bf16.gmra.mxu0 %v7360
      %v7582 = vpop.f32.mrf.mxu0
      %v7583 = vadd.f32 0.0, %v7582
      %v7584 = vpop.f32.mrf.mxu0
      %v7585 = vadd.f32 0.0, %v7584
      %7586 = vmatmul.bf16.gmra.mxu0 %v7362
      %v7587 = vpop.f32.mrf.mxu0
      %v7588 = vadd.f32 0.0, %v7587
      %v7589 = vpop.f32.mrf.mxu0
      %v7590 = vadd.f32 0.0, %v7589
      %7591 = vmatmul.bf16.gmra.mxu0 %v7364
      %v7592 = vpop.f32.mrf.mxu0
      %v7593 = vadd.f32 0.0, %v7592
      %v7594 = vpop.f32.mrf.mxu0
      %v7595 = vadd.f32 0.0, %v7594
      %7596 = vmatmul.bf16.gmra.mxu0 %v7366
      %v7597 = vpop.f32.mrf.mxu0
      %v7598 = vadd.f32 0.0, %v7597
      %v7599 = vpop.f32.mrf.mxu0
      %v7600 = vadd.f32 0.0, %v7599
      %7601 = vmatmul.bf16.gmra.mxu0 %v7368
      %v7602 = vpop.f32.mrf.mxu0
      %v7603 = vadd.f32 0.0, %v7602
      %v7604 = vpop.f32.mrf.mxu0
      %v7605 = vadd.f32 0.0, %v7604
      %7606 = vmatmul.bf16.gmra.mxu0 %v7370
      %v7607 = vpop.f32.mrf.mxu0
      %v7608 = vadd.f32 0.0, %v7607
      %v7609 = vpop.f32.mrf.mxu0
      %v7610 = vadd.f32 0.0, %v7609
      %7611 = vmatmul.bf16.gmra.mxu0 %v7372
      %v7612 = vpop.f32.mrf.mxu0
      %v7613 = vadd.f32 0.0, %v7612
      %v7614 = vpop.f32.mrf.mxu0
      %v7615 = vadd.f32 0.0, %v7614
      %7616 = vmatmul.bf16.gmra.mxu0 %v7374
      %v7617 = vpop.f32.mrf.mxu0
      %v7618 = vadd.f32 0.0, %v7617
      %v7619 = vpop.f32.mrf.mxu0
      %v7620 = vadd.f32 0.0, %v7619
      %7621 = vmatmul.bf16.gmra.mxu0 %v7376
      %v7622 = vpop.f32.mrf.mxu0
      %v7623 = vadd.f32 0.0, %v7622
      %v7624 = vpop.f32.mrf.mxu0
      %v7625 = vadd.f32 0.0, %v7624
      %7626 = vmatmul.bf16.gmra.mxu0 %v7378
      %v7627 = vpop.f32.mrf.mxu0
      %v7628 = vadd.f32 0.0, %v7627
      %v7629 = vpop.f32.mrf.mxu0
      %v7630 = vadd.f32 0.0, %v7629
      %7631 = vmatmul.bf16.gmra.mxu0 %v7380
      %v7632 = vpop.f32.mrf.mxu0
      %v7633 = vadd.f32 0.0, %v7632
      %v7634 = vpop.f32.mrf.mxu0
      %v7635 = vadd.f32 0.0, %v7634
      %7636 = vmatmul.bf16.gmra.mxu0 %v7382
      %v7637 = vpop.f32.mrf.mxu0
      %v7638 = vadd.f32 0.0, %v7637
      %v7639 = vpop.f32.mrf.mxu0
      %v7640 = vadd.f32 0.0, %v7639
      %7641 = vmatmul.bf16.gmra.mxu0 %v7384
      %v7642 = vpop.f32.mrf.mxu0
      %v7643 = vadd.f32 0.0, %v7642
      %v7644 = vpop.f32.mrf.mxu0
      %v7645 = vadd.f32 0.0, %v7644
      %7646 = vmatmul.bf16.gmra.mxu0 %v7386
      %v7647 = vpop.f32.mrf.mxu0
      %v7648 = vadd.f32 0.0, %v7647
      %v7649 = vpop.f32.mrf.mxu0
      %v7650 = vadd.f32 0.0, %v7649
      %7651 = vmatmul.bf16.gmra.mxu0 %v7388
      %v7652 = vpop.f32.mrf.mxu0
      %v7653 = vadd.f32 0.0, %v7652
      %v7654 = vpop.f32.mrf.mxu0
      %v7655 = vadd.f32 0.0, %v7654
      %7656 = vmatmul.bf16.gmra.mxu0 %v7390
      %v7657 = vpop.f32.mrf.mxu0
      %v7658 = vadd.f32 0.0, %v7657
      %v7659 = vpop.f32.mrf.mxu0
      %v7660 = vadd.f32 0.0, %v7659
      %7661 = vmatmul.bf16.gmra.mxu0 %v7392
      %v7662 = vpop.f32.mrf.mxu0
      %v7663 = vadd.f32 0.0, %v7662
      %v7664 = vpop.f32.mrf.mxu0
      %v7665 = vadd.f32 0.0, %v7664
      %7666 = vmatmul.bf16.gmra.mxu0 %v7394
      %v7667 = vpop.f32.mrf.mxu0
      %v7668 = vadd.f32 0.0, %v7667
      %v7669 = vpop.f32.mrf.mxu0
      %v7670 = vadd.f32 0.0, %v7669
      %7671 = vmatmul.bf16.gmra.mxu0 %v7396
      %v7672 = vpop.f32.mrf.mxu0
      %v7673 = vadd.f32 0.0, %v7672
      %v7674 = vpop.f32.mrf.mxu0
      %v7675 = vadd.f32 0.0, %v7674
      %7676 = vmatmul.bf16.gmra.mxu0 %v7398
      %v7677 = vpop.f32.mrf.mxu0
      %v7678 = vadd.f32 0.0, %v7677
      %v7679 = vpop.f32.mrf.mxu0
      %v7680 = vadd.f32 0.0, %v7679
      %7681 = vmatmul.bf16.gmra.mxu0 %v7400
      %v7682 = vpop.f32.mrf.mxu0
      %v7683 = vadd.f32 0.0, %v7682
      %v7684 = vpop.f32.mrf.mxu0
      %v7685 = vadd.f32 0.0, %v7684
      %7686 = vmatmul.bf16.gmra.mxu0 %v7402
      %v7687 = vpop.f32.mrf.mxu0
      %v7688 = vadd.f32 0.0, %v7687
      %v7689 = vpop.f32.mrf.mxu0
      %v7690 = vadd.f32 0.0, %v7689
      %7691 = vmatmul.bf16.gmra.mxu0 %v7404
      %v7692 = vpop.f32.mrf.mxu0
      %v7693 = vadd.f32 0.0, %v7692
      %v7694 = vpop.f32.mrf.mxu0
      %v7695 = vadd.f32 0.0, %v7694
      %7696 = vmatmul.bf16.gmra.mxu0 %v7406
      %v7697 = vpop.f32.mrf.mxu0
      %v7698 = vadd.f32 0.0, %v7697
      %v7699 = vpop.f32.mrf.mxu0
      %v7700 = vadd.f32 0.0, %v7699
      %7701 = vmatmul.bf16.gmra.mxu0 %v7408
      %v7702 = vpop.f32.mrf.mxu0
      %v7703 = vadd.f32 0.0, %v7702
      %v7704 = vpop.f32.mrf.mxu0
      %v7705 = vadd.f32 0.0, %v7704
      %7706 = vmatmul.bf16.gmra.mxu0 %v7407
      %v7707 = vpop.f32.mrf.mxu0
      %v7708 = vadd.f32 0.0, %v7707
      %v7709 = vpop.f32.mrf.mxu0
      %7710 = vdwg.mxu0
      %v7711 = vadd.f32 %v7225, %v7508
      %v7712 = vadd.f32 %v7226, %v7510
      %v7713 = vadd.f32 %v7227, %v7513
      %v7714 = vadd.f32 %v7228, %v7515
      %v7715 = vadd.f32 %v7229, %v7518
      %v7716 = vadd.f32 %v7230, %v7520
      %v7717 = vadd.f32 %v7231, %v7523
      %v7718 = vadd.f32 %v7232, %v7525
      %v7719 = vadd.f32 %v7233, %v7528
      %v7720 = vadd.f32 %v7234, %v7530
      %v7721 = vadd.f32 %v7235, %v7533
      %v7722 = vadd.f32 %v7236, %v7535
      %v7723 = vadd.f32 %v7237, %v7538
      %v7724 = vadd.f32 %v7238, %v7540
      %v7725 = vadd.f32 %v7239, %v7543
      %v7726 = vadd.f32 %v7240, %v7545
      %v7727 = vadd.f32 %v7241, %v7548
      %v7728 = vadd.f32 %v7242, %v7550
      %v7729 = vadd.f32 %v7243, %v7553
      %v7730 = vadd.f32 %v7244, %v7555
      %v7731 = vadd.f32 %v7245, %v7558
      %v7732 = vadd.f32 %v7246, %v7560
      %v7733 = vadd.f32 %v7247, %v7563
      %v7734 = vadd.f32 %v7248, %v7565
      %v7735 = vadd.f32 %v7249, %v7568
      %v7736 = vadd.f32 %v7250, %v7570
      %v7737 = vadd.f32 %v7251, %v7573
      %v7738 = vadd.f32 %v7252, %v7575
      %v7739 = vadd.f32 %v7253, %v7578
      %v7740 = vadd.f32 %v7254, %v7580
      %v7741 = vadd.f32 %v7255, %v7583
      %v7742 = vadd.f32 %v7256, %v7585
      %v7743 = vadd.f32 %v7257, %v7588
      %v7744 = vadd.f32 %v7258, %v7590
      %v7745 = vadd.f32 %v7259, %v7593
      %v7746 = vadd.f32 %v7260, %v7595
      %v7747 = vadd.f32 %v7261, %v7598
      %v7748 = vadd.f32 %v7262, %v7600
      %v7749 = vadd.f32 %v7263, %v7603
      %v7750 = vadd.f32 %v7264, %v7605
      %v7751 = vadd.f32 %v7265, %v7608
      %v7752 = vadd.f32 %v7266, %v7610
      %v7753 = vadd.f32 %v7267, %v7613
      %v7754 = vadd.f32 %v7268, %v7615
      %v7755 = vadd.f32 %v7269, %v7618
      %v7756 = vadd.f32 %v7270, %v7620
      %v7757 = vadd.f32 %v7271, %v7623
      %v7758 = vadd.f32 %v7272, %v7625
      %v7759 = vadd.f32 %v7273, %v7628
      %v7760 = vadd.f32 %v7274, %v7630
      %v7761 = vadd.f32 %v7275, %v7633
      %v7762 = vadd.f32 %v7276, %v7635
      %v7763 = vadd.f32 %v7277, %v7638
      %v7764 = vadd.f32 %v7278, %v7640
      %v7765 = vadd.f32 %v7279, %v7643
      %v7766 = vadd.f32 %v7280, %v7645
      %v7767 = vadd.f32 %v7281, %v7648
      %v7768 = vadd.f32 %v7282, %v7650
      %v7769 = vadd.f32 %v7283, %v7653
      %v7770 = vadd.f32 %v7284, %v7655
      %v7771 = vadd.f32 %v7285, %v7658
      %v7772 = vadd.f32 %v7286, %v7660
      %v7773 = vadd.f32 %v7287, %v7663
      %v7774 = vadd.f32 %v7288, %v7665
      %v7775 = vadd.f32 %v7289, %v7668
      %v7776 = vadd.f32 %v7290, %v7670
      %v7777 = vadd.f32 %v7291, %v7673
      %v7778 = vadd.f32 %v7292, %v7675
      %v7779 = vadd.f32 %v7293, %v7678
      %v7780 = vadd.f32 %v7294, %v7680
      %v7781 = vadd.f32 %v7295, %v7683
      %v7782 = vadd.f32 %v7296, %v7685
      %v7783 = vadd.f32 %v7297, %v7688
      %v7784 = vadd.f32 %v7298, %v7690
      %v7785 = vadd.f32 %v7299, %v7693
      %v7786 = vadd.f32 %v7300, %v7695
      %v7787 = vadd.f32 %v7301, %v7698
      %v7788 = vadd.f32 %v7302, %v7700
      %v7789 = vadd.f32 %v7303, %v7703
      %v7790 = vadd.f32 %v7304, %v7705
      %v7791 = vadd.f32 %v7305, %v7708
      %v7792 = vld [vmem:[#allocation2 + $0x15c] sm:$0x3]
      %s7793 = scalar_lea.vmem %s5, 512
      %v7794 = vld [vmem:[%s7793] sm:$0xf]
      %v7795 = vld [vmem:[%s7793 + $0x4] sm:$0xf]
      %v7796 = vld [vmem:[%s7793 + $0x8] sm:$0xf]
      %v7797 = vld [vmem:[%s7793 + $0xc] sm:$0xf]
      %v7798 = vld [vmem:[%s7793 + $0x10] sm:$0xf]
      %v7799 = vld [vmem:[%s7793 + $0x14] sm:$0xf]
      %v7800 = vld [vmem:[%s7793 + $0x18] sm:$0xf]
      %v7801 = vld [vmem:[%s7793 + $0x1c] sm:$0xf]
      %v7802 = vld [vmem:[%s7793 + $0x20] sm:$0xf]
      %v7803 = vld [vmem:[%s7793 + $0x24] sm:$0xf]
      %v7804 = vld [vmem:[%s7793 + $0x28] sm:$0xf]
      %v7805 = vld [vmem:[%s7793 + $0x2c] sm:$0xf]
      %v7806 = vld [vmem:[%s7793 + $0x30] sm:$0xf]
      %v7807 = vld [vmem:[%s7793 + $0x34] sm:$0xf]
      %v7808 = vld [vmem:[%s7793 + $0x38] sm:$0xf]
      %v7809 = vld [vmem:[%s7793 + $0x3c] sm:$0xf]
      %v7811 = vunpack.c.l.b16 %v7792
      %v7812 = vpack.c.b16 %v7811, %v6553
      %vm7813 = vsmask.f32 6400
      %v7815 = vshrl.u32 %v7326, 16
      %v7817 = vrot.slane %v7815, 1
      %v7818 = vshll.u32 %v7326, 16
      %v7820 = vrot.slane %v7818, 2
      %v7821 = vor.u32 %v7817, %v7820
      %v7822 = vrot.slane %v6608, 1
      %v7823 = vrot.slane %v6604, 2
      %v7824 = vor.u32 %v7822, %v7823
      %v7825 = vsel %vm7813, %v7821, %v7824
      %v7826 = vrot.slane %v6616, 1
      %v7827 = vrot.slane %v6612, 2
      %v7828 = vor.u32 %v7826, %v7827
      %v7829 = vsel %vm7813, %v7824, %v7828
      %v7830 = vrot.slane %v6624, 1
      %v7831 = vrot.slane %v6620, 2
      %v7832 = vor.u32 %v7830, %v7831
      %v7833 = vsel %vm7813, %v7828, %v7832
      %v7834 = vrot.slane %v6632, 1
      %v7835 = vrot.slane %v6628, 2
      %v7836 = vor.u32 %v7834, %v7835
      %v7837 = vsel %vm7813, %v7832, %v7836
      %v7838 = vrot.slane %v6640, 1
      %v7839 = vrot.slane %v6636, 2
      %v7840 = vor.u32 %v7838, %v7839
      %v7841 = vsel %vm7813, %v7836, %v7840
      %v7842 = vrot.slane %v6648, 1
      %v7843 = vrot.slane %v6644, 2
      %v7844 = vor.u32 %v7842, %v7843
      %v7845 = vsel %vm7813, %v7840, %v7844
      %v7846 = vrot.slane %v6656, 1
      %v7847 = vrot.slane %v6652, 2
      %v7848 = vor.u32 %v7846, %v7847
      %v7849 = vsel %vm7813, %v7844, %v7848
      %v7850 = vrot.slane %v6664, 1
      %v7851 = vrot.slane %v6660, 2
      %v7852 = vor.u32 %v7850, %v7851
      %v7853 = vsel %vm7813, %v7848, %v7852
      %v7854 = vrot.slane %v6672, 1
      %v7855 = vrot.slane %v6668, 2
      %v7856 = vor.u32 %v7854, %v7855
      %v7857 = vsel %vm7813, %v7852, %v7856
      %v7858 = vrot.slane %v6680, 1
      %v7859 = vrot.slane %v6676, 2
      %v7860 = vor.u32 %v7858, %v7859
      %v7861 = vsel %vm7813, %v7856, %v7860
      %v7862 = vrot.slane %v6688, 1
      %v7863 = vrot.slane %v6684, 2
      %v7864 = vor.u32 %v7862, %v7863
      %v7865 = vsel %vm7813, %v7860, %v7864
      %v7866 = vrot.slane %v6696, 1
      %v7867 = vrot.slane %v6692, 2
      %v7868 = vor.u32 %v7866, %v7867
      %v7869 = vsel %vm7813, %v7864, %v7868
      %v7870 = vrot.slane %v6704, 1
      %v7871 = vrot.slane %v6700, 2
      %v7872 = vor.u32 %v7870, %v7871
      %v7873 = vsel %vm7813, %v7868, %v7872
      %v7874 = vrot.slane %v6712, 1
      %v7875 = vrot.slane %v6708, 2
      %v7876 = vor.u32 %v7874, %v7875
      %v7877 = vsel %vm7813, %v7872, %v7876
      %v7878 = vrot.slane %v6720, 1
      %v7879 = vrot.slane %v6716, 2
      %v7880 = vor.u32 %v7878, %v7879
      %v7881 = vsel %vm7813, %v7876, %v7880
      %v7882 = vrot.slane %v6728, 1
      %v7883 = vrot.slane %v6724, 2
      %v7884 = vor.u32 %v7882, %v7883
      %v7885 = vsel %vm7813, %v7880, %v7884
      %v7886 = vrot.slane %v6736, 1
      %v7887 = vrot.slane %v6732, 2
      %v7888 = vor.u32 %v7886, %v7887
      %v7889 = vsel %vm7813, %v7884, %v7888
      %v7890 = vrot.slane %v6744, 1
      %v7891 = vrot.slane %v6740, 2
      %v7892 = vor.u32 %v7890, %v7891
      %v7893 = vsel %vm7813, %v7888, %v7892
      %v7894 = vrot.slane %v6752, 1
      %v7895 = vrot.slane %v6748, 2
      %v7896 = vor.u32 %v7894, %v7895
      %v7897 = vsel %vm7813, %v7892, %v7896
      %v7898 = vrot.slane %v6760, 1
      %v7899 = vrot.slane %v6756, 2
      %v7900 = vor.u32 %v7898, %v7899
      %v7901 = vsel %vm7813, %v7896, %v7900
      %v7902 = vrot.slane %v6768, 1
      %v7903 = vrot.slane %v6764, 2
      %v7904 = vor.u32 %v7902, %v7903
      %v7905 = vsel %vm7813, %v7900, %v7904
      %v7906 = vrot.slane %v6776, 1
      %v7907 = vrot.slane %v6772, 2
      %v7908 = vor.u32 %v7906, %v7907
      %v7909 = vsel %vm7813, %v7904, %v7908
      %v7910 = vrot.slane %v6784, 1
      %v7911 = vrot.slane %v6780, 2
      %v7912 = vor.u32 %v7910, %v7911
      %v7913 = vsel %vm7813, %v7908, %v7912
      %v7914 = vrot.slane %v6792, 1
      %v7915 = vrot.slane %v6788, 2
      %v7916 = vor.u32 %v7914, %v7915
      %v7917 = vsel %vm7813, %v7912, %v7916
      %v7918 = vrot.slane %v6800, 1
      %v7919 = vrot.slane %v6796, 2
      %v7920 = vor.u32 %v7918, %v7919
      %v7921 = vsel %vm7813, %v7916, %v7920
      %v7922 = vrot.slane %v6808, 1
      %v7923 = vrot.slane %v6804, 2
      %v7924 = vor.u32 %v7922, %v7923
      %v7925 = vsel %vm7813, %v7920, %v7924
      %v7926 = vrot.slane %v6816, 1
      %v7927 = vrot.slane %v6812, 2
      %v7928 = vor.u32 %v7926, %v7927
      %v7929 = vsel %vm7813, %v7924, %v7928
      %v7930 = vrot.slane %v6824, 1
      %v7931 = vrot.slane %v6820, 2
      %v7932 = vor.u32 %v7930, %v7931
      %v7933 = vsel %vm7813, %v7928, %v7932
      %v7934 = vrot.slane %v6832, 1
      %v7935 = vrot.slane %v6828, 2
      %v7936 = vor.u32 %v7934, %v7935
      %v7937 = vsel %vm7813, %v7932, %v7936
      %v7938 = vrot.slane %v6840, 1
      %v7939 = vrot.slane %v6836, 2
      %v7940 = vor.u32 %v7938, %v7939
      %v7941 = vsel %vm7813, %v7936, %v7940
      %v7942 = vrot.slane %v6848, 1
      %v7943 = vrot.slane %v6844, 2
      %v7944 = vor.u32 %v7942, %v7943
      %v7945 = vsel %vm7813, %v7940, %v7944
      %v7946 = vrot.slane %v6856, 1
      %v7947 = vrot.slane %v6852, 2
      %v7948 = vor.u32 %v7946, %v7947
      %v7949 = vsel %vm7813, %v7944, %v7948
      %v7950 = vrot.slane %v6864, 1
      %v7951 = vrot.slane %v6860, 2
      %v7952 = vor.u32 %v7950, %v7951
      %v7953 = vsel %vm7813, %v7948, %v7952
      %v7954 = vrot.slane %v6872, 1
      %v7955 = vrot.slane %v6868, 2
      %v7956 = vor.u32 %v7954, %v7955
      %v7957 = vsel %vm7813, %v7952, %v7956
      %v7958 = vrot.slane %v6880, 1
      %v7959 = vrot.slane %v6876, 2
      %v7960 = vor.u32 %v7958, %v7959
      %v7961 = vsel %vm7813, %v7956, %v7960
      %v7962 = vrot.slane %v6888, 1
      %v7963 = vrot.slane %v6884, 2
      %v7964 = vor.u32 %v7962, %v7963
      %v7965 = vsel %vm7813, %v7960, %v7964
      %v7966 = vrot.slane %v6896, 1
      %v7967 = vrot.slane %v6892, 2
      %v7968 = vor.u32 %v7966, %v7967
      %v7969 = vsel %vm7813, %v7964, %v7968
      %v7970 = vrot.slane %v6904, 1
      %v7971 = vrot.slane %v6900, 2
      %v7972 = vor.u32 %v7970, %v7971
      %v7973 = vsel %vm7813, %v7968, %v7972
      %v7974 = vrot.slane %v6912, 1
      %v7975 = vrot.slane %v6908, 2
      %v7976 = vor.u32 %v7974, %v7975
      %v7977 = vsel %vm7813, %v7972, %v7976
      %v7979 = vshrl.u32 %v7812, 16
      %v7981 = vrot.slane %v7979, 1
      %v7982 = vshll.u32 %v7812, 16
      %v7984 = vrot.slane %v7982, 2
      %v7985 = vor.u32 %v7981, %v7984
      %v7986 = vsel %vm7813, %v7976, %v7985
      %v8044 = vunpack.c.l.b16 %v7794
      %v8045 = vunpack.c.l.b16 %v7795
      %v8046 = vunpack.c.l.b16 %v7796
      %v8047 = vunpack.c.l.b16 %v7797
      %v8048 = vunpack.c.l.b16 %v7798
      %v8049 = vunpack.c.l.b16 %v7799
      %v8050 = vunpack.c.l.b16 %v7800
      %v8051 = vunpack.c.l.b16 %v7801
      %v8052 = vunpack.c.l.b16 %v7802
      %v8053 = vunpack.c.l.b16 %v7803
      %v8054 = vunpack.c.l.b16 %v7804
      %v8055 = vunpack.c.l.b16 %v7805
      %v8056 = vunpack.c.l.b16 %v7806
      %v8057 = vunpack.c.l.b16 %v7807
      %v8058 = vunpack.c.l.b16 %v7808
      %v8059 = vunpack.c.l.b16 %v7809
      %v8060 = vpack.c.b16 %v8045, %v8044
      %v8061 = vpack.c.b16 %v8047, %v8046
      %v8062 = vpack.c.b16 %v8049, %v8048
      %v8063 = vpack.c.b16 %v8051, %v8050
      %v8064 = vpack.c.b16 %v8053, %v8052
      %v8065 = vpack.c.b16 %v8055, %v8054
      %v8066 = vpack.c.b16 %v8057, %v8056
      %v8067 = vpack.c.b16 %v8059, %v8058
      %8076 = vmatpush.bf16.msra.mxu0 %v8067
      %8077 = vmatpush.bf16.msra.mxu0 %v8066
      %8078 = vmatpush.bf16.msra.mxu0 %v8065
      %8079 = vmatpush.bf16.msra.mxu0 %v8064
      %8080 = vmatpush.bf16.msra.mxu0 %v8063
      %8081 = vmatpush.bf16.msra.mxu0 %v8062
      %8082 = vmatpush.bf16.msra.mxu0 %v8061
      %8083 = vmatpush.bf16.msra.mxu0 %v8060
      %8084 = vmatmul.bf16.gmra.mxu0 %v7825
      %v8085 = vpop.f32.mrf.mxu0
      %v8086 = vadd.f32 0.0, %v8085
      %v8087 = vpop.f32.mrf.mxu0
      %v8088 = vadd.f32 0.0, %v8087
      %8089 = vmatmul.bf16.gmra.mxu0 %v7829
      %v8090 = vpop.f32.mrf.mxu0
      %v8091 = vadd.f32 0.0, %v8090
      %v8092 = vpop.f32.mrf.mxu0
      %v8093 = vadd.f32 0.0, %v8092
      %8094 = vmatmul.bf16.gmra.mxu0 %v7833
      %v8095 = vpop.f32.mrf.mxu0
      %v8096 = vadd.f32 0.0, %v8095
      %v8097 = vpop.f32.mrf.mxu0
      %v8098 = vadd.f32 0.0, %v8097
      %8099 = vmatmul.bf16.gmra.mxu0 %v7837
      %v8100 = vpop.f32.mrf.mxu0
      %v8101 = vadd.f32 0.0, %v8100
      %v8102 = vpop.f32.mrf.mxu0
      %v8103 = vadd.f32 0.0, %v8102
      %8104 = vmatmul.bf16.gmra.mxu0 %v7841
      %v8105 = vpop.f32.mrf.mxu0
      %v8106 = vadd.f32 0.0, %v8105
      %v8107 = vpop.f32.mrf.mxu0
      %v8108 = vadd.f32 0.0, %v8107
      %8109 = vmatmul.bf16.gmra.mxu0 %v7845
      %v8110 = vpop.f32.mrf.mxu0
      %v8111 = vadd.f32 0.0, %v8110
      %v8112 = vpop.f32.mrf.mxu0
      %v8113 = vadd.f32 0.0, %v8112
      %8114 = vmatmul.bf16.gmra.mxu0 %v7849
      %v8115 = vpop.f32.mrf.mxu0
      %v8116 = vadd.f32 0.0, %v8115
      %v8117 = vpop.f32.mrf.mxu0
      %v8118 = vadd.f32 0.0, %v8117
      %8119 = vmatmul.bf16.gmra.mxu0 %v7853
      %v8120 = vpop.f32.mrf.mxu0
      %v8121 = vadd.f32 0.0, %v8120
      %v8122 = vpop.f32.mrf.mxu0
      %v8123 = vadd.f32 0.0, %v8122
      %8124 = vmatmul.bf16.gmra.mxu0 %v7857
      %v8125 = vpop.f32.mrf.mxu0
      %v8126 = vadd.f32 0.0, %v8125
      %v8127 = vpop.f32.mrf.mxu0
      %v8128 = vadd.f32 0.0, %v8127
      %8129 = vmatmul.bf16.gmra.mxu0 %v7861
      %v8130 = vpop.f32.mrf.mxu0
      %v8131 = vadd.f32 0.0, %v8130
      %v8132 = vpop.f32.mrf.mxu0
      %v8133 = vadd.f32 0.0, %v8132
      %8134 = vmatmul.bf16.gmra.mxu0 %v7865
      %v8135 = vpop.f32.mrf.mxu0
      %v8136 = vadd.f32 0.0, %v8135
      %v8137 = vpop.f32.mrf.mxu0
      %v8138 = vadd.f32 0.0, %v8137
      %8139 = vmatmul.bf16.gmra.mxu0 %v7869
      %v8140 = vpop.f32.mrf.mxu0
      %v8141 = vadd.f32 0.0, %v8140
      %v8142 = vpop.f32.mrf.mxu0
      %v8143 = vadd.f32 0.0, %v8142
      %8144 = vmatmul.bf16.gmra.mxu0 %v7873
      %v8145 = vpop.f32.mrf.mxu0
      %v8146 = vadd.f32 0.0, %v8145
      %v8147 = vpop.f32.mrf.mxu0
      %v8148 = vadd.f32 0.0, %v8147
      %8149 = vmatmul.bf16.gmra.mxu0 %v7877
      %v8150 = vpop.f32.mrf.mxu0
      %v8151 = vadd.f32 0.0, %v8150
      %v8152 = vpop.f32.mrf.mxu0
      %v8153 = vadd.f32 0.0, %v8152
      %8154 = vmatmul.bf16.gmra.mxu0 %v7881
      %v8155 = vpop.f32.mrf.mxu0
      %v8156 = vadd.f32 0.0, %v8155
      %v8157 = vpop.f32.mrf.mxu0
      %v8158 = vadd.f32 0.0, %v8157
      %8159 = vmatmul.bf16.gmra.mxu0 %v7885
      %v8160 = vpop.f32.mrf.mxu0
      %v8161 = vadd.f32 0.0, %v8160
      %v8162 = vpop.f32.mrf.mxu0
      %v8163 = vadd.f32 0.0, %v8162
      %8164 = vmatmul.bf16.gmra.mxu0 %v7889
      %v8165 = vpop.f32.mrf.mxu0
      %v8166 = vadd.f32 0.0, %v8165
      %v8167 = vpop.f32.mrf.mxu0
      %v8168 = vadd.f32 0.0, %v8167
      %8169 = vmatmul.bf16.gmra.mxu0 %v7893
      %v8170 = vpop.f32.mrf.mxu0
      %v8171 = vadd.f32 0.0, %v8170
      %v8172 = vpop.f32.mrf.mxu0
      %v8173 = vadd.f32 0.0, %v8172
      %8174 = vmatmul.bf16.gmra.mxu0 %v7897
      %v8175 = vpop.f32.mrf.mxu0
      %v8176 = vadd.f32 0.0, %v8175
      %v8177 = vpop.f32.mrf.mxu0
      %v8178 = vadd.f32 0.0, %v8177
      %8179 = vmatmul.bf16.gmra.mxu0 %v7901
      %v8180 = vpop.f32.mrf.mxu0
      %v8181 = vadd.f32 0.0, %v8180
      %v8182 = vpop.f32.mrf.mxu0
      %v8183 = vadd.f32 0.0, %v8182
      %8184 = vmatmul.bf16.gmra.mxu0 %v7905
      %v8185 = vpop.f32.mrf.mxu0
      %v8186 = vadd.f32 0.0, %v8185
      %v8187 = vpop.f32.mrf.mxu0
      %v8188 = vadd.f32 0.0, %v8187
      %8189 = vmatmul.bf16.gmra.mxu0 %v7909
      %v8190 = vpop.f32.mrf.mxu0
      %v8191 = vadd.f32 0.0, %v8190
      %v8192 = vpop.f32.mrf.mxu0
      %v8193 = vadd.f32 0.0, %v8192
      %8194 = vmatmul.bf16.gmra.mxu0 %v7913
      %v8195 = vpop.f32.mrf.mxu0
      %v8196 = vadd.f32 0.0, %v8195
      %v8197 = vpop.f32.mrf.mxu0
      %v8198 = vadd.f32 0.0, %v8197
      %8199 = vmatmul.bf16.gmra.mxu0 %v7917
      %v8200 = vpop.f32.mrf.mxu0
      %v8201 = vadd.f32 0.0, %v8200
      %v8202 = vpop.f32.mrf.mxu0
      %v8203 = vadd.f32 0.0, %v8202
      %8204 = vmatmul.bf16.gmra.mxu0 %v7921
      %v8205 = vpop.f32.mrf.mxu0
      %v8206 = vadd.f32 0.0, %v8205
      %v8207 = vpop.f32.mrf.mxu0
      %v8208 = vadd.f32 0.0, %v8207
      %8209 = vmatmul.bf16.gmra.mxu0 %v7925
      %v8210 = vpop.f32.mrf.mxu0
      %v8211 = vadd.f32 0.0, %v8210
      %v8212 = vpop.f32.mrf.mxu0
      %v8213 = vadd.f32 0.0, %v8212
      %8214 = vmatmul.bf16.gmra.mxu0 %v7929
      %v8215 = vpop.f32.mrf.mxu0
      %v8216 = vadd.f32 0.0, %v8215
      %v8217 = vpop.f32.mrf.mxu0
      %v8218 = vadd.f32 0.0, %v8217
      %8219 = vmatmul.bf16.gmra.mxu0 %v7933
      %v8220 = vpop.f32.mrf.mxu0
      %v8221 = vadd.f32 0.0, %v8220
      %v8222 = vpop.f32.mrf.mxu0
      %v8223 = vadd.f32 0.0, %v8222
      %8224 = vmatmul.bf16.gmra.mxu0 %v7937
      %v8225 = vpop.f32.mrf.mxu0
      %v8226 = vadd.f32 0.0, %v8225
      %v8227 = vpop.f32.mrf.mxu0
      %v8228 = vadd.f32 0.0, %v8227
      %8229 = vmatmul.bf16.gmra.mxu0 %v7941
      %v8230 = vpop.f32.mrf.mxu0
      %v8231 = vadd.f32 0.0, %v8230
      %v8232 = vpop.f32.mrf.mxu0
      %v8233 = vadd.f32 0.0, %v8232
      %8234 = vmatmul.bf16.gmra.mxu0 %v7945
      %v8235 = vpop.f32.mrf.mxu0
      %v8236 = vadd.f32 0.0, %v8235
      %v8237 = vpop.f32.mrf.mxu0
      %v8238 = vadd.f32 0.0, %v8237
      %8239 = vmatmul.bf16.gmra.mxu0 %v7949
      %v8240 = vpop.f32.mrf.mxu0
      %v8241 = vadd.f32 0.0, %v8240
      %v8242 = vpop.f32.mrf.mxu0
      %v8243 = vadd.f32 0.0, %v8242
      %8244 = vmatmul.bf16.gmra.mxu0 %v7953
      %v8245 = vpop.f32.mrf.mxu0
      %v8246 = vadd.f32 0.0, %v8245
      %v8247 = vpop.f32.mrf.mxu0
      %v8248 = vadd.f32 0.0, %v8247
      %8249 = vmatmul.bf16.gmra.mxu0 %v7957
      %v8250 = vpop.f32.mrf.mxu0
      %v8251 = vadd.f32 0.0, %v8250
      %v8252 = vpop.f32.mrf.mxu0
      %v8253 = vadd.f32 0.0, %v8252
      %8254 = vmatmul.bf16.gmra.mxu0 %v7961
      %v8255 = vpop.f32.mrf.mxu0
      %v8256 = vadd.f32 0.0, %v8255
      %v8257 = vpop.f32.mrf.mxu0
      %v8258 = vadd.f32 0.0, %v8257
      %8259 = vmatmul.bf16.gmra.mxu0 %v7965
      %v8260 = vpop.f32.mrf.mxu0
      %v8261 = vadd.f32 0.0, %v8260
      %v8262 = vpop.f32.mrf.mxu0
      %v8263 = vadd.f32 0.0, %v8262
      %8264 = vmatmul.bf16.gmra.mxu0 %v7969
      %v8265 = vpop.f32.mrf.mxu0
      %v8266 = vadd.f32 0.0, %v8265
      %v8267 = vpop.f32.mrf.mxu0
      %v8268 = vadd.f32 0.0, %v8267
      %8269 = vmatmul.bf16.gmra.mxu0 %v7973
      %v8270 = vpop.f32.mrf.mxu0
      %v8271 = vadd.f32 0.0, %v8270
      %v8272 = vpop.f32.mrf.mxu0
      %v8273 = vadd.f32 0.0, %v8272
      %8274 = vmatmul.bf16.gmra.mxu0 %v7977
      %v8275 = vpop.f32.mrf.mxu0
      %v8276 = vadd.f32 0.0, %v8275
      %v8277 = vpop.f32.mrf.mxu0
      %v8278 = vadd.f32 0.0, %v8277
      %8279 = vmatmul.bf16.gmra.mxu0 %v7986
      %v8280 = vpop.f32.mrf.mxu0
      %v8281 = vadd.f32 0.0, %v8280
      %v8282 = vpop.f32.mrf.mxu0
      %v8283 = vadd.f32 0.0, %v8282
      %8284 = vmatmul.bf16.gmra.mxu0 %v7985
      %v8285 = vpop.f32.mrf.mxu0
      %v8286 = vadd.f32 0.0, %v8285
      %v8287 = vpop.f32.mrf.mxu0
      %8288 = vdwg.mxu0
      %v8289 = vadd.f32 %v7711, %v8086
      %v8290 = vadd.f32 %v7712, %v8088
      %v8291 = vadd.f32 %v7713, %v8091
      %v8292 = vadd.f32 %v7714, %v8093
      %v8293 = vadd.f32 %v7715, %v8096
      %v8294 = vadd.f32 %v7716, %v8098
      %v8295 = vadd.f32 %v7717, %v8101
      %v8296 = vadd.f32 %v7718, %v8103
      %v8297 = vadd.f32 %v7719, %v8106
      %v8298 = vadd.f32 %v7720, %v8108
      %v8299 = vadd.f32 %v7721, %v8111
      %v8300 = vadd.f32 %v7722, %v8113
      %v8301 = vadd.f32 %v7723, %v8116
      %v8302 = vadd.f32 %v7724, %v8118
      %v8303 = vadd.f32 %v7725, %v8121
      %v8304 = vadd.f32 %v7726, %v8123
      %v8305 = vadd.f32 %v7727, %v8126
      %v8306 = vadd.f32 %v7728, %v8128
      %v8307 = vadd.f32 %v7729, %v8131
      %v8308 = vadd.f32 %v7730, %v8133
      %v8309 = vadd.f32 %v7731, %v8136
      %v8310 = vadd.f32 %v7732, %v8138
      %v8311 = vadd.f32 %v7733, %v8141
      %v8312 = vadd.f32 %v7734, %v8143
      %v8313 = vadd.f32 %v7735, %v8146
      %v8314 = vadd.f32 %v7736, %v8148
      %v8315 = vadd.f32 %v7737, %v8151
      %v8316 = vadd.f32 %v7738, %v8153
      %v8317 = vadd.f32 %v7739, %v8156
      %v8318 = vadd.f32 %v7740, %v8158
      %v8319 = vadd.f32 %v7741, %v8161
      %v8320 = vadd.f32 %v7742, %v8163
      %v8321 = vadd.f32 %v7743, %v8166
      %v8322 = vadd.f32 %v7744, %v8168
      %v8323 = vadd.f32 %v7745, %v8171
      %v8324 = vadd.f32 %v7746, %v8173
      %v8325 = vadd.f32 %v7747, %v8176
      %v8326 = vadd.f32 %v7748, %v8178
      %v8327 = vadd.f32 %v7749, %v8181
      %v8328 = vadd.f32 %v7750, %v8183
      %v8329 = vadd.f32 %v7751, %v8186
      %v8330 = vadd.f32 %v7752, %v8188
      %v8331 = vadd.f32 %v7753, %v8191
      %v8332 = vadd.f32 %v7754, %v8193
      %v8333 = vadd.f32 %v7755, %v8196
      %v8334 = vadd.f32 %v7756, %v8198
      %v8335 = vadd.f32 %v7757, %v8201
      %v8336 = vadd.f32 %v7758, %v8203
      %v8337 = vadd.f32 %v7759, %v8206
      %v8338 = vadd.f32 %v7760, %v8208
      %v8339 = vadd.f32 %v7761, %v8211
      %v8340 = vadd.f32 %v7762, %v8213
      %v8341 = vadd.f32 %v7763, %v8216
      %v8342 = vadd.f32 %v7764, %v8218
      %v8343 = vadd.f32 %v7765, %v8221
      %v8344 = vadd.f32 %v7766, %v8223
      %v8345 = vadd.f32 %v7767, %v8226
      %v8346 = vadd.f32 %v7768, %v8228
      %v8347 = vadd.f32 %v7769, %v8231
      %v8348 = vadd.f32 %v7770, %v8233
      %v8349 = vadd.f32 %v7771, %v8236
      %v8350 = vadd.f32 %v7772, %v8238
      %v8351 = vadd.f32 %v7773, %v8241
      %v8352 = vadd.f32 %v7774, %v8243
      %v8353 = vadd.f32 %v7775, %v8246
      %v8354 = vadd.f32 %v7776, %v8248
      %v8355 = vadd.f32 %v7777, %v8251
      %v8356 = vadd.f32 %v7778, %v8253
      %v8357 = vadd.f32 %v7779, %v8256
      %v8358 = vadd.f32 %v7780, %v8258
      %v8359 = vadd.f32 %v7781, %v8261
      %v8360 = vadd.f32 %v7782, %v8263
      %v8361 = vadd.f32 %v7783, %v8266
      %v8362 = vadd.f32 %v7784, %v8268
      %v8363 = vadd.f32 %v7785, %v8271
      %v8364 = vadd.f32 %v7786, %v8273
      %v8365 = vadd.f32 %v7787, %v8276
      %v8366 = vadd.f32 %v7788, %v8278
      %v8367 = vadd.f32 %v7789, %v8281
      %v8368 = vadd.f32 %v7790, %v8283
      %v8369 = vadd.f32 %v7791, %v8286
      %v8370 = vld [vmem:[%s6] sm:$0x1]
      %v8372 = vperm.slane %v8370, 0
      %v8374 = vadd.f32 %v8289, %v8372
      %v8375 = vadd.f32 %v8290, %v8372
      %v8376 = vadd.f32 %v8291, %v8372
      %v8377 = vadd.f32 %v8292, %v8372
      %v8378 = vadd.f32 %v8293, %v8372
      %v8379 = vadd.f32 %v8294, %v8372
      %v8380 = vadd.f32 %v8295, %v8372
      %v8381 = vadd.f32 %v8296, %v8372
      %v8382 = vadd.f32 %v8297, %v8372
      %v8383 = vadd.f32 %v8298, %v8372
      %v8384 = vadd.f32 %v8299, %v8372
      %v8385 = vadd.f32 %v8300, %v8372
      %v8386 = vadd.f32 %v8301, %v8372
      %v8387 = vadd.f32 %v8302, %v8372
      %v8388 = vadd.f32 %v8303, %v8372
      %v8389 = vadd.f32 %v8304, %v8372
      %v8390 = vadd.f32 %v8305, %v8372
      %v8391 = vadd.f32 %v8306, %v8372
      %v8392 = vadd.f32 %v8307, %v8372
      %v8393 = vadd.f32 %v8308, %v8372
      %v8394 = vadd.f32 %v8309, %v8372
      %v8395 = vadd.f32 %v8310, %v8372
      %v8396 = vadd.f32 %v8311, %v8372
      %v8397 = vadd.f32 %v8312, %v8372
      %v8398 = vadd.f32 %v8313, %v8372
      %v8399 = vadd.f32 %v8314, %v8372
      %v8400 = vadd.f32 %v8315, %v8372
      %v8401 = vadd.f32 %v8316, %v8372
      %v8402 = vadd.f32 %v8317, %v8372
      %v8403 = vadd.f32 %v8318, %v8372
      %v8404 = vadd.f32 %v8319, %v8372
      %v8405 = vadd.f32 %v8320, %v8372
      %v8406 = vadd.f32 %v8321, %v8372
      %v8407 = vadd.f32 %v8322, %v8372
      %v8408 = vadd.f32 %v8323, %v8372
      %v8409 = vadd.f32 %v8324, %v8372
      %v8410 = vadd.f32 %v8325, %v8372
      %v8411 = vadd.f32 %v8326, %v8372
      %v8412 = vadd.f32 %v8327, %v8372
      %v8413 = vadd.f32 %v8328, %v8372
      %v8414 = vadd.f32 %v8329, %v8372
      %v8415 = vadd.f32 %v8330, %v8372
      %v8416 = vadd.f32 %v8331, %v8372
      %v8417 = vadd.f32 %v8332, %v8372
      %v8418 = vadd.f32 %v8333, %v8372
      %v8419 = vadd.f32 %v8334, %v8372
      %v8420 = vadd.f32 %v8335, %v8372
      %v8421 = vadd.f32 %v8336, %v8372
      %v8422 = vadd.f32 %v8337, %v8372
      %v8423 = vadd.f32 %v8338, %v8372
      %v8424 = vadd.f32 %v8339, %v8372
      %v8425 = vadd.f32 %v8340, %v8372
      %v8426 = vadd.f32 %v8341, %v8372
      %v8427 = vadd.f32 %v8342, %v8372
      %v8428 = vadd.f32 %v8343, %v8372
      %v8429 = vadd.f32 %v8344, %v8372
      %v8430 = vadd.f32 %v8345, %v8372
      %v8431 = vadd.f32 %v8346, %v8372
      %v8432 = vadd.f32 %v8347, %v8372
      %v8433 = vadd.f32 %v8348, %v8372
      %v8434 = vadd.f32 %v8349, %v8372
      %v8435 = vadd.f32 %v8350, %v8372
      %v8436 = vadd.f32 %v8351, %v8372
      %v8437 = vadd.f32 %v8352, %v8372
      %v8438 = vadd.f32 %v8353, %v8372
      %v8439 = vadd.f32 %v8354, %v8372
      %v8440 = vadd.f32 %v8355, %v8372
      %v8441 = vadd.f32 %v8356, %v8372
      %v8442 = vadd.f32 %v8357, %v8372
      %v8443 = vadd.f32 %v8358, %v8372
      %v8444 = vadd.f32 %v8359, %v8372
      %v8445 = vadd.f32 %v8360, %v8372
      %v8446 = vadd.f32 %v8361, %v8372
      %v8447 = vadd.f32 %v8362, %v8372
      %v8448 = vadd.f32 %v8363, %v8372
      %v8449 = vadd.f32 %v8364, %v8372
      %v8450 = vadd.f32 %v8365, %v8372
      %v8451 = vadd.f32 %v8366, %v8372
      %v8452 = vadd.f32 %v8367, %v8372
      %v8453 = vadd.f32 %v8368, %v8372
      %v8454 = vadd.f32 %v8369, %v8372
      %v8455 = vmax.f32 %v8374, 0.0
      %v8456 = vmax.f32 %v8375, 0.0
      %v8457 = vmax.f32 %v8376, 0.0
      %v8458 = vmax.f32 %v8377, 0.0
      %v8459 = vmax.f32 %v8378, 0.0
      %v8460 = vmax.f32 %v8379, 0.0
      %v8461 = vmax.f32 %v8380, 0.0
      %v8462 = vmax.f32 %v8381, 0.0
      %v8463 = vmax.f32 %v8382, 0.0
      %v8464 = vmax.f32 %v8383, 0.0
      %v8465 = vmax.f32 %v8384, 0.0
      %v8466 = vmax.f32 %v8385, 0.0
      %v8467 = vmax.f32 %v8386, 0.0
      %v8468 = vmax.f32 %v8387, 0.0
      %v8469 = vmax.f32 %v8388, 0.0
      %v8470 = vmax.f32 %v8389, 0.0
      %v8471 = vmax.f32 %v8390, 0.0
      %v8472 = vmax.f32 %v8391, 0.0
      %v8473 = vmax.f32 %v8392, 0.0
      %v8474 = vmax.f32 %v8393, 0.0
      %v8475 = vmax.f32 %v8394, 0.0
      %v8476 = vmax.f32 %v8395, 0.0
      %v8477 = vmax.f32 %v8396, 0.0
      %v8478 = vmax.f32 %v8397, 0.0
      %v8479 = vmax.f32 %v8398, 0.0
      %v8480 = vmax.f32 %v8399, 0.0
      %v8481 = vmax.f32 %v8400, 0.0
      %v8482 = vmax.f32 %v8401, 0.0
      %v8483 = vmax.f32 %v8402, 0.0
      %v8484 = vmax.f32 %v8403, 0.0
      %v8485 = vmax.f32 %v8404, 0.0
      %v8486 = vmax.f32 %v8405, 0.0
      %v8487 = vmax.f32 %v8406, 0.0
      %v8488 = vmax.f32 %v8407, 0.0
      %v8489 = vmax.f32 %v8408, 0.0
      %v8490 = vmax.f32 %v8409, 0.0
      %v8491 = vmax.f32 %v8410, 0.0
      %v8492 = vmax.f32 %v8411, 0.0
      %v8493 = vmax.f32 %v8412, 0.0
      %v8494 = vmax.f32 %v8413, 0.0
      %v8495 = vmax.f32 %v8414, 0.0
      %v8496 = vmax.f32 %v8415, 0.0
      %v8497 = vmax.f32 %v8416, 0.0
      %v8498 = vmax.f32 %v8417, 0.0
      %v8499 = vmax.f32 %v8418, 0.0
      %v8500 = vmax.f32 %v8419, 0.0
      %v8501 = vmax.f32 %v8420, 0.0
      %v8502 = vmax.f32 %v8421, 0.0
      %v8503 = vmax.f32 %v8422, 0.0
      %v8504 = vmax.f32 %v8423, 0.0
      %v8505 = vmax.f32 %v8424, 0.0
      %v8506 = vmax.f32 %v8425, 0.0
      %v8507 = vmax.f32 %v8426, 0.0
      %v8508 = vmax.f32 %v8427, 0.0
      %v8509 = vmax.f32 %v8428, 0.0
      %v8510 = vmax.f32 %v8429, 0.0
      %v8511 = vmax.f32 %v8430, 0.0
      %v8512 = vmax.f32 %v8431, 0.0
      %v8513 = vmax.f32 %v8432, 0.0
      %v8514 = vmax.f32 %v8433, 0.0
      %v8515 = vmax.f32 %v8434, 0.0
      %v8516 = vmax.f32 %v8435, 0.0
      %v8517 = vmax.f32 %v8436, 0.0
      %v8518 = vmax.f32 %v8437, 0.0
      %v8519 = vmax.f32 %v8438, 0.0
      %v8520 = vmax.f32 %v8439, 0.0
      %v8521 = vmax.f32 %v8440, 0.0
      %v8522 = vmax.f32 %v8441, 0.0
      %v8523 = vmax.f32 %v8442, 0.0
      %v8524 = vmax.f32 %v8443, 0.0
      %v8525 = vmax.f32 %v8444, 0.0
      %v8526 = vmax.f32 %v8445, 0.0
      %v8527 = vmax.f32 %v8446, 0.0
      %v8528 = vmax.f32 %v8447, 0.0
      %v8529 = vmax.f32 %v8448, 0.0
      %v8530 = vmax.f32 %v8449, 0.0
      %v8531 = vmax.f32 %v8450, 0.0
      %v8532 = vmax.f32 %v8451, 0.0
      %v8533 = vmax.f32 %v8452, 0.0
      %v8534 = vmax.f32 %v8453, 0.0
      %v8535 = vmax.f32 %v8454, 0.0
      %v8536 = vmul.f32 %v8455, %v1179
      %v8537 = vmul.f32 %v8456, %v1184
      %v8538 = vmul.f32 %v8457, %v1189
      %v8539 = vmul.f32 %v8458, %v1194
      %v8540 = vmul.f32 %v8459, %v1199
      %v8541 = vmul.f32 %v8460, %v1204
      %v8542 = vmul.f32 %v8461, %v1209
      %v8543 = vmul.f32 %v8462, %v1214
      %v8544 = vmul.f32 %v8463, %v1219
      %v8545 = vmul.f32 %v8464, %v1224
      %v8546 = vmul.f32 %v8465, %v1229
      %v8547 = vmul.f32 %v8466, %v1234
      %v8548 = vmul.f32 %v8467, %v1239
      %v8549 = vmul.f32 %v8468, %v1244
      %v8550 = vmul.f32 %v8469, %v1249
      %v8551 = vmul.f32 %v8470, %v1254
      %v8552 = vmul.f32 %v8471, %v1259
      %v8553 = vmul.f32 %v8472, %v1264
      %v8554 = vmul.f32 %v8473, %v1269
      %v8555 = vmul.f32 %v8474, %v1274
      %v8556 = vmul.f32 %v8475, %v1279
      %v8557 = vmul.f32 %v8476, %v1284
      %v8558 = vmul.f32 %v8477, %v1289
      %v8559 = vmul.f32 %v8478, %v1294
      %v8560 = vmul.f32 %v8479, %v1299
      %v8561 = vmul.f32 %v8480, %v1304
      %v8562 = vmul.f32 %v8481, %v1309
      %v8563 = vmul.f32 %v8482, %v1314
      %v8564 = vmul.f32 %v8483, %v1319
      %v8565 = vmul.f32 %v8484, %v1324
      %v8566 = vmul.f32 %v8485, %v1329
      %v8567 = vmul.f32 %v8486, %v1334
      %v8568 = vmul.f32 %v8487, %v1339
      %v8569 = vmul.f32 %v8488, %v1344
      %v8570 = vmul.f32 %v8489, %v1349
      %v8571 = vmul.f32 %v8490, %v1354
      %v8572 = vmul.f32 %v8491, %v1359
      %v8573 = vmul.f32 %v8492, %v1364
      %v8574 = vmul.f32 %v8493, %v1369
      %v8575 = vmul.f32 %v8494, %v1374
      %v8576 = vmul.f32 %v8495, %v1379
      %v8577 = vmul.f32 %v8496, %v1384
      %v8578 = vmul.f32 %v8497, %v1389
      %v8579 = vmul.f32 %v8498, %v1394
      %v8580 = vmul.f32 %v8499, %v1399
      %v8581 = vmul.f32 %v8500, %v1404
      %v8582 = vmul.f32 %v8501, %v1409
      %v8583 = vmul.f32 %v8502, %v1414
      %v8584 = vmul.f32 %v8503, %v1419
      %v8585 = vmul.f32 %v8504, %v1424
      %v8586 = vmul.f32 %v8505, %v1429
      %v8587 = vmul.f32 %v8506, %v1434
      %v8588 = vmul.f32 %v8507, %v1439
      %v8589 = vmul.f32 %v8508, %v1444
      %v8590 = vmul.f32 %v8509, %v1449
      %v8591 = vmul.f32 %v8510, %v1454
      %v8592 = vmul.f32 %v8511, %v1459
      %v8593 = vmul.f32 %v8512, %v1464
      %v8594 = vmul.f32 %v8513, %v1469
      %v8595 = vmul.f32 %v8514, %v1474
      %v8596 = vmul.f32 %v8515, %v1479
      %v8597 = vmul.f32 %v8516, %v1484
      %v8598 = vmul.f32 %v8517, %v1489
      %v8599 = vmul.f32 %v8518, %v1494
      %v8600 = vmul.f32 %v8519, %v1499
      %v8601 = vmul.f32 %v8520, %v1504
      %v8602 = vmul.f32 %v8521, %v1509
      %v8603 = vmul.f32 %v8522, %v1514
      %v8604 = vmul.f32 %v8523, %v1519
      %v8605 = vmul.f32 %v8524, %v1524
      %v8606 = vmul.f32 %v8525, %v1529
      %v8607 = vmul.f32 %v8526, %v1534
      %v8608 = vmul.f32 %v8527, %v1539
      %v8609 = vmul.f32 %v8528, %v1544
      %v8610 = vmul.f32 %v8529, %v1549
      %v8611 = vmul.f32 %v8530, %v1554
      %v8612 = vmul.f32 %v8531, %v1559
      %v8613 = vmul.f32 %v8532, %v1564
      %v8614 = vmul.f32 %v8533, %v1569
      %v8615 = vmul.f32 %v8534, %v1574
      %v8616 = vmul.f32 %v8535, %v1579
      %8617 = vst [vmem:[#allocation3 + $0x20] sm:$0xff] %v8536
      %8618 = vst [vmem:[#allocation3 + $0x28] sm:$0xff] %v8537
      %8619 = vst [vmem:[#allocation3 + $0x30] sm:$0xff] %v8538
      %8620 = vst [vmem:[#allocation3 + $0x38] sm:$0xff] %v8539
      %8621 = vst [vmem:[#allocation3 + $0x40] sm:$0xff] %v8540
      %8622 = vst [vmem:[#allocation3 + $0x48] sm:$0xff] %v8541
      %8623 = vst [vmem:[#allocation3 + $0x50] sm:$0xff] %v8542
      %8624 = vst [vmem:[#allocation3 + $0x58] sm:$0xff] %v8543
      %8625 = vst [vmem:[#allocation3 + $0x60] sm:$0xff] %v8544
      %8626 = vst [vmem:[#allocation3 + $0x68] sm:$0xff] %v8545
      %8627 = vst [vmem:[#allocation3 + $0x70] sm:$0xff] %v8546
      %8628 = vst [vmem:[#allocation3 + $0x78] sm:$0xff] %v8547
      %8629 = vst [vmem:[#allocation3 + $0x80] sm:$0xff] %v8548
      %8630 = vst [vmem:[#allocation3 + $0x88] sm:$0xff] %v8549
      %8631 = vst [vmem:[#allocation3 + $0x90] sm:$0xff] %v8550
      %8632 = vst [vmem:[#allocation3 + $0x98] sm:$0xff] %v8551
      %8633 = vst [vmem:[#allocation3 + $0xa0] sm:$0xff] %v8552
      %8634 = vst [vmem:[#allocation3 + $0xa8] sm:$0xff] %v8553
      %8635 = vst [vmem:[#allocation3 + $0xb0] sm:$0xff] %v8554
      %8636 = vst [vmem:[#allocation3 + $0xb8] sm:$0xff] %v8555
      %8637 = vst [vmem:[#allocation3 + $0xc0] sm:$0xff] %v8556
      %8638 = vst [vmem:[#allocation3 + $0xc8] sm:$0xff] %v8557
      %8639 = vst [vmem:[#allocation3 + $0xd0] sm:$0xff] %v8558
      %8640 = vst [vmem:[#allocation3 + $0xd8] sm:$0xff] %v8559
      %8641 = vst [vmem:[#allocation3 + $0xe0] sm:$0xff] %v8560
      %8642 = vst [vmem:[#allocation3 + $0xe8] sm:$0xff] %v8561
      %8643 = vst [vmem:[#allocation3 + $0xf0] sm:$0xff] %v8562
      %8644 = vst [vmem:[#allocation3 + $0xf8] sm:$0xff] %v8563
      %8645 = vst [vmem:[#allocation3 + $0x100] sm:$0xff] %v8564
      %8646 = vst [vmem:[#allocation3 + $0x108] sm:$0xff] %v8565
      %8647 = vst [vmem:[#allocation3 + $0x110] sm:$0xff] %v8566
      %8648 = vst [vmem:[#allocation3 + $0x118] sm:$0xff] %v8567
      %8649 = vst [vmem:[#allocation3 + $0x120] sm:$0xff] %v8568
      %8650 = vst [vmem:[#allocation3 + $0x128] sm:$0xff] %v8569
      %8651 = vst [vmem:[#allocation3 + $0x130] sm:$0xff] %v8570
      %8652 = vst [vmem:[#allocation3 + $0x138] sm:$0xff] %v8571
      %8653 = vst [vmem:[#allocation3 + $0x140] sm:$0xff] %v8572
      %8654 = vst [vmem:[#allocation3 + $0x148] sm:$0xff] %v8573
      %8655 = vst [vmem:[#allocation3 + $0x150] sm:$0xff] %v8574
      %8656 = vst [vmem:[#allocation3 + $0x158] sm:$0xff] %v8575
      %8657 = vst [vmem:[#allocation3 + $0x160] sm:$0xff] %v8576
      %8658 = vst [vmem:[#allocation3 + $0x168] sm:$0xff] %v8577
      %8659 = vst [vmem:[#allocation3 + $0x170] sm:$0xff] %v8578
      %8660 = vst [vmem:[#allocation3 + $0x178] sm:$0xff] %v8579
      %8661 = vst [vmem:[#allocation3 + $0x180] sm:$0xff] %v8580
      %8662 = vst [vmem:[#allocation3 + $0x188] sm:$0xff] %v8581
      %8663 = vst [vmem:[#allocation3 + $0x190] sm:$0xff] %v8582
      %8664 = vst [vmem:[#allocation3 + $0x198] sm:$0xff] %v8583
      %8665 = vst [vmem:[#allocation3 + $0x1a0] sm:$0xff] %v8584
      %8666 = vst [vmem:[#allocation3 + $0x1a8] sm:$0xff] %v8585
      %8667 = vst [vmem:[#allocation3 + $0x1b0] sm:$0xff] %v8586
      %8668 = vst [vmem:[#allocation3 + $0x1b8] sm:$0xff] %v8587
      %8669 = vst [vmem:[#allocation3 + $0x1c0] sm:$0xff] %v8588
      %8670 = vst [vmem:[#allocation3 + $0x1c8] sm:$0xff] %v8589
      %8671 = vst [vmem:[#allocation3 + $0x1d0] sm:$0xff] %v8590
      %8672 = vst [vmem:[#allocation3 + $0x1d8] sm:$0xff] %v8591
      %8673 = vst [vmem:[#allocation3 + $0x1e0] sm:$0xff] %v8592
      %8674 = vst [vmem:[#allocation3 + $0x1e8] sm:$0xff] %v8593
      %8675 = vst [vmem:[#allocation3 + $0x1f0] sm:$0xff] %v8594
      %8676 = vst [vmem:[#allocation3 + $0x1f8] sm:$0xff] %v8595
      %8677 = vst [vmem:[#allocation3 + $0x200] sm:$0xff] %v8596
      %8678 = vst [vmem:[#allocation3 + $0x208] sm:$0xff] %v8597
      %8679 = vst [vmem:[#allocation3 + $0x210] sm:$0xff] %v8598
      %8680 = vst [vmem:[#allocation3 + $0x218] sm:$0xff] %v8599
      %8681 = vst [vmem:[#allocation3 + $0x220] sm:$0xff] %v8600
      %8682 = vst [vmem:[#allocation3 + $0x228] sm:$0xff] %v8601
      %8683 = vst [vmem:[#allocation3 + $0x230] sm:$0xff] %v8602
      %8684 = vst [vmem:[#allocation3 + $0x238] sm:$0xff] %v8603
      %8685 = vst [vmem:[#allocation3 + $0x240] sm:$0xff] %v8604
      %8686 = vst [vmem:[#allocation3 + $0x248] sm:$0xff] %v8605
      %8687 = vst [vmem:[#allocation3 + $0x250] sm:$0xff] %v8606
      %8688 = vst [vmem:[#allocation3 + $0x258] sm:$0xff] %v8607
      %8689 = vst [vmem:[#allocation3 + $0x260] sm:$0xff] %v8608
      %8690 = vst [vmem:[#allocation3 + $0x268] sm:$0xff] %v8609
      %8691 = vst [vmem:[#allocation3 + $0x270] sm:$0xff] %v8610
      %8692 = vst [vmem:[#allocation3 + $0x278] sm:$0xff] %v8611
      %8693 = vst [vmem:[#allocation3 + $0x280] sm:$0xff] %v8612
      %8694 = vst [vmem:[#allocation3 + $0x288] sm:$0xff] %v8613
      %8695 = vst [vmem:[#allocation3 + $0x290] sm:$0xff] %v8614
      %8696 = vst [vmem:[#allocation3 + $0x298] sm:$0xff] %v8615
      %8697 = vst [vmem:[#allocation3 + $0x2a0] sm:$0xff] %v8616
      %v8698 = vld [vmem:[#allocation3 + $0x20] sm:$0xff]
      %v8699 = vld [vmem:[#allocation3 + $0x28] sm:$0xff]
      %v8700 = vld [vmem:[#allocation3 + $0x30] sm:$0xff]
      %v8701 = vld [vmem:[#allocation3 + $0x38] sm:$0xff]
      %v8702 = vld [vmem:[#allocation3 + $0x40] sm:$0xff]
      %v8703 = vld [vmem:[#allocation3 + $0x48] sm:$0xff]
      %v8704 = vld [vmem:[#allocation3 + $0x50] sm:$0xff]
      %v8705 = vld [vmem:[#allocation3 + $0x58] sm:$0xff]
      %v8706 = vld [vmem:[#allocation3 + $0x60] sm:$0xff]
      %v8707 = vld [vmem:[#allocation3 + $0x68] sm:$0xff]
      %v8708 = vld [vmem:[#allocation3 + $0x70] sm:$0xff]
      %v8709 = vld [vmem:[#allocation3 + $0x78] sm:$0xff]
      %v8710 = vld [vmem:[#allocation3 + $0x80] sm:$0xff]
      %v8711 = vld [vmem:[#allocation3 + $0x88] sm:$0xff]
      %v8712 = vld [vmem:[#allocation3 + $0x90] sm:$0xff]
      %v8713 = vld [vmem:[#allocation3 + $0x98] sm:$0xff]
      %v8714 = vld [vmem:[#allocation3 + $0xa0] sm:$0xff]
      %v8715 = vld [vmem:[#allocation3 + $0xa8] sm:$0xff]
      %v8716 = vld [vmem:[#allocation3 + $0xb0] sm:$0xff]
      %v8717 = vld [vmem:[#allocation3 + $0xb8] sm:$0xff]
      %v8718 = vld [vmem:[#allocation3 + $0xc0] sm:$0xff]
      %v8719 = vld [vmem:[#allocation3 + $0xc8] sm:$0xff]
      %v8720 = vld [vmem:[#allocation3 + $0xd0] sm:$0xff]
      %v8721 = vld [vmem:[#allocation3 + $0xd8] sm:$0xff]
      %v8722 = vld [vmem:[#allocation3 + $0xe0] sm:$0xff]
      %v8723 = vld [vmem:[#allocation3 + $0xe8] sm:$0xff]
      %v8724 = vld [vmem:[#allocation3 + $0xf0] sm:$0xff]
      %v8725 = vld [vmem:[#allocation3 + $0xf8] sm:$0xff]
      %v8726 = vld [vmem:[#allocation3 + $0x100] sm:$0xff]
      %v8727 = vld [vmem:[#allocation3 + $0x108] sm:$0xff]
      %v8728 = vld [vmem:[#allocation3 + $0x110] sm:$0xff]
      %v8729 = vld [vmem:[#allocation3 + $0x118] sm:$0xff]
      %v8730 = vld [vmem:[#allocation3 + $0x120] sm:$0xff]
      %v8731 = vld [vmem:[#allocation3 + $0x128] sm:$0xff]
      %v8732 = vld [vmem:[#allocation3 + $0x130] sm:$0xff]
      %v8733 = vld [vmem:[#allocation3 + $0x138] sm:$0xff]
      %v8734 = vld [vmem:[#allocation3 + $0x140] sm:$0xff]
      %v8735 = vld [vmem:[#allocation3 + $0x148] sm:$0xff]
      %v8736 = vld [vmem:[#allocation3 + $0x150] sm:$0xff]
      %v8737 = vld [vmem:[#allocation3 + $0x158] sm:$0xff]
      %v8738 = vld [vmem:[#allocation3 + $0x160] sm:$0xf]
      %v8739 = vld [vmem:[#allocation3 + $0x21] sm:$0xff]
      %v8740 = vld [vmem:[#allocation3 + $0x29] sm:$0xff]
      %v8741 = vld [vmem:[#allocation3 + $0x31] sm:$0xff]
      %v8742 = vld [vmem:[#allocation3 + $0x39] sm:$0xff]
      %v8743 = vld [vmem:[#allocation3 + $0x41] sm:$0xff]
      %v8744 = vld [vmem:[#allocation3 + $0x49] sm:$0xff]
      %v8745 = vld [vmem:[#allocation3 + $0x51] sm:$0xff]
      %v8746 = vld [vmem:[#allocation3 + $0x59] sm:$0xff]
      %v8747 = vld [vmem:[#allocation3 + $0x61] sm:$0xff]
      %v8748 = vld [vmem:[#allocation3 + $0x69] sm:$0xff]
      %v8749 = vld [vmem:[#allocation3 + $0x71] sm:$0xff]
      %v8750 = vld [vmem:[#allocation3 + $0x79] sm:$0xff]
      %v8751 = vld [vmem:[#allocation3 + $0x81] sm:$0xff]
      %v8752 = vld [vmem:[#allocation3 + $0x89] sm:$0xff]
      %v8753 = vld [vmem:[#allocation3 + $0x91] sm:$0xff]
      %v8754 = vld [vmem:[#allocation3 + $0x99] sm:$0xff]
      %v8755 = vld [vmem:[#allocation3 + $0xa1] sm:$0xff]
      %v8756 = vld [vmem:[#allocation3 + $0xa9] sm:$0xff]
      %v8757 = vld [vmem:[#allocation3 + $0xb1] sm:$0xff]
      %v8758 = vld [vmem:[#allocation3 + $0xb9] sm:$0xff]
      %v8759 = vld [vmem:[#allocation3 + $0xc1] sm:$0xff]
      %v8760 = vld [vmem:[#allocation3 + $0xc9] sm:$0xff]
      %v8761 = vld [vmem:[#allocation3 + $0xd1] sm:$0xff]
      %v8762 = vld [vmem:[#allocation3 + $0xd9] sm:$0xff]
      %v8763 = vld [vmem:[#allocation3 + $0xe1] sm:$0xff]
      %v8764 = vld [vmem:[#allocation3 + $0xe9] sm:$0xff]
      %v8765 = vld [vmem:[#allocation3 + $0xf1] sm:$0xff]
      %v8766 = vld [vmem:[#allocation3 + $0xf9] sm:$0xff]
      %v8767 = vld [vmem:[#allocation3 + $0x101] sm:$0xff]
      %v8768 = vld [vmem:[#allocation3 + $0x109] sm:$0xff]
      %v8769 = vld [vmem:[#allocation3 + $0x111] sm:$0xff]
      %v8770 = vld [vmem:[#allocation3 + $0x119] sm:$0xff]
      %v8771 = vld [vmem:[#allocation3 + $0x121] sm:$0xff]
      %v8772 = vld [vmem:[#allocation3 + $0x129] sm:$0xff]
      %v8773 = vld [vmem:[#allocation3 + $0x131] sm:$0xff]
      %v8774 = vld [vmem:[#allocation3 + $0x139] sm:$0xff]
      %v8775 = vld [vmem:[#allocation3 + $0x141] sm:$0xff]
      %v8776 = vld [vmem:[#allocation3 + $0x149] sm:$0xff]
      %v8777 = vld [vmem:[#allocation3 + $0x151] sm:$0xff]
      %v8778 = vld [vmem:[#allocation3 + $0x159] sm:$0xff]
      %v8779 = vld [vmem:[#allocation3 + $0x161] sm:$0xf]
      %v8780 = vld [vmem:[#allocation3 + $0x32] sm:$0xff]
      %v8781 = vld [vmem:[#allocation3 + $0x3a] sm:$0xff]
      %v8782 = vld [vmem:[#allocation3 + $0x42] sm:$0xff]
      %v8783 = vld [vmem:[#allocation3 + $0x4a] sm:$0xff]
      %v8784 = vld [vmem:[#allocation3 + $0x52] sm:$0xff]
      %v8785 = vld [vmem:[#allocation3 + $0x5a] sm:$0xff]
      %v8786 = vld [vmem:[#allocation3 + $0x62] sm:$0xff]
      %v8787 = vld [vmem:[#allocation3 + $0x6a] sm:$0xff]
      %v8788 = vld [vmem:[#allocation3 + $0x72] sm:$0xff]
      %v8789 = vld [vmem:[#allocation3 + $0x7a] sm:$0xff]
      %v8790 = vld [vmem:[#allocation3 + $0x82] sm:$0xff]
      %v8791 = vld [vmem:[#allocation3 + $0x8a] sm:$0xff]
      %v8792 = vld [vmem:[#allocation3 + $0x92] sm:$0xff]
      %v8793 = vld [vmem:[#allocation3 + $0x9a] sm:$0xff]
      %v8794 = vld [vmem:[#allocation3 + $0xa2] sm:$0xff]
      %v8795 = vld [vmem:[#allocation3 + $0xaa] sm:$0xff]
      %v8796 = vld [vmem:[#allocation3 + $0xb2] sm:$0xff]
      %v8797 = vld [vmem:[#allocation3 + $0xba] sm:$0xff]
      %v8798 = vld [vmem:[#allocation3 + $0xc2] sm:$0xff]
      %v8799 = vld [vmem:[#allocation3 + $0xca] sm:$0xff]
      %v8800 = vld [vmem:[#allocation3 + $0xd2] sm:$0xff]
      %v8801 = vld [vmem:[#allocation3 + $0xda] sm:$0xff]
      %v8802 = vld [vmem:[#allocation3 + $0xe2] sm:$0xff]
      %v8803 = vld [vmem:[#allocation3 + $0xea] sm:$0xff]
      %v8804 = vld [vmem:[#allocation3 + $0xf2] sm:$0xff]
      %v8805 = vld [vmem:[#allocation3 + $0xfa] sm:$0xff]
      %v8806 = vld [vmem:[#allocation3 + $0x102] sm:$0xff]
      %v8807 = vld [vmem:[#allocation3 + $0x10a] sm:$0xff]
      %v8808 = vld [vmem:[#allocation3 + $0x112] sm:$0xff]
      %v8809 = vld [vmem:[#allocation3 + $0x11a] sm:$0xff]
      %v8810 = vld [vmem:[#allocation3 + $0x122] sm:$0xff]
      %v8811 = vld [vmem:[#allocation3 + $0x12a] sm:$0xff]
      %v8812 = vld [vmem:[#allocation3 + $0x132] sm:$0xff]
      %v8813 = vld [vmem:[#allocation3 + $0x13a] sm:$0xff]
      %v8814 = vld [vmem:[#allocation3 + $0x142] sm:$0xff]
      %v8815 = vld [vmem:[#allocation3 + $0x14a] sm:$0xff]
      %v8816 = vld [vmem:[#allocation3 + $0x152] sm:$0xff]
      %v8817 = vld [vmem:[#allocation3 + $0x15a] sm:$0xff]
      %v8818 = vld [vmem:[#allocation3 + $0x162] sm:$0xff]
      %v8819 = vld [vmem:[#allocation3 + $0x16a] sm:$0xff]
      %v8820 = vld [vmem:[#allocation3 + $0x172] sm:$0xf]
      %v8821 = vld [vmem:[#allocation3 + $0x33] sm:$0xff]
      %v8822 = vld [vmem:[#allocation3 + $0x3b] sm:$0xff]
      %v8823 = vld [vmem:[#allocation3 + $0x43] sm:$0xff]
      %v8824 = vld [vmem:[#allocation3 + $0x4b] sm:$0xff]
      %v8825 = vld [vmem:[#allocation3 + $0x53] sm:$0xff]
      %v8826 = vld [vmem:[#allocation3 + $0x5b] sm:$0xff]
      %v8827 = vld [vmem:[#allocation3 + $0x63] sm:$0xff]
      %v8828 = vld [vmem:[#allocation3 + $0x6b] sm:$0xff]
      %v8829 = vld [vmem:[#allocation3 + $0x73] sm:$0xff]
      %v8830 = vld [vmem:[#allocation3 + $0x7b] sm:$0xff]
      %v8831 = vld [vmem:[#allocation3 + $0x83] sm:$0xff]
      %v8832 = vld [vmem:[#allocation3 + $0x8b] sm:$0xff]
      %v8833 = vld [vmem:[#allocation3 + $0x93] sm:$0xff]
      %v8834 = vld [vmem:[#allocation3 + $0x9b] sm:$0xff]
      %v8835 = vld [vmem:[#allocation3 + $0xa3] sm:$0xff]
      %v8836 = vld [vmem:[#allocation3 + $0xab] sm:$0xff]
      %v8837 = vld [vmem:[#allocation3 + $0xb3] sm:$0xff]
      %v8838 = vld [vmem:[#allocation3 + $0xbb] sm:$0xff]
      %v8839 = vld [vmem:[#allocation3 + $0xc3] sm:$0xff]
      %v8840 = vld [vmem:[#allocation3 + $0xcb] sm:$0xff]
      %v8841 = vld [vmem:[#allocation3 + $0xd3] sm:$0xff]
      %v8842 = vld [vmem:[#allocation3 + $0xdb] sm:$0xff]
      %v8843 = vld [vmem:[#allocation3 + $0xe3] sm:$0xff]
      %v8844 = vld [vmem:[#allocation3 + $0xeb] sm:$0xff]
      %v8845 = vld [vmem:[#allocation3 + $0xf3] sm:$0xff]
      %v8846 = vld [vmem:[#allocation3 + $0xfb] sm:$0xff]
      %v8847 = vld [vmem:[#allocation3 + $0x103] sm:$0xff]
      %v8848 = vld [vmem:[#allocation3 + $0x10b] sm:$0xff]
      %v8849 = vld [vmem:[#allocation3 + $0x113] sm:$0xff]
      %v8850 = vld [vmem:[#allocation3 + $0x11b] sm:$0xff]
      %v8851 = vld [vmem:[#allocation3 + $0x123] sm:$0xff]
      %v8852 = vld [vmem:[#allocation3 + $0x12b] sm:$0xff]
      %v8853 = vld [vmem:[#allocation3 + $0x133] sm:$0xff]
      %v8854 = vld [vmem:[#allocation3 + $0x13b] sm:$0xff]
      %v8855 = vld [vmem:[#allocation3 + $0x143] sm:$0xff]
      %v8856 = vld [vmem:[#allocation3 + $0x14b] sm:$0xff]
      %v8857 = vld [vmem:[#allocation3 + $0x153] sm:$0xff]
      %v8858 = vld [vmem:[#allocation3 + $0x15b] sm:$0xff]
      %v8859 = vld [vmem:[#allocation3 + $0x163] sm:$0xff]
      %v8860 = vld [vmem:[#allocation3 + $0x16b] sm:$0xff]
      %v8861 = vld [vmem:[#allocation3 + $0x173] sm:$0xf]
      %v8862 = vmax.f32 %v8698, %v8739
      %v8863 = vmax.f32 %v8699, %v8740
      %v8864 = vmax.f32 %v8700, %v8741
      %v8865 = vmax.f32 %v8701, %v8742
      %v8866 = vmax.f32 %v8702, %v8743
      %v8867 = vmax.f32 %v8703, %v8744
      %v8868 = vmax.f32 %v8704, %v8745
      %v8869 = vmax.f32 %v8705, %v8746
      %v8870 = vmax.f32 %v8706, %v8747
      %v8871 = vmax.f32 %v8707, %v8748
      %v8872 = vmax.f32 %v8708, %v8749
      %v8873 = vmax.f32 %v8709, %v8750
      %v8874 = vmax.f32 %v8710, %v8751
      %v8875 = vmax.f32 %v8711, %v8752
      %v8876 = vmax.f32 %v8712, %v8753
      %v8877 = vmax.f32 %v8713, %v8754
      %v8878 = vmax.f32 %v8714, %v8755
      %v8879 = vmax.f32 %v8715, %v8756
      %v8880 = vmax.f32 %v8716, %v8757
      %v8881 = vmax.f32 %v8717, %v8758
      %v8882 = vmax.f32 %v8718, %v8759
      %v8883 = vmax.f32 %v8719, %v8760
      %v8884 = vmax.f32 %v8720, %v8761
      %v8885 = vmax.f32 %v8721, %v8762
      %v8886 = vmax.f32 %v8722, %v8763
      %v8887 = vmax.f32 %v8723, %v8764
      %v8888 = vmax.f32 %v8724, %v8765
      %v8889 = vmax.f32 %v8725, %v8766
      %v8890 = vmax.f32 %v8726, %v8767
      %v8891 = vmax.f32 %v8727, %v8768
      %v8892 = vmax.f32 %v8728, %v8769
      %v8893 = vmax.f32 %v8729, %v8770
      %v8894 = vmax.f32 %v8730, %v8771
      %v8895 = vmax.f32 %v8731, %v8772
      %v8896 = vmax.f32 %v8732, %v8773
      %v8897 = vmax.f32 %v8733, %v8774
      %v8898 = vmax.f32 %v8734, %v8775
      %v8899 = vmax.f32 %v8735, %v8776
      %v8900 = vmax.f32 %v8736, %v8777
      %v8901 = vmax.f32 %v8737, %v8778
      %v8902 = vmax.f32 %v8738, %v8779
      %v8903 = vmax.f32 %v8780, %v8821
      %v8904 = vmax.f32 %v8781, %v8822
      %v8905 = vmax.f32 %v8782, %v8823
      %v8906 = vmax.f32 %v8783, %v8824
      %v8907 = vmax.f32 %v8784, %v8825
      %v8908 = vmax.f32 %v8785, %v8826
      %v8909 = vmax.f32 %v8786, %v8827
      %v8910 = vmax.f32 %v8787, %v8828
      %v8911 = vmax.f32 %v8788, %v8829
      %v8912 = vmax.f32 %v8789, %v8830
      %v8913 = vmax.f32 %v8790, %v8831
      %v8914 = vmax.f32 %v8791, %v8832
      %v8915 = vmax.f32 %v8792, %v8833
      %v8916 = vmax.f32 %v8793, %v8834
      %v8917 = vmax.f32 %v8794, %v8835
      %v8918 = vmax.f32 %v8795, %v8836
      %v8919 = vmax.f32 %v8796, %v8837
      %v8920 = vmax.f32 %v8797, %v8838
      %v8921 = vmax.f32 %v8798, %v8839
      %v8922 = vmax.f32 %v8799, %v8840
      %v8923 = vmax.f32 %v8800, %v8841
      %v8924 = vmax.f32 %v8801, %v8842
      %v8925 = vmax.f32 %v8802, %v8843
      %v8926 = vmax.f32 %v8803, %v8844
      %v8927 = vmax.f32 %v8804, %v8845
      %v8928 = vmax.f32 %v8805, %v8846
      %v8929 = vmax.f32 %v8806, %v8847
      %v8930 = vmax.f32 %v8807, %v8848
      %v8931 = vmax.f32 %v8808, %v8849
      %v8932 = vmax.f32 %v8809, %v8850
      %v8933 = vmax.f32 %v8810, %v8851
      %v8934 = vmax.f32 %v8811, %v8852
      %v8935 = vmax.f32 %v8812, %v8853
      %v8936 = vmax.f32 %v8813, %v8854
      %v8937 = vmax.f32 %v8814, %v8855
      %v8938 = vmax.f32 %v8815, %v8856
      %v8939 = vmax.f32 %v8816, %v8857
      %v8940 = vmax.f32 %v8817, %v8858
      %v8941 = vmax.f32 %v8818, %v8859
      %v8942 = vmax.f32 %v8819, %v8860
      %v8943 = vmax.f32 %v8820, %v8861
      %v8944 = vmax.f32 %v8862, %v8903
      %v8945 = vmax.f32 %v8863, %v8904
      %v8946 = vmax.f32 %v8864, %v8905
      %v8947 = vmax.f32 %v8865, %v8906
      %v8948 = vmax.f32 %v8866, %v8907
      %v8949 = vmax.f32 %v8867, %v8908
      %v8950 = vmax.f32 %v8868, %v8909
      %v8951 = vmax.f32 %v8869, %v8910
      %v8952 = vmax.f32 %v8870, %v8911
      %v8953 = vmax.f32 %v8871, %v8912
      %v8954 = vmax.f32 %v8872, %v8913
      %v8955 = vmax.f32 %v8873, %v8914
      %v8956 = vmax.f32 %v8874, %v8915
      %v8957 = vmax.f32 %v8875, %v8916
      %v8958 = vmax.f32 %v8876, %v8917
      %v8959 = vmax.f32 %v8877, %v8918
      %v8960 = vmax.f32 %v8878, %v8919
      %v8961 = vmax.f32 %v8879, %v8920
      %v8962 = vmax.f32 %v8880, %v8921
      %v8963 = vmax.f32 %v8881, %v8922
      %v8964 = vmax.f32 %v8882, %v8923
      %v8965 = vmax.f32 %v8883, %v8924
      %v8966 = vmax.f32 %v8884, %v8925
      %v8967 = vmax.f32 %v8885, %v8926
      %v8968 = vmax.f32 %v8886, %v8927
      %v8969 = vmax.f32 %v8887, %v8928
      %v8970 = vmax.f32 %v8888, %v8929
      %v8971 = vmax.f32 %v8889, %v8930
      %v8972 = vmax.f32 %v8890, %v8931
      %v8973 = vmax.f32 %v8891, %v8932
      %v8974 = vmax.f32 %v8892, %v8933
      %v8975 = vmax.f32 %v8893, %v8934
      %v8976 = vmax.f32 %v8894, %v8935
      %v8977 = vmax.f32 %v8895, %v8936
      %v8978 = vmax.f32 %v8896, %v8937
      %v8979 = vmax.f32 %v8897, %v8938
      %v8980 = vmax.f32 %v8898, %v8939
      %v8981 = vmax.f32 %v8899, %v8940
      %v8982 = vmax.f32 %v8900, %v8941
      %v8983 = vmax.f32 %v8901, %v8942
      %v8984 = vmax.f32 %v8902, %v8943
      %v8985 = vld [vmem:[#allocation3 + $0x164] sm:$0xff]
      %v8986 = vld [vmem:[#allocation3 + $0x16c] sm:$0xff]
      %v8987 = vld [vmem:[#allocation3 + $0x174] sm:$0xff]
      %v8988 = vld [vmem:[#allocation3 + $0x17c] sm:$0xff]
      %v8989 = vld [vmem:[#allocation3 + $0x184] sm:$0xff]
      %v8990 = vld [vmem:[#allocation3 + $0x18c] sm:$0xff]
      %v8991 = vld [vmem:[#allocation3 + $0x194] sm:$0xff]
      %v8992 = vld [vmem:[#allocation3 + $0x19c] sm:$0xff]
      %v8993 = vld [vmem:[#allocation3 + $0x1a4] sm:$0xff]
      %v8994 = vld [vmem:[#allocation3 + $0x1ac] sm:$0xff]
      %v8995 = vld [vmem:[#allocation3 + $0x1b4] sm:$0xff]
      %v8996 = vld [vmem:[#allocation3 + $0x1bc] sm:$0xff]
      %v8997 = vld [vmem:[#allocation3 + $0x1c4] sm:$0xff]
      %v8998 = vld [vmem:[#allocation3 + $0x1cc] sm:$0xff]
      %v8999 = vld [vmem:[#allocation3 + $0x1d4] sm:$0xff]
      %v9000 = vld [vmem:[#allocation3 + $0x1dc] sm:$0xff]
      %v9001 = vld [vmem:[#allocation3 + $0x1e4] sm:$0xff]
      %v9002 = vld [vmem:[#allocation3 + $0x1ec] sm:$0xff]
      %v9003 = vld [vmem:[#allocation3 + $0x1f4] sm:$0xff]
      %v9004 = vld [vmem:[#allocation3 + $0x1fc] sm:$0xff]
      %v9005 = vld [vmem:[#allocation3 + $0x204] sm:$0xff]
      %v9006 = vld [vmem:[#allocation3 + $0x20c] sm:$0xff]
      %v9007 = vld [vmem:[#allocation3 + $0x214] sm:$0xff]
      %v9008 = vld [vmem:[#allocation3 + $0x21c] sm:$0xff]
      %v9009 = vld [vmem:[#allocation3 + $0x224] sm:$0xff]
      %v9010 = vld [vmem:[#allocation3 + $0x22c] sm:$0xff]
      %v9011 = vld [vmem:[#allocation3 + $0x234] sm:$0xff]
      %v9012 = vld [vmem:[#allocation3 + $0x23c] sm:$0xff]
      %v9013 = vld [vmem:[#allocation3 + $0x244] sm:$0xff]
      %v9014 = vld [vmem:[#allocation3 + $0x24c] sm:$0xff]
      %v9015 = vld [vmem:[#allocation3 + $0x254] sm:$0xff]
      %v9016 = vld [vmem:[#allocation3 + $0x25c] sm:$0xff]
      %v9017 = vld [vmem:[#allocation3 + $0x264] sm:$0xff]
      %v9018 = vld [vmem:[#allocation3 + $0x26c] sm:$0xff]
      %v9019 = vld [vmem:[#allocation3 + $0x274] sm:$0xff]
      %v9020 = vld [vmem:[#allocation3 + $0x27c] sm:$0xff]
      %v9021 = vld [vmem:[#allocation3 + $0x284] sm:$0xff]
      %v9022 = vld [vmem:[#allocation3 + $0x28c] sm:$0xff]
      %v9023 = vld [vmem:[#allocation3 + $0x294] sm:$0xff]
      %v9024 = vld [vmem:[#allocation3 + $0x29c] sm:$0xff]
      %v9025 = vld [vmem:[#allocation3 + $0x2a4] sm:$0xf]
      %v9026 = vld [vmem:[#allocation3 + $0x165] sm:$0xff]
      %v9027 = vld [vmem:[#allocation3 + $0x16d] sm:$0xff]
      %v9028 = vld [vmem:[#allocation3 + $0x175] sm:$0xff]
      %v9029 = vld [vmem:[#allocation3 + $0x17d] sm:$0xff]
      %v9030 = vld [vmem:[#allocation3 + $0x185] sm:$0xff]
      %v9031 = vld [vmem:[#allocation3 + $0x18d] sm:$0xff]
      %v9032 = vld [vmem:[#allocation3 + $0x195] sm:$0xff]
      %v9033 = vld [vmem:[#allocation3 + $0x19d] sm:$0xff]
      %v9034 = vld [vmem:[#allocation3 + $0x1a5] sm:$0xff]
      %v9035 = vld [vmem:[#allocation3 + $0x1ad] sm:$0xff]
      %v9036 = vld [vmem:[#allocation3 + $0x1b5] sm:$0xff]
      %v9037 = vld [vmem:[#allocation3 + $0x1bd] sm:$0xff]
      %v9038 = vld [vmem:[#allocation3 + $0x1c5] sm:$0xff]
      %v9039 = vld [vmem:[#allocation3 + $0x1cd] sm:$0xff]
      %v9040 = vld [vmem:[#allocation3 + $0x1d5] sm:$0xff]
      %v9041 = vld [vmem:[#allocation3 + $0x1dd] sm:$0xff]
      %v9042 = vld [vmem:[#allocation3 + $0x1e5] sm:$0xff]
      %v9043 = vld [vmem:[#allocation3 + $0x1ed] sm:$0xff]
      %v9044 = vld [vmem:[#allocation3 + $0x1f5] sm:$0xff]
      %v9045 = vld [vmem:[#allocation3 + $0x1fd] sm:$0xff]
      %v9046 = vld [vmem:[#allocation3 + $0x205] sm:$0xff]
      %v9047 = vld [vmem:[#allocation3 + $0x20d] sm:$0xff]
      %v9048 = vld [vmem:[#allocation3 + $0x215] sm:$0xff]
      %v9049 = vld [vmem:[#allocation3 + $0x21d] sm:$0xff]
      %v9050 = vld [vmem:[#allocation3 + $0x225] sm:$0xff]
      %v9051 = vld [vmem:[#allocation3 + $0x22d] sm:$0xff]
      %v9052 = vld [vmem:[#allocation3 + $0x235] sm:$0xff]
      %v9053 = vld [vmem:[#allocation3 + $0x23d] sm:$0xff]
      %v9054 = vld [vmem:[#allocation3 + $0x245] sm:$0xff]
      %v9055 = vld [vmem:[#allocation3 + $0x24d] sm:$0xff]
      %v9056 = vld [vmem:[#allocation3 + $0x255] sm:$0xff]
      %v9057 = vld [vmem:[#allocation3 + $0x25d] sm:$0xff]
      %v9058 = vld [vmem:[#allocation3 + $0x265] sm:$0xff]
      %v9059 = vld [vmem:[#allocation3 + $0x26d] sm:$0xff]
      %v9060 = vld [vmem:[#allocation3 + $0x275] sm:$0xff]
      %v9061 = vld [vmem:[#allocation3 + $0x27d] sm:$0xff]
      %v9062 = vld [vmem:[#allocation3 + $0x285] sm:$0xff]
      %v9063 = vld [vmem:[#allocation3 + $0x28d] sm:$0xff]
      %v9064 = vld [vmem:[#allocation3 + $0x295] sm:$0xff]
      %v9065 = vld [vmem:[#allocation3 + $0x29d] sm:$0xff]
      %v9066 = vld [vmem:[#allocation3 + $0x2a5] sm:$0xf]
      %v9067 = vld [vmem:[#allocation3 + $0x176] sm:$0xff]
      %v9068 = vld [vmem:[#allocation3 + $0x17e] sm:$0xff]
      %v9069 = vld [vmem:[#allocation3 + $0x186] sm:$0xff]
      %v9070 = vld [vmem:[#allocation3 + $0x18e] sm:$0xff]
      %v9071 = vld [vmem:[#allocation3 + $0x196] sm:$0xff]
      %v9072 = vld [vmem:[#allocation3 + $0x19e] sm:$0xff]
      %v9073 = vld [vmem:[#allocation3 + $0x1a6] sm:$0xff]
      %v9074 = vld [vmem:[#allocation3 + $0x1ae] sm:$0xff]
      %v9075 = vld [vmem:[#allocation3 + $0x1b6] sm:$0xff]
      %v9076 = vld [vmem:[#allocation3 + $0x1be] sm:$0xff]
      %v9077 = vld [vmem:[#allocation3 + $0x1c6] sm:$0xff]
      %v9078 = vld [vmem:[#allocation3 + $0x1ce] sm:$0xff]
      %v9079 = vld [vmem:[#allocation3 + $0x1d6] sm:$0xff]
      %v9080 = vld [vmem:[#allocation3 + $0x1de] sm:$0xff]
      %v9081 = vld [vmem:[#allocation3 + $0x1e6] sm:$0xff]
      %v9082 = vld [vmem:[#allocation3 + $0x1ee] sm:$0xff]
      %v9083 = vld [vmem:[#allocation3 + $0x1f6] sm:$0xff]
      %v9084 = vld [vmem:[#allocation3 + $0x1fe] sm:$0xff]
      %v9085 = vld [vmem:[#allocation3 + $0x206] sm:$0xff]
      %v9086 = vld [vmem:[#allocation3 + $0x20e] sm:$0xff]
      %v9087 = vld [vmem:[#allocation3 + $0x216] sm:$0xff]
      %v9088 = vld [vmem:[#allocation3 + $0x21e] sm:$0xff]
      %v9089 = vld [vmem:[#allocation3 + $0x226] sm:$0xff]
      %v9090 = vld [vmem:[#allocation3 + $0x22e] sm:$0xff]
      %v9091 = vld [vmem:[#allocation3 + $0x236] sm:$0xff]
      %v9092 = vld [vmem:[#allocation3 + $0x23e] sm:$0xff]
      %v9093 = vld [vmem:[#allocation3 + $0x246] sm:$0xff]
      %v9094 = vld [vmem:[#allocation3 + $0x24e] sm:$0xff]
      %v9095 = vld [vmem:[#allocation3 + $0x256] sm:$0xff]
      %v9096 = vld [vmem:[#allocation3 + $0x25e] sm:$0xff]
      %v9097 = vld [vmem:[#allocation3 + $0x266] sm:$0xff]
      %v9098 = vld [vmem:[#allocation3 + $0x26e] sm:$0xff]
      %v9099 = vld [vmem:[#allocation3 + $0x276] sm:$0xff]
      %v9100 = vld [vmem:[#allocation3 + $0x27e] sm:$0xff]
      %v9101 = vld [vmem:[#allocation3 + $0x286] sm:$0xff]
      %v9102 = vld [vmem:[#allocation3 + $0x28e] sm:$0xff]
      %v9103 = vld [vmem:[#allocation3 + $0x296] sm:$0xff]
      %v9104 = vld [vmem:[#allocation3 + $0x29e] sm:$0xff]
      %v9105 = vld [vmem:[#allocation3 + $0x2a6] sm:$0xff]
      %v9106 = vld [vmem:[#allocation3 + $0x2ae] sm:$0xff]
      %v9107 = vld [vmem:[#allocation3 + $0x2b6] sm:$0xf]
      %v9108 = vld [vmem:[#allocation3 + $0x177] sm:$0xff]
      %v9109 = vld [vmem:[#allocation3 + $0x17f] sm:$0xff]
      %v9110 = vld [vmem:[#allocation3 + $0x187] sm:$0xff]
      %v9111 = vld [vmem:[#allocation3 + $0x18f] sm:$0xff]
      %v9112 = vld [vmem:[#allocation3 + $0x197] sm:$0xff]
      %v9113 = vld [vmem:[#allocation3 + $0x19f] sm:$0xff]
      %v9114 = vld [vmem:[#allocation3 + $0x1a7] sm:$0xff]
      %v9115 = vld [vmem:[#allocation3 + $0x1af] sm:$0xff]
      %v9116 = vld [vmem:[#allocation3 + $0x1b7] sm:$0xff]
      %v9117 = vld [vmem:[#allocation3 + $0x1bf] sm:$0xff]
      %v9118 = vld [vmem:[#allocation3 + $0x1c7] sm:$0xff]
      %v9119 = vld [vmem:[#allocation3 + $0x1cf] sm:$0xff]
      %v9120 = vld [vmem:[#allocation3 + $0x1d7] sm:$0xff]
      %v9121 = vld [vmem:[#allocation3 + $0x1df] sm:$0xff]
      %v9122 = vld [vmem:[#allocation3 + $0x1e7] sm:$0xff]
      %v9123 = vld [vmem:[#allocation3 + $0x1ef] sm:$0xff]
      %v9124 = vld [vmem:[#allocation3 + $0x1f7] sm:$0xff]
      %v9125 = vld [vmem:[#allocation3 + $0x1ff] sm:$0xff]
      %v9126 = vld [vmem:[#allocation3 + $0x207] sm:$0xff]
      %v9127 = vld [vmem:[#allocation3 + $0x20f] sm:$0xff]
      %v9128 = vld [vmem:[#allocation3 + $0x217] sm:$0xff]
      %v9129 = vld [vmem:[#allocation3 + $0x21f] sm:$0xff]
      %v9130 = vld [vmem:[#allocation3 + $0x227] sm:$0xff]
      %v9131 = vld [vmem:[#allocation3 + $0x22f] sm:$0xff]
      %v9132 = vld [vmem:[#allocation3 + $0x237] sm:$0xff]
      %v9133 = vld [vmem:[#allocation3 + $0x23f] sm:$0xff]
      %v9134 = vld [vmem:[#allocation3 + $0x247] sm:$0xff]
      %v9135 = vld [vmem:[#allocation3 + $0x24f] sm:$0xff]
      %v9136 = vld [vmem:[#allocation3 + $0x257] sm:$0xff]
      %v9137 = vld [vmem:[#allocation3 + $0x25f] sm:$0xff]
      %v9138 = vld [vmem:[#allocation3 + $0x267] sm:$0xff]
      %v9139 = vld [vmem:[#allocation3 + $0x26f] sm:$0xff]
      %v9140 = vld [vmem:[#allocation3 + $0x277] sm:$0xff]
      %v9141 = vld [vmem:[#allocation3 + $0x27f] sm:$0xff]
      %v9142 = vld [vmem:[#allocation3 + $0x287] sm:$0xff]
      %v9143 = vld [vmem:[#allocation3 + $0x28f] sm:$0xff]
      %v9144 = vld [vmem:[#allocation3 + $0x297] sm:$0xff]
      %v9145 = vld [vmem:[#allocation3 + $0x29f] sm:$0xff]
      %v9146 = vld [vmem:[#allocation3 + $0x2a7] sm:$0xff]
      %v9147 = vld [vmem:[#allocation3 + $0x2af] sm:$0xff]
      %v9148 = vld [vmem:[#allocation3 + $0x2b7] sm:$0xf]
      %v9149 = vmax.f32 %v8985, %v9026
      %v9150 = vmax.f32 %v8986, %v9027
      %v9151 = vmax.f32 %v8987, %v9028
      %v9152 = vmax.f32 %v8988, %v9029
      %v9153 = vmax.f32 %v8989, %v9030
      %v9154 = vmax.f32 %v8990, %v9031
      %v9155 = vmax.f32 %v8991, %v9032
      %v9156 = vmax.f32 %v8992, %v9033
      %v9157 = vmax.f32 %v8993, %v9034
      %v9158 = vmax.f32 %v8994, %v9035
      %v9159 = vmax.f32 %v8995, %v9036
      %v9160 = vmax.f32 %v8996, %v9037
      %v9161 = vmax.f32 %v8997, %v9038
      %v9162 = vmax.f32 %v8998, %v9039
      %v9163 = vmax.f32 %v8999, %v9040
      %v9164 = vmax.f32 %v9000, %v9041
      %v9165 = vmax.f32 %v9001, %v9042
      %v9166 = vmax.f32 %v9002, %v9043
      %v9167 = vmax.f32 %v9003, %v9044
      %v9168 = vmax.f32 %v9004, %v9045
      %v9169 = vmax.f32 %v9005, %v9046
      %v9170 = vmax.f32 %v9006, %v9047
      %v9171 = vmax.f32 %v9007, %v9048
      %v9172 = vmax.f32 %v9008, %v9049
      %v9173 = vmax.f32 %v9009, %v9050
      %v9174 = vmax.f32 %v9010, %v9051
      %v9175 = vmax.f32 %v9011, %v9052
      %v9176 = vmax.f32 %v9012, %v9053
      %v9177 = vmax.f32 %v9013, %v9054
      %v9178 = vmax.f32 %v9014, %v9055
      %v9179 = vmax.f32 %v9015, %v9056
      %v9180 = vmax.f32 %v9016, %v9057
      %v9181 = vmax.f32 %v9017, %v9058
      %v9182 = vmax.f32 %v9018, %v9059
      %v9183 = vmax.f32 %v9019, %v9060
      %v9184 = vmax.f32 %v9020, %v9061
      %v9185 = vmax.f32 %v9021, %v9062
      %v9186 = vmax.f32 %v9022, %v9063
      %v9187 = vmax.f32 %v9023, %v9064
      %v9188 = vmax.f32 %v9024, %v9065
      %v9189 = vmax.f32 %v9025, %v9066
      %v9190 = vmax.f32 %v9067, %v9108
      %v9191 = vmax.f32 %v9068, %v9109
      %v9192 = vmax.f32 %v9069, %v9110
      %v9193 = vmax.f32 %v9070, %v9111
      %v9194 = vmax.f32 %v9071, %v9112
      %v9195 = vmax.f32 %v9072, %v9113
      %v9196 = vmax.f32 %v9073, %v9114
      %v9197 = vmax.f32 %v9074, %v9115
      %v9198 = vmax.f32 %v9075, %v9116
      %v9199 = vmax.f32 %v9076, %v9117
      %v9200 = vmax.f32 %v9077, %v9118
      %v9201 = vmax.f32 %v9078, %v9119
      %v9202 = vmax.f32 %v9079, %v9120
      %v9203 = vmax.f32 %v9080, %v9121
      %v9204 = vmax.f32 %v9081, %v9122
      %v9205 = vmax.f32 %v9082, %v9123
      %v9206 = vmax.f32 %v9083, %v9124
      %v9207 = vmax.f32 %v9084, %v9125
      %v9208 = vmax.f32 %v9085, %v9126
      %v9209 = vmax.f32 %v9086, %v9127
      %v9210 = vmax.f32 %v9087, %v9128
      %v9211 = vmax.f32 %v9088, %v9129
      %v9212 = vmax.f32 %v9089, %v9130
      %v9213 = vmax.f32 %v9090, %v9131
      %v9214 = vmax.f32 %v9091, %v9132
      %v9215 = vmax.f32 %v9092, %v9133
      %v9216 = vmax.f32 %v9093, %v9134
      %v9217 = vmax.f32 %v9094, %v9135
      %v9218 = vmax.f32 %v9095, %v9136
      %v9219 = vmax.f32 %v9096, %v9137
      %v9220 = vmax.f32 %v9097, %v9138
      %v9221 = vmax.f32 %v9098, %v9139
      %v9222 = vmax.f32 %v9099, %v9140
      %v9223 = vmax.f32 %v9100, %v9141
      %v9224 = vmax.f32 %v9101, %v9142
      %v9225 = vmax.f32 %v9102, %v9143
      %v9226 = vmax.f32 %v9103, %v9144
      %v9227 = vmax.f32 %v9104, %v9145
      %v9228 = vmax.f32 %v9105, %v9146
      %v9229 = vmax.f32 %v9106, %v9147
      %v9230 = vmax.f32 %v9107, %v9148
      %v9231 = vmax.f32 %v9149, %v9190
      %v9232 = vmax.f32 %v9150, %v9191
      %v9233 = vmax.f32 %v9151, %v9192
      %v9234 = vmax.f32 %v9152, %v9193
      %v9235 = vmax.f32 %v9153, %v9194
      %v9236 = vmax.f32 %v9154, %v9195
      %v9237 = vmax.f32 %v9155, %v9196
      %v9238 = vmax.f32 %v9156, %v9197
      %v9239 = vmax.f32 %v9157, %v9198
      %v9240 = vmax.f32 %v9158, %v9199
      %v9241 = vmax.f32 %v9159, %v9200
      %v9242 = vmax.f32 %v9160, %v9201
      %v9243 = vmax.f32 %v9161, %v9202
      %v9244 = vmax.f32 %v9162, %v9203
      %v9245 = vmax.f32 %v9163, %v9204
      %v9246 = vmax.f32 %v9164, %v9205
      %v9247 = vmax.f32 %v9165, %v9206
      %v9248 = vmax.f32 %v9166, %v9207
      %v9249 = vmax.f32 %v9167, %v9208
      %v9250 = vmax.f32 %v9168, %v9209
      %v9251 = vmax.f32 %v9169, %v9210
      %v9252 = vmax.f32 %v9170, %v9211
      %v9253 = vmax.f32 %v9171, %v9212
      %v9254 = vmax.f32 %v9172, %v9213
      %v9255 = vmax.f32 %v9173, %v9214
      %v9256 = vmax.f32 %v9174, %v9215
      %v9257 = vmax.f32 %v9175, %v9216
      %v9258 = vmax.f32 %v9176, %v9217
      %v9259 = vmax.f32 %v9177, %v9218
      %v9260 = vmax.f32 %v9178, %v9219
      %v9261 = vmax.f32 %v9179, %v9220
      %v9262 = vmax.f32 %v9180, %v9221
      %v9263 = vmax.f32 %v9181, %v9222
      %v9264 = vmax.f32 %v9182, %v9223
      %v9265 = vmax.f32 %v9183, %v9224
      %v9266 = vmax.f32 %v9184, %v9225
      %v9267 = vmax.f32 %v9185, %v9226
      %v9268 = vmax.f32 %v9186, %v9227
      %v9269 = vmax.f32 %v9187, %v9228
      %v9270 = vmax.f32 %v9188, %v9229
      %v9271 = vmax.f32 %v9189, %v9230
      %v9272 = vsub.f32 %v8944, %v9231
      %v9273 = vsub.f32 %v8945, %v9232
      %v9274 = vsub.f32 %v8946, %v9233
      %v9275 = vsub.f32 %v8947, %v9234
      %v9276 = vsub.f32 %v8948, %v9235
      %v9277 = vsub.f32 %v8949, %v9236
      %v9278 = vsub.f32 %v8950, %v9237
      %v9279 = vsub.f32 %v8951, %v9238
      %v9280 = vsub.f32 %v8952, %v9239
      %v9281 = vsub.f32 %v8953, %v9240
      %v9282 = vsub.f32 %v8954, %v9241
      %v9283 = vsub.f32 %v8955, %v9242
      %v9284 = vsub.f32 %v8956, %v9243
      %v9285 = vsub.f32 %v8957, %v9244
      %v9286 = vsub.f32 %v8958, %v9245
      %v9287 = vsub.f32 %v8959, %v9246
      %v9288 = vsub.f32 %v8960, %v9247
      %v9289 = vsub.f32 %v8961, %v9248
      %v9290 = vsub.f32 %v8962, %v9249
      %v9291 = vsub.f32 %v8963, %v9250
      %v9292 = vsub.f32 %v8964, %v9251
      %v9293 = vsub.f32 %v8965, %v9252
      %v9294 = vsub.f32 %v8966, %v9253
      %v9295 = vsub.f32 %v8967, %v9254
      %v9296 = vsub.f32 %v8968, %v9255
      %v9297 = vsub.f32 %v8969, %v9256
      %v9298 = vsub.f32 %v8970, %v9257
      %v9299 = vsub.f32 %v8971, %v9258
      %v9300 = vsub.f32 %v8972, %v9259
      %v9301 = vsub.f32 %v8973, %v9260
      %v9302 = vsub.f32 %v8974, %v9261
      %v9303 = vsub.f32 %v8975, %v9262
      %v9304 = vsub.f32 %v8976, %v9263
      %v9305 = vsub.f32 %v8977, %v9264
      %v9306 = vsub.f32 %v8978, %v9265
      %v9307 = vsub.f32 %v8979, %v9266
      %v9308 = vsub.f32 %v8980, %v9267
      %v9309 = vsub.f32 %v8981, %v9268
      %v9310 = vsub.f32 %v8982, %v9269
      %v9311 = vsub.f32 %v8983, %v9270
      %v9312 = vsub.f32 %v8984, %v9271
      %v9313 = vmul.f32 %v9272, %v9272
      %v9314 = vmul.f32 %v9273, %v9273
      %v9315 = vmul.f32 %v9274, %v9274
      %v9316 = vmul.f32 %v9275, %v9275
      %v9317 = vmul.f32 %v9276, %v9276
      %v9318 = vmul.f32 %v9277, %v9277
      %v9319 = vmul.f32 %v9278, %v9278
      %v9320 = vmul.f32 %v9279, %v9279
      %v9321 = vmul.f32 %v9280, %v9280
      %v9322 = vmul.f32 %v9281, %v9281
      %v9323 = vmul.f32 %v9282, %v9282
      %v9324 = vmul.f32 %v9283, %v9283
      %v9325 = vmul.f32 %v9284, %v9284
      %v9326 = vmul.f32 %v9285, %v9285
      %v9327 = vmul.f32 %v9286, %v9286
      %v9328 = vmul.f32 %v9287, %v9287
      %v9329 = vmul.f32 %v9288, %v9288
      %v9330 = vmul.f32 %v9289, %v9289
      %v9331 = vmul.f32 %v9290, %v9290
      %v9332 = vmul.f32 %v9291, %v9291
      %v9333 = vmul.f32 %v9292, %v9292
      %v9334 = vmul.f32 %v9293, %v9293
      %v9335 = vmul.f32 %v9294, %v9294
      %v9336 = vmul.f32 %v9295, %v9295
      %v9337 = vmul.f32 %v9296, %v9296
      %v9338 = vmul.f32 %v9297, %v9297
      %v9339 = vmul.f32 %v9298, %v9298
      %v9340 = vmul.f32 %v9299, %v9299
      %v9341 = vmul.f32 %v9300, %v9300
      %v9342 = vmul.f32 %v9301, %v9301
      %v9343 = vmul.f32 %v9302, %v9302
      %v9344 = vmul.f32 %v9303, %v9303
      %v9345 = vmul.f32 %v9304, %v9304
      %v9346 = vmul.f32 %v9305, %v9305
      %v9347 = vmul.f32 %v9306, %v9306
      %v9348 = vmul.f32 %v9307, %v9307
      %v9349 = vmul.f32 %v9308, %v9308
      %v9350 = vmul.f32 %v9309, %v9309
      %v9351 = vmul.f32 %v9310, %v9310
      %v9352 = vmul.f32 %v9311, %v9311
      %v9353 = vmul.f32 %v9312, %v9312
      %v9354 = vld [vmem:[%s8] sm:$0xff]
      %v9355 = vld [vmem:[%s8 + $0x8] sm:$0xff]
      %v9356 = vld [vmem:[%s8 + $0x10] sm:$0xff]
      %v9357 = vld [vmem:[%s8 + $0x18] sm:$0xff]
      %v9358 = vld [vmem:[%s8 + $0x20] sm:$0xff]
      %v9359 = vld [vmem:[%s8 + $0x28] sm:$0xff]
      %v9360 = vld [vmem:[%s8 + $0x30] sm:$0xff]
      %v9361 = vld [vmem:[%s8 + $0x38] sm:$0xff]
      %v9362 = vld [vmem:[%s8 + $0x40] sm:$0xff]
      %v9363 = vld [vmem:[%s8 + $0x48] sm:$0xff]
      %v9364 = vld [vmem:[%s8 + $0x50] sm:$0xff]
      %v9365 = vld [vmem:[%s8 + $0x58] sm:$0xff]
      %v9366 = vld [vmem:[%s8 + $0x60] sm:$0xff]
      %v9367 = vld [vmem:[%s8 + $0x68] sm:$0xff]
      %v9368 = vld [vmem:[%s8 + $0x70] sm:$0xff]
      %v9369 = vld [vmem:[%s8 + $0x78] sm:$0xff]
      %v9370 = vld [vmem:[%s8 + $0x80] sm:$0xff]
      %v9371 = vld [vmem:[%s8 + $0x88] sm:$0xff]
      %v9372 = vld [vmem:[%s8 + $0x90] sm:$0xff]
      %v9373 = vld [vmem:[%s8 + $0x98] sm:$0xff]
      %v9374 = vld [vmem:[%s8 + $0xa0] sm:$0xff]
      %v9375 = vld [vmem:[%s8 + $0xa8] sm:$0xff]
      %v9376 = vld [vmem:[%s8 + $0xb0] sm:$0xff]
      %v9377 = vld [vmem:[%s8 + $0xb8] sm:$0xff]
      %v9378 = vld [vmem:[%s8 + $0xc0] sm:$0xff]
      %v9379 = vld [vmem:[%s8 + $0xc8] sm:$0xff]
      %v9380 = vld [vmem:[%s8 + $0xd0] sm:$0xff]
      %v9381 = vld [vmem:[%s8 + $0xd8] sm:$0xff]
      %v9382 = vld [vmem:[%s8 + $0xe0] sm:$0xff]
      %v9383 = vld [vmem:[%s8 + $0xe8] sm:$0xff]
      %v9384 = vld [vmem:[%s8 + $0xf0] sm:$0xff]
      %v9385 = vld [vmem:[%s8 + $0xf8] sm:$0xff]
      %v9386 = vld [vmem:[%s8 + $0x100] sm:$0xff]
      %v9387 = vld [vmem:[%s8 + $0x108] sm:$0xff]
      %v9388 = vld [vmem:[%s8 + $0x110] sm:$0xff]
      %v9389 = vld [vmem:[%s8 + $0x118] sm:$0xff]
      %v9390 = vld [vmem:[%s8 + $0x120] sm:$0xff]
      %v9391 = vld [vmem:[%s8 + $0x128] sm:$0xff]
      %v9392 = vld [vmem:[%s8 + $0x130] sm:$0xff]
      %v9393 = vld [vmem:[%s8 + $0x138] sm:$0xff]
      %v9394 = vld [vmem:[%s8 + $0x140] sm:$0xf]
      %9396 = vset.pattern.permute.xlu0 0
      %9397 = vperm.xlu0 %9396, %v9354
      %v9398 = vpop.permute.xlu0 %9397
      %9401 = vset.pattern.permute.xlu0 0
      %9402 = vperm.xlu0 %9401, %v9355
      %v9403 = vpop.permute.xlu0 %9402
      %9406 = vset.pattern.permute.xlu0 0
      %9407 = vperm.xlu0 %9406, %v9356
      %v9408 = vpop.permute.xlu0 %9407
      %9411 = vset.pattern.permute.xlu0 0
      %9412 = vperm.xlu0 %9411, %v9357
      %v9413 = vpop.permute.xlu0 %9412
      %9416 = vset.pattern.permute.xlu0 0
      %9417 = vperm.xlu0 %9416, %v9358
      %v9418 = vpop.permute.xlu0 %9417
      %9421 = vset.pattern.permute.xlu0 0
      %9422 = vperm.xlu0 %9421, %v9359
      %v9423 = vpop.permute.xlu0 %9422
      %9426 = vset.pattern.permute.xlu0 0
      %9427 = vperm.xlu0 %9426, %v9360
      %v9428 = vpop.permute.xlu0 %9427
      %9431 = vset.pattern.permute.xlu0 0
      %9432 = vperm.xlu0 %9431, %v9361
      %v9433 = vpop.permute.xlu0 %9432
      %9436 = vset.pattern.permute.xlu0 0
      %9437 = vperm.xlu0 %9436, %v9362
      %v9438 = vpop.permute.xlu0 %9437
      %9441 = vset.pattern.permute.xlu0 0
      %9442 = vperm.xlu0 %9441, %v9363
      %v9443 = vpop.permute.xlu0 %9442
      %9446 = vset.pattern.permute.xlu0 0
      %9447 = vperm.xlu0 %9446, %v9364
      %v9448 = vpop.permute.xlu0 %9447
      %9451 = vset.pattern.permute.xlu0 0
      %9452 = vperm.xlu0 %9451, %v9365
      %v9453 = vpop.permute.xlu0 %9452
      %9456 = vset.pattern.permute.xlu0 0
      %9457 = vperm.xlu0 %9456, %v9366
      %v9458 = vpop.permute.xlu0 %9457
      %9461 = vset.pattern.permute.xlu0 0
      %9462 = vperm.xlu0 %9461, %v9367
      %v9463 = vpop.permute.xlu0 %9462
      %9466 = vset.pattern.permute.xlu0 0
      %9467 = vperm.xlu0 %9466, %v9368
      %v9468 = vpop.permute.xlu0 %9467
      %9471 = vset.pattern.permute.xlu0 0
      %9472 = vperm.xlu0 %9471, %v9369
      %v9473 = vpop.permute.xlu0 %9472
      %9476 = vset.pattern.permute.xlu0 0
      %9477 = vperm.xlu0 %9476, %v9370
      %v9478 = vpop.permute.xlu0 %9477
      %9481 = vset.pattern.permute.xlu0 0
      %9482 = vperm.xlu0 %9481, %v9371
      %v9483 = vpop.permute.xlu0 %9482
      %9486 = vset.pattern.permute.xlu0 0
      %9487 = vperm.xlu0 %9486, %v9372
      %v9488 = vpop.permute.xlu0 %9487
      %9491 = vset.pattern.permute.xlu0 0
      %9492 = vperm.xlu0 %9491, %v9373
      %v9493 = vpop.permute.xlu0 %9492
      %9496 = vset.pattern.permute.xlu0 0
      %9497 = vperm.xlu0 %9496, %v9374
      %v9498 = vpop.permute.xlu0 %9497
      %9501 = vset.pattern.permute.xlu0 0
      %9502 = vperm.xlu0 %9501, %v9375
      %v9503 = vpop.permute.xlu0 %9502
      %9506 = vset.pattern.permute.xlu0 0
      %9507 = vperm.xlu0 %9506, %v9376
      %v9508 = vpop.permute.xlu0 %9507
      %9511 = vset.pattern.permute.xlu0 0
      %9512 = vperm.xlu0 %9511, %v9377
      %v9513 = vpop.permute.xlu0 %9512
      %9516 = vset.pattern.permute.xlu0 0
      %9517 = vperm.xlu0 %9516, %v9378
      %v9518 = vpop.permute.xlu0 %9517
      %9521 = vset.pattern.permute.xlu0 0
      %9522 = vperm.xlu0 %9521, %v9379
      %v9523 = vpop.permute.xlu0 %9522
      %9526 = vset.pattern.permute.xlu0 0
      %9527 = vperm.xlu0 %9526, %v9380
      %v9528 = vpop.permute.xlu0 %9527
      %9531 = vset.pattern.permute.xlu0 0
      %9532 = vperm.xlu0 %9531, %v9381
      %v9533 = vpop.permute.xlu0 %9532
      %9536 = vset.pattern.permute.xlu0 0
      %9537 = vperm.xlu0 %9536, %v9382
      %v9538 = vpop.permute.xlu0 %9537
      %9541 = vset.pattern.permute.xlu0 0
      %9542 = vperm.xlu0 %9541, %v9383
      %v9543 = vpop.permute.xlu0 %9542
      %9546 = vset.pattern.permute.xlu0 0
      %9547 = vperm.xlu0 %9546, %v9384
      %v9548 = vpop.permute.xlu0 %9547
      %9551 = vset.pattern.permute.xlu0 0
      %9552 = vperm.xlu0 %9551, %v9385
      %v9553 = vpop.permute.xlu0 %9552
      %9556 = vset.pattern.permute.xlu0 0
      %9557 = vperm.xlu0 %9556, %v9386
      %v9558 = vpop.permute.xlu0 %9557
      %9561 = vset.pattern.permute.xlu0 0
      %9562 = vperm.xlu0 %9561, %v9387
      %v9563 = vpop.permute.xlu0 %9562
      %9566 = vset.pattern.permute.xlu0 0
      %9567 = vperm.xlu0 %9566, %v9388
      %v9568 = vpop.permute.xlu0 %9567
      %9571 = vset.pattern.permute.xlu0 0
      %9572 = vperm.xlu0 %9571, %v9389
      %v9573 = vpop.permute.xlu0 %9572
      %9576 = vset.pattern.permute.xlu0 0
      %9577 = vperm.xlu0 %9576, %v9390
      %v9578 = vpop.permute.xlu0 %9577
      %9581 = vset.pattern.permute.xlu0 0
      %9582 = vperm.xlu0 %9581, %v9391
      %v9583 = vpop.permute.xlu0 %9582
      %9586 = vset.pattern.permute.xlu0 0
      %9587 = vperm.xlu0 %9586, %v9392
      %v9588 = vpop.permute.xlu0 %9587
      %9591 = vset.pattern.permute.xlu0 0
      %9592 = vperm.xlu0 %9591, %v9393
      %v9593 = vpop.permute.xlu0 %9592
      %9596 = vset.pattern.permute.xlu0 0
      %9597 = vperm.xlu0 %9596, %v9394
      %v9598 = vpop.permute.xlu0 %9597
      %v9600 = vmul.f32 %v9313, %v9398
      %v9601 = vmul.f32 %v9314, %v9403
      %v9602 = vmul.f32 %v9315, %v9408
      %v9603 = vmul.f32 %v9316, %v9413
      %v9604 = vmul.f32 %v9317, %v9418
      %v9605 = vmul.f32 %v9318, %v9423
      %v9606 = vmul.f32 %v9319, %v9428
      %v9607 = vmul.f32 %v9320, %v9433
      %v9608 = vmul.f32 %v9321, %v9438
      %v9609 = vmul.f32 %v9322, %v9443
      %v9610 = vmul.f32 %v9323, %v9448
      %v9611 = vmul.f32 %v9324, %v9453
      %v9612 = vmul.f32 %v9325, %v9458
      %v9613 = vmul.f32 %v9326, %v9463
      %v9614 = vmul.f32 %v9327, %v9468
      %v9615 = vmul.f32 %v9328, %v9473
      %v9616 = vmul.f32 %v9329, %v9478
      %v9617 = vmul.f32 %v9330, %v9483
      %v9618 = vmul.f32 %v9331, %v9488
      %v9619 = vmul.f32 %v9332, %v9493
      %v9620 = vmul.f32 %v9333, %v9498
      %v9621 = vmul.f32 %v9334, %v9503
      %v9622 = vmul.f32 %v9335, %v9508
      %v9623 = vmul.f32 %v9336, %v9513
      %v9624 = vmul.f32 %v9337, %v9518
      %v9625 = vmul.f32 %v9338, %v9523
      %v9626 = vmul.f32 %v9339, %v9528
      %v9627 = vmul.f32 %v9340, %v9533
      %v9628 = vmul.f32 %v9341, %v9538
      %v9629 = vmul.f32 %v9342, %v9543
      %v9630 = vmul.f32 %v9343, %v9548
      %v9631 = vmul.f32 %v9344, %v9553
      %v9632 = vmul.f32 %v9345, %v9558
      %v9633 = vmul.f32 %v9346, %v9563
      %v9634 = vmul.f32 %v9347, %v9568
      %v9635 = vmul.f32 %v9348, %v9573
      %v9636 = vmul.f32 %v9349, %v9578
      %v9637 = vmul.f32 %v9350, %v9583
      %v9638 = vmul.f32 %v9351, %v9588
      %v9639 = vmul.f32 %v9352, %v9593
      %v9640 = vmul.f32 %v9353, %v9598
      %v9641 = vadd.f32 %v9600, %v9601
      %v9642 = vadd.f32 %v9641, %v9602
      %v9643 = vadd.f32 %v9642, %v9603
      %v9644 = vadd.f32 %v9643, %v9604
      %v9645 = vadd.f32 %v9644, %v9605
      %v9646 = vadd.f32 %v9645, %v9606
      %v9647 = vadd.f32 %v9646, %v9607
      %v9648 = vadd.f32 %v9647, %v9608
      %v9649 = vadd.f32 %v9648, %v9609
      %v9650 = vadd.f32 %v9649, %v9610
      %v9651 = vadd.f32 %v9650, %v9611
      %v9652 = vadd.f32 %v9651, %v9612
      %v9653 = vadd.f32 %v9652, %v9613
      %v9654 = vadd.f32 %v9653, %v9614
      %v9655 = vadd.f32 %v9654, %v9615
      %v9656 = vadd.f32 %v9655, %v9616
      %v9657 = vadd.f32 %v9656, %v9617
      %v9658 = vadd.f32 %v9657, %v9618
      %v9659 = vadd.f32 %v9658, %v9619
      %v9660 = vadd.f32 %v9659, %v9620
      %v9661 = vadd.f32 %v9660, %v9621
      %v9662 = vadd.f32 %v9661, %v9622
      %v9663 = vadd.f32 %v9662, %v9623
      %v9664 = vadd.f32 %v9663, %v9624
      %v9665 = vadd.f32 %v9664, %v9625
      %v9666 = vadd.f32 %v9665, %v9626
      %v9667 = vadd.f32 %v9666, %v9627
      %v9668 = vadd.f32 %v9667, %v9628
      %v9669 = vadd.f32 %v9668, %v9629
      %v9670 = vadd.f32 %v9669, %v9630
      %v9671 = vadd.f32 %v9670, %v9631
      %v9672 = vadd.f32 %v9671, %v9632
      %v9673 = vadd.f32 %v9672, %v9633
      %v9674 = vadd.f32 %v9673, %v9634
      %v9675 = vadd.f32 %v9674, %v9635
      %v9676 = vadd.f32 %v9675, %v9636
      %v9677 = vadd.f32 %v9676, %v9637
      %v9678 = vadd.f32 %v9677, %v9638
      %v9679 = vadd.f32 %v9678, %v9639
      %vm9680 = vcmask 1043456
      %v9681 = vsel %vm9680, %v9640, 0.0
      %v9682 = vadd.f32 %v9679, %v9681
      %9683 = vadd.xlane.f32.xlu0 %v9682
      %v9684 = vpop.xlane.xlu0 %9683
      %v9685 = vrot.slane %v9684, 4
      %v9686 = vadd.f32 %v9684, %v9685
      %v9687 = vrot.slane %v9686, 2
      %v9688 = vadd.f32 %v9686, %v9687
      %v9689 = vrot.slane %v9688, 1
      %v9690 = vadd.f32 %v9688, %v9689
      %s9691 = vtos %v9690
      %v9692 = vlaneseq
      %v9693 = vshrl.u32 %v9692, 7
      %v9694 = vlaneseq
      %v9695 = vand.u32 %v9694, 127
      %vm9696 = vcmp.eq.s32.totalorder %v9693, 0
      %vm9697 = vcmp.eq.s32.totalorder %v9695, 0
      %vm9698 = vmand %vm9696, %vm9697
      %v9699 = vstv %s380
      %v9700 = vsel %vm9698, %v9699, 0.0
      %vm9701 = vcmp.eq.s32.totalorder %v9695, 1
      %vm9702 = vmand %vm9696, %vm9701
      %v9703 = vstv %s391
      %v9704 = vsel %vm9702, %v9703, 0.0
      %v9705 = vadd.f32 %v9700, %v9704
      %vm9706 = vcmp.eq.s32.totalorder %v9695, 2
      %vm9707 = vmand %vm9696, %vm9706
      %v9708 = vstv %s9691
      %v9709 = vsel %vm9707, %v9708, 0.0
      %v9710 = vadd.f32 %v9705, %v9709
      %9711 = vst [vmem:[%s364] sm:$0xff] %v9710
      %p9712 = scmp.lt.s32.totalorder %s20, 1
      %s9713 = scalar_select %p9712, %s20, 1
      %s9714 = smul.addr %s9713, 8
      %s9715 = scalar_lea.vmem %s9, %s9714
      // Predicated region
      $region57: #{combination_loss.1} parent=55 // pred_check
        %p9716 = pneg %p242
      $region58: #{combination_loss.1} parent=55 // pred_check_branch
        %9718 = sbr.rel (%p9716) target = $region60
      $region59: #{combination_loss.1} parent=55 // pred_region
        _
      $region60: #{combination_loss.1} parent=55 // pred_fallthru
        _
    $region56: #{combination_loss.1} parent=5 // pred_fallthru
      _
    %p9719 = scmp.le.s32.totalorder 2, %s15
    // Predicated region
    $region61: #{combination_loss.1} parent=5 // pred_check
      %p9720 = pneg %p9719
    $region62: #{combination_loss.1} parent=5 // pred_check_branch
      %9722 = sbr.rel (%p9720) target = $region64
    $region63: #{combination_loss.1} parent=5 // pred_region
      %s9723 = ssub.s32 %s15, 2
      // Predicated region
      $region65: #{combination_loss.1} parent=63 // pred_check
        %p9724 = pneg %p248
      $region66: #{combination_loss.1} parent=63 // pred_check_branch
        %9726 = sbr.rel (%p9724) target = $region68
      $region67: #{combination_loss.1} parent=63 // pred_region
        %p9727 = scmp.lt.s32.totalorder %s21, 1
        %s9728 = scalar_select %p9727, %s21, 1
        %s9729 = smul.addr %s9728, 8
        %s9730 = scalar_lea.vmem %s9, %s9729
      $region68: #{combination_loss.1} parent=63 // pred_fallthru
        _
    $region64: #{combination_loss.1} parent=5 // pred_fallthru
      _
  $region6: #{combination_loss.1} parent=0 // loop_footer
    %s19 = sadd.s32 1, %s15
  $region7: #{combination_loss.1} parent=0 // loop_footer_branch
    %14 = sbr.rel target = $region3
  $region8: #{combination_loss.1} parent=0 // loop_exit
    _

</llo_original>
